<compile_context>
chip_gen: v6e
topology: v6e:2x2x1
jax: 0.10.0
libtpu: 0.0.40
codegen_flags: <defaults>
</compile_context>

<pallas_src>
import functools

import jax
import jax.numpy as jnp
from jax import lax
from jax.experimental import pallas as pl
from jax.experimental.pallas import tpu as pltpu

# ------------------------- model configuration -----------------------------
IMG_SIZE = 16                      # image_encoder.img_size
PATCH = 4
EMBED_DIM = 32                     # transformer / prompt embedding dim
HE = WE = IMG_SIZE // PATCH        # 4x4 image-embedding grid
N_TOK = HE * WE
MLP_DIM = 4 * EMBED_DIM
UP_DIM = EMBED_DIM // 4            # channels after mask upscaling
NUM_MASK_TOKENS = 4
LANE = 128                         # one TPU lane tile
QKV_FUSED = 3 * LANE               # q|k|v each padded to a full 128-lane tile

PIXEL_MEAN = jnp.array([123.675, 116.28, 103.53], jnp.float32)
PIXEL_STD = jnp.array([58.395, 57.12, 57.375], jnp.float32)


# ------------------------- in-kernel helpers --------------------------------
def _ln(x, g, b):
    mu = jnp.mean(x, axis=-1, keepdims=True)
    var = jnp.mean((x - mu) ** 2, axis=-1, keepdims=True)
    return (x - mu) * lax.rsqrt(var + 1e-5) * g + b


def _sdpa(q, k, v, scale):
    # q @ k^T without an explicit transpose: contract the last dims of both.
    s = lax.dot_general(q, k, (((1,), (1,)), ((), ())),
                        preferred_element_type=jnp.float32) * scale
    s = s - jnp.max(s, axis=-1, keepdims=True)
    p = jnp.exp(s)
    # Exact reciprocal: review flagged approx=True as a (small) parity risk.
    p = p / jnp.sum(p, axis=-1, keepdims=True)
    return jnp.dot(p, v, preferred_element_type=jnp.float32)


def _mm(x, w, b=None):
    y = jnp.dot(x, w, preferred_element_type=jnp.float32)
    return y if b is None else y + b


# ----------------------------- Pallas kernels -------------------------------
def _encoder_kernel(patches_ref,
                    pw_ref, pb_ref, pos_ref, ln1g_ref, ln1b_ref,
                    qkvw_ref, qkvb_ref, ow_ref, ob_ref,
                    ln2g_ref, ln2b_ref, mw1_ref, mb1_ref, mw2_ref, mb2_ref,
                    nkw_ref, nkb_ref,
                    o_ref):
    """One grid step = one image: patch embed (1/pixel_std folded into the
    weights), LN1, lane-tile-aligned fused QKV, attention, O-proj, residual,
    LN2, MLP, residual, neck."""
    D = EMBED_DIM
    scale = 1.0 / (D ** 0.5)
    x = patches_ref[...]                                   # (N_TOK, 48)
    tok = _mm(x, pw_ref[...], pb_ref[...]) + pos_ref[...]  # (N_TOK, D)
    h = _ln(tok, ln1g_ref[...], ln1b_ref[...])
    qkv = _mm(h, qkvw_ref[...], qkvb_ref[...])             # (N_TOK, 384)
    q = qkv[:, 0:D]                                        # lane offsets 0/128/256
    k = qkv[:, LANE:LANE + D]
    v = qkv[:, 2 * LANE:2 * LANE + D]
    tok = tok + _mm(_sdpa(q, k, v, scale), ow_ref[...], ob_ref[...])
    h = _ln(tok, ln2g_ref[...], ln2b_ref[...])
    h = jax.nn.gelu(_mm(h, mw1_ref[...], mb1_ref[...]))
    tok = tok + _mm(h, mw2_ref[...], mb2_ref[...])
    o_ref[...] = _mm(tok, nkw_ref[...], nkb_ref[...])


def _decoder_kernel(*refs, multimask):
    """One grid step = one prompt: tokens->image cross-attn, LN, MLP, LN,
    image->tokens cross-attn, bilinear 4x upscale as a constant matmul,
    hypernetwork, lane-dense (nm, 256) mask matmul, IoU head."""
    masks_ref, iou_ref = refs[-2:]
    tok_ref, src_ref, dense_ref, pos_ref, up_mat_ref = refs[:5]
    (cq_w, cq_b, ck_w, ck_b, cv_w, cv_b, co_w, co_b,
     lna_g, lna_b, dm_w1, dm_b1, dm_w2, dm_b2, lnm_g, lnm_b,
     rq_w, rq_b, rk_w, rk_b, rv_w, rv_b, ro_w, ro_b,
     up_w, up_b, hy_w1, hy_b1, hy_w2, hy_b2,
     iou_w1, iou_b1, iou_w2, iou_b2) = [r[...] for r in refs[5:-2]]
    scale = 1.0 / (EMBED_DIM ** 0.5)

    tokens = tok_ref[...]                                  # (T, D)
    src = src_ref[...] + dense_ref[...]                    # (N_TOK, D) + dense prompt
    pos = pos_ref[...]                                     # (N_TOK, D)
    srcp = src + pos

    # tokens -> image cross-attention
    a = _sdpa(_mm(tokens, cq_w, cq_b), _mm(srcp, ck_w, ck_b),
              _mm(src, cv_w, cv_b), scale)
    tokens = _ln(tokens + _mm(a, co_w, co_b), lna_g, lna_b)
    h = jnp.maximum(_mm(tokens, dm_w1, dm_b1), 0.0)
    tokens = _ln(tokens + _mm(h, dm_w2, dm_b2), lnm_g, lnm_b)

    # image -> tokens cross-attention
    a = _sdpa(_mm(srcp, rq_w, rq_b), _mm(tokens, rk_w, rk_b),
              _mm(tokens, rv_w, rv_b), scale)
    src = src + _mm(a, ro_w, ro_b)

    # hypernetwork on the selected mask token(s)
    sel = tokens[2:2 + (NUM_MASK_TOKENS - 1), :] if multimask else tokens[1:2, :]
    hyper = jnp.maximum(_mm(sel, hy_w1, hy_b1), 0.0)
    hyper = _mm(hyper, hy_w2, hy_b2)                       # (nm, UP_DIM)

    # TODO(synk): real SAM uses stacked ConvTranspose2d here; stand-in is the
    # exact bilinear-resize operator (constant matmul) + 1x1 conv + GELU.
    up = jnp.dot(up_mat_ref[...], src, preferred_element_type=jnp.float32)  # (256, D)
    up = jax.nn.gelu(_mm(up, up_w, up_b))                  # (256, UP_DIM)
    masks_ref[...] = lax.dot_general(                      # lane-dense (nm, 256)
        hyper, up, (((1,), (1,)), ((), ())), preferred_element_type=jnp.float32)

    # IoU head
    iou = jnp.maximum(_mm(tokens[0:1, :], iou_w1, iou_b1), 0.0)
    iou_ref[...] = _mm(iou, iou_w2, iou_b2)                # (1, NUM_MASK_TOKENS)


# ------------------------------ parameters ----------------------------------
def init_params(key):
    keys = iter(jax.random.split(key, 80))

    def w(shape, s=0.02):
        return (s * jax.random.normal(next(keys), shape)).astype(jnp.float32)

    p = {}
    # --- image encoder (synthetic stand-in for injected SAM ViT encoder) ---
    p["patch_w"] = w((PATCH * PATCH * 3, EMBED_DIM)); p["patch_b"] = jnp.zeros((EMBED_DIM,))
    p["pos_embed"] = w((N_TOK, EMBED_DIM))
    p["ln1_g"] = jnp.ones((EMBED_DIM,)); p["ln1_b"] = jnp.zeros((EMBED_DIM,))
    for nm in ("q", "k", "v", "o"):
        p[f"attn_{nm}_w"] = w((EMBED_DIM, EMBED_DIM))
        p[f"attn_{nm}_b"] = jnp.zeros((EMBED_DIM,))
    p["ln2_g"] = jnp.ones((EMBED_DIM,)); p["ln2_b"] = jnp.zeros((EMBED_DIM,))
    p["mlp_w1"] = w((EMBED_DIM, MLP_DIM)); p["mlp_b1"] = jnp.zeros((MLP_DIM,))
    p["mlp_w2"] = w((MLP_DIM, EMBED_DIM)); p["mlp_b2"] = jnp.zeros((EMBED_DIM,))
    p["neck_w"] = w((EMBED_DIM, EMBED_DIM)); p["neck_b"] = jnp.zeros((EMBED_DIM,))
    # --- prompt encoder ---
    p["pe_gauss"] = w((2, EMBED_DIM // 2), s=1.0)
    p["point_embed_pos"] = w((EMBED_DIM,))
    p["point_embed_neg"] = w((EMBED_DIM,))
    p["not_a_point_embed"] = w((EMBED_DIM,))
    p["no_mask_embed"] = w((EMBED_DIM,))
    # --- mask decoder ---
    p["iou_token"] = w((1, EMBED_DIM))
    p["mask_tokens"] = w((NUM_MASK_TOKENS, EMBED_DIM))
    for nm in ("cq", "ck", "cv", "co", "rq", "rk", "rv", "ro"):
        p[f"{nm}_w"] = w((EMBED_DIM, EMBED_DIM))
        p[f"{nm}_b"] = jnp.zeros((EMBED_DIM,))
    p["ln_a_g"] = jnp.ones((EMBED_DIM,)); p["ln_a_b"] = jnp.zeros((EMBED_DIM,))
    p["ln_m_g"] = jnp.ones((EMBED_DIM,)); p["ln_m_b"] = jnp.zeros((EMBED_DIM,))
    p["dm_w1"] = w((EMBED_DIM, MLP_DIM)); p["dm_b1"] = jnp.zeros((MLP_DIM,))
    p["dm_w2"] = w((MLP_DIM, EMBED_DIM)); p["dm_b2"] = jnp.zeros((EMBED_DIM,))
    p["up_w"] = w((EMBED_DIM, UP_DIM)); p["up_b"] = jnp.zeros((UP_DIM,))
    p["hy_w1"] = w((EMBED_DIM, EMBED_DIM)); p["hy_b1"] = jnp.zeros((EMBED_DIM,))
    p["hy_w2"] = w((EMBED_DIM, UP_DIM)); p["hy_b2"] = jnp.zeros((UP_DIM,))
    p["iou_w1"] = w((EMBED_DIM, EMBED_DIM)); p["iou_b1"] = jnp.zeros((EMBED_DIM,))
    p["iou_w2"] = w((EMBED_DIM, NUM_MASK_TOKENS)); p["iou_b2"] = jnp.zeros((NUM_MASK_TOKENS,))
    return p


def _pe_encoding(gauss, coords01):
    # random-Fourier positional encoding; the (…,2)@(2,16) matmul is tiny glue.
    c = 2.0 * coords01 - 1.0
    c = c @ gauss
    c = 2.0 * jnp.pi * c
    return jnp.concatenate([jnp.sin(c), jnp.cos(c)], axis=-1)        # (..., D)


def _bilinear_upsample_matrix():
    """Exact (IMG*IMG, N_TOK) matrix equivalent of the bilinear 4x spatial resize."""
    basis = jnp.eye(N_TOK, dtype=jnp.float32).reshape(N_TOK, HE, WE)
    up = jax.image.resize(basis, (N_TOK, IMG_SIZE, IMG_SIZE), method="bilinear")
    return up.reshape(N_TOK, IMG_SIZE * IMG_SIZE).T


def prepare_params(p):
    """One-time (untraced) parameter prep: 1/pixel_std fold, QKV lane-tile pad,
    bias reshapes, bilinear-upscale matrix and dense positional encoding.
    Hoisted out of the traced forward so it is never re-done per call."""
    r2 = lambda a: jnp.asarray(a, jnp.float32).reshape(1, -1)
    prep = dict(p)

    # fold 1/pixel_std into the patch-embed weight rows (channel is fastest axis)
    std_rows = jnp.tile(PIXEL_STD, (PATCH * PATCH,))          # (48,)
    pw = p["patch_w"] / std_rows[:, None]

    # q|k|v each padded to a full 128-lane tile -> splits are tile-aligned
    padw = LANE - EMBED_DIM
    pad_w = lambda a: jnp.pad(a, ((0, 0), (0, padw)))
    pad_b = lambda a: jnp.pad(a, ((0, padw),))                # zero-padded bias
    qkv_w = jnp.concatenate([pad_w(p["attn_q_w"]), pad_w(p["attn_k_w"]),
                             pad_w(p["attn_v_w"])], axis=1)   # (D, 384)
    qkv_b = jnp.concatenate([pad_b(p["attn_q_b"]), pad_b(p["attn_k_b"]),
                             pad_b(p["attn_v_b"])])           # (384,)

    prep["enc_weights"] = [
        pw, r2(p["patch_b"]), p["pos_embed"],
        r2(p["ln1_g"]), r2(p["ln1_b"]),
        qkv_w, r2(qkv_b),
        p["attn_o_w"], r2(p["attn_o_b"]),
        r2(p["ln2_g"]), r2(p["ln2_b"]),
        p["mlp_w1"], r2(p["mlp_b1"]),
        p["mlp_w2"], r2(p["mlp_b2"]),
        p["neck_w"], r2(p["neck_b"]),
    ]
    prep["dec_weights"] = [
        p["cq_w"], r2(p["cq_b"]), p["ck_w"], r2(p["ck_b"]),
        p["cv_w"], r2(p["cv_b"]), p["co_w"], r2(p["co_b"]),
        r2(p["ln_a_g"]), r2(p["ln_a_b"]),
        p["dm_w1"], r2(p["dm_b1"]), p["dm_w2"], r2(p["dm_b2"]),
        r2(p["ln_m_g"]), r2(p["ln_m_b"]),
        p["rq_w"], r2(p["rq_b"]), p["rk_w"], r2(p["rk_b"]),
        p["rv_w"], r2(p["rv_b"]), p["ro_w"], r2(p["ro_b"]),
        p["up_w"], r2(p["up_b"]),
        p["hy_w1"], r2(p["hy_b1"]), p["hy_w2"], r2(p["hy_b2"]),
        p["iou_w1"], r2(p["iou_b1"]), p["iou_w2"], r2(p["iou_b2"]),
    ]
    prep["up_mat"] = _bilinear_upsample_matrix()              # (256, N_TOK)

    # dense positional encoding of the embedding grid, token-major (N_TOK, D)
    ys = (jnp.arange(HE, dtype=jnp.float32) + 0.5) / HE
    xs = (jnp.arange(WE, dtype=jnp.float32) + 0.5) / WE
    gy, gx = jnp.meshgrid(ys, xs, indexing="ij")
    pe = _pe_encoding(p["pe_gauss"], jnp.stack([gx, gy], axis=-1))   # (HE, WE, D)
    prep["dense_pe"] = pe.reshape(N_TOK, EMBED_DIM)
    return prep


# ------------------------------ sub-modules ----------------------------------
def preprocess(x):
    """Subtract the per-channel pixel mean and zero-pad to a square input.
    The 1/pixel_std scaling is folded into the patch-embedding weights (once,
    in prepare_params), so the padded region stays exactly zero — same
    semantics as the reference normalize-then-pad."""
    x = x - PIXEL_MEAN.reshape(1, 3, 1, 1)
    h, w = x.shape[-2:]
    x = jnp.pad(x, ((0, 0), (0, 0), (0, IMG_SIZE - h), (0, IMG_SIZE - w)))
    return x.astype(jnp.float32)


def image_encoder(prep, x):
    """Synthetic ViT-style encoder, fully fused into one Pallas kernel with a
    grid over the batch; weights stay resident via constant index_maps."""
    B = x.shape[0]
    patches = x.reshape(B, 3, HE, PATCH, WE, PATCH)
    patches = patches.transpose(0, 2, 4, 3, 5, 1).reshape(B, N_TOK, PATCH * PATCH * 3)
    weights = prep["enc_weights"]
    in_specs = [pl.BlockSpec((None, N_TOK, PATCH * PATCH * 3), lambda b: (b, 0, 0))]
    in_specs += [pl.BlockSpec(w.shape, lambda b: (0, 0)) for w in weights]
    tok = pl.pallas_call(
        _encoder_kernel,
        grid=(B,),
        in_specs=in_specs,
        out_specs=pl.BlockSpec((None, N_TOK, EMBED_DIM), lambda b: (b, 0, 0)),
        out_shape=jax.ShapeDtypeStruct((B, N_TOK, EMBED_DIM), jnp.float32),
        compiler_params=pltpu.CompilerParams(dimension_semantics=("parallel",)),
    )(patches, *weights)
    return tok   # token-major (B, N_TOK, D): no NCHW round-trip between kernels


def prompt_encoder(prep, points, labels):
    """Point prompts -> (sparse (B, Np+1, D), dense (1, D)) embeddings.
    The dense (no-mask) embedding is the same vector for every prompt, so it
    is returned in broadcastable form and added inside the decoder kernel."""
    B = points.shape[0]
    pts = points + 0.5
    pts = jnp.concatenate([pts, jnp.zeros((B, 1, 2), pts.dtype)], axis=1)   # pad point
    lbl = jnp.concatenate([labels, -jnp.ones((B, 1), labels.dtype)], axis=1)
    pe = _pe_encoding(prep["pe_gauss"], pts / float(IMG_SIZE))
    lbl = lbl[..., None]
    pe = jnp.where(lbl == -1, 0.0, pe)
    pe = pe + jnp.where(lbl == -1, prep["not_a_point_embed"][None, None], 0.0)
    pe = pe + jnp.where(lbl == 0, prep["point_embed_neg"][None, None], 0.0)
    pe = pe + jnp.where(lbl == 1, prep["point_embed_pos"][None, None], 0.0)
    dense = prep["no_mask_embed"].reshape(1, EMBED_DIM)
    return pe, dense


def mask_decoder(prep, image_embeddings, image_pe, sparse, dense,
                 multimask_output=False):
    """Synthetic two-way-transformer mask decoder, one fused Pallas kernel with
    a grid over prompts. image_embeddings is token-major (B_img, N_TOK, D);
    when there are more prompts than images (forward_type=1) the src
    BlockSpec maps prompt g -> image g % B_img instead of tiling in HBM."""
    Bp = sparse.shape[0]
    n_img = image_embeddings.shape[0]
    out_tokens = jnp.concatenate([prep["iou_token"], prep["mask_tokens"]], axis=0)
    tokens0 = jnp.concatenate(
        [jnp.broadcast_to(out_tokens[None], (Bp,) + out_tokens.shape), sparse], axis=1)
    T = tokens0.shape[1]
    nm = NUM_MASK_TOKENS - 1 if multimask_output else 1
    weights = prep["dec_weights"]
    up_mat = prep["up_mat"]

    in_specs = [
        pl.BlockSpec((None, T, EMBED_DIM), lambda b: (b, 0, 0)),               # tokens
        pl.BlockSpec((None, N_TOK, EMBED_DIM), lambda b: (b % n_img, 0, 0)),   # src
        pl.BlockSpec(dense.shape, lambda b: (0, 0)),                           # no-mask
        pl.BlockSpec(image_pe.shape, lambda b: (0, 0)),                        # pos PE
        pl.BlockSpec(up_mat.shape, lambda b: (0, 0)),                          # upscale
    ]
    in_specs += [pl.BlockSpec(w.shape, lambda b: (0, 0)) for w in weights]

    masks, iou = pl.pallas_call(
        functools.partial(_decoder_kernel, multimask=multimask_output),
        grid=(Bp,),
        in_specs=in_specs,
        out_specs=(
            pl.BlockSpec((None, nm, IMG_SIZE * IMG_SIZE), lambda b: (b, 0, 0)),
            pl.BlockSpec((None, 1, NUM_MASK_TOKENS), lambda b: (b, 0, 0)),
        ),
        out_shape=(
            jax.ShapeDtypeStruct((Bp, nm, IMG_SIZE * IMG_SIZE), jnp.float32),
            jax.ShapeDtypeStruct((Bp, 1, NUM_MASK_TOKENS), jnp.float32),
        ),
        compiler_params=pltpu.CompilerParams(dimension_semantics=("parallel",)),
    )(tokens0, image_embeddings, dense, image_pe, up_mat, *weights)

    masks = masks.reshape(Bp, nm, IMG_SIZE, IMG_SIZE)                # low-res masks
    iou = iou.reshape(Bp, NUM_MASK_TOKENS)
    iou = iou[:, 1:NUM_MASK_TOKENS] if multimask_output else iou[:, 0:1]
    return masks, iou


# ------------------------------ AdaptorSAM -----------------------------------
def adaptor_sam_forward(prep, image, point_prompt, forward_type=0, upscale_output=True):
    image = preprocess(image)
    emb = image_encoder(prep, image)                 # (B, N_TOK, D) token-major
    dense_pe = prep["dense_pe"]                      # (N_TOK, D)
    points, labels = point_prompt
    B = image.shape[0]

    def decode(pts, lbls):
        sparse, dense = prompt_encoder(prep, pts, lbls)
        low, iou = mask_decoder(prep, emb, dense_pe, sparse, dense,
                                multimask_output=False)
        if upscale_output:
            Bp, C = low.shape[:2]
            low = jax.image.resize(low, (Bp, C, image.shape[2], image.shape[3]),
                                   method="bilinear")
        return low, iou

    if forward_type == 0:
        return decode(points, labels)
    elif forward_type == 1:
        # Prompt-major flattening: one decoder launch for all B*Np prompts; the
        # decoder's src index_map (g % B) re-uses each image embedding directly
        # from HBM instead of tiling it Np times.
        Np = points.shape[1]
        pts_b = points.transpose(1, 0, 2).reshape(B * Np, 1, 2)
        lbl_b = labels.T.reshape(B * Np, 1)
        low, iou = decode(pts_b, lbl_b)
        group_masks = [low[i * B:(i + 1) * B] for i in range(Np)]
        group_ious = [iou[i * B:(i + 1) * B] for i in range(Np)]
        return group_masks, group_ious
    else:
        raise NotImplementedError


# --------------------------------- main ---------------------------------------
if __name__ == "__main__":
    params = init_params(jax.random.PRNGKey(42))
    prep = prepare_params(params)      # one-time weight prep, outside the traced forward

    key = jax.random.PRNGKey(0)
    k_img, k_pts = jax.random.split(key, 2)
    B, Np, H_in, W_in = 2, 2, 12, 12
    image = jax.random.uniform(k_img, (B, 3, H_in, W_in), jnp.float32, 0.0, 255.0)
    points = jax.random.uniform(k_pts, (B, Np, 2), jnp.float32, 0.0, float(H_in))
    labels = jnp.ones((B, Np), jnp.int32)

    fwd0 = jax.jit(lambda img, pts, lbl: adaptor_sam_forward(
        prep, img, (pts, lbl), forward_type=0, upscale_output=True))
    masks, iou = fwd0(image, points, labels)
    jax.block_until_ready((masks, iou))
    assert masks.shape == (B, 1, IMG_SIZE, IMG_SIZE)
    assert iou.shape == (B, 1)

    fwd1 = jax.jit(lambda img, pts, lbl: adaptor_sam_forward(
        prep, img, (pts, lbl), forward_type=1, upscale_output=True))
    group_masks, group_ious = fwd1(image, points, labels)
    jax.block_until_ready((group_masks, group_ious))
    assert len(group_masks) == Np and group_masks[0].shape == (B, 1, IMG_SIZE, IMG_SIZE)
    assert len(group_ious) == Np and group_ious[0].shape == (B, 1)

    print("KERNEL_OK")
</pallas_src>

<mosaic_0001>
module attributes {stable_mosaic.version = 11 : i64} {
  func.func @_encoder_kernel(%arg0: i32, %arg1: memref<1x16x48xf32, #tpu.memory_space<vmem>>, %arg2: memref<48x32xf32, #tpu.memory_space<vmem>>, %arg3: memref<1x32xf32, #tpu.memory_space<vmem>>, %arg4: memref<16x32xf32, #tpu.memory_space<vmem>>, %arg5: memref<1x32xf32, #tpu.memory_space<vmem>>, %arg6: memref<1x32xf32, #tpu.memory_space<vmem>>, %arg7: memref<32x384xf32, #tpu.memory_space<vmem>>, %arg8: memref<1x384xf32, #tpu.memory_space<vmem>>, %arg9: memref<32x32xf32, #tpu.memory_space<vmem>>, %arg10: memref<1x32xf32, #tpu.memory_space<vmem>>, %arg11: memref<1x32xf32, #tpu.memory_space<vmem>>, %arg12: memref<1x32xf32, #tpu.memory_space<vmem>>, %arg13: memref<32x128xf32, #tpu.memory_space<vmem>>, %arg14: memref<1x128xf32, #tpu.memory_space<vmem>>, %arg15: memref<128x32xf32, #tpu.memory_space<vmem>>, %arg16: memref<1x32xf32, #tpu.memory_space<vmem>>, %arg17: memref<32x32xf32, #tpu.memory_space<vmem>>, %arg18: memref<1x32xf32, #tpu.memory_space<vmem>>, %arg19: memref<1x16x32xf32, #tpu.memory_space<vmem>>) attributes {dimension_semantics = [#tpu.dimension_semantics<parallel>], iteration_bounds = array<i64: 2>, scalar_prefetch = 0 : i64, scratch_operands = 0 : i64, tpu.core_type = #tpu.core_type<tc>, window_params = [{transform_indices = @transform_0, window_bounds = array<i64: 1, 16, 48>}, {pipeline_mode = #tpu.pipeline_mode<synchronous>, transform_indices = @transform_1, window_bounds = array<i64: 48, 32>}, {pipeline_mode = #tpu.pipeline_mode<synchronous>, transform_indices = @transform_2, window_bounds = array<i64: 1, 32>}, {pipeline_mode = #tpu.pipeline_mode<synchronous>, transform_indices = @transform_3, window_bounds = array<i64: 16, 32>}, {pipeline_mode = #tpu.pipeline_mode<synchronous>, transform_indices = @transform_4, window_bounds = array<i64: 1, 32>}, {pipeline_mode = #tpu.pipeline_mode<synchronous>, transform_indices = @transform_5, window_bounds = array<i64: 1, 32>}, {pipeline_mode = #tpu.pipeline_mode<synchronous>, transform_indices = @transform_6, window_bounds = array<i64: 32, 384>}, {pipeline_mode = #tpu.pipeline_mode<synchronous>, transform_indices = @transform_7, window_bounds = array<i64: 1, 384>}, {pipeline_mode = #tpu.pipeline_mode<synchronous>, transform_indices = @transform_8, window_bounds = array<i64: 32, 32>}, {pipeline_mode = #tpu.pipeline_mode<synchronous>, transform_indices = @transform_9, window_bounds = array<i64: 1, 32>}, {pipeline_mode = #tpu.pipeline_mode<synchronous>, transform_indices = @transform_10, window_bounds = array<i64: 1, 32>}, {pipeline_mode = #tpu.pipeline_mode<synchronous>, transform_indices = @transform_11, window_bounds = array<i64: 1, 32>}, {pipeline_mode = #tpu.pipeline_mode<synchronous>, transform_indices = @transform_12, window_bounds = array<i64: 32, 128>}, {pipeline_mode = #tpu.pipeline_mode<synchronous>, transform_indices = @transform_13, window_bounds = array<i64: 1, 128>}, {pipeline_mode = #tpu.pipeline_mode<synchronous>, transform_indices = @transform_14, window_bounds = array<i64: 128, 32>}, {pipeline_mode = #tpu.pipeline_mode<synchronous>, transform_indices = @transform_15, window_bounds = array<i64: 1, 32>}, {pipeline_mode = #tpu.pipeline_mode<synchronous>, transform_indices = @transform_16, window_bounds = array<i64: 32, 32>}, {pipeline_mode = #tpu.pipeline_mode<synchronous>, transform_indices = @transform_17, window_bounds = array<i64: 1, 32>}, {transform_indices = @transform_18, window_bounds = array<i64: 1, 16, 32>}]} {
    %c0 = arith.constant 0 : index
    %c0_0 = arith.constant 0 : index
    %c0_1 = arith.constant 0 : index
    %0 = vector.load %arg1[%c0, %c0_0, %c0_1] : memref<1x16x48xf32, #tpu.memory_space<vmem>>, vector<1x16x48xf32>
    %1 = vector.shape_cast %0 : vector<1x16x48xf32> to vector<16x48xf32>
    %c0_2 = arith.constant 0 : index
    %c0_3 = arith.constant 0 : index
    %2 = vector.load %arg2[%c0_2, %c0_3] : memref<48x32xf32, #tpu.memory_space<vmem>>, vector<48x32xf32>
    %c0_4 = arith.constant 0 : index
    %c0_5 = arith.constant 0 : index
    %3 = vector.load %arg3[%c0_4, %c0_5] : memref<1x32xf32, #tpu.memory_space<vmem>>, vector<1x32xf32>
    %cst = arith.constant dense<0.000000e+00> : vector<16x32xf32>
    %4 = tpu.matmul %1, %2, %cst {dimension_numbers = #tpu.dot_dimension_numbers<[1], [0], [0], [1], [0, 0, 1, 1], [], []>} : vector<16x48xf32>, vector<48x32xf32>, vector<16x32xf32> -> vector<16x32xf32>
    %5 = vector.broadcast %3 : vector<1x32xf32> to vector<16x32xf32>
    %6 = arith.addf %4, %5 : vector<16x32xf32>
    %c0_6 = arith.constant 0 : index
    %c0_7 = arith.constant 0 : index
    %7 = vector.load %arg4[%c0_6, %c0_7] : memref<16x32xf32, #tpu.memory_space<vmem>>, vector<16x32xf32>
    %8 = arith.addf %6, %7 : vector<16x32xf32>
    %c0_8 = arith.constant 0 : index
    %c0_9 = arith.constant 0 : index
    %9 = vector.load %arg5[%c0_8, %c0_9] : memref<1x32xf32, #tpu.memory_space<vmem>>, vector<1x32xf32>
    %c0_10 = arith.constant 0 : index
    %c0_11 = arith.constant 0 : index
    %10 = vector.load %arg6[%c0_10, %c0_11] : memref<1x32xf32, #tpu.memory_space<vmem>>, vector<1x32xf32>
    %cst_12 = arith.constant dense<0.000000e+00> : vector<16xf32>
    %11 = vector.multi_reduction <add>, %8, %cst_12 [1] : vector<16x32xf32> to vector<16xf32>
    %12 = vector.shape_cast %11 : vector<16xf32> to vector<16x1xf32>
    %cst_13 = arith.constant 3.200000e+01 : f32
    %13 = vector.broadcast %cst_13 : f32 to vector<16x1xf32>
    %14 = arith.divf %12, %13 : vector<16x1xf32>
    %15 = vector.broadcast %14 : vector<16x1xf32> to vector<16x32xf32>
    %16 = arith.subf %8, %15 : vector<16x32xf32>
    %17 = arith.mulf %16, %16 : vector<16x32xf32>
    %cst_14 = arith.constant dense<0.000000e+00> : vector<16xf32>
    %18 = vector.multi_reduction <add>, %17, %cst_14 [1] : vector<16x32xf32> to vector<16xf32>
    %19 = vector.shape_cast %18 : vector<16xf32> to vector<16x1xf32>
    %cst_15 = arith.constant 3.200000e+01 : f32
    %20 = vector.broadcast %cst_15 : f32 to vector<16x1xf32>
    %21 = arith.divf %19, %20 : vector<16x1xf32>
    %22 = vector.broadcast %14 : vector<16x1xf32> to vector<16x32xf32>
    %23 = arith.subf %8, %22 : vector<16x32xf32>
    %cst_16 = arith.constant 9.99999974E-6 : f32
    %24 = vector.broadcast %cst_16 : f32 to vector<16x1xf32>
    %25 = arith.addf %21, %24 : vector<16x1xf32>
    %26 = math.rsqrt %25 : vector<16x1xf32>
    %27 = vector.broadcast %26 : vector<16x1xf32> to vector<16x32xf32>
    %28 = arith.mulf %23, %27 : vector<16x32xf32>
    %29 = vector.broadcast %9 : vector<1x32xf32> to vector<16x32xf32>
    %30 = arith.mulf %28, %29 : vector<16x32xf32>
    %31 = vector.broadcast %10 : vector<1x32xf32> to vector<16x32xf32>
    %32 = arith.addf %30, %31 : vector<16x32xf32>
    %c0_17 = arith.constant 0 : index
    %c0_18 = arith.constant 0 : index
    %33 = vector.load %arg7[%c0_17, %c0_18] : memref<32x384xf32, #tpu.memory_space<vmem>>, vector<32x384xf32>
    %c0_19 = arith.constant 0 : index
    %c0_20 = arith.constant 0 : index
    %34 = vector.load %arg8[%c0_19, %c0_20] : memref<1x384xf32, #tpu.memory_space<vmem>>, vector<1x384xf32>
    %cst_21 = arith.constant dense<0.000000e+00> : vector<16x384xf32>
    %35 = tpu.matmul %32, %33, %cst_21 {dimension_numbers = #tpu.dot_dimension_numbers<[1], [0], [0], [1], [0, 0, 1, 1], [], []>} : vector<16x32xf32>, vector<32x384xf32>, vector<16x384xf32> -> vector<16x384xf32>
    %36 = vector.broadcast %34 : vector<1x384xf32> to vector<16x384xf32>
    %37 = arith.addf %35, %36 : vector<16x384xf32>
    %38 = vector.extract_strided_slice %37 {offsets = [0, 0], sizes = [16, 32], strides = [1, 1]} : vector<16x384xf32> to vector<16x32xf32>
    %39 = vector.extract_strided_slice %37 {offsets = [0, 128], sizes = [16, 32], strides = [1, 1]} : vector<16x384xf32> to vector<16x32xf32>
    %40 = vector.extract_strided_slice %37 {offsets = [0, 256], sizes = [16, 32], strides = [1, 1]} : vector<16x384xf32> to vector<16x32xf32>
    %cst_22 = arith.constant dense<0.000000e+00> : vector<16x16xf32>
    %41 = tpu.matmul %38, %39, %cst_22 {dimension_numbers = #tpu.dot_dimension_numbers<[1], [1], [0], [0], [0, 0, 1, 0], [], []>} : vector<16x32xf32>, vector<16x32xf32>, vector<16x16xf32> -> vector<16x16xf32>
    %cst_23 = arith.constant 0.176776692 : f32
    %42 = vector.broadcast %cst_23 : f32 to vector<16x16xf32>
    %43 = arith.mulf %41, %42 : vector<16x16xf32>
    %cst_24 = arith.constant dense<0xFF800000> : vector<16xf32>
    %44 = vector.multi_reduction <maximumf>, %43, %cst_24 [1] : vector<16x16xf32> to vector<16xf32>
    %45 = vector.shape_cast %44 : vector<16xf32> to vector<16x1xf32>
    %46 = vector.broadcast %45 : vector<16x1xf32> to vector<16x16xf32>
    %47 = arith.subf %43, %46 : vector<16x16xf32>
    %48 = math.exp %47 : vector<16x16xf32>
    %cst_25 = arith.constant dense<0.000000e+00> : vector<16xf32>
    %49 = vector.multi_reduction <add>, %48, %cst_25 [1] : vector<16x16xf32> to vector<16xf32>
    %50 = vector.shape_cast %49 : vector<16xf32> to vector<16x1xf32>
    %51 = vector.broadcast %50 : vector<16x1xf32> to vector<16x16xf32>
    %52 = arith.divf %48, %51 : vector<16x16xf32>
    %cst_26 = arith.constant dense<0.000000e+00> : vector<16x32xf32>
    %53 = tpu.matmul %52, %40, %cst_26 {dimension_numbers = #tpu.dot_dimension_numbers<[1], [0], [0], [1], [0, 0, 1, 1], [], []>} : vector<16x16xf32>, vector<16x32xf32>, vector<16x32xf32> -> vector<16x32xf32>
    %c0_27 = arith.constant 0 : index
    %c0_28 = arith.constant 0 : index
    %54 = vector.load %arg9[%c0_27, %c0_28] : memref<32x32xf32, #tpu.memory_space<vmem>>, vector<32x32xf32>
    %c0_29 = arith.constant 0 : index
    %c0_30 = arith.constant 0 : index
    %55 = vector.load %arg10[%c0_29, %c0_30] : memref<1x32xf32, #tpu.memory_space<vmem>>, vector<1x32xf32>
    %cst_31 = arith.constant dense<0.000000e+00> : vector<16x32xf32>
    %56 = tpu.matmul %53, %54, %cst_31 {dimension_numbers = #tpu.dot_dimension_numbers<[1], [0], [0], [1], [0, 0, 1, 1], [], []>} : vector<16x32xf32>, vector<32x32xf32>, vector<16x32xf32> -> vector<16x32xf32>
    %57 = vector.broadcast %55 : vector<1x32xf32> to vector<16x32xf32>
    %58 = arith.addf %56, %57 : vector<16x32xf32>
    %59 = arith.addf %8, %58 : vector<16x32xf32>
    %c0_32 = arith.constant 0 : index
    %c0_33 = arith.constant 0 : index
    %60 = vector.load %arg11[%c0_32, %c0_33] : memref<1x32xf32, #tpu.memory_space<vmem>>, vector<1x32xf32>
    %c0_34 = arith.constant 0 : index
    %c0_35 = arith.constant 0 : index
    %61 = vector.load %arg12[%c0_34, %c0_35] : memref<1x32xf32, #tpu.memory_space<vmem>>, vector<1x32xf32>
    %cst_36 = arith.constant dense<0.000000e+00> : vector<16xf32>
    %62 = vector.multi_reduction <add>, %59, %cst_36 [1] : vector<16x32xf32> to vector<16xf32>
    %63 = vector.shape_cast %62 : vector<16xf32> to vector<16x1xf32>
    %cst_37 = arith.constant 3.200000e+01 : f32
    %64 = vector.broadcast %cst_37 : f32 to vector<16x1xf32>
    %65 = arith.divf %63, %64 : vector<16x1xf32>
    %66 = vector.broadcast %65 : vector<16x1xf32> to vector<16x32xf32>
    %67 = arith.subf %59, %66 : vector<16x32xf32>
    %68 = arith.mulf %67, %67 : vector<16x32xf32>
    %cst_38 = arith.constant dense<0.000000e+00> : vector<16xf32>
    %69 = vector.multi_reduction <add>, %68, %cst_38 [1] : vector<16x32xf32> to vector<16xf32>
    %70 = vector.shape_cast %69 : vector<16xf32> to vector<16x1xf32>
    %cst_39 = arith.constant 3.200000e+01 : f32
    %71 = vector.broadcast %cst_39 : f32 to vector<16x1xf32>
    %72 = arith.divf %70, %71 : vector<16x1xf32>
    %73 = vector.broadcast %65 : vector<16x1xf32> to vector<16x32xf32>
    %74 = arith.subf %59, %73 : vector<16x32xf32>
    %cst_40 = arith.constant 9.99999974E-6 : f32
    %75 = vector.broadcast %cst_40 : f32 to vector<16x1xf32>
    %76 = arith.addf %72, %75 : vector<16x1xf32>
    %77 = math.rsqrt %76 : vector<16x1xf32>
    %78 = vector.broadcast %77 : vector<16x1xf32> to vector<16x32xf32>
    %79 = arith.mulf %74, %78 : vector<16x32xf32>
    %80 = vector.broadcast %60 : vector<1x32xf32> to vector<16x32xf32>
    %81 = arith.mulf %79, %80 : vector<16x32xf32>
    %82 = vector.broadcast %61 : vector<1x32xf32> to vector<16x32xf32>
    %83 = arith.addf %81, %82 : vector<16x32xf32>
    %c0_41 = arith.constant 0 : index
    %c0_42 = arith.constant 0 : index
    %84 = vector.load %arg13[%c0_41, %c0_42] : memref<32x128xf32, #tpu.memory_space<vmem>>, vector<32x128xf32>
    %c0_43 = arith.constant 0 : index
    %c0_44 = arith.constant 0 : index
    %85 = vector.load %arg14[%c0_43, %c0_44] : memref<1x128xf32, #tpu.memory_space<vmem>>, vector<1x128xf32>
    %cst_45 = arith.constant dense<0.000000e+00> : vector<16x128xf32>
    %86 = tpu.matmul %83, %84, %cst_45 {dimension_numbers = #tpu.dot_dimension_numbers<[1], [0], [0], [1], [0, 0, 1, 1], [], []>} : vector<16x32xf32>, vector<32x128xf32>, vector<16x128xf32> -> vector<16x128xf32>
    %87 = vector.broadcast %85 : vector<1x128xf32> to vector<16x128xf32>
    %88 = arith.addf %86, %87 : vector<16x128xf32>
    %89 = arith.mulf %88, %88 : vector<16x128xf32>
    %90 = arith.mulf %88, %89 : vector<16x128xf32>
    %cst_46 = arith.constant 4.471500e-02 : f32
    %91 = vector.broadcast %cst_46 : f32 to vector<16x128xf32>
    %92 = arith.mulf %91, %90 : vector<16x128xf32>
    %93 = arith.addf %88, %92 : vector<16x128xf32>
    %cst_47 = arith.constant 0.797884583 : f32
    %94 = vector.broadcast %cst_47 : f32 to vector<16x128xf32>
    %95 = arith.mulf %94, %93 : vector<16x128xf32>
    %96 = math.tanh %95 : vector<16x128xf32>
    %cst_48 = arith.constant 1.000000e+00 : f32
    %97 = vector.broadcast %cst_48 : f32 to vector<16x128xf32>
    %98 = arith.addf %97, %96 : vector<16x128xf32>
    %cst_49 = arith.constant 5.000000e-01 : f32
    %99 = vector.broadcast %cst_49 : f32 to vector<16x128xf32>
    %100 = arith.mulf %99, %98 : vector<16x128xf32>
    %101 = arith.mulf %88, %100 : vector<16x128xf32>
    %c0_50 = arith.constant 0 : index
    %c0_51 = arith.constant 0 : index
    %102 = vector.load %arg15[%c0_50, %c0_51] : memref<128x32xf32, #tpu.memory_space<vmem>>, vector<128x32xf32>
    %c0_52 = arith.constant 0 : index
    %c0_53 = arith.constant 0 : index
    %103 = vector.load %arg16[%c0_52, %c0_53] : memref<1x32xf32, #tpu.memory_space<vmem>>, vector<1x32xf32>
    %cst_54 = arith.constant dense<0.000000e+00> : vector<16x32xf32>
    %104 = tpu.matmul %101, %102, %cst_54 {dimension_numbers = #tpu.dot_dimension_numbers<[1], [0], [0], [1], [0, 0, 1, 1], [], []>} : vector<16x128xf32>, vector<128x32xf32>, vector<16x32xf32> -> vector<16x32xf32>
    %105 = vector.broadcast %103 : vector<1x32xf32> to vector<16x32xf32>
    %106 = arith.addf %104, %105 : vector<16x32xf32>
    %107 = arith.addf %59, %106 : vector<16x32xf32>
    %c0_55 = arith.constant 0 : index
    %c0_56 = arith.constant 0 : index
    %108 = vector.load %arg17[%c0_55, %c0_56] : memref<32x32xf32, #tpu.memory_space<vmem>>, vector<32x32xf32>
    %c0_57 = arith.constant 0 : index
    %c0_58 = arith.constant 0 : index
    %109 = vector.load %arg18[%c0_57, %c0_58] : memref<1x32xf32, #tpu.memory_space<vmem>>, vector<1x32xf32>
    %cst_59 = arith.constant dense<0.000000e+00> : vector<16x32xf32>
    %110 = tpu.matmul %107, %108, %cst_59 {dimension_numbers = #tpu.dot_dimension_numbers<[1], [0], [0], [1], [0, 0, 1, 1], [], []>} : vector<16x32xf32>, vector<32x32xf32>, vector<16x32xf32> -> vector<16x32xf32>
    %111 = vector.broadcast %109 : vector<1x32xf32> to vector<16x32xf32>
    %112 = arith.addf %110, %111 : vector<16x32xf32>
    %c0_60 = arith.constant 0 : index
    %c0_61 = arith.constant 0 : index
    %c0_62 = arith.constant 0 : index
    %113 = vector.load %arg19[%c0_60, %c0_61, %c0_62] : memref<1x16x32xf32, #tpu.memory_space<vmem>>, vector<1x16x32xf32>
    %114 = vector.shape_cast %113 : vector<1x16x32xf32> to vector<16x32xf32>
    %115 = vector.shape_cast %112 : vector<16x32xf32> to vector<1x16x32xf32>
    tpu.vector_store %arg19[%c0_60, %c0_61, %c0_62], %115 {strides = array<i32>} : memref<1x16x32xf32, #tpu.memory_space<vmem>>, vector<1x16x32xf32>,
    return
  }
  func.func @transform_0(%arg0: i32) -> (i32, i32, i32) {
    %c0_i32 = arith.constant 0 : i32
    %c0_i32_0 = arith.constant 0 : i32
    %c0_i32_1 = arith.constant 0 : i32
    return %arg0, %c0_i32, %c0_i32_0 : i32, i32, i32
  }
  func.func @transform_1(%arg0: i32) -> (i32, i32) {
    %c0_i32 = arith.constant 0 : i32
    %c0_i32_0 = arith.constant 0 : i32
    %c0_i32_1 = arith.constant 0 : i32
    return %c0_i32, %c0_i32_0 : i32, i32
  }
  func.func @transform_2(%arg0: i32) -> (i32, i32) {
    %c0_i32 = arith.constant 0 : i32
    %c0_i32_0 = arith.constant 0 : i32
    %c0_i32_1 = arith.constant 0 : i32
    return %c0_i32, %c0_i32_0 : i32, i32
  }
  func.func @transform_3(%arg0: i32) -> (i32, i32) {
    %c0_i32 = arith.constant 0 : i32
    %c0_i32_0 = arith.constant 0 : i32
    %c0_i32_1 = arith.constant 0 : i32
    return %c0_i32, %c0_i32_0 : i32, i32
  }
  func.func @transform_4(%arg0: i32) -> (i32, i32) {
    %c0_i32 = arith.constant 0 : i32
    %c0_i32_0 = arith.constant 0 : i32
    %c0_i32_1 = arith.constant 0 : i32
    return %c0_i32, %c0_i32_0 : i32, i32
  }
  func.func @transform_5(%arg0: i32) -> (i32, i32) {
    %c0_i32 = arith.constant 0 : i32
    %c0_i32_0 = arith.constant 0 : i32
    %c0_i32_1 = arith.constant 0 : i32
    return %c0_i32, %c0_i32_0 : i32, i32
  }
  func.func @transform_6(%arg0: i32) -> (i32, i32) {
    %c0_i32 = arith.constant 0 : i32
    %c0_i32_0 = arith.constant 0 : i32
    %c0_i32_1 = arith.constant 0 : i32
    return %c0_i32, %c0_i32_0 : i32, i32
  }
  func.func @transform_7(%arg0: i32) -> (i32, i32) {
    %c0_i32 = arith.constant 0 : i32
    %c0_i32_0 = arith.constant 0 : i32
    %c0_i32_1 = arith.constant 0 : i32
    return %c0_i32, %c0_i32_0 : i32, i32
  }
  func.func @transform_8(%arg0: i32) -> (i32, i32) {
    %c0_i32 = arith.constant 0 : i32
    %c0_i32_0 = arith.constant 0 : i32
    %c0_i32_1 = arith.constant 0 : i32
    return %c0_i32, %c0_i32_0 : i32, i32
  }
  func.func @transform_9(%arg0: i32) -> (i32, i32) {
    %c0_i32 = arith.constant 0 : i32
    %c0_i32_0 = arith.constant 0 : i32
    %c0_i32_1 = arith.constant 0 : i32
    return %c0_i32, %c0_i32_0 : i32, i32
  }
  func.func @transform_10(%arg0: i32) -> (i32, i32) {
    %c0_i32 = arith.constant 0 : i32
    %c0_i32_0 = arith.constant 0 : i32
    %c0_i32_1 = arith.constant 0 : i32
    return %c0_i32, %c0_i32_0 : i32, i32
  }
  func.func @transform_11(%arg0: i32) -> (i32, i32) {
    %c0_i32 = arith.constant 0 : i32
    %c0_i32_0 = arith.constant 0 : i32
    %c0_i32_1 = arith.constant 0 : i32
    return %c0_i32, %c0_i32_0 : i32, i32
  }
  func.func @transform_12(%arg0: i32) -> (i32, i32) {
    %c0_i32 = arith.constant 0 : i32
    %c0_i32_0 = arith.constant 0 : i32
    %c0_i32_1 = arith.constant 0 : i32
    return %c0_i32, %c0_i32_0 : i32, i32
  }
  func.func @transform_13(%arg0: i32) -> (i32, i32) {
    %c0_i32 = arith.constant 0 : i32
    %c0_i32_0 = arith.constant 0 : i32
    %c0_i32_1 = arith.constant 0 : i32
    return %c0_i32, %c0_i32_0 : i32, i32
  }
  func.func @transform_14(%arg0: i32) -> (i32, i32) {
    %c0_i32 = arith.constant 0 : i32
    %c0_i32_0 = arith.constant 0 : i32
    %c0_i32_1 = arith.constant 0 : i32
    return %c0_i32, %c0_i32_0 : i32, i32
  }
  func.func @transform_15(%arg0: i32) -> (i32, i32) {
    %c0_i32 = arith.constant 0 : i32
    %c0_i32_0 = arith.constant 0 : i32
    %c0_i32_1 = arith.constant 0 : i32
    return %c0_i32, %c0_i32_0 : i32, i32
  }
  func.func @transform_16(%arg0: i32) -> (i32, i32) {
    %c0_i32 = arith.constant 0 : i32
    %c0_i32_0 = arith.constant 0 : i32
    %c0_i32_1 = arith.constant 0 : i32
    return %c0_i32, %c0_i32_0 : i32, i32
  }
  func.func @transform_17(%arg0: i32) -> (i32, i32) {
    %c0_i32 = arith.constant 0 : i32
    %c0_i32_0 = arith.constant 0 : i32
    %c0_i32_1 = arith.constant 0 : i32
    return %c0_i32, %c0_i32_0 : i32, i32
  }
  func.func @transform_18(%arg0: i32) -> (i32, i32, i32) {
    %c0_i32 = arith.constant 0 : i32
    %c0_i32_0 = arith.constant 0 : i32
    %c0_i32_1 = arith.constant 0 : i32
    return %arg0, %c0_i32, %c0_i32_0 : i32, i32, i32
  }
}

module attributes {stable_mosaic.version = 11 : i64} {
  func.func @_decoder_kernel(%arg0: i32, %arg1: memref<1x8x32xf32, #tpu.memory_space<vmem>>, %arg2: memref<1x16x32xf32, #tpu.memory_space<vmem>>, %arg3: memref<1x32xf32, #tpu.memory_space<vmem>>, %arg4: memref<16x32xf32, #tpu.memory_space<vmem>>, %arg5: memref<256x16xf32, #tpu.memory_space<vmem>>, %arg6: memref<32x32xf32, #tpu.memory_space<vmem>>, %arg7: memref<1x32xf32, #tpu.memory_space<vmem>>, %arg8: memref<32x32xf32, #tpu.memory_space<vmem>>, %arg9: memref<1x32xf32, #tpu.memory_space<vmem>>, %arg10: memref<32x32xf32, #tpu.memory_space<vmem>>, %arg11: memref<1x32xf32, #tpu.memory_space<vmem>>, %arg12: memref<32x32xf32, #tpu.memory_space<vmem>>, %arg13: memref<1x32xf32, #tpu.memory_space<vmem>>, %arg14: memref<1x32xf32, #tpu.memory_space<vmem>>, %arg15: memref<1x32xf32, #tpu.memory_space<vmem>>, %arg16: memref<32x128xf32, #tpu.memory_space<vmem>>, %arg17: memref<1x128xf32, #tpu.memory_space<vmem>>, %arg18: memref<128x32xf32, #tpu.memory_space<vmem>>, %arg19: memref<1x32xf32, #tpu.memory_space<vmem>>, %arg20: memref<1x32xf32, #tpu.memory_space<vmem>>, %arg21: memref<1x32xf32, #tpu.memory_space<vmem>>, %arg22: memref<32x32xf32, #tpu.memory_space<vmem>>, %arg23: memref<1x32xf32, #tpu.memory_space<vmem>>, %arg24: memref<32x32xf32, #tpu.memory_space<vmem>>, %arg25: memref<1x32xf32, #tpu.memory_space<vmem>>, %arg26: memref<32x32xf32, #tpu.memory_space<vmem>>, %arg27: memref<1x32xf32, #tpu.memory_space<vmem>>, %arg28: memref<32x32xf32, #tpu.memory_space<vmem>>, %arg29: memref<1x32xf32, #tpu.memory_space<vmem>>, %arg30: memref<32x8xf32, #tpu.memory_space<vmem>>, %arg31: memref<1x8xf32, #tpu.memory_space<vmem>>, %arg32: memref<32x32xf32, #tpu.memory_space<vmem>>, %arg33: memref<1x32xf32, #tpu.memory_space<vmem>>, %arg34: memref<32x8xf32, #tpu.memory_space<vmem>>, %arg35: memref<1x8xf32, #tpu.memory_space<vmem>>, %arg36: memref<32x32xf32, #tpu.memory_space<vmem>>, %arg37: memref<1x32xf32, #tpu.memory_space<vmem>>, %arg38: memref<32x4xf32, #tpu.memory_space<vmem>>, %arg39: memref<1x4xf32, #tpu.memory_space<vmem>>, %arg40: memref<1x1x256xf32, #tpu.memory_space<vmem>>, %arg41: memref<1x1x4xf32, #tpu.memory_space<vmem>>) attributes {dimension_semantics = [#tpu.dimension_semantics<parallel>], iteration_bounds = array<i64: 2>, scalar_prefetch = 0 : i64, scratch_operands = 0 : i64, tpu.core_type = #tpu.core_type<tc>, window_params = [{transform_indices = @transform_0, window_bounds = array<i64: 1, 8, 32>}, {transform_indices = @transform_1, window_bounds = array<i64: 1, 16, 32>}, {pipeline_mode = #tpu.pipeline_mode<synchronous>, transform_indices = @transform_2, window_bounds = array<i64: 1, 32>}, {pipeline_mode = #tpu.pipeline_mode<synchronous>, transform_indices = @transform_3, window_bounds = array<i64: 16, 32>}, {pipeline_mode = #tpu.pipeline_mode<synchronous>, transform_indices = @transform_4, window_bounds = array<i64: 256, 16>}, {pipeline_mode = #tpu.pipeline_mode<synchronous>, transform_indices = @transform_5, window_bounds = array<i64: 32, 32>}, {pipeline_mode = #tpu.pipeline_mode<synchronous>, transform_indices = @transform_6, window_bounds = array<i64: 1, 32>}, {pipeline_mode = #tpu.pipeline_mode<synchronous>, transform_indices = @transform_7, window_bounds = array<i64: 32, 32>}, {pipeline_mode = #tpu.pipeline_mode<synchronous>, transform_indices = @transform_8, window_bounds = array<i64: 1, 32>}, {pipeline_mode = #tpu.pipeline_mode<synchronous>, transform_indices = @transform_9, window_bounds = array<i64: 32, 32>}, {pipeline_mode = #tpu.pipeline_mode<synchronous>, transform_indices = @transform_10, window_bounds = array<i64: 1, 32>}, {pipeline_mode = #tpu.pipeline_mode<synchronous>, transform_indices = @transform_11, window_bounds = array<i64: 32, 32>}, {pipeline_mode = #tpu.pipeline_mode<synchronous>, transform_indices = @transform_12, window_bounds = array<i64: 1, 32>}, {pipeline_mode = #tpu.pipeline_mode<synchronous>, transform_indices = @transform_13, window_bounds = array<i64: 1, 32>}, {pipeline_mode = #tpu.pipeline_mode<synchronous>, transform_indices = @transform_14, window_bounds = array<i64: 1, 32>}, {pipeline_mode = #tpu.pipeline_mode<synchronous>, transform_indices = @transform_15, window_bounds = array<i64: 32, 128>}, {pipeline_mode = #tpu.pipeline_mode<synchronous>, transform_indices = @transform_16, window_bounds = array<i64: 1, 128>}, {pipeline_mode = #tpu.pipeline_mode<synchronous>, transform_indices = @transform_17, window_bounds = array<i64: 128, 32>}, {pipeline_mode = #tpu.pipeline_mode<synchronous>, transform_indices = @transform_18, window_bounds = array<i64: 1, 32>}, {pipeline_mode = #tpu.pipeline_mode<synchronous>, transform_indices = @transform_19, window_bounds = array<i64: 1, 32>}, {pipeline_mode = #tpu.pipeline_mode<synchronous>, transform_indices = @transform_20, window_bounds = array<i64: 1, 32>}, {pipeline_mode = #tpu.pipeline_mode<synchronous>, transform_indices = @transform_21, window_bounds = array<i64: 32, 32>}, {pipeline_mode = #tpu.pipeline_mode<synchronous>, transform_indices = @transform_22, window_bounds = array<i64: 1, 32>}, {pipeline_mode = #tpu.pipeline_mode<synchronous>, transform_indices = @transform_23, window_bounds = array<i64: 32, 32>}, {pipeline_mode = #tpu.pipeline_mode<synchronous>, transform_indices = @transform_24, window_bounds = array<i64: 1, 32>}, {pipeline_mode = #tpu.pipeline_mode<synchronous>, transform_indices = @transform_25, window_bounds = array<i64: 32, 32>}, {pipeline_mode = #tpu.pipeline_mode<synchronous>, transform_indices = @transform_26, window_bounds = array<i64: 1, 32>}, {pipeline_mode = #tpu.pipeline_mode<synchronous>, transform_indices = @transform_27, window_bounds = array<i64: 32, 32>}, {pipeline_mode = #tpu.pipeline_mode<synchronous>, transform_indices = @transform_28, window_bounds = array<i64: 1, 32>}, {pipeline_mode = #tpu.pipeline_mode<synchronous>, transform_indices = @transform_29, window_bounds = array<i64: 32, 8>}, {pipeline_mode = #tpu.pipeline_mode<synchronous>, transform_indices = @transform_30, window_bounds = array<i64: 1, 8>}, {pipeline_mode = #tpu.pipeline_mode<synchronous>, transform_indices = @transform_31, window_bounds = array<i64: 32, 32>}, {pipeline_mode = #tpu.pipeline_mode<synchronous>, transform_indices = @transform_32, window_bounds = array<i64: 1, 32>}, {pipeline_mode = #tpu.pipeline_mode<synchronous>, transform_indices = @transform_33, window_bounds = array<i64: 32, 8>}, {pipeline_mode = #tpu.pipeline_mode<synchronous>, transform_indices = @transform_34, window_bounds = array<i64: 1, 8>}, {pipeline_mode = #tpu.pipeline_mode<synchronous>, transform_indices = @transform_35, window_bounds = array<i64: 32, 32>}, {pipeline_mode = #tpu.pipeline_mode<synchronous>, transform_indices = @transform_36, window_bounds = array<i64: 1, 32>}, {pipeline_mode = #tpu.pipeline_mode<synchronous>, transform_indices = @transform_37, window_bounds = array<i64: 32, 4>}, {pipeline_mode = #tpu.pipeline_mode<synchronous>, transform_indices = @transform_38, window_bounds = array<i64: 1, 4>}, {transform_indices = @transform_39, window_bounds = array<i64: 1, 1, 256>}, {transform_indices = @transform_40, window_bounds = array<i64: 1, 1, 4>}]} {
    %c0 = arith.constant 0 : index
    %c0_0 = arith.constant 0 : index
    %0 = vector.load %arg6[%c0, %c0_0] : memref<32x32xf32, #tpu.memory_space<vmem>>, vector<32x32xf32>
    %c0_1 = arith.constant 0 : index
    %c0_2 = arith.constant 0 : index
    %1 = vector.load %arg7[%c0_1, %c0_2] : memref<1x32xf32, #tpu.memory_space<vmem>>, vector<1x32xf32>
    %c0_3 = arith.constant 0 : index
    %c0_4 = arith.constant 0 : index
    %2 = vector.load %arg8[%c0_3, %c0_4] : memref<32x32xf32, #tpu.memory_space<vmem>>, vector<32x32xf32>
    %c0_5 = arith.constant 0 : index
    %c0_6 = arith.constant 0 : index
    %3 = vector.load %arg9[%c0_5, %c0_6] : memref<1x32xf32, #tpu.memory_space<vmem>>, vector<1x32xf32>
    %c0_7 = arith.constant 0 : index
    %c0_8 = arith.constant 0 : index
    %4 = vector.load %arg10[%c0_7, %c0_8] : memref<32x32xf32, #tpu.memory_space<vmem>>, vector<32x32xf32>
    %c0_9 = arith.constant 0 : index
    %c0_10 = arith.constant 0 : index
    %5 = vector.load %arg11[%c0_9, %c0_10] : memref<1x32xf32, #tpu.memory_space<vmem>>, vector<1x32xf32>
    %c0_11 = arith.constant 0 : index
    %c0_12 = arith.constant 0 : index
    %6 = vector.load %arg12[%c0_11, %c0_12] : memref<32x32xf32, #tpu.memory_space<vmem>>, vector<32x32xf32>
    %c0_13 = arith.constant 0 : index
    %c0_14 = arith.constant 0 : index
    %7 = vector.load %arg13[%c0_13, %c0_14] : memref<1x32xf32, #tpu.memory_space<vmem>>, vector<1x32xf32>
    %c0_15 = arith.constant 0 : index
    %c0_16 = arith.constant 0 : index
    %8 = vector.load %arg14[%c0_15, %c0_16] : memref<1x32xf32, #tpu.memory_space<vmem>>, vector<1x32xf32>
    %c0_17 = arith.constant 0 : index
    %c0_18 = arith.constant 0 : index
    %9 = vector.load %arg15[%c0_17, %c0_18] : memref<1x32xf32, #tpu.memory_space<vmem>>, vector<1x32xf32>
    %c0_19 = arith.constant 0 : index
    %c0_20 = arith.constant 0 : index
    %10 = vector.load %arg16[%c0_19, %c0_20] : memref<32x128xf32, #tpu.memory_space<vmem>>, vector<32x128xf32>
    %c0_21 = arith.constant 0 : index
    %c0_22 = arith.constant 0 : index
    %11 = vector.load %arg17[%c0_21, %c0_22] : memref<1x128xf32, #tpu.memory_space<vmem>>, vector<1x128xf32>
    %c0_23 = arith.constant 0 : index
    %c0_24 = arith.constant 0 : index
    %12 = vector.load %arg18[%c0_23, %c0_24] : memref<128x32xf32, #tpu.memory_space<vmem>>, vector<128x32xf32>
    %c0_25 = arith.constant 0 : index
    %c0_26 = arith.constant 0 : index
    %13 = vector.load %arg19[%c0_25, %c0_26] : memref<1x32xf32, #tpu.memory_space<vmem>>, vector<1x32xf32>
    %c0_27 = arith.constant 0 : index
    %c0_28 = arith.constant 0 : index
    %14 = vector.load %arg20[%c0_27, %c0_28] : memref<1x32xf32, #tpu.memory_space<vmem>>, vector<1x32xf32>
    %c0_29 = arith.constant 0 : index
    %c0_30 = arith.constant 0 : index
    %15 = vector.load %arg21[%c0_29, %c0_30] : memref<1x32xf32, #tpu.memory_space<vmem>>, vector<1x32xf32>
    %c0_31 = arith.constant 0 : index
    %c0_32 = arith.constant 0 : index
    %16 = vector.load %arg22[%c0_31, %c0_32] : memref<32x32xf32, #tpu.memory_space<vmem>>, vector<32x32xf32>
    %c0_33 = arith.constant 0 : index
    %c0_34 = arith.constant 0 : index
    %17 = vector.load %arg23[%c0_33, %c0_34] : memref<1x32xf32, #tpu.memory_space<vmem>>, vector<1x32xf32>
    %c0_35 = arith.constant 0 : index
    %c0_36 = arith.constant 0 : index
    %18 = vector.load %arg24[%c0_35, %c0_36] : memref<32x32xf32, #tpu.memory_space<vmem>>, vector<32x32xf32>
    %c0_37 = arith.constant 0 : index
    %c0_38 = arith.constant 0 : index
    %19 = vector.load %arg25[%c0_37, %c0_38] : memref<1x32xf32, #tpu.memory_space<vmem>>, vector<1x32xf32>
    %c0_39 = arith.constant 0 : index
    %c0_40 = arith.constant 0 : index
    %20 = vector.load %arg26[%c0_39, %c0_40] : memref<32x32xf32, #tpu.memory_space<vmem>>, vector<32x32xf32>
    %c0_41 = arith.constant 0 : index
    %c0_42 = arith.constant 0 : index
    %21 = vector.load %arg27[%c0_41, %c0_42] : memref<1x32xf32, #tpu.memory_space<vmem>>, vector<1x32xf32>
    %c0_43 = arith.constant 0 : index
    %c0_44 = arith.constant 0 : index
    %22 = vector.load %arg28[%c0_43, %c0_44] : memref<32x32xf32, #tpu.memory_space<vmem>>, vector<32x32xf32>
    %c0_45 = arith.constant 0 : index
    %c0_46 = arith.constant 0 : index
    %23 = vector.load %arg29[%c0_45, %c0_46] : memref<1x32xf32, #tpu.memory_space<vmem>>, vector<1x32xf32>
    %c0_47 = arith.constant 0 : index
    %c0_48 = arith.constant 0 : index
    %24 = vector.load %arg30[%c0_47, %c0_48] : memref<32x8xf32, #tpu.memory_space<vmem>>, vector<32x8xf32>
    %c0_49 = arith.constant 0 : index
    %c0_50 = arith.constant 0 : index
    %25 = vector.load %arg31[%c0_49, %c0_50] : memref<1x8xf32, #tpu.memory_space<vmem>>, vector<1x8xf32>
    %c0_51 = arith.constant 0 : index
    %c0_52 = arith.constant 0 : index
    %26 = vector.load %arg32[%c0_51, %c0_52] : memref<32x32xf32, #tpu.memory_space<vmem>>, vector<32x32xf32>
    %c0_53 = arith.constant 0 : index
    %c0_54 = arith.constant 0 : index
    %27 = vector.load %arg33[%c0_53, %c0_54] : memref<1x32xf32, #tpu.memory_space<vmem>>, vector<1x32xf32>
    %c0_55 = arith.constant 0 : index
    %c0_56 = arith.constant 0 : index
    %28 = vector.load %arg34[%c0_55, %c0_56] : memref<32x8xf32, #tpu.memory_space<vmem>>, vector<32x8xf32>
    %c0_57 = arith.constant 0 : index
    %c0_58 = arith.constant 0 : index
    %29 = vector.load %arg35[%c0_57, %c0_58] : memref<1x8xf32, #tpu.memory_space<vmem>>, vector<1x8xf32>
    %c0_59 = arith.constant 0 : index
    %c0_60 = arith.constant 0 : index
    %30 = vector.load %arg36[%c0_59, %c0_60] : memref<32x32xf32, #tpu.memory_space<vmem>>, vector<32x32xf32>
    %c0_61 = arith.constant 0 : index
    %c0_62 = arith.constant 0 : index
    %31 = vector.load %arg37[%c0_61, %c0_62] : memref<1x32xf32, #tpu.memory_space<vmem>>, vector<1x32xf32>
    %c0_63 = arith.constant 0 : index
    %c0_64 = arith.constant 0 : index
    %32 = vector.load %arg38[%c0_63, %c0_64] : memref<32x4xf32, #tpu.memory_space<vmem>>, vector<32x4xf32>
    %c0_65 = arith.constant 0 : index
    %c0_66 = arith.constant 0 : index
    %33 = vector.load %arg39[%c0_65, %c0_66] : memref<1x4xf32, #tpu.memory_space<vmem>>, vector<1x4xf32>
    %c0_67 = arith.constant 0 : index
    %c0_68 = arith.constant 0 : index
    %c0_69 = arith.constant 0 : index
    %34 = vector.load %arg1[%c0_67, %c0_68, %c0_69] : memref<1x8x32xf32, #tpu.memory_space<vmem>>, vector<1x8x32xf32>
    %35 = vector.shape_cast %34 : vector<1x8x32xf32> to vector<8x32xf32>
    %c0_70 = arith.constant 0 : index
    %c0_71 = arith.constant 0 : index
    %c0_72 = arith.constant 0 : index
    %36 = vector.load %arg2[%c0_70, %c0_71, %c0_72] : memref<1x16x32xf32, #tpu.memory_space<vmem>>, vector<1x16x32xf32>
    %37 = vector.shape_cast %36 : vector<1x16x32xf32> to vector<16x32xf32>
    %c0_73 = arith.constant 0 : index
    %c0_74 = arith.constant 0 : index
    %38 = vector.load %arg3[%c0_73, %c0_74] : memref<1x32xf32, #tpu.memory_space<vmem>>, vector<1x32xf32>
    %39 = vector.broadcast %38 : vector<1x32xf32> to vector<16x32xf32>
    %40 = arith.addf %37, %39 : vector<16x32xf32>
    %c0_75 = arith.constant 0 : index
    %c0_76 = arith.constant 0 : index
    %41 = vector.load %arg4[%c0_75, %c0_76] : memref<16x32xf32, #tpu.memory_space<vmem>>, vector<16x32xf32>
    %42 = arith.addf %40, %41 : vector<16x32xf32>
    %cst = arith.constant dense<0.000000e+00> : vector<8x32xf32>
    %43 = tpu.matmul %35, %0, %cst {dimension_numbers = #tpu.dot_dimension_numbers<[1], [0], [0], [1], [0, 0, 1, 1], [], []>} : vector<8x32xf32>, vector<32x32xf32>, vector<8x32xf32> -> vector<8x32xf32>
    %44 = vector.broadcast %1 : vector<1x32xf32> to vector<8x32xf32>
    %45 = arith.addf %43, %44 : vector<8x32xf32>
    %cst_77 = arith.constant dense<0.000000e+00> : vector<16x32xf32>
    %46 = tpu.matmul %42, %2, %cst_77 {dimension_numbers = #tpu.dot_dimension_numbers<[1], [0], [0], [1], [0, 0, 1, 1], [], []>} : vector<16x32xf32>, vector<32x32xf32>, vector<16x32xf32> -> vector<16x32xf32>
    %47 = vector.broadcast %3 : vector<1x32xf32> to vector<16x32xf32>
    %48 = arith.addf %46, %47 : vector<16x32xf32>
    %cst_78 = arith.constant dense<0.000000e+00> : vector<16x32xf32>
    %49 = tpu.matmul %40, %4, %cst_78 {dimension_numbers = #tpu.dot_dimension_numbers<[1], [0], [0], [1], [0, 0, 1, 1], [], []>} : vector<16x32xf32>, vector<32x32xf32>, vector<16x32xf32> -> vector<16x32xf32>
    %50 = vector.broadcast %5 : vector<1x32xf32> to vector<16x32xf32>
    %51 = arith.addf %49, %50 : vector<16x32xf32>
    %cst_79 = arith.constant dense<0.000000e+00> : vector<8x16xf32>
    %52 = tpu.matmul %45, %48, %cst_79 {dimension_numbers = #tpu.dot_dimension_numbers<[1], [1], [0], [0], [0, 0, 1, 0], [], []>} : vector<8x32xf32>, vector<16x32xf32>, vector<8x16xf32> -> vector<8x16xf32>
    %cst_80 = arith.constant 0.176776692 : f32
    %53 = vector.broadcast %cst_80 : f32 to vector<8x16xf32>
    %54 = arith.mulf %52, %53 : vector<8x16xf32>
    %cst_81 = arith.constant dense<0xFF800000> : vector<8xf32>
    %55 = vector.multi_reduction <maximumf>, %54, %cst_81 [1] : vector<8x16xf32> to vector<8xf32>
    %56 = vector.shape_cast %55 : vector<8xf32> to vector<8x1xf32>
    %57 = vector.broadcast %56 : vector<8x1xf32> to vector<8x16xf32>
    %58 = arith.subf %54, %57 : vector<8x16xf32>
    %59 = math.exp %58 : vector<8x16xf32>
    %cst_82 = arith.constant dense<0.000000e+00> : vector<8xf32>
    %60 = vector.multi_reduction <add>, %59, %cst_82 [1] : vector<8x16xf32> to vector<8xf32>
    %61 = vector.shape_cast %60 : vector<8xf32> to vector<8x1xf32>
    %62 = vector.broadcast %61 : vector<8x1xf32> to vector<8x16xf32>
    %63 = arith.divf %59, %62 : vector<8x16xf32>
    %cst_83 = arith.constant dense<0.000000e+00> : vector<8x32xf32>
    %64 = tpu.matmul %63, %51, %cst_83 {dimension_numbers = #tpu.dot_dimension_numbers<[1], [0], [0], [1], [0, 0, 1, 1], [], []>} : vector<8x16xf32>, vector<16x32xf32>, vector<8x32xf32> -> vector<8x32xf32>
    %cst_84 = arith.constant dense<0.000000e+00> : vector<8x32xf32>
    %65 = tpu.matmul %64, %6, %cst_84 {dimension_numbers = #tpu.dot_dimension_numbers<[1], [0], [0], [1], [0, 0, 1, 1], [], []>} : vector<8x32xf32>, vector<32x32xf32>, vector<8x32xf32> -> vector<8x32xf32>
    %66 = vector.broadcast %7 : vector<1x32xf32> to vector<8x32xf32>
    %67 = arith.addf %65, %66 : vector<8x32xf32>
    %68 = arith.addf %35, %67 : vector<8x32xf32>
    %cst_85 = arith.constant dense<0.000000e+00> : vector<8xf32>
    %69 = vector.multi_reduction <add>, %68, %cst_85 [1] : vector<8x32xf32> to vector<8xf32>
    %70 = vector.shape_cast %69 : vector<8xf32> to vector<8x1xf32>
    %cst_86 = arith.constant 3.200000e+01 : f32
    %71 = vector.broadcast %cst_86 : f32 to vector<8x1xf32>
    %72 = arith.divf %70, %71 : vector<8x1xf32>
    %73 = vector.broadcast %72 : vector<8x1xf32> to vector<8x32xf32>
    %74 = arith.subf %68, %73 : vector<8x32xf32>
    %75 = arith.mulf %74, %74 : vector<8x32xf32>
    %cst_87 = arith.constant dense<0.000000e+00> : vector<8xf32>
    %76 = vector.multi_reduction <add>, %75, %cst_87 [1] : vector<8x32xf32> to vector<8xf32>
    %77 = vector.shape_cast %76 : vector<8xf32> to vector<8x1xf32>
    %cst_88 = arith.constant 3.200000e+01 : f32
    %78 = vector.broadcast %cst_88 : f32 to vector<8x1xf32>
    %79 = arith.divf %77, %78 : vector<8x1xf32>
    %80 = vector.broadcast %72 : vector<8x1xf32> to vector<8x32xf32>
    %81 = arith.subf %68, %80 : vector<8x32xf32>
    %cst_89 = arith.constant 9.99999974E-6 : f32
    %82 = vector.broadcast %cst_89 : f32 to vector<8x1xf32>
    %83 = arith.addf %79, %82 : vector<8x1xf32>
    %84 = math.rsqrt %83 : vector<8x1xf32>
    %85 = vector.broadcast %84 : vector<8x1xf32> to vector<8x32xf32>
    %86 = arith.mulf %81, %85 : vector<8x32xf32>
    %87 = vector.broadcast %8 : vector<1x32xf32> to vector<8x32xf32>
    %88 = arith.mulf %86, %87 : vector<8x32xf32>
    %89 = vector.broadcast %9 : vector<1x32xf32> to vector<8x32xf32>
    %90 = arith.addf %88, %89 : vector<8x32xf32>
    %cst_90 = arith.constant dense<0.000000e+00> : vector<8x128xf32>
    %91 = tpu.matmul %90, %10, %cst_90 {dimension_numbers = #tpu.dot_dimension_numbers<[1], [0], [0], [1], [0, 0, 1, 1], [], []>} : vector<8x32xf32>, vector<32x128xf32>, vector<8x128xf32> -> vector<8x128xf32>
    %92 = vector.broadcast %11 : vector<1x128xf32> to vector<8x128xf32>
    %93 = arith.addf %91, %92 : vector<8x128xf32>
    %cst_91 = arith.constant 0.000000e+00 : f32
    %94 = vector.broadcast %cst_91 : f32 to vector<8x128xf32>
    %95 = arith.maximumf %93, %94 : vector<8x128xf32>
    %cst_92 = arith.constant dense<0.000000e+00> : vector<8x32xf32>
    %96 = tpu.matmul %95, %12, %cst_92 {dimension_numbers = #tpu.dot_dimension_numbers<[1], [0], [0], [1], [0, 0, 1, 1], [], []>} : vector<8x128xf32>, vector<128x32xf32>, vector<8x32xf32> -> vector<8x32xf32>
    %97 = vector.broadcast %13 : vector<1x32xf32> to vector<8x32xf32>
    %98 = arith.addf %96, %97 : vector<8x32xf32>
    %99 = arith.addf %90, %98 : vector<8x32xf32>
    %cst_93 = arith.constant dense<0.000000e+00> : vector<8xf32>
    %100 = vector.multi_reduction <add>, %99, %cst_93 [1] : vector<8x32xf32> to vector<8xf32>
    %101 = vector.shape_cast %100 : vector<8xf32> to vector<8x1xf32>
    %cst_94 = arith.constant 3.200000e+01 : f32
    %102 = vector.broadcast %cst_94 : f32 to vector<8x1xf32>
    %103 = arith.divf %101, %102 : vector<8x1xf32>
    %104 = vector.broadcast %103 : vector<8x1xf32> to vector<8x32xf32>
    %105 = arith.subf %99, %104 : vector<8x32xf32>
    %106 = arith.mulf %105, %105 : vector<8x32xf32>
    %cst_95 = arith.constant dense<0.000000e+00> : vector<8xf32>
    %107 = vector.multi_reduction <add>, %106, %cst_95 [1] : vector<8x32xf32> to vector<8xf32>
    %108 = vector.shape_cast %107 : vector<8xf32> to vector<8x1xf32>
    %cst_96 = arith.constant 3.200000e+01 : f32
    %109 = vector.broadcast %cst_96 : f32 to vector<8x1xf32>
    %110 = arith.divf %108, %109 : vector<8x1xf32>
    %111 = vector.broadcast %103 : vector<8x1xf32> to vector<8x32xf32>
    %112 = arith.subf %99, %111 : vector<8x32xf32>
    %cst_97 = arith.constant 9.99999974E-6 : f32
    %113 = vector.broadcast %cst_97 : f32 to vector<8x1xf32>
    %114 = arith.addf %110, %113 : vector<8x1xf32>
    %115 = math.rsqrt %114 : vector<8x1xf32>
    %116 = vector.broadcast %115 : vector<8x1xf32> to vector<8x32xf32>
    %117 = arith.mulf %112, %116 : vector<8x32xf32>
    %118 = vector.broadcast %14 : vector<1x32xf32> to vector<8x32xf32>
    %119 = arith.mulf %117, %118 : vector<8x32xf32>
    %120 = vector.broadcast %15 : vector<1x32xf32> to vector<8x32xf32>
    %121 = arith.addf %119, %120 : vector<8x32xf32>
    %cst_98 = arith.constant dense<0.000000e+00> : vector<16x32xf32>
    %122 = tpu.matmul %42, %16, %cst_98 {dimension_numbers = #tpu.dot_dimension_numbers<[1], [0], [0], [1], [0, 0, 1, 1], [], []>} : vector<16x32xf32>, vector<32x32xf32>, vector<16x32xf32> -> vector<16x32xf32>
    %123 = vector.broadcast %17 : vector<1x32xf32> to vector<16x32xf32>
    %124 = arith.addf %122, %123 : vector<16x32xf32>
    %cst_99 = arith.constant dense<0.000000e+00> : vector<8x32xf32>
    %125 = tpu.matmul %121, %18, %cst_99 {dimension_numbers = #tpu.dot_dimension_numbers<[1], [0], [0], [1], [0, 0, 1, 1], [], []>} : vector<8x32xf32>, vector<32x32xf32>, vector<8x32xf32> -> vector<8x32xf32>
    %126 = vector.broadcast %19 : vector<1x32xf32> to vector<8x32xf32>
    %127 = arith.addf %125, %126 : vector<8x32xf32>
    %cst_100 = arith.constant dense<0.000000e+00> : vector<8x32xf32>
    %128 = tpu.matmul %121, %20, %cst_100 {dimension_numbers = #tpu.dot_dimension_numbers<[1], [0], [0], [1], [0, 0, 1, 1], [], []>} : vector<8x32xf32>, vector<32x32xf32>, vector<8x32xf32> -> vector<8x32xf32>
    %129 = vector.broadcast %21 : vector<1x32xf32> to vector<8x32xf32>
    %130 = arith.addf %128, %129 : vector<8x32xf32>
    %cst_101 = arith.constant dense<0.000000e+00> : vector<16x8xf32>
    %131 = tpu.matmul %124, %127, %cst_101 {dimension_numbers = #tpu.dot_dimension_numbers<[1], [1], [0], [0], [0, 0, 1, 0], [], []>} : vector<16x32xf32>, vector<8x32xf32>, vector<16x8xf32> -> vector<16x8xf32>
    %cst_102 = arith.constant 0.176776692 : f32
    %132 = vector.broadcast %cst_102 : f32 to vector<16x8xf32>
    %133 = arith.mulf %131, %132 : vector<16x8xf32>
    %cst_103 = arith.constant dense<0xFF800000> : vector<16xf32>
    %134 = vector.multi_reduction <maximumf>, %133, %cst_103 [1] : vector<16x8xf32> to vector<16xf32>
    %135 = vector.shape_cast %134 : vector<16xf32> to vector<16x1xf32>
    %136 = vector.broadcast %135 : vector<16x1xf32> to vector<16x8xf32>
    %137 = arith.subf %133, %136 : vector<16x8xf32>
    %138 = math.exp %137 : vector<16x8xf32>
    %cst_104 = arith.constant dense<0.000000e+00> : vector<16xf32>
    %139 = vector.multi_reduction <add>, %138, %cst_104 [1] : vector<16x8xf32> to vector<16xf32>
    %140 = vector.shape_cast %139 : vector<16xf32> to vector<16x1xf32>
    %141 = vector.broadcast %140 : vector<16x1xf32> to vector<16x8xf32>
    %142 = arith.divf %138, %141 : vector<16x8xf32>
    %cst_105 = arith.constant dense<0.000000e+00> : vector<16x32xf32>
    %143 = tpu.matmul %142, %130, %cst_105 {dimension_numbers = #tpu.dot_dimension_numbers<[1], [0], [0], [1], [0, 0, 1, 1], [], []>} : vector<16x8xf32>, vector<8x32xf32>, vector<16x32xf32> -> vector<16x32xf32>
    %cst_106 = arith.constant dense<0.000000e+00> : vector<16x32xf32>
    %144 = tpu.matmul %143, %22, %cst_106 {dimension_numbers = #tpu.dot_dimension_numbers<[1], [0], [0], [1], [0, 0, 1, 1], [], []>} : vector<16x32xf32>, vector<32x32xf32>, vector<16x32xf32> -> vector<16x32xf32>
    %145 = vector.broadcast %23 : vector<1x32xf32> to vector<16x32xf32>
    %146 = arith.addf %144, %145 : vector<16x32xf32>
    %147 = arith.addf %40, %146 : vector<16x32xf32>
    %148 = vector.extract_strided_slice %121 {offsets = [1, 0], sizes = [1, 32], strides = [1, 1]} : vector<8x32xf32> to vector<1x32xf32>
    %cst_107 = arith.constant dense<0.000000e+00> : vector<1x32xf32>
    %149 = tpu.matmul %148, %26, %cst_107 {dimension_numbers = #tpu.dot_dimension_numbers<[1], [0], [0], [1], [0, 0, 1, 1], [], []>} : vector<1x32xf32>, vector<32x32xf32>, vector<1x32xf32> -> vector<1x32xf32>
    %150 = arith.addf %149, %27 : vector<1x32xf32>
    %cst_108 = arith.constant 0.000000e+00 : f32
    %151 = vector.broadcast %cst_108 : f32 to vector<1x32xf32>
    %152 = arith.maximumf %150, %151 : vector<1x32xf32>
    %cst_109 = arith.constant dense<0.000000e+00> : vector<1x8xf32>
    %153 = tpu.matmul %152, %28, %cst_109 {dimension_numbers = #tpu.dot_dimension_numbers<[1], [0], [0], [1], [0, 0, 1, 1], [], []>} : vector<1x32xf32>, vector<32x8xf32>, vector<1x8xf32> -> vector<1x8xf32>
    %154 = arith.addf %153, %29 : vector<1x8xf32>
    %c0_110 = arith.constant 0 : index
    %c0_111 = arith.constant 0 : index
    %155 = vector.load %arg5[%c0_110, %c0_111] : memref<256x16xf32, #tpu.memory_space<vmem>>, vector<256x16xf32>
    %cst_112 = arith.constant dense<0.000000e+00> : vector<256x32xf32>
    %156 = tpu.matmul %155, %147, %cst_112 {dimension_numbers = #tpu.dot_dimension_numbers<[1], [0], [0], [1], [0, 0, 1, 1], [], []>} : vector<256x16xf32>, vector<16x32xf32>, vector<256x32xf32> -> vector<256x32xf32>
    %cst_113 = arith.constant dense<0.000000e+00> : vector<256x8xf32>
    %157 = tpu.matmul %156, %24, %cst_113 {dimension_numbers = #tpu.dot_dimension_numbers<[1], [0], [0], [1], [0, 0, 1, 1], [], []>} : vector<256x32xf32>, vector<32x8xf32>, vector<256x8xf32> -> vector<256x8xf32>
    %158 = vector.broadcast %25 : vector<1x8xf32> to vector<256x8xf32>
    %159 = arith.addf %157, %158 : vector<256x8xf32>
    %160 = arith.mulf %159, %159 : vector<256x8xf32>
    %161 = arith.mulf %159, %160 : vector<256x8xf32>
    %cst_114 = arith.constant 4.471500e-02 : f32
    %162 = vector.broadcast %cst_114 : f32 to vector<256x8xf32>
    %163 = arith.mulf %162, %161 : vector<256x8xf32>
    %164 = arith.addf %159, %163 : vector<256x8xf32>
    %cst_115 = arith.constant 0.797884583 : f32
    %165 = vector.broadcast %cst_115 : f32 to vector<256x8xf32>
    %166 = arith.mulf %165, %164 : vector<256x8xf32>
    %167 = math.tanh %166 : vector<256x8xf32>
    %cst_116 = arith.constant 1.000000e+00 : f32
    %168 = vector.broadcast %cst_116 : f32 to vector<256x8xf32>
    %169 = arith.addf %168, %167 : vector<256x8xf32>
    %cst_117 = arith.constant 5.000000e-01 : f32
    %170 = vector.broadcast %cst_117 : f32 to vector<256x8xf32>
    %171 = arith.mulf %170, %169 : vector<256x8xf32>
    %172 = arith.mulf %159, %171 : vector<256x8xf32>
    %cst_118 = arith.constant dense<0.000000e+00> : vector<1x256xf32>
    %173 = tpu.matmul %154, %172, %cst_118 {dimension_numbers = #tpu.dot_dimension_numbers<[1], [1], [0], [0], [0, 0, 1, 0], [], []>} : vector<1x8xf32>, vector<256x8xf32>, vector<1x256xf32> -> vector<1x256xf32>
    %c0_119 = arith.constant 0 : index
    %c0_120 = arith.constant 0 : index
    %c0_121 = arith.constant 0 : index
    %174 = vector.load %arg40[%c0_119, %c0_120, %c0_121] : memref<1x1x256xf32, #tpu.memory_space<vmem>>, vector<1x1x256xf32>
    %175 = vector.shape_cast %174 : vector<1x1x256xf32> to vector<1x256xf32>
    %176 = vector.shape_cast %173 : vector<1x256xf32> to vector<1x1x256xf32>
    tpu.vector_store %arg40[%c0_119, %c0_120, %c0_121], %176 {strides = array<i32>} : memref<1x1x256xf32, #tpu.memory_space<vmem>>, vector<1x1x256xf32>,
    %177 = vector.extract_strided_slice %121 {offsets = [0, 0], sizes = [1, 32], strides = [1, 1]} : vector<8x32xf32> to vector<1x32xf32>
    %cst_122 = arith.constant dense<0.000000e+00> : vector<1x32xf32>
    %178 = tpu.matmul %177, %30, %cst_122 {dimension_numbers = #tpu.dot_dimension_numbers<[1], [0], [0], [1], [0, 0, 1, 1], [], []>} : vector<1x32xf32>, vector<32x32xf32>, vector<1x32xf32> -> vector<1x32xf32>
    %179 = arith.addf %178, %31 : vector<1x32xf32>
    %cst_123 = arith.constant 0.000000e+00 : f32
    %180 = vector.broadcast %cst_123 : f32 to vector<1x32xf32>
    %181 = arith.maximumf %179, %180 : vector<1x32xf32>
    %cst_124 = arith.constant dense<0.000000e+00> : vector<1x4xf32>
    %182 = tpu.matmul %181, %32, %cst_124 {dimension_numbers = #tpu.dot_dimension_numbers<[1], [0], [0], [1], [0, 0, 1, 1], [], []>} : vector<1x32xf32>, vector<32x4xf32>, vector<1x4xf32> -> vector<1x4xf32>
    %183 = arith.addf %182, %33 : vector<1x4xf32>
    %c0_125 = arith.constant 0 : index
    %c0_126 = arith.constant 0 : index
    %c0_127 = arith.constant 0 : index
    %184 = vector.load %arg41[%c0_125, %c0_126, %c0_127] : memref<1x1x4xf32, #tpu.memory_space<vmem>>, vector<1x1x4xf32>
    %185 = vector.shape_cast %184 : vector<1x1x4xf32> to vector<1x4xf32>
    %186 = vector.shape_cast %183 : vector<1x4xf32> to vector<1x1x4xf32>
    tpu.vector_store %arg41[%c0_125, %c0_126, %c0_127], %186 {strides = array<i32>} : memref<1x1x4xf32, #tpu.memory_space<vmem>>, vector<1x1x4xf32>,
    return
  }
  func.func @transform_0(%arg0: i32) -> (i32, i32, i32) {
    %c0_i32 = arith.constant 0 : i32
    %c0_i32_0 = arith.constant 0 : i32
    %c0_i32_1 = arith.constant 0 : i32
    return %arg0, %c0_i32, %c0_i32_0 : i32, i32, i32
  }
  func.func @transform_1(%arg0: i32) -> (i32, i32, i32) {
    %c2_i32 = arith.constant 2 : i32
    %c0_i32 = arith.constant 0 : i32
    %0 = arith.cmpi eq, %c2_i32, %c0_i32 : i32
    %c1_i32 = arith.constant 1 : i32
    %1 = arith.select %0, %c1_i32, %c2_i32 : i32
    %2 = arith.remsi %arg0, %1 : i32
    %c0_i32_0 = arith.constant 0 : i32
    %3 = arith.cmpi ne, %2, %c0_i32_0 : i32
    %c0_i32_1 = arith.constant 0 : i32
    %4 = arith.cmpi slt, %2, %c0_i32_1 : i32
    %c0_i32_2 = arith.constant 0 : i32
    %5 = arith.cmpi slt, %1, %c0_i32_2 : i32
    %6 = arith.xori %4, %5 : i1
    %7 = arith.andi %6, %3 : i1
    %8 = arith.addi %2, %1 : i32
    %9 = arith.select %7, %8, %2 : i32
    %c0_i32_3 = arith.constant 0 : i32
    %c0_i32_4 = arith.constant 0 : i32
    %c0_i32_5 = arith.constant 0 : i32
    return %9, %c0_i32_3, %c0_i32_4 : i32, i32, i32
  }
  func.func @transform_2(%arg0: i32) -> (i32, i32) {
    %c0_i32 = arith.constant 0 : i32
    %c0_i32_0 = arith.constant 0 : i32
    %c0_i32_1 = arith.constant 0 : i32
    return %c0_i32, %c0_i32_0 : i32, i32
  }
  func.func @transform_3(%arg0: i32) -> (i32, i32) {
    %c0_i32 = arith.constant 0 : i32
    %c0_i32_0 = arith.constant 0 : i32
    %c0_i32_1 = arith.constant 0 : i32
    return %c0_i32, %c0_i32_0 : i32, i32
  }
  func.func @transform_4(%arg0: i32) -> (i32, i32) {
    %c0_i32 = arith.constant 0 : i32
    %c0_i32_0 = arith.constant 0 : i32
    %c0_i32_1 = arith.constant 0 : i32
    return %c0_i32, %c0_i32_0 : i32, i32
  }
  func.func @transform_5(%arg0: i32) -> (i32, i32) {
    %c0_i32 = arith.constant 0 : i32
    %c0_i32_0 = arith.constant 0 : i32
    %c0_i32_1 = arith.constant 0 : i32
    return %c0_i32, %c0_i32_0 : i32, i32
  }
  func.func @transform_6(%arg0: i32) -> (i32, i32) {
    %c0_i32 = arith.constant 0 : i32
    %c0_i32_0 = arith.constant 0 : i32
    %c0_i32_1 = arith.constant 0 : i32
    return %c0_i32, %c0_i32_0 : i32, i32
  }
  func.func @transform_7(%arg0: i32) -> (i32, i32) {
    %c0_i32 = arith.constant 0 : i32
    %c0_i32_0 = arith.constant 0 : i32
    %c0_i32_1 = arith.constant 0 : i32
    return %c0_i32, %c0_i32_0 : i32, i32
  }
  func.func @transform_8(%arg0: i32) -> (i32, i32) {
    %c0_i32 = arith.constant 0 : i32
    %c0_i32_0 = arith.constant 0 : i32
    %c0_i32_1 = arith.constant 0 : i32
    return %c0_i32, %c0_i32_0 : i32, i32
  }
  func.func @transform_9(%arg0: i32) -> (i32, i32) {
    %c0_i32 = arith.constant 0 : i32
    %c0_i32_0 = arith.constant 0 : i32
    %c0_i32_1 = arith.constant 0 : i32
    return %c0_i32, %c0_i32_0 : i32, i32
  }
  func.func @transform_10(%arg0: i32) -> (i32, i32) {
    %c0_i32 = arith.constant 0 : i32
    %c0_i32_0 = arith.constant 0 : i32
    %c0_i32_1 = arith.constant 0 : i32
    return %c0_i32, %c0_i32_0 : i32, i32
  }
  func.func @transform_11(%arg0: i32) -> (i32, i32) {
    %c0_i32 = arith.constant 0 : i32
    %c0_i32_0 = arith.constant 0 : i32
    %c0_i32_1 = arith.constant 0 : i32
    return %c0_i32, %c0_i32_0 : i32, i32
  }
  func.func @transform_12(%arg0: i32) -> (i32, i32) {
    %c0_i32 = arith.constant 0 : i32
    %c0_i32_0 = arith.constant 0 : i32
    %c0_i32_1 = arith.constant 0 : i32
    return %c0_i32, %c0_i32_0 : i32, i32
  }
  func.func @transform_13(%arg0: i32) -> (i32, i32) {
    %c0_i32 = arith.constant 0 : i32
    %c0_i32_0 = arith.constant 0 : i32
    %c0_i32_1 = arith.constant 0 : i32
    return %c0_i32, %c0_i32_0 : i32, i32
  }
  func.func @transform_14(%arg0: i32) -> (i32, i32) {
    %c0_i32 = arith.constant 0 : i32
    %c0_i32_0 = arith.constant 0 : i32
    %c0_i32_1 = arith.constant 0 : i32
    return %c0_i32, %c0_i32_0 : i32, i32
  }
  func.func @transform_15(%arg0: i32) -> (i32, i32) {
    %c0_i32 = arith.constant 0 : i32
    %c0_i32_0 = arith.constant 0 : i32
    %c0_i32_1 = arith.constant 0 : i32
    return %c0_i32, %c0_i32_0 : i32, i32
  }
  func.func @transform_16(%arg0: i32) -> (i32, i32) {
    %c0_i32 = arith.constant 0 : i32
    %c0_i32_0 = arith.constant 0 : i32
    %c0_i32_1 = arith.constant 0 : i32
    return %c0_i32, %c0_i32_0 : i32, i32
  }
  func.func @transform_17(%arg0: i32) -> (i32, i32) {
    %c0_i32 = arith.constant 0 : i32
    %c0_i32_0 = arith.constant 0 : i32
    %c0_i32_1 = arith.constant 0 : i32
    return %c0_i32, %c0_i32_0 : i32, i32
  }
  func.func @transform_18(%arg0: i32) -> (i32, i32) {
    %c0_i32 = arith.constant 0 : i32
    %c0_i32_0 = arith.constant 0 : i32
    %c0_i32_1 = arith.constant 0 : i32
    return %c0_i32, %c0_i32_0 : i32, i32
  }
  func.func @transform_19(%arg0: i32) -> (i32, i32) {
    %c0_i32 = arith.constant 0 : i32
    %c0_i32_0 = arith.constant 0 : i32
    %c0_i32_1 = arith.constant 0 : i32
    return %c0_i32, %c0_i32_0 : i32, i32
  }
  func.func @transform_20(%arg0: i32) -> (i32, i32) {
    %c0_i32 = arith.constant 0 : i32
    %c0_i32_0 = arith.constant 0 : i32
    %c0_i32_1 = arith.constant 0 : i32
    return %c0_i32, %c0_i32_0 : i32, i32
  }
  func.func @transform_21(%arg0: i32) -> (i32, i32) {
    %c0_i32 = arith.constant 0 : i32
    %c0_i32_0 = arith.constant 0 : i32
    %c0_i32_1 = arith.constant 0 : i32
    return %c0_i32, %c0_i32_0 : i32, i32
  }
  func.func @transform_22(%arg0: i32) -> (i32, i32) {
    %c0_i32 = arith.constant 0 : i32
    %c0_i32_0 = arith.constant 0 : i32
    %c0_i32_1 = arith.constant 0 : i32
    return %c0_i32, %c0_i32_0 : i32, i32
  }
  func.func @transform_23(%arg0: i32) -> (i32, i32) {
    %c0_i32 = arith.constant 0 : i32
    %c0_i32_0 = arith.constant 0 : i32
    %c0_i32_1 = arith.constant 0 : i32
    return %c0_i32, %c0_i32_0 : i32, i32
  }
  func.func @transform_24(%arg0: i32) -> (i32, i32) {
    %c0_i32 = arith.constant 0 : i32
    %c0_i32_0 = arith.constant 0 : i32
    %c0_i32_1 = arith.constant 0 : i32
    return %c0_i32, %c0_i32_0 : i32, i32
  }
  func.func @transform_25(%arg0: i32) -> (i32, i32) {
    %c0_i32 = arith.constant 0 : i32
    %c0_i32_0 = arith.constant 0 : i32
    %c0_i32_1 = arith.constant 0 : i32
    return %c0_i32, %c0_i32_0 : i32, i32
  }
  func.func @transform_26(%arg0: i32) -> (i32, i32) {
    %c0_i32 = arith.constant 0 : i32
    %c0_i32_0 = arith.constant 0 : i32
    %c0_i32_1 = arith.constant 0 : i32
    return %c0_i32, %c0_i32_0 : i32, i32
  }
  func.func @transform_27(%arg0: i32) -> (i32, i32) {
    %c0_i32 = arith.constant 0 : i32
    %c0_i32_0 = arith.constant 0 : i32
    %c0_i32_1 = arith.constant 0 : i32
    return %c0_i32, %c0_i32_0 : i32, i32
  }
  func.func @transform_28(%arg0: i32) -> (i32, i32) {
    %c0_i32 = arith.constant 0 : i32
    %c0_i32_0 = arith.constant 0 : i32
    %c0_i32_1 = arith.constant 0 : i32
    return %c0_i32, %c0_i32_0 : i32, i32
  }
  func.func @transform_29(%arg0: i32) -> (i32, i32) {
    %c0_i32 = arith.constant 0 : i32
    %c0_i32_0 = arith.constant 0 : i32
    %c0_i32_1 = arith.constant 0 : i32
    return %c0_i32, %c0_i32_0 : i32, i32
  }
  func.func @transform_30(%arg0: i32) -> (i32, i32) {
    %c0_i32 = arith.constant 0 : i32
    %c0_i32_0 = arith.constant 0 : i32
    %c0_i32_1 = arith.constant 0 : i32
    return %c0_i32, %c0_i32_0 : i32, i32
  }
  func.func @transform_31(%arg0: i32) -> (i32, i32) {
    %c0_i32 = arith.constant 0 : i32
    %c0_i32_0 = arith.constant 0 : i32
    %c0_i32_1 = arith.constant 0 : i32
    return %c0_i32, %c0_i32_0 : i32, i32
  }
  func.func @transform_32(%arg0: i32) -> (i32, i32) {
    %c0_i32 = arith.constant 0 : i32
    %c0_i32_0 = arith.constant 0 : i32
    %c0_i32_1 = arith.constant 0 : i32
    return %c0_i32, %c0_i32_0 : i32, i32
  }
  func.func @transform_33(%arg0: i32) -> (i32, i32) {
    %c0_i32 = arith.constant 0 : i32
    %c0_i32_0 = arith.constant 0 : i32
    %c0_i32_1 = arith.constant 0 : i32
    return %c0_i32, %c0_i32_0 : i32, i32
  }
  func.func @transform_34(%arg0: i32) -> (i32, i32) {
    %c0_i32 = arith.constant 0 : i32
    %c0_i32_0 = arith.constant 0 : i32
    %c0_i32_1 = arith.constant 0 : i32
    return %c0_i32, %c0_i32_0 : i32, i32
  }
  func.func @transform_35(%arg0: i32) -> (i32, i32) {
    %c0_i32 = arith.constant 0 : i32
    %c0_i32_0 = arith.constant 0 : i32
    %c0_i32_1 = arith.constant 0 : i32
    return %c0_i32, %c0_i32_0 : i32, i32
  }
  func.func @transform_36(%arg0: i32) -> (i32, i32) {
    %c0_i32 = arith.constant 0 : i32
    %c0_i32_0 = arith.constant 0 : i32
    %c0_i32_1 = arith.constant 0 : i32
    return %c0_i32, %c0_i32_0 : i32, i32
  }
  func.func @transform_37(%arg0: i32) -> (i32, i32) {
    %c0_i32 = arith.constant 0 : i32
    %c0_i32_0 = arith.constant 0 : i32
    %c0_i32_1 = arith.constant 0 : i32
    return %c0_i32, %c0_i32_0 : i32, i32
  }
  func.func @transform_38(%arg0: i32) -> (i32, i32) {
    %c0_i32 = arith.constant 0 : i32
    %c0_i32_0 = arith.constant 0 : i32
    %c0_i32_1 = arith.constant 0 : i32
    return %c0_i32, %c0_i32_0 : i32, i32
  }
  func.func @transform_39(%arg0: i32) -> (i32, i32, i32) {
    %c0_i32 = arith.constant 0 : i32
    %c0_i32_0 = arith.constant 0 : i32
    %c0_i32_1 = arith.constant 0 : i32
    return %arg0, %c0_i32, %c0_i32_0 : i32, i32, i32
  }
  func.func @transform_40(%arg0: i32) -> (i32, i32, i32) {
    %c0_i32 = arith.constant 0 : i32
    %c0_i32_0 = arith.constant 0 : i32
    %c0_i32_1 = arith.constant 0 : i32
    return %arg0, %c0_i32, %c0_i32_0 : i32, i32, i32
  }
}

</mosaic_0001>

<llo_original>
// kernel: _lambda_.2
$region0: #{_lambda_.2}
  #allocation0 [shape = 'u32[]', space=smem, size = 0x4, offset = 0x4, fixed_abs, tag = 'smem constant byte address 0x4 - core index']
  #allocation1 [shape = 'u32[144,128]{1,0:T(1,128)}', space=vmem, size = 0x12000, scoped, tag = 'internal scratch']
  %s0 = inlined_call_operand.vmem [shape: f32[2,16,48], index: 0, kind: input, shape index: {}]
  %s1 = inlined_call_operand.vmem [shape: f32[48,32], index: 1, kind: input, shape index: {}]
  %s2 = inlined_call_operand.vmem [shape: f32[1,32], index: 2, kind: input, shape index: {}, may-alias: {2,5,9,11,15,17}]
  %s3 = inlined_call_operand.vmem [shape: f32[16,32], index: 3, kind: input, shape index: {}]
  %s4 = inlined_call_operand.vmem [shape: f32[1,32], index: 4, kind: input, shape index: {}, may-alias: {4,10}]
  %s5 = inlined_call_operand.vmem [shape: f32[1,32], index: 5, kind: input, shape index: {}, may-alias: {2,5,9,11,15,17}]
  %s6 = inlined_call_operand.vmem [shape: f32[32,384], index: 6, kind: input, shape index: {}]
  %s7 = inlined_call_operand.vmem [shape: f32[1,384], index: 7, kind: input, shape index: {}]
  %s8 = inlined_call_operand.vmem [shape: f32[32,32], index: 8, kind: input, shape index: {}]
  %s9 = inlined_call_operand.vmem [shape: f32[1,32], index: 9, kind: input, shape index: {}, may-alias: {2,5,9,11,15,17}]
  %s10 = inlined_call_operand.vmem [shape: f32[1,32], index: 10, kind: input, shape index: {}, may-alias: {4,10}]
  %s11 = inlined_call_operand.vmem [shape: f32[1,32], index: 11, kind: input, shape index: {}, may-alias: {2,5,9,11,15,17}]
  %s12 = inlined_call_operand.vmem [shape: f32[32,128], index: 12, kind: input, shape index: {}]
  %s13 = inlined_call_operand.vmem [shape: f32[1,128], index: 13, kind: input, shape index: {}]
  %s14 = inlined_call_operand.vmem [shape: f32[128,32], index: 14, kind: input, shape index: {}]
  %s15 = inlined_call_operand.vmem [shape: f32[1,32], index: 15, kind: input, shape index: {}, may-alias: {2,5,9,11,15,17}]
  %s16 = inlined_call_operand.vmem [shape: f32[32,32], index: 16, kind: input, shape index: {}]
  %s17 = inlined_call_operand.vmem [shape: f32[1,32], index: 17, kind: input, shape index: {}, may-alias: {2,5,9,11,15,17}]
  %s18 = inlined_call_operand.vmem [shape: f32[2,16,32], index: 18, kind: output, shape index: {}]
  %s19 = sld [smem:[#allocation0]]
  $region105: #{_lambda_.2} parent=0
    _
  %s21 = ssub.s32 1, %s19
  %s22 = scalar_select 0, %s21, %s19
  loop: start=0, step=1, limit=4
  $region2: #{_lambda_.2} parent=0 // loop_pre_header
    _
  $region3: #{_lambda_.2} parent=0 // loop_header
    %s24 = sphi 0, %s28
    %p25 = scmp.ge.s32.totalorder %s24, 4
    %s34 = sphi 0, %s36
    %s37 = sphi 0, %s34
    %s38 = sphi 0, %s37
    %s54 = sphi 0, %s38
    %s58 = sphi 0, %s58
    %s60 = sphi 0, %s58
    %s61 = sphi 0, %s60
    %s75 = sphi 0, %s61
    %s79 = sphi 0, %s79
    %s81 = sphi 0, %s79
    %s82 = sphi 0, %s81
    %s96 = sphi 0, %s82
    %s100 = sphi 0, %s100
    %s102 = sphi 0, %s100
    %s103 = sphi 0, %s102
    %s117 = sphi 0, %s103
    %s121 = sphi 0, %s121
    %s123 = sphi 0, %s121
    %s124 = sphi 0, %s123
    %s138 = sphi 0, %s124
    %s142 = sphi 0, %s142
    %s144 = sphi 0, %s142
    %s145 = sphi 0, %s144
    %s159 = sphi 0, %s145
    %s163 = sphi 0, %s163
    %s165 = sphi 0, %s163
    %s166 = sphi 0, %s165
    %s180 = sphi 0, %s166
    %s184 = sphi 0, %s184
    %s186 = sphi 0, %s184
    %s187 = sphi 0, %s186
    %s201 = sphi 0, %s187
    %s205 = sphi 0, %s205
    %s207 = sphi 0, %s205
    %s208 = sphi 0, %s207
    %s222 = sphi 0, %s208
    %s226 = sphi 0, %s226
    %s228 = sphi 0, %s226
    %s229 = sphi 0, %s228
    %s243 = sphi 0, %s229
    %s247 = sphi 0, %s247
    %s249 = sphi 0, %s247
    %s250 = sphi 0, %s249
    %s264 = sphi 0, %s250
    %s268 = sphi 0, %s268
    %s270 = sphi 0, %s268
    %s271 = sphi 0, %s270
    %s285 = sphi 0, %s271
    %s289 = sphi 0, %s289
    %s291 = sphi 0, %s289
    %s292 = sphi 0, %s291
    %s306 = sphi 0, %s292
    %s310 = sphi 0, %s310
    %s312 = sphi 0, %s310
    %s313 = sphi 0, %s312
    %s327 = sphi 0, %s313
    %s331 = sphi 0, %s331
    %s333 = sphi 0, %s331
    %s334 = sphi 0, %s333
    %s348 = sphi 0, %s334
    %s352 = sphi 0, %s352
    %s354 = sphi 0, %s352
    %s355 = sphi 0, %s354
    %s369 = sphi 0, %s355
    %s373 = sphi 0, %s373
    %s375 = sphi 0, %s373
    %s376 = sphi 0, %s375
    %s390 = sphi 0, %s376
    %s394 = sphi 0, %s394
    %s396 = sphi 0, %s394
    %s397 = sphi 0, %s396
    %s411 = sphi 0, %s397
    %s417 = sphi 0, %s419
    %s420 = sphi 0, %s417
    %s421 = sphi 0, %s420
    %s437 = sphi 0, %s421
  $region4: #{_lambda_.2} parent=0 // loop_header_branch
    %27 = sbr.rel (%p25) target = $region8
  $region5: #{_lambda_.2} parent=0 // loop_body
    %s29 = ssub.s32 %s24, 1
    %s30 = ssub.s32 %s24, 2
    %s31 = sadd.s32 %s24, 1
    %s32 = ssub.s32 %s24, %s31
    %p33 = scmp.eq.s32.totalorder %s32, 0
    %s35 = sadd.s32 %s34, 1
    %s36 = scalar_select %p33, %s34, %s35
    %p39 = pneg %p33
    %p40 = scmp.eq.s32.totalorder %s24, 1
    %p41 = por %p39, %p40
    %p42 = scmp.ne.s32.totalorder %s34, %s37
    %p43 = scmp.eq.s32.totalorder %s24, 0
    %p44 = por %p42, %p43
    %p45 = scmp.ne.s32.totalorder %s34, %s37
    %p46 = scmp.eq.s32.totalorder %s29, 1
    %p47 = por %p45, %p46
    %p48 = scmp.ne.s32.totalorder %s37, %s38
    %p49 = scmp.eq.s32.totalorder %s29, 0
    %p50 = por %p48, %p49
    %p51 = scmp.ne.s32.totalorder %s37, %s38
    %p52 = scmp.eq.s32.totalorder %s30, 1
    %p53 = por %p51, %p52
    %p55 = scmp.ne.s32.totalorder %s38, %s54
    %p56 = scmp.eq.s32.totalorder %s30, 0
    %p57 = por %p55, %p56
    %s59 = sadd.s32 %s58, 1
    %p62 = scmp.eq.s32.totalorder %s24, 1
    %p63 = scmp.ne.s32.totalorder %s58, %s60
    %p64 = scmp.eq.s32.totalorder %s24, 0
    %p65 = por %p63, %p64
    %p66 = scmp.ne.s32.totalorder %s58, %s60
    %p67 = scmp.eq.s32.totalorder %s29, 1
    %p68 = por %p66, %p67
    %p69 = scmp.ne.s32.totalorder %s60, %s61
    %p70 = scmp.eq.s32.totalorder %s29, 0
    %p71 = por %p69, %p70
    %p72 = scmp.ne.s32.totalorder %s60, %s61
    %p73 = scmp.eq.s32.totalorder %s30, 1
    %p74 = por %p72, %p73
    %p76 = scmp.ne.s32.totalorder %s61, %s75
    %p77 = scmp.eq.s32.totalorder %s30, 0
    %p78 = por %p76, %p77
    %s80 = sadd.s32 %s79, 1
    %p83 = scmp.eq.s32.totalorder %s24, 1
    %p84 = scmp.ne.s32.totalorder %s79, %s81
    %p85 = scmp.eq.s32.totalorder %s24, 0
    %p86 = por %p84, %p85
    %p87 = scmp.ne.s32.totalorder %s79, %s81
    %p88 = scmp.eq.s32.totalorder %s29, 1
    %p89 = por %p87, %p88
    %p90 = scmp.ne.s32.totalorder %s81, %s82
    %p91 = scmp.eq.s32.totalorder %s29, 0
    %p92 = por %p90, %p91
    %p93 = scmp.ne.s32.totalorder %s81, %s82
    %p94 = scmp.eq.s32.totalorder %s30, 1
    %p95 = por %p93, %p94
    %p97 = scmp.ne.s32.totalorder %s82, %s96
    %p98 = scmp.eq.s32.totalorder %s30, 0
    %p99 = por %p97, %p98
    %s101 = sadd.s32 %s100, 1
    %p104 = scmp.eq.s32.totalorder %s24, 1
    %p105 = scmp.ne.s32.totalorder %s100, %s102
    %p106 = scmp.eq.s32.totalorder %s24, 0
    %p107 = por %p105, %p106
    %p108 = scmp.ne.s32.totalorder %s100, %s102
    %p109 = scmp.eq.s32.totalorder %s29, 1
    %p110 = por %p108, %p109
    %p111 = scmp.ne.s32.totalorder %s102, %s103
    %p112 = scmp.eq.s32.totalorder %s29, 0
    %p113 = por %p111, %p112
    %p114 = scmp.ne.s32.totalorder %s102, %s103
    %p115 = scmp.eq.s32.totalorder %s30, 1
    %p116 = por %p114, %p115
    %p118 = scmp.ne.s32.totalorder %s103, %s117
    %p119 = scmp.eq.s32.totalorder %s30, 0
    %p120 = por %p118, %p119
    %s122 = sadd.s32 %s121, 1
    %p125 = scmp.eq.s32.totalorder %s24, 1
    %p126 = scmp.ne.s32.totalorder %s121, %s123
    %p127 = scmp.eq.s32.totalorder %s24, 0
    %p128 = por %p126, %p127
    %p129 = scmp.ne.s32.totalorder %s121, %s123
    %p130 = scmp.eq.s32.totalorder %s29, 1
    %p131 = por %p129, %p130
    %p132 = scmp.ne.s32.totalorder %s123, %s124
    %p133 = scmp.eq.s32.totalorder %s29, 0
    %p134 = por %p132, %p133
    %p135 = scmp.ne.s32.totalorder %s123, %s124
    %p136 = scmp.eq.s32.totalorder %s30, 1
    %p137 = por %p135, %p136
    %p139 = scmp.ne.s32.totalorder %s124, %s138
    %p140 = scmp.eq.s32.totalorder %s30, 0
    %p141 = por %p139, %p140
    %s143 = sadd.s32 %s142, 1
    %p146 = scmp.eq.s32.totalorder %s24, 1
    %p147 = scmp.ne.s32.totalorder %s142, %s144
    %p148 = scmp.eq.s32.totalorder %s24, 0
    %p149 = por %p147, %p148
    %p150 = scmp.ne.s32.totalorder %s142, %s144
    %p151 = scmp.eq.s32.totalorder %s29, 1
    %p152 = por %p150, %p151
    %p153 = scmp.ne.s32.totalorder %s144, %s145
    %p154 = scmp.eq.s32.totalorder %s29, 0
    %p155 = por %p153, %p154
    %p156 = scmp.ne.s32.totalorder %s144, %s145
    %p157 = scmp.eq.s32.totalorder %s30, 1
    %p158 = por %p156, %p157
    %p160 = scmp.ne.s32.totalorder %s145, %s159
    %p161 = scmp.eq.s32.totalorder %s30, 0
    %p162 = por %p160, %p161
    %s164 = sadd.s32 %s163, 1
    %p167 = scmp.eq.s32.totalorder %s24, 1
    %p168 = scmp.ne.s32.totalorder %s163, %s165
    %p169 = scmp.eq.s32.totalorder %s24, 0
    %p170 = por %p168, %p169
    %p171 = scmp.ne.s32.totalorder %s163, %s165
    %p172 = scmp.eq.s32.totalorder %s29, 1
    %p173 = por %p171, %p172
    %p174 = scmp.ne.s32.totalorder %s165, %s166
    %p175 = scmp.eq.s32.totalorder %s29, 0
    %p176 = por %p174, %p175
    %p177 = scmp.ne.s32.totalorder %s165, %s166
    %p178 = scmp.eq.s32.totalorder %s30, 1
    %p179 = por %p177, %p178
    %p181 = scmp.ne.s32.totalorder %s166, %s180
    %p182 = scmp.eq.s32.totalorder %s30, 0
    %p183 = por %p181, %p182
    %s185 = sadd.s32 %s184, 1
    %p188 = scmp.eq.s32.totalorder %s24, 1
    %p189 = scmp.ne.s32.totalorder %s184, %s186
    %p190 = scmp.eq.s32.totalorder %s24, 0
    %p191 = por %p189, %p190
    %p192 = scmp.ne.s32.totalorder %s184, %s186
    %p193 = scmp.eq.s32.totalorder %s29, 1
    %p194 = por %p192, %p193
    %p195 = scmp.ne.s32.totalorder %s186, %s187
    %p196 = scmp.eq.s32.totalorder %s29, 0
    %p197 = por %p195, %p196
    %p198 = scmp.ne.s32.totalorder %s186, %s187
    %p199 = scmp.eq.s32.totalorder %s30, 1
    %p200 = por %p198, %p199
    %p202 = scmp.ne.s32.totalorder %s187, %s201
    %p203 = scmp.eq.s32.totalorder %s30, 0
    %p204 = por %p202, %p203
    %s206 = sadd.s32 %s205, 1
    %p209 = scmp.eq.s32.totalorder %s24, 1
    %p210 = scmp.ne.s32.totalorder %s205, %s207
    %p211 = scmp.eq.s32.totalorder %s24, 0
    %p212 = por %p210, %p211
    %p213 = scmp.ne.s32.totalorder %s205, %s207
    %p214 = scmp.eq.s32.totalorder %s29, 1
    %p215 = por %p213, %p214
    %p216 = scmp.ne.s32.totalorder %s207, %s208
    %p217 = scmp.eq.s32.totalorder %s29, 0
    %p218 = por %p216, %p217
    %p219 = scmp.ne.s32.totalorder %s207, %s208
    %p220 = scmp.eq.s32.totalorder %s30, 1
    %p221 = por %p219, %p220
    %p223 = scmp.ne.s32.totalorder %s208, %s222
    %p224 = scmp.eq.s32.totalorder %s30, 0
    %p225 = por %p223, %p224
    %s227 = sadd.s32 %s226, 1
    %p230 = scmp.eq.s32.totalorder %s24, 1
    %p231 = scmp.ne.s32.totalorder %s226, %s228
    %p232 = scmp.eq.s32.totalorder %s24, 0
    %p233 = por %p231, %p232
    %p234 = scmp.ne.s32.totalorder %s226, %s228
    %p235 = scmp.eq.s32.totalorder %s29, 1
    %p236 = por %p234, %p235
    %p237 = scmp.ne.s32.totalorder %s228, %s229
    %p238 = scmp.eq.s32.totalorder %s29, 0
    %p239 = por %p237, %p238
    %p240 = scmp.ne.s32.totalorder %s228, %s229
    %p241 = scmp.eq.s32.totalorder %s30, 1
    %p242 = por %p240, %p241
    %p244 = scmp.ne.s32.totalorder %s229, %s243
    %p245 = scmp.eq.s32.totalorder %s30, 0
    %p246 = por %p244, %p245
    %s248 = sadd.s32 %s247, 1
    %p251 = scmp.eq.s32.totalorder %s24, 1
    %p252 = scmp.ne.s32.totalorder %s247, %s249
    %p253 = scmp.eq.s32.totalorder %s24, 0
    %p254 = por %p252, %p253
    %p255 = scmp.ne.s32.totalorder %s247, %s249
    %p256 = scmp.eq.s32.totalorder %s29, 1
    %p257 = por %p255, %p256
    %p258 = scmp.ne.s32.totalorder %s249, %s250
    %p259 = scmp.eq.s32.totalorder %s29, 0
    %p260 = por %p258, %p259
    %p261 = scmp.ne.s32.totalorder %s249, %s250
    %p262 = scmp.eq.s32.totalorder %s30, 1
    %p263 = por %p261, %p262
    %p265 = scmp.ne.s32.totalorder %s250, %s264
    %p266 = scmp.eq.s32.totalorder %s30, 0
    %p267 = por %p265, %p266
    %s269 = sadd.s32 %s268, 1
    %p272 = scmp.eq.s32.totalorder %s24, 1
    %p273 = scmp.ne.s32.totalorder %s268, %s270
    %p274 = scmp.eq.s32.totalorder %s24, 0
    %p275 = por %p273, %p274
    %p276 = scmp.ne.s32.totalorder %s268, %s270
    %p277 = scmp.eq.s32.totalorder %s29, 1
    %p278 = por %p276, %p277
    %p279 = scmp.ne.s32.totalorder %s270, %s271
    %p280 = scmp.eq.s32.totalorder %s29, 0
    %p281 = por %p279, %p280
    %p282 = scmp.ne.s32.totalorder %s270, %s271
    %p283 = scmp.eq.s32.totalorder %s30, 1
    %p284 = por %p282, %p283
    %p286 = scmp.ne.s32.totalorder %s271, %s285
    %p287 = scmp.eq.s32.totalorder %s30, 0
    %p288 = por %p286, %p287
    %s290 = sadd.s32 %s289, 1
    %p293 = scmp.eq.s32.totalorder %s24, 1
    %p294 = scmp.ne.s32.totalorder %s289, %s291
    %p295 = scmp.eq.s32.totalorder %s24, 0
    %p296 = por %p294, %p295
    %p297 = scmp.ne.s32.totalorder %s289, %s291
    %p298 = scmp.eq.s32.totalorder %s29, 1
    %p299 = por %p297, %p298
    %p300 = scmp.ne.s32.totalorder %s291, %s292
    %p301 = scmp.eq.s32.totalorder %s29, 0
    %p302 = por %p300, %p301
    %p303 = scmp.ne.s32.totalorder %s291, %s292
    %p304 = scmp.eq.s32.totalorder %s30, 1
    %p305 = por %p303, %p304
    %p307 = scmp.ne.s32.totalorder %s292, %s306
    %p308 = scmp.eq.s32.totalorder %s30, 0
    %p309 = por %p307, %p308
    %s311 = sadd.s32 %s310, 1
    %p314 = scmp.eq.s32.totalorder %s24, 1
    %p315 = scmp.ne.s32.totalorder %s310, %s312
    %p316 = scmp.eq.s32.totalorder %s24, 0
    %p317 = por %p315, %p316
    %p318 = scmp.ne.s32.totalorder %s310, %s312
    %p319 = scmp.eq.s32.totalorder %s29, 1
    %p320 = por %p318, %p319
    %p321 = scmp.ne.s32.totalorder %s312, %s313
    %p322 = scmp.eq.s32.totalorder %s29, 0
    %p323 = por %p321, %p322
    %p324 = scmp.ne.s32.totalorder %s312, %s313
    %p325 = scmp.eq.s32.totalorder %s30, 1
    %p326 = por %p324, %p325
    %p328 = scmp.ne.s32.totalorder %s313, %s327
    %p329 = scmp.eq.s32.totalorder %s30, 0
    %p330 = por %p328, %p329
    %s332 = sadd.s32 %s331, 1
    %p335 = scmp.eq.s32.totalorder %s24, 1
    %p336 = scmp.ne.s32.totalorder %s331, %s333
    %p337 = scmp.eq.s32.totalorder %s24, 0
    %p338 = por %p336, %p337
    %p339 = scmp.ne.s32.totalorder %s331, %s333
    %p340 = scmp.eq.s32.totalorder %s29, 1
    %p341 = por %p339, %p340
    %p342 = scmp.ne.s32.totalorder %s333, %s334
    %p343 = scmp.eq.s32.totalorder %s29, 0
    %p344 = por %p342, %p343
    %p345 = scmp.ne.s32.totalorder %s333, %s334
    %p346 = scmp.eq.s32.totalorder %s30, 1
    %p347 = por %p345, %p346
    %p349 = scmp.ne.s32.totalorder %s334, %s348
    %p350 = scmp.eq.s32.totalorder %s30, 0
    %p351 = por %p349, %p350
    %s353 = sadd.s32 %s352, 1
    %p356 = scmp.eq.s32.totalorder %s24, 1
    %p357 = scmp.ne.s32.totalorder %s352, %s354
    %p358 = scmp.eq.s32.totalorder %s24, 0
    %p359 = por %p357, %p358
    %p360 = scmp.ne.s32.totalorder %s352, %s354
    %p361 = scmp.eq.s32.totalorder %s29, 1
    %p362 = por %p360, %p361
    %p363 = scmp.ne.s32.totalorder %s354, %s355
    %p364 = scmp.eq.s32.totalorder %s29, 0
    %p365 = por %p363, %p364
    %p366 = scmp.ne.s32.totalorder %s354, %s355
    %p367 = scmp.eq.s32.totalorder %s30, 1
    %p368 = por %p366, %p367
    %p370 = scmp.ne.s32.totalorder %s355, %s369
    %p371 = scmp.eq.s32.totalorder %s30, 0
    %p372 = por %p370, %p371
    %s374 = sadd.s32 %s373, 1
    %p377 = scmp.eq.s32.totalorder %s24, 1
    %p378 = scmp.ne.s32.totalorder %s373, %s375
    %p379 = scmp.eq.s32.totalorder %s24, 0
    %p380 = por %p378, %p379
    %p381 = scmp.ne.s32.totalorder %s373, %s375
    %p382 = scmp.eq.s32.totalorder %s29, 1
    %p383 = por %p381, %p382
    %p384 = scmp.ne.s32.totalorder %s375, %s376
    %p385 = scmp.eq.s32.totalorder %s29, 0
    %p386 = por %p384, %p385
    %p387 = scmp.ne.s32.totalorder %s375, %s376
    %p388 = scmp.eq.s32.totalorder %s30, 1
    %p389 = por %p387, %p388
    %p391 = scmp.ne.s32.totalorder %s376, %s390
    %p392 = scmp.eq.s32.totalorder %s30, 0
    %p393 = por %p391, %p392
    %s395 = sadd.s32 %s394, 1
    %p398 = scmp.eq.s32.totalorder %s24, 1
    %p399 = scmp.ne.s32.totalorder %s394, %s396
    %p400 = scmp.eq.s32.totalorder %s24, 0
    %p401 = por %p399, %p400
    %p402 = scmp.ne.s32.totalorder %s394, %s396
    %p403 = scmp.eq.s32.totalorder %s29, 1
    %p404 = por %p402, %p403
    %p405 = scmp.ne.s32.totalorder %s396, %s397
    %p406 = scmp.eq.s32.totalorder %s29, 0
    %p407 = por %p405, %p406
    %p408 = scmp.ne.s32.totalorder %s396, %s397
    %p409 = scmp.eq.s32.totalorder %s30, 1
    %p410 = por %p408, %p409
    %p412 = scmp.ne.s32.totalorder %s397, %s411
    %p413 = scmp.eq.s32.totalorder %s30, 0
    %p414 = por %p412, %p413
    %s415 = ssub.s32 %s24, %s31
    %p416 = scmp.eq.s32.totalorder %s415, 0
    %s418 = sadd.s32 %s417, 1
    %s419 = scalar_select %p416, %s417, %s418
    %p422 = pneg %p416
    %p423 = scmp.eq.s32.totalorder %s24, 1
    %p424 = por %p422, %p423
    %p425 = scmp.ne.s32.totalorder %s417, %s420
    %p426 = scmp.eq.s32.totalorder %s24, 0
    %p427 = por %p425, %p426
    %p428 = scmp.ne.s32.totalorder %s417, %s420
    %p429 = scmp.eq.s32.totalorder %s29, 1
    %p430 = por %p428, %p429
    %p431 = scmp.ne.s32.totalorder %s420, %s421
    %p432 = scmp.eq.s32.totalorder %s29, 0
    %p433 = por %p431, %p432
    %p434 = scmp.ne.s32.totalorder %s420, %s421
    %p435 = scmp.eq.s32.totalorder %s30, 1
    %p436 = por %p434, %p435
    %p438 = scmp.ne.s32.totalorder %s421, %s437
    %p439 = scmp.eq.s32.totalorder %s30, 0
    %p440 = por %p438, %p439
    %p441 = scmp.le.s32.totalorder 1, %s24
    %p442 = scmp.lt.s32.totalorder %s24, 3
    %p443 = pnand %p441, %p442
    %p444 = pneg %p443
    // Predicated region
    $region9: #{_lambda_.2} parent=5 // pred_check
      _
    $region10: #{_lambda_.2} parent=5 // pred_check_branch
      %446 = sbr.rel (%p443) target = $region12
    $region11: #{_lambda_.2} parent=5 // pred_region
      %s447 = ssub.s32 %s24, 1
      // Predicated region
      $region13: #{_lambda_.2} parent=11 // pred_check
        %p448 = pneg %p71
      $region14: #{_lambda_.2} parent=11 // pred_check_branch
        %450 = sbr.rel (%p448) target = $region16
      $region15: #{_lambda_.2} parent=11 // pred_region
        _
      $region16: #{_lambda_.2} parent=11 // pred_fallthru
        _
      // Predicated region
      $region17: #{_lambda_.2} parent=11 // pred_check
        %p451 = pneg %p92
      $region18: #{_lambda_.2} parent=11 // pred_check_branch
        %453 = sbr.rel (%p451) target = $region20
      $region19: #{_lambda_.2} parent=11 // pred_region
        _
      $region20: #{_lambda_.2} parent=11 // pred_fallthru
        _
      // Predicated region
      $region21: #{_lambda_.2} parent=11 // pred_check
        %p454 = pneg %p113
      $region22: #{_lambda_.2} parent=11 // pred_check_branch
        %456 = sbr.rel (%p454) target = $region24
      $region23: #{_lambda_.2} parent=11 // pred_region
        _
      $region24: #{_lambda_.2} parent=11 // pred_fallthru
        _
      // Predicated region
      $region25: #{_lambda_.2} parent=11 // pred_check
        %p457 = pneg %p134
      $region26: #{_lambda_.2} parent=11 // pred_check_branch
        %459 = sbr.rel (%p457) target = $region28
      $region27: #{_lambda_.2} parent=11 // pred_region
        _
      $region28: #{_lambda_.2} parent=11 // pred_fallthru
        _
      // Predicated region
      $region29: #{_lambda_.2} parent=11 // pred_check
        %p460 = pneg %p155
      $region30: #{_lambda_.2} parent=11 // pred_check_branch
        %462 = sbr.rel (%p460) target = $region32
      $region31: #{_lambda_.2} parent=11 // pred_region
        _
      $region32: #{_lambda_.2} parent=11 // pred_fallthru
        _
      // Predicated region
      $region33: #{_lambda_.2} parent=11 // pred_check
        %p463 = pneg %p176
      $region34: #{_lambda_.2} parent=11 // pred_check_branch
        %465 = sbr.rel (%p463) target = $region36
      $region35: #{_lambda_.2} parent=11 // pred_region
        _
      $region36: #{_lambda_.2} parent=11 // pred_fallthru
        _
      // Predicated region
      $region37: #{_lambda_.2} parent=11 // pred_check
        %p466 = pneg %p197
      $region38: #{_lambda_.2} parent=11 // pred_check_branch
        %468 = sbr.rel (%p466) target = $region40
      $region39: #{_lambda_.2} parent=11 // pred_region
        _
      $region40: #{_lambda_.2} parent=11 // pred_fallthru
        _
      // Predicated region
      $region41: #{_lambda_.2} parent=11 // pred_check
        %p469 = pneg %p218
      $region42: #{_lambda_.2} parent=11 // pred_check_branch
        %471 = sbr.rel (%p469) target = $region44
      $region43: #{_lambda_.2} parent=11 // pred_region
        _
      $region44: #{_lambda_.2} parent=11 // pred_fallthru
        _
      // Predicated region
      $region45: #{_lambda_.2} parent=11 // pred_check
        %p472 = pneg %p239
      $region46: #{_lambda_.2} parent=11 // pred_check_branch
        %474 = sbr.rel (%p472) target = $region48
      $region47: #{_lambda_.2} parent=11 // pred_region
        _
      $region48: #{_lambda_.2} parent=11 // pred_fallthru
        _
      // Predicated region
      $region49: #{_lambda_.2} parent=11 // pred_check
        %p475 = pneg %p260
      $region50: #{_lambda_.2} parent=11 // pred_check_branch
        %477 = sbr.rel (%p475) target = $region52
      $region51: #{_lambda_.2} parent=11 // pred_region
        _
      $region52: #{_lambda_.2} parent=11 // pred_fallthru
        _
      // Predicated region
      $region53: #{_lambda_.2} parent=11 // pred_check
        %p478 = pneg %p281
      $region54: #{_lambda_.2} parent=11 // pred_check_branch
        %480 = sbr.rel (%p478) target = $region56
      $region55: #{_lambda_.2} parent=11 // pred_region
        _
      $region56: #{_lambda_.2} parent=11 // pred_fallthru
        _
      // Predicated region
      $region57: #{_lambda_.2} parent=11 // pred_check
        %p481 = pneg %p302
      $region58: #{_lambda_.2} parent=11 // pred_check_branch
        %483 = sbr.rel (%p481) target = $region60
      $region59: #{_lambda_.2} parent=11 // pred_region
        _
      $region60: #{_lambda_.2} parent=11 // pred_fallthru
        _
      // Predicated region
      $region61: #{_lambda_.2} parent=11 // pred_check
        %p484 = pneg %p323
      $region62: #{_lambda_.2} parent=11 // pred_check_branch
        %486 = sbr.rel (%p484) target = $region64
      $region63: #{_lambda_.2} parent=11 // pred_region
        _
      $region64: #{_lambda_.2} parent=11 // pred_fallthru
        _
      // Predicated region
      $region65: #{_lambda_.2} parent=11 // pred_check
        %p487 = pneg %p344
      $region66: #{_lambda_.2} parent=11 // pred_check_branch
        %489 = sbr.rel (%p487) target = $region68
      $region67: #{_lambda_.2} parent=11 // pred_region
        _
      $region68: #{_lambda_.2} parent=11 // pred_fallthru
        _
      // Predicated region
      $region69: #{_lambda_.2} parent=11 // pred_check
        %p490 = pneg %p365
      $region70: #{_lambda_.2} parent=11 // pred_check_branch
        %492 = sbr.rel (%p490) target = $region72
      $region71: #{_lambda_.2} parent=11 // pred_region
        _
      $region72: #{_lambda_.2} parent=11 // pred_fallthru
        _
      // Predicated region
      $region73: #{_lambda_.2} parent=11 // pred_check
        %p493 = pneg %p386
      $region74: #{_lambda_.2} parent=11 // pred_check_branch
        %495 = sbr.rel (%p493) target = $region76
      $region75: #{_lambda_.2} parent=11 // pred_region
        _
      $region76: #{_lambda_.2} parent=11 // pred_fallthru
        _
      // Predicated region
      $region77: #{_lambda_.2} parent=11 // pred_check
        %p496 = pneg %p407
      $region78: #{_lambda_.2} parent=11 // pred_check_branch
        %498 = sbr.rel (%p496) target = $region80
      $region79: #{_lambda_.2} parent=11 // pred_region
        _
      $region80: #{_lambda_.2} parent=11 // pred_fallthru
        _
    $region12: #{_lambda_.2} parent=5 // pred_fallthru
      _
    %p499 = scmp.lt.s32.totalorder %s24, 2
    // Predicated region
    $region81: #{_lambda_.2} parent=5 // pred_check
      %p500 = pneg %p499
    $region82: #{_lambda_.2} parent=5 // pred_check_branch
      %502 = sbr.rel (%p500) target = $region84
    $region83: #{_lambda_.2} parent=5 // pred_region
      // Predicated region
      $region85: #{_lambda_.2} parent=83 // pred_check
        %p503 = pneg %p44
      $region86: #{_lambda_.2} parent=83 // pred_check_branch
        %505 = sbr.rel (%p503) target = $region88
      $region87: #{_lambda_.2} parent=83 // pred_region
        %p506 = scmp.lt.s32.totalorder %s24, 1
        %s507 = scalar_select %p506, %s24, 1
        %s508 = smul.addr %s507, 2
        %s509 = smul.addr %s508, 8
        %s510 = scalar_lea.vmem %s0, %s509
      $region88: #{_lambda_.2} parent=83 // pred_fallthru
        _
    $region84: #{_lambda_.2} parent=5 // pred_fallthru
      _
    %p511 = scmp.le.s32.totalorder 1, %s24
    %p512 = scmp.lt.s32.totalorder %s24, 3
    %p513 = pnand %p511, %p512
    %p514 = pneg %p513
    // Predicated region
    $region89: #{_lambda_.2} parent=5 // pred_check
      _
    $region90: #{_lambda_.2} parent=5 // pred_check_branch
      %516 = sbr.rel (%p513) target = $region92
    $region91: #{_lambda_.2} parent=5 // pred_region
      %s517 = ssub.s32 %s24, 1
      %p518 = scmp.lt.s32.totalorder %s29, 1
      %s519 = scalar_select %p518, %s29, 1
      %s520 = smul.addr %s519, 2
      %s521 = smul.addr %s520, 8
      %s522 = scalar_lea.vmem %s0, %s521
      %p523 = pneg %p50
      %p524 = pneg %p47
      %p525 = pneg %p71
      %p526 = pneg %p68
      %p527 = pneg %p92
      %p528 = pneg %p89
      %p529 = pneg %p113
      %p530 = pneg %p110
      %p531 = pneg %p134
      %p532 = pneg %p131
      %p533 = pneg %p155
      %p534 = pneg %p152
      %p535 = pneg %p176
      %p536 = pneg %p173
      %p537 = pneg %p197
      %p538 = pneg %p194
      %p539 = pneg %p218
      %p540 = pneg %p215
      %p541 = pneg %p239
      %p542 = pneg %p236
      %p543 = pneg %p260
      %p544 = pneg %p257
      %p545 = pneg %p281
      %p546 = pneg %p278
      %p547 = pneg %p302
      %p548 = pneg %p299
      %p549 = pneg %p323
      %p550 = pneg %p320
      %p551 = pneg %p344
      %p552 = pneg %p341
      %p553 = pneg %p365
      %p554 = pneg %p362
      %p555 = pneg %p386
      %p556 = pneg %p383
      %p557 = pneg %p407
      %p558 = pneg %p404
      %p559 = pneg %p433
      %p560 = pneg %p430
      %p561 = scmp.lt.s32.totalorder %s29, 1
      %s562 = scalar_select %p561, %s29, 1
      %s563 = smul.addr %s562, 2
      %s564 = smul.addr %s563, 8
      %s565 = scalar_lea.vmem %s18, %s564
      %p566 = scmp.lt.s32.totalorder %s29, 1
      %s567 = scalar_select %p566, %s29, 1
      %s568 = smul.addr %s567, 2
      %s569 = smul.addr %s568, 8
      %s570 = scalar_lea.vmem %s0, %s569
      %p571 = scmp.lt.s32.totalorder %s29, 1
      %s572 = scalar_select %p571, %s29, 1
      %s573 = smul.addr %s572, 2
      %s574 = smul.addr %s573, 8
      %s575 = scalar_lea.vmem %s18, %s574
      %v576 = vld [vmem:[%s570] sm:$0xff]
      %v577 = vld [vmem:[%s570 + $0x8] sm:$0xff]
      %v578 = vld [vmem:[%s1] sm:$0xff]
      %v579 = vld [vmem:[%s1 + $0x8] sm:$0xff]
      %v580 = vld [vmem:[%s1 + $0x10] sm:$0xff]
      %v581 = vld [vmem:[%s1 + $0x18] sm:$0xff]
      %v582 = vld [vmem:[%s1 + $0x20] sm:$0xff]
      %v583 = vld [vmem:[%s1 + $0x28] sm:$0xff]
      %v584 = vld [vmem:[%s2] sm:$0x1]
      %v586 = vlaneseq
      %v587 = vshrl.u32 %v586, 7
      %v588 = vsub.s32 0, %v587
      %v589 = vrot.slane %v584, %v588
      %vm591 = vcmask 392192
      %v593 = vsel %vm591, %v576, 0
      %v596 = vsel %vm591, %v577, 0
      %598 = vmatprep.subr.mxu0 0.0
      %599 = vmatpush1.msra.mxu0 0.0
      %600 = vmatprep.subr.mxu0 0.0
      %601 = vmatpush1.msra.mxu0 0.0
      %602 = vmatprep.subr.mxu0 0.0
      %603 = vmatpush1.msra.mxu0 0.0
      %604 = vmatprep.subr.mxu0 0.0
      %605 = vmatpush1.msra.mxu0 0.0
      %606 = vmatprep.subr.mxu0 0.0
      %607 = vmatpush1.msra.mxu0 0.0
      %608 = vmatprep.subr.mxu0 0.0
      %609 = vmatpush1.msra.mxu0 0.0
      %610 = vmatprep.subr.mxu0 0.0
      %611 = vmatpush1.msra.mxu0 0.0
      %612 = vmatprep.subr.mxu0 0.0
      %613 = vmatpush1.msra.mxu0 0.0
      %614 = vmatprep.subr.mxu0 0.0
      %615 = vmatpush1.msra.mxu0 0.0
      %616 = vmatprep.subr.mxu0 0.0
      %617 = vmatpush1.msra.mxu0 0.0
      %618 = vmatprep.subr.mxu0 0.0
      %619 = vmatpush1.msra.mxu0 %v583
      %620 = vmatprep.subr.mxu0 0.0
      %621 = vmatpush1.msra.mxu0 %v582
      %622 = vmatprep.subr.mxu0 0.0
      %623 = vmatpush1.msra.mxu0 %v581
      %624 = vmatprep.subr.mxu0 0.0
      %625 = vmatpush1.msra.mxu0 %v580
      %626 = vmatprep.subr.mxu0 0.0
      %627 = vmatpush1.msra.mxu0 %v579
      %628 = vmatprep.subr.mxu0 0.0
      %629 = vmatpush1.msra.mxu0 %v578
      %630 = vmatprep.subr.mxu0 0.0
      %631 = vmatpush2.msra.mxu0 0.0
      %632 = vmatprep.subr.mxu0 0.0
      %633 = vmatpush2.msra.mxu0 0.0
      %634 = vmatprep.subr.mxu0 0.0
      %635 = vmatpush2.msra.mxu0 0.0
      %636 = vmatprep.subr.mxu0 0.0
      %637 = vmatpush2.msra.mxu0 0.0
      %638 = vmatprep.subr.mxu0 0.0
      %639 = vmatpush2.msra.mxu0 0.0
      %640 = vmatprep.subr.mxu0 0.0
      %641 = vmatpush2.msra.mxu0 0.0
      %642 = vmatprep.subr.mxu0 0.0
      %643 = vmatpush2.msra.mxu0 0.0
      %644 = vmatprep.subr.mxu0 0.0
      %645 = vmatpush2.msra.mxu0 0.0
      %646 = vmatprep.subr.mxu0 0.0
      %647 = vmatpush2.msra.mxu0 0.0
      %648 = vmatprep.subr.mxu0 0.0
      %649 = vmatpush2.msra.mxu0 0.0
      %650 = vmatprep.subr.mxu0 0.0
      %651 = vmatpush2.msra.mxu0 0.0
      %652 = vmatprep.subr.mxu0 0.0
      %653 = vmatpush2.msra.mxu0 0.0
      %654 = vmatprep.subr.mxu0 0.0
      %655 = vmatpush2.msra.mxu0 0.0
      %656 = vmatprep.subr.mxu0 0.0
      %657 = vmatpush2.msra.mxu0 0.0
      %658 = vmatprep.subr.mxu0 0.0
      %659 = vmatpush2.msra.mxu0 0.0
      %660 = vmatprep.subr.mxu0 0.0
      %661 = vmatpush2.msra.mxu0 0.0
      %662 = vmatprep.mubr.f32.mxu0 0.0
      %663 = vmatmul.mubr.f32.gmra.mxu0 %v593
      %v664 = vpop.f32.mrf.mxu0
      %v665 = vadd.f32 %v589, %v664
      %v666 = vpop.f32.mrf.mxu0
      %667 = vmatprep.mubr.f32.mxu0 0.0
      %668 = vmatmul.mubr.f32.gmra.mxu0 %v596
      %v669 = vpop.f32.mrf.mxu0
      %v670 = vadd.f32 %v589, %v669
      %v671 = vpop.f32.mrf.mxu0
      %672 = vdwg.mxu0
      %v673 = vld [vmem:[%s3] sm:$0xff]
      %v674 = vld [vmem:[%s3 + $0x8] sm:$0xff]
      %v675 = vadd.f32 %v665, %v673
      %v676 = vadd.f32 %v670, %v674
      %v677 = vld [vmem:[%s4] sm:$0x1]
      %v678 = vld [vmem:[%s5] sm:$0x1]
      %vm679 = vcmask 261120
      %v680 = vsel %vm679, %v675, 0.0
      %681 = vadd.xlane.f32.xlu0 %v680
      %v682 = vpop.xlane.xlu0 %681
      %v683 = vsel %vm679, %v676, 0.0
      %684 = vadd.xlane.f32.xlu0 %v683
      %v685 = vpop.xlane.xlu0 %684
      %v686 = vrcp.pop 32.0
      %v687 = vmul.f32 %v682, %v686
      %v688 = vmul.f32 %v685, %v686
      %v689 = vsub.f32 %v675, %v687
      %v690 = vsub.f32 %v676, %v688
      %v691 = vmul.f32 %v689, %v689
      %v692 = vmul.f32 %v690, %v690
      %v693 = vsel %vm679, %v691, 0.0
      %694 = vadd.xlane.f32.xlu0 %v693
      %v695 = vpop.xlane.xlu0 %694
      %v696 = vsel %vm679, %v692, 0.0
      %697 = vadd.xlane.f32.xlu0 %v696
      %v698 = vpop.xlane.xlu0 %697
      %v699 = vmul.f32 %v695, %v686
      %v700 = vmul.f32 %v698, %v686
      %v701 = vadd.f32 %v699, 1e-05
      %v702 = vadd.f32 %v700, 1e-05
      %v703 = vrsqrt.pop %v701
      %v704 = vrsqrt.pop %v702
      %v705 = vmul.f32 %v689, %v703
      %v706 = vmul.f32 %v690, %v704
      %v708 = vlaneseq
      %v709 = vshrl.u32 %v708, 7
      %v710 = vsub.s32 0, %v709
      %v711 = vrot.slane %v677, %v710
      %v713 = vmul.f32 %v705, %v711
      %v714 = vmul.f32 %v706, %v711
      %v716 = vlaneseq
      %v717 = vshrl.u32 %v716, 7
      %v718 = vsub.s32 0, %v717
      %v719 = vrot.slane %v678, %v718
      %v721 = vadd.f32 %v713, %v719
      %v722 = vadd.f32 %v714, %v719
      %v723 = vld [vmem:[%s6] sm:$0xff]
      %v724 = vld [vmem:[%s6 + $0x8] sm:$0xff]
      %v725 = vld [vmem:[%s6 + $0x10] sm:$0xff]
      %v726 = vld [vmem:[%s6 + $0x18] sm:$0xff]
      %v727 = vld [vmem:[%s6 + $0x20] sm:$0xff]
      %v728 = vld [vmem:[%s6 + $0x28] sm:$0xff]
      %v729 = vld [vmem:[%s6 + $0x30] sm:$0xff]
      %v730 = vld [vmem:[%s6 + $0x38] sm:$0xff]
      %v731 = vld [vmem:[%s6 + $0x40] sm:$0xff]
      %v732 = vld [vmem:[%s6 + $0x48] sm:$0xff]
      %v733 = vld [vmem:[%s6 + $0x50] sm:$0xff]
      %v734 = vld [vmem:[%s6 + $0x58] sm:$0xff]
      %v735 = vld [vmem:[%s7] sm:$0x7]
      %v737 = vlaneseq
      %v738 = vshrl.u32 %v737, 7
      %v739 = vsub.s32 0, %v738
      %v740 = vrot.slane %v735, %v739
      %v741 = vlaneseq
      %v742 = vshrl.u32 %v741, 7
      %v743 = vsub.s32 1, %v742
      %v744 = vrot.slane %v735, %v743
      %v745 = vlaneseq
      %v746 = vshrl.u32 %v745, 7
      %v747 = vsub.s32 2, %v746
      %v748 = vrot.slane %v735, %v747
      %v753 = vsel %vm679, %v721, 0
      %v756 = vsel %vm679, %v722, 0
      %758 = vmatprep.subr.mxu0 0.0
      %759 = vmatpush1.msra.mxu0 0.0
      %760 = vmatprep.subr.mxu0 0.0
      %761 = vmatpush1.msra.mxu0 0.0
      %762 = vmatprep.subr.mxu0 0.0
      %763 = vmatpush1.msra.mxu0 0.0
      %764 = vmatprep.subr.mxu0 0.0
      %765 = vmatpush1.msra.mxu0 0.0
      %766 = vmatprep.subr.mxu0 0.0
      %767 = vmatpush1.msra.mxu0 0.0
      %768 = vmatprep.subr.mxu0 0.0
      %769 = vmatpush1.msra.mxu0 0.0
      %770 = vmatprep.subr.mxu0 0.0
      %771 = vmatpush1.msra.mxu0 0.0
      %772 = vmatprep.subr.mxu0 0.0
      %773 = vmatpush1.msra.mxu0 0.0
      %774 = vmatprep.subr.mxu0 0.0
      %775 = vmatpush1.msra.mxu0 0.0
      %776 = vmatprep.subr.mxu0 0.0
      %777 = vmatpush1.msra.mxu0 0.0
      %778 = vmatprep.subr.mxu0 0.0
      %779 = vmatpush1.msra.mxu0 0.0
      %780 = vmatprep.subr.mxu0 0.0
      %781 = vmatpush1.msra.mxu0 0.0
      %782 = vmatprep.subr.mxu0 %v733
      %783 = vmatpush1.msra.mxu0 %v732
      %784 = vmatprep.subr.mxu0 %v730
      %785 = vmatpush1.msra.mxu0 %v729
      %786 = vmatprep.subr.mxu0 %v727
      %787 = vmatpush1.msra.mxu0 %v726
      %788 = vmatprep.subr.mxu0 %v724
      %789 = vmatpush1.msra.mxu0 %v723
      %790 = vmatprep.subr.mxu0 0.0
      %791 = vmatpush2.msra.mxu0 0.0
      %792 = vmatprep.subr.mxu0 0.0
      %793 = vmatpush2.msra.mxu0 0.0
      %794 = vmatprep.subr.mxu0 0.0
      %795 = vmatpush2.msra.mxu0 0.0
      %796 = vmatprep.subr.mxu0 0.0
      %797 = vmatpush2.msra.mxu0 0.0
      %798 = vmatprep.subr.mxu0 0.0
      %799 = vmatpush2.msra.mxu0 0.0
      %800 = vmatprep.subr.mxu0 0.0
      %801 = vmatpush2.msra.mxu0 0.0
      %802 = vmatprep.subr.mxu0 0.0
      %803 = vmatpush2.msra.mxu0 0.0
      %804 = vmatprep.subr.mxu0 0.0
      %805 = vmatpush2.msra.mxu0 0.0
      %806 = vmatprep.subr.mxu0 0.0
      %807 = vmatpush2.msra.mxu0 0.0
      %808 = vmatprep.subr.mxu0 0.0
      %809 = vmatpush2.msra.mxu0 0.0
      %810 = vmatprep.subr.mxu0 0.0
      %811 = vmatpush2.msra.mxu0 0.0
      %812 = vmatprep.subr.mxu0 0.0
      %813 = vmatpush2.msra.mxu0 0.0
      %814 = vmatprep.subr.mxu0 0.0
      %815 = vmatpush2.msra.mxu0 0.0
      %816 = vmatprep.subr.mxu0 0.0
      %817 = vmatpush2.msra.mxu0 0.0
      %818 = vmatprep.subr.mxu0 0.0
      %819 = vmatpush2.msra.mxu0 0.0
      %820 = vmatprep.subr.mxu0 0.0
      %821 = vmatpush2.msra.mxu0 0.0
      %822 = vmatprep.mubr.f32.mxu0 0.0
      %823 = vmatmul.mubr.f32.gmra.mxu0 %v753
      %v824 = vpop.f32.mrf.mxu0
      %v825 = vadd.f32 %v740, %v824
      %v826 = vpop.f32.mrf.mxu0
      %v827 = vadd.f32 %v744, %v826
      %828 = vmatprep.mubr.f32.mxu0 0.0
      %829 = vmatmul.mubr.f32.gmra.mxu0 %v756
      %v830 = vpop.f32.mrf.mxu0
      %v831 = vadd.f32 %v740, %v830
      %v832 = vpop.f32.mrf.mxu0
      %v833 = vadd.f32 %v744, %v832
      %834 = vdwg.mxu0
      %835 = vmatprep.subr.mxu0 0.0
      %836 = vmatpush1.msra.mxu0 0.0
      %837 = vmatprep.subr.mxu0 0.0
      %838 = vmatpush1.msra.mxu0 0.0
      %839 = vmatprep.subr.mxu0 0.0
      %840 = vmatpush1.msra.mxu0 0.0
      %841 = vmatprep.subr.mxu0 0.0
      %842 = vmatpush1.msra.mxu0 0.0
      %843 = vmatprep.subr.mxu0 0.0
      %844 = vmatpush1.msra.mxu0 0.0
      %845 = vmatprep.subr.mxu0 0.0
      %846 = vmatpush1.msra.mxu0 0.0
      %847 = vmatprep.subr.mxu0 0.0
      %848 = vmatpush1.msra.mxu0 0.0
      %849 = vmatprep.subr.mxu0 0.0
      %850 = vmatpush1.msra.mxu0 0.0
      %851 = vmatprep.subr.mxu0 0.0
      %852 = vmatpush1.msra.mxu0 0.0
      %853 = vmatprep.subr.mxu0 0.0
      %854 = vmatpush1.msra.mxu0 0.0
      %855 = vmatprep.subr.mxu0 0.0
      %856 = vmatpush1.msra.mxu0 0.0
      %857 = vmatprep.subr.mxu0 0.0
      %858 = vmatpush1.msra.mxu0 0.0
      %859 = vmatprep.subr.mxu0 0.0
      %860 = vmatpush1.msra.mxu0 %v734
      %861 = vmatprep.subr.mxu0 0.0
      %862 = vmatpush1.msra.mxu0 %v731
      %863 = vmatprep.subr.mxu0 0.0
      %864 = vmatpush1.msra.mxu0 %v728
      %865 = vmatprep.subr.mxu0 0.0
      %866 = vmatpush1.msra.mxu0 %v725
      %867 = vmatprep.subr.mxu0 0.0
      %868 = vmatpush2.msra.mxu0 0.0
      %869 = vmatprep.subr.mxu0 0.0
      %870 = vmatpush2.msra.mxu0 0.0
      %871 = vmatprep.subr.mxu0 0.0
      %872 = vmatpush2.msra.mxu0 0.0
      %873 = vmatprep.subr.mxu0 0.0
      %874 = vmatpush2.msra.mxu0 0.0
      %875 = vmatprep.subr.mxu0 0.0
      %876 = vmatpush2.msra.mxu0 0.0
      %877 = vmatprep.subr.mxu0 0.0
      %878 = vmatpush2.msra.mxu0 0.0
      %879 = vmatprep.subr.mxu0 0.0
      %880 = vmatpush2.msra.mxu0 0.0
      %881 = vmatprep.subr.mxu0 0.0
      %882 = vmatpush2.msra.mxu0 0.0
      %883 = vmatprep.subr.mxu0 0.0
      %884 = vmatpush2.msra.mxu0 0.0
      %885 = vmatprep.subr.mxu0 0.0
      %886 = vmatpush2.msra.mxu0 0.0
      %887 = vmatprep.subr.mxu0 0.0
      %888 = vmatpush2.msra.mxu0 0.0
      %889 = vmatprep.subr.mxu0 0.0
      %890 = vmatpush2.msra.mxu0 0.0
      %891 = vmatprep.subr.mxu0 0.0
      %892 = vmatpush2.msra.mxu0 0.0
      %893 = vmatprep.subr.mxu0 0.0
      %894 = vmatpush2.msra.mxu0 0.0
      %895 = vmatprep.subr.mxu0 0.0
      %896 = vmatpush2.msra.mxu0 0.0
      %897 = vmatprep.subr.mxu0 0.0
      %898 = vmatpush2.msra.mxu0 0.0
      %899 = vmatprep.mubr.f32.mxu0 0.0
      %900 = vmatmul.mubr.f32.gmra.mxu0 %v753
      %v901 = vpop.f32.mrf.mxu0
      %v902 = vadd.f32 %v748, %v901
      %v903 = vpop.f32.mrf.mxu0
      %904 = vmatprep.mubr.f32.mxu0 0.0
      %905 = vmatmul.mubr.f32.gmra.mxu0 %v756
      %v906 = vpop.f32.mrf.mxu0
      %v907 = vadd.f32 %v748, %v906
      %v908 = vpop.f32.mrf.mxu0
      %909 = vdwg.mxu0
      %v911 = vsel %vm679, %v825, 0
      %v914 = vsel %vm679, %v831, 0
      %v917 = vsel %vm679, %v827, 0
      %v920 = vsel %vm679, %v833, 0
      %922 = vmatprep.subr.mxu0 0.0
      %923 = vmatpush1.xpose.msra.mxu0 0.0
      %924 = vmatprep.subr.mxu0 0.0
      %925 = vmatpush1.xpose.msra.mxu0 0.0
      %926 = vmatprep.subr.mxu0 0.0
      %927 = vmatpush1.xpose.msra.mxu0 0.0
      %928 = vmatprep.subr.mxu0 0.0
      %929 = vmatpush1.xpose.msra.mxu0 0.0
      %930 = vmatprep.subr.mxu0 0.0
      %931 = vmatpush1.xpose.msra.mxu0 0.0
      %932 = vmatprep.subr.mxu0 0.0
      %933 = vmatpush1.xpose.msra.mxu0 0.0
      %934 = vmatprep.subr.mxu0 0.0
      %935 = vmatpush1.xpose.msra.mxu0 0.0
      %936 = vmatprep.subr.mxu0 0.0
      %937 = vmatpush1.xpose.msra.mxu0 0.0
      %938 = vmatprep.subr.mxu0 0.0
      %939 = vmatpush1.xpose.msra.mxu0 0.0
      %940 = vmatprep.subr.mxu0 0.0
      %941 = vmatpush1.xpose.msra.mxu0 0.0
      %942 = vmatprep.subr.mxu0 0.0
      %943 = vmatpush1.xpose.msra.mxu0 0.0
      %944 = vmatprep.subr.mxu0 0.0
      %945 = vmatpush1.xpose.msra.mxu0 0.0
      %946 = vmatprep.subr.mxu0 0.0
      %947 = vmatpush1.xpose.msra.mxu0 0.0
      %948 = vmatprep.subr.mxu0 0.0
      %949 = vmatpush1.xpose.msra.mxu0 0.0
      %950 = vmatprep.subr.mxu0 0.0
      %951 = vmatpush1.xpose.msra.mxu0 %v920
      %952 = vmatprep.subr.mxu0 0.0
      %953 = vmatpush1.xpose.msra.mxu0 %v917
      %954 = vmatprep.subr.mxu0 0.0
      %955 = vmatpush2.xpose.msra.mxu0 0.0
      %956 = vmatprep.subr.mxu0 0.0
      %957 = vmatpush2.xpose.msra.mxu0 0.0
      %958 = vmatprep.subr.mxu0 0.0
      %959 = vmatpush2.xpose.msra.mxu0 0.0
      %960 = vmatprep.subr.mxu0 0.0
      %961 = vmatpush2.xpose.msra.mxu0 0.0
      %962 = vmatprep.subr.mxu0 0.0
      %963 = vmatpush2.xpose.msra.mxu0 0.0
      %964 = vmatprep.subr.mxu0 0.0
      %965 = vmatpush2.xpose.msra.mxu0 0.0
      %966 = vmatprep.subr.mxu0 0.0
      %967 = vmatpush2.xpose.msra.mxu0 0.0
      %968 = vmatprep.subr.mxu0 0.0
      %969 = vmatpush2.xpose.msra.mxu0 0.0
      %970 = vmatprep.subr.mxu0 0.0
      %971 = vmatpush2.xpose.msra.mxu0 0.0
      %972 = vmatprep.subr.mxu0 0.0
      %973 = vmatpush2.xpose.msra.mxu0 0.0
      %974 = vmatprep.subr.mxu0 0.0
      %975 = vmatpush2.xpose.msra.mxu0 0.0
      %976 = vmatprep.subr.mxu0 0.0
      %977 = vmatpush2.xpose.msra.mxu0 0.0
      %978 = vmatprep.subr.mxu0 0.0
      %979 = vmatpush2.xpose.msra.mxu0 0.0
      %980 = vmatprep.subr.mxu0 0.0
      %981 = vmatpush2.xpose.msra.mxu0 0.0
      %982 = vmatprep.subr.mxu0 0.0
      %983 = vmatpush2.xpose.msra.mxu0 0.0
      %984 = vmatprep.subr.mxu0 0.0
      %985 = vmatpush2.xpose.msra.mxu0 0.0
      %986 = vmatprep.mubr.f32.mxu0 0.0
      %987 = vmatmul.mubr.f32.gmra.mxu0 %v911
      %v988 = vpop.f32.mrf.mxu0
      %v989 = vadd.f32 0.0, %v988
      %v990 = vpop.f32.mrf.mxu0
      %991 = vmatprep.mubr.f32.mxu0 0.0
      %992 = vmatmul.mubr.f32.gmra.mxu0 %v914
      %v993 = vpop.f32.mrf.mxu0
      %v994 = vadd.f32 0.0, %v993
      %v995 = vpop.f32.mrf.mxu0
      %996 = vdwg.mxu0
      %v997 = vmul.f32 %v989, 0.17677669
      %v998 = vmul.f32 %v994, 0.17677669
      %vm999 = vcmask 130048
      %v1000 = vsel %vm999, %v997, -inf
      %1001 = vmax.xlane.f32.xlu0 %v1000
      %v1002 = vpop.xlane.xlu0 %1001
      %v1003 = vsel %vm999, %v998, -inf
      %1004 = vmax.xlane.f32.xlu0 %v1003
      %v1005 = vpop.xlane.xlu0 %1004
      %v1006 = vsub.f32 %v997, %v1002
      %v1007 = vsub.f32 %v998, %v1005
      %v1008 = vmul.f32 %v1006, 1.442695
      %v1009 = vpow.pop %v1008
      %v1010 = vmul.f32 %v1007, 1.442695
      %v1011 = vpow.pop %v1010
      %v1012 = vsel %vm999, %v1009, 0.0
      %1013 = vadd.xlane.f32.xlu0 %v1012
      %v1014 = vpop.xlane.xlu0 %1013
      %v1015 = vsel %vm999, %v1011, 0.0
      %1016 = vadd.xlane.f32.xlu0 %v1015
      %v1017 = vpop.xlane.xlu0 %1016
      %v1018 = vrcp.pop %v1014
      %v1019 = vmul.f32 %v1009, %v1018
      %v1020 = vrcp.pop %v1017
      %v1021 = vmul.f32 %v1011, %v1020
      %v1023 = vsel %vm999, %v1019, 0
      %v1026 = vsel %vm999, %v1021, 0
      %1028 = vmatprep.subr.mxu0 0.0
      %1029 = vmatpush1.msra.mxu0 0.0
      %1030 = vmatprep.subr.mxu0 0.0
      %1031 = vmatpush1.msra.mxu0 0.0
      %1032 = vmatprep.subr.mxu0 0.0
      %1033 = vmatpush1.msra.mxu0 0.0
      %1034 = vmatprep.subr.mxu0 0.0
      %1035 = vmatpush1.msra.mxu0 0.0
      %1036 = vmatprep.subr.mxu0 0.0
      %1037 = vmatpush1.msra.mxu0 0.0
      %1038 = vmatprep.subr.mxu0 0.0
      %1039 = vmatpush1.msra.mxu0 0.0
      %1040 = vmatprep.subr.mxu0 0.0
      %1041 = vmatpush1.msra.mxu0 0.0
      %1042 = vmatprep.subr.mxu0 0.0
      %1043 = vmatpush1.msra.mxu0 0.0
      %1044 = vmatprep.subr.mxu0 0.0
      %1045 = vmatpush1.msra.mxu0 0.0
      %1046 = vmatprep.subr.mxu0 0.0
      %1047 = vmatpush1.msra.mxu0 0.0
      %1048 = vmatprep.subr.mxu0 0.0
      %1049 = vmatpush1.msra.mxu0 0.0
      %1050 = vmatprep.subr.mxu0 0.0
      %1051 = vmatpush1.msra.mxu0 0.0
      %1052 = vmatprep.subr.mxu0 0.0
      %1053 = vmatpush1.msra.mxu0 0.0
      %1054 = vmatprep.subr.mxu0 0.0
      %1055 = vmatpush1.msra.mxu0 0.0
      %1056 = vmatprep.subr.mxu0 0.0
      %1057 = vmatpush1.msra.mxu0 %v907
      %1058 = vmatprep.subr.mxu0 0.0
      %1059 = vmatpush1.msra.mxu0 %v902
      %1060 = vmatprep.subr.mxu0 0.0
      %1061 = vmatpush2.msra.mxu0 0.0
      %1062 = vmatprep.subr.mxu0 0.0
      %1063 = vmatpush2.msra.mxu0 0.0
      %1064 = vmatprep.subr.mxu0 0.0
      %1065 = vmatpush2.msra.mxu0 0.0
      %1066 = vmatprep.subr.mxu0 0.0
      %1067 = vmatpush2.msra.mxu0 0.0
      %1068 = vmatprep.subr.mxu0 0.0
      %1069 = vmatpush2.msra.mxu0 0.0
      %1070 = vmatprep.subr.mxu0 0.0
      %1071 = vmatpush2.msra.mxu0 0.0
      %1072 = vmatprep.subr.mxu0 0.0
      %1073 = vmatpush2.msra.mxu0 0.0
      %1074 = vmatprep.subr.mxu0 0.0
      %1075 = vmatpush2.msra.mxu0 0.0
      %1076 = vmatprep.subr.mxu0 0.0
      %1077 = vmatpush2.msra.mxu0 0.0
      %1078 = vmatprep.subr.mxu0 0.0
      %1079 = vmatpush2.msra.mxu0 0.0
      %1080 = vmatprep.subr.mxu0 0.0
      %1081 = vmatpush2.msra.mxu0 0.0
      %1082 = vmatprep.subr.mxu0 0.0
      %1083 = vmatpush2.msra.mxu0 0.0
      %1084 = vmatprep.subr.mxu0 0.0
      %1085 = vmatpush2.msra.mxu0 0.0
      %1086 = vmatprep.subr.mxu0 0.0
      %1087 = vmatpush2.msra.mxu0 0.0
      %1088 = vmatprep.subr.mxu0 0.0
      %1089 = vmatpush2.msra.mxu0 0.0
      %1090 = vmatprep.subr.mxu0 0.0
      %1091 = vmatpush2.msra.mxu0 0.0
      %1092 = vmatprep.mubr.f32.mxu0 0.0
      %1093 = vmatmul.mubr.f32.gmra.mxu0 %v1023
      %v1094 = vpop.f32.mrf.mxu0
      %v1095 = vadd.f32 0.0, %v1094
      %v1096 = vpop.f32.mrf.mxu0
      %1097 = vmatprep.mubr.f32.mxu0 0.0
      %1098 = vmatmul.mubr.f32.gmra.mxu0 %v1026
      %v1099 = vpop.f32.mrf.mxu0
      %v1100 = vadd.f32 0.0, %v1099
      %v1101 = vpop.f32.mrf.mxu0
      %1102 = vdwg.mxu0
      %v1103 = vld [vmem:[%s8] sm:$0xff]
      %v1104 = vld [vmem:[%s8 + $0x8] sm:$0xff]
      %v1105 = vld [vmem:[%s8 + $0x10] sm:$0xff]
      %v1106 = vld [vmem:[%s8 + $0x18] sm:$0xff]
      %v1107 = vld [vmem:[%s9] sm:$0x1]
      %v1109 = vlaneseq
      %v1110 = vshrl.u32 %v1109, 7
      %v1111 = vsub.s32 0, %v1110
      %v1112 = vrot.slane %v1107, %v1111
      %v1115 = vsel %vm679, %v1095, 0
      %v1118 = vsel %vm679, %v1100, 0
      %1120 = vmatprep.subr.mxu0 0.0
      %1121 = vmatpush1.msra.mxu0 0.0
      %1122 = vmatprep.subr.mxu0 0.0
      %1123 = vmatpush1.msra.mxu0 0.0
      %1124 = vmatprep.subr.mxu0 0.0
      %1125 = vmatpush1.msra.mxu0 0.0
      %1126 = vmatprep.subr.mxu0 0.0
      %1127 = vmatpush1.msra.mxu0 0.0
      %1128 = vmatprep.subr.mxu0 0.0
      %1129 = vmatpush1.msra.mxu0 0.0
      %1130 = vmatprep.subr.mxu0 0.0
      %1131 = vmatpush1.msra.mxu0 0.0
      %1132 = vmatprep.subr.mxu0 0.0
      %1133 = vmatpush1.msra.mxu0 0.0
      %1134 = vmatprep.subr.mxu0 0.0
      %1135 = vmatpush1.msra.mxu0 0.0
      %1136 = vmatprep.subr.mxu0 0.0
      %1137 = vmatpush1.msra.mxu0 0.0
      %1138 = vmatprep.subr.mxu0 0.0
      %1139 = vmatpush1.msra.mxu0 0.0
      %1140 = vmatprep.subr.mxu0 0.0
      %1141 = vmatpush1.msra.mxu0 0.0
      %1142 = vmatprep.subr.mxu0 0.0
      %1143 = vmatpush1.msra.mxu0 0.0
      %1144 = vmatprep.subr.mxu0 0.0
      %1145 = vmatpush1.msra.mxu0 %v1106
      %1146 = vmatprep.subr.mxu0 0.0
      %1147 = vmatpush1.msra.mxu0 %v1105
      %1148 = vmatprep.subr.mxu0 0.0
      %1149 = vmatpush1.msra.mxu0 %v1104
      %1150 = vmatprep.subr.mxu0 0.0
      %1151 = vmatpush1.msra.mxu0 %v1103
      %1152 = vmatprep.subr.mxu0 0.0
      %1153 = vmatpush2.msra.mxu0 0.0
      %1154 = vmatprep.subr.mxu0 0.0
      %1155 = vmatpush2.msra.mxu0 0.0
      %1156 = vmatprep.subr.mxu0 0.0
      %1157 = vmatpush2.msra.mxu0 0.0
      %1158 = vmatprep.subr.mxu0 0.0
      %1159 = vmatpush2.msra.mxu0 0.0
      %1160 = vmatprep.subr.mxu0 0.0
      %1161 = vmatpush2.msra.mxu0 0.0
      %1162 = vmatprep.subr.mxu0 0.0
      %1163 = vmatpush2.msra.mxu0 0.0
      %1164 = vmatprep.subr.mxu0 0.0
      %1165 = vmatpush2.msra.mxu0 0.0
      %1166 = vmatprep.subr.mxu0 0.0
      %1167 = vmatpush2.msra.mxu0 0.0
      %1168 = vmatprep.subr.mxu0 0.0
      %1169 = vmatpush2.msra.mxu0 0.0
      %1170 = vmatprep.subr.mxu0 0.0
      %1171 = vmatpush2.msra.mxu0 0.0
      %1172 = vmatprep.subr.mxu0 0.0
      %1173 = vmatpush2.msra.mxu0 0.0
      %1174 = vmatprep.subr.mxu0 0.0
      %1175 = vmatpush2.msra.mxu0 0.0
      %1176 = vmatprep.subr.mxu0 0.0
      %1177 = vmatpush2.msra.mxu0 0.0
      %1178 = vmatprep.subr.mxu0 0.0
      %1179 = vmatpush2.msra.mxu0 0.0
      %1180 = vmatprep.subr.mxu0 0.0
      %1181 = vmatpush2.msra.mxu0 0.0
      %1182 = vmatprep.subr.mxu0 0.0
      %1183 = vmatpush2.msra.mxu0 0.0
      %1184 = vmatprep.mubr.f32.mxu0 0.0
      %1185 = vmatmul.mubr.f32.gmra.mxu0 %v1115
      %v1186 = vpop.f32.mrf.mxu0
      %v1187 = vadd.f32 %v1112, %v1186
      %v1188 = vpop.f32.mrf.mxu0
      %1189 = vmatprep.mubr.f32.mxu0 0.0
      %1190 = vmatmul.mubr.f32.gmra.mxu0 %v1118
      %v1191 = vpop.f32.mrf.mxu0
      %v1192 = vadd.f32 %v1112, %v1191
      %v1193 = vpop.f32.mrf.mxu0
      %1194 = vdwg.mxu0
      %v1195 = vadd.f32 %v675, %v1187
      %v1196 = vadd.f32 %v676, %v1192
      %v1197 = vld [vmem:[%s10] sm:$0x1]
      %v1198 = vld [vmem:[%s11] sm:$0x1]
      %v1199 = vsel %vm679, %v1195, 0.0
      %1200 = vadd.xlane.f32.xlu0 %v1199
      %v1201 = vpop.xlane.xlu0 %1200
      %v1202 = vsel %vm679, %v1196, 0.0
      %1203 = vadd.xlane.f32.xlu0 %v1202
      %v1204 = vpop.xlane.xlu0 %1203
      %v1205 = vmul.f32 %v1201, %v686
      %v1206 = vmul.f32 %v1204, %v686
      %v1207 = vsub.f32 %v1195, %v1205
      %v1208 = vsub.f32 %v1196, %v1206
      %v1209 = vmul.f32 %v1207, %v1207
      %v1210 = vmul.f32 %v1208, %v1208
      %v1211 = vsel %vm679, %v1209, 0.0
      %1212 = vadd.xlane.f32.xlu0 %v1211
      %v1213 = vpop.xlane.xlu0 %1212
      %v1214 = vsel %vm679, %v1210, 0.0
      %1215 = vadd.xlane.f32.xlu0 %v1214
      %v1216 = vpop.xlane.xlu0 %1215
      %v1217 = vmul.f32 %v1213, %v686
      %v1218 = vmul.f32 %v1216, %v686
      %v1219 = vadd.f32 %v1217, 1e-05
      %v1220 = vadd.f32 %v1218, 1e-05
      %v1221 = vrsqrt.pop %v1219
      %v1222 = vrsqrt.pop %v1220
      %v1223 = vmul.f32 %v1207, %v1221
      %v1224 = vmul.f32 %v1208, %v1222
      %v1226 = vlaneseq
      %v1227 = vshrl.u32 %v1226, 7
      %v1228 = vsub.s32 0, %v1227
      %v1229 = vrot.slane %v1197, %v1228
      %v1231 = vmul.f32 %v1223, %v1229
      %v1232 = vmul.f32 %v1224, %v1229
      %v1234 = vlaneseq
      %v1235 = vshrl.u32 %v1234, 7
      %v1236 = vsub.s32 0, %v1235
      %v1237 = vrot.slane %v1198, %v1236
      %v1239 = vadd.f32 %v1231, %v1237
      %v1240 = vadd.f32 %v1232, %v1237
      %v1241 = vld [vmem:[%s12] sm:$0xff]
      %v1242 = vld [vmem:[%s12 + $0x8] sm:$0xff]
      %v1243 = vld [vmem:[%s12 + $0x10] sm:$0xff]
      %v1244 = vld [vmem:[%s12 + $0x18] sm:$0xff]
      %v1245 = vld [vmem:[%s13] sm:$0x1]
      %v1247 = vlaneseq
      %v1248 = vshrl.u32 %v1247, 7
      %v1249 = vsub.s32 0, %v1248
      %v1250 = vrot.slane %v1245, %v1249
      %v1253 = vsel %vm679, %v1239, 0
      %v1256 = vsel %vm679, %v1240, 0
      %1258 = vmatprep.subr.mxu0 0.0
      %1259 = vmatpush1.msra.mxu0 0.0
      %1260 = vmatprep.subr.mxu0 0.0
      %1261 = vmatpush1.msra.mxu0 0.0
      %1262 = vmatprep.subr.mxu0 0.0
      %1263 = vmatpush1.msra.mxu0 0.0
      %1264 = vmatprep.subr.mxu0 0.0
      %1265 = vmatpush1.msra.mxu0 0.0
      %1266 = vmatprep.subr.mxu0 0.0
      %1267 = vmatpush1.msra.mxu0 0.0
      %1268 = vmatprep.subr.mxu0 0.0
      %1269 = vmatpush1.msra.mxu0 0.0
      %1270 = vmatprep.subr.mxu0 0.0
      %1271 = vmatpush1.msra.mxu0 0.0
      %1272 = vmatprep.subr.mxu0 0.0
      %1273 = vmatpush1.msra.mxu0 0.0
      %1274 = vmatprep.subr.mxu0 0.0
      %1275 = vmatpush1.msra.mxu0 0.0
      %1276 = vmatprep.subr.mxu0 0.0
      %1277 = vmatpush1.msra.mxu0 0.0
      %1278 = vmatprep.subr.mxu0 0.0
      %1279 = vmatpush1.msra.mxu0 0.0
      %1280 = vmatprep.subr.mxu0 0.0
      %1281 = vmatpush1.msra.mxu0 0.0
      %1282 = vmatprep.subr.mxu0 0.0
      %1283 = vmatpush1.msra.mxu0 %v1244
      %1284 = vmatprep.subr.mxu0 0.0
      %1285 = vmatpush1.msra.mxu0 %v1243
      %1286 = vmatprep.subr.mxu0 0.0
      %1287 = vmatpush1.msra.mxu0 %v1242
      %1288 = vmatprep.subr.mxu0 0.0
      %1289 = vmatpush1.msra.mxu0 %v1241
      %1290 = vmatprep.subr.mxu0 0.0
      %1291 = vmatpush2.msra.mxu0 0.0
      %1292 = vmatprep.subr.mxu0 0.0
      %1293 = vmatpush2.msra.mxu0 0.0
      %1294 = vmatprep.subr.mxu0 0.0
      %1295 = vmatpush2.msra.mxu0 0.0
      %1296 = vmatprep.subr.mxu0 0.0
      %1297 = vmatpush2.msra.mxu0 0.0
      %1298 = vmatprep.subr.mxu0 0.0
      %1299 = vmatpush2.msra.mxu0 0.0
      %1300 = vmatprep.subr.mxu0 0.0
      %1301 = vmatpush2.msra.mxu0 0.0
      %1302 = vmatprep.subr.mxu0 0.0
      %1303 = vmatpush2.msra.mxu0 0.0
      %1304 = vmatprep.subr.mxu0 0.0
      %1305 = vmatpush2.msra.mxu0 0.0
      %1306 = vmatprep.subr.mxu0 0.0
      %1307 = vmatpush2.msra.mxu0 0.0
      %1308 = vmatprep.subr.mxu0 0.0
      %1309 = vmatpush2.msra.mxu0 0.0
      %1310 = vmatprep.subr.mxu0 0.0
      %1311 = vmatpush2.msra.mxu0 0.0
      %1312 = vmatprep.subr.mxu0 0.0
      %1313 = vmatpush2.msra.mxu0 0.0
      %1314 = vmatprep.subr.mxu0 0.0
      %1315 = vmatpush2.msra.mxu0 0.0
      %1316 = vmatprep.subr.mxu0 0.0
      %1317 = vmatpush2.msra.mxu0 0.0
      %1318 = vmatprep.subr.mxu0 0.0
      %1319 = vmatpush2.msra.mxu0 0.0
      %1320 = vmatprep.subr.mxu0 0.0
      %1321 = vmatpush2.msra.mxu0 0.0
      %1322 = vmatprep.mubr.f32.mxu0 0.0
      %1323 = vmatmul.mubr.f32.gmra.mxu0 %v1253
      %v1324 = vpop.f32.mrf.mxu0
      %v1325 = vadd.f32 %v1250, %v1324
      %v1326 = vpop.f32.mrf.mxu0
      %1327 = vmatprep.mubr.f32.mxu0 0.0
      %1328 = vmatmul.mubr.f32.gmra.mxu0 %v1256
      %v1329 = vpop.f32.mrf.mxu0
      %v1330 = vadd.f32 %v1250, %v1329
      %v1331 = vpop.f32.mrf.mxu0
      %1332 = vdwg.mxu0
      %v1333 = vmul.f32 %v1325, %v1325
      %v1334 = vmul.f32 %v1330, %v1330
      %v1335 = vmul.f32 %v1325, %v1333
      %v1336 = vmul.f32 %v1330, %v1334
      %v1337 = vmul.f32 %v1335, 0.044715
      %v1338 = vmul.f32 %v1336, 0.044715
      %v1339 = vadd.f32 %v1325, %v1337
      %v1340 = vadd.f32 %v1330, %v1338
      %v1341 = vmul.f32 %v1339, 0.7978846
      %v1342 = vmul.f32 %v1340, 0.7978846
      %v1343 = vtanh.pop %v1341
      %v1344 = vtanh.pop %v1342
      %v1345 = vadd.f32 %v1343, 1.0
      %v1346 = vadd.f32 %v1344, 1.0
      %v1347 = vmul.f32 %v1345, 0.5
      %v1348 = vmul.f32 %v1346, 0.5
      %v1349 = vmul.f32 %v1325, %v1347
      %v1350 = vmul.f32 %v1330, %v1348
      %v1351 = vld [vmem:[%s14] sm:$0xff]
      %v1352 = vld [vmem:[%s14 + $0x8] sm:$0xff]
      %v1353 = vld [vmem:[%s14 + $0x10] sm:$0xff]
      %v1354 = vld [vmem:[%s14 + $0x18] sm:$0xff]
      %v1355 = vld [vmem:[%s14 + $0x20] sm:$0xff]
      %v1356 = vld [vmem:[%s14 + $0x28] sm:$0xff]
      %v1357 = vld [vmem:[%s14 + $0x30] sm:$0xff]
      %v1358 = vld [vmem:[%s14 + $0x38] sm:$0xff]
      %v1359 = vld [vmem:[%s14 + $0x40] sm:$0xff]
      %v1360 = vld [vmem:[%s14 + $0x48] sm:$0xff]
      %v1361 = vld [vmem:[%s14 + $0x50] sm:$0xff]
      %v1362 = vld [vmem:[%s14 + $0x58] sm:$0xff]
      %v1363 = vld [vmem:[%s14 + $0x60] sm:$0xff]
      %v1364 = vld [vmem:[%s14 + $0x68] sm:$0xff]
      %v1365 = vld [vmem:[%s14 + $0x70] sm:$0xff]
      %v1366 = vld [vmem:[%s14 + $0x78] sm:$0xff]
      %v1367 = vld [vmem:[%s15] sm:$0x1]
      %v1369 = vlaneseq
      %v1370 = vshrl.u32 %v1369, 7
      %v1371 = vsub.s32 0, %v1370
      %v1372 = vrot.slane %v1367, %v1371
      %1374 = vmatprep.subr.mxu0 0.0
      %1375 = vmatpush1.msra.mxu0 %v1366
      %1376 = vmatprep.subr.mxu0 0.0
      %1377 = vmatpush1.msra.mxu0 %v1365
      %1378 = vmatprep.subr.mxu0 0.0
      %1379 = vmatpush1.msra.mxu0 %v1364
      %1380 = vmatprep.subr.mxu0 0.0
      %1381 = vmatpush1.msra.mxu0 %v1363
      %1382 = vmatprep.subr.mxu0 0.0
      %1383 = vmatpush1.msra.mxu0 %v1362
      %1384 = vmatprep.subr.mxu0 0.0
      %1385 = vmatpush1.msra.mxu0 %v1361
      %1386 = vmatprep.subr.mxu0 0.0
      %1387 = vmatpush1.msra.mxu0 %v1360
      %1388 = vmatprep.subr.mxu0 0.0
      %1389 = vmatpush1.msra.mxu0 %v1359
      %1390 = vmatprep.subr.mxu0 0.0
      %1391 = vmatpush1.msra.mxu0 %v1358
      %1392 = vmatprep.subr.mxu0 0.0
      %1393 = vmatpush1.msra.mxu0 %v1357
      %1394 = vmatprep.subr.mxu0 0.0
      %1395 = vmatpush1.msra.mxu0 %v1356
      %1396 = vmatprep.subr.mxu0 0.0
      %1397 = vmatpush1.msra.mxu0 %v1355
      %1398 = vmatprep.subr.mxu0 0.0
      %1399 = vmatpush1.msra.mxu0 %v1354
      %1400 = vmatprep.subr.mxu0 0.0
      %1401 = vmatpush1.msra.mxu0 %v1353
      %1402 = vmatprep.subr.mxu0 0.0
      %1403 = vmatpush1.msra.mxu0 %v1352
      %1404 = vmatprep.subr.mxu0 0.0
      %1405 = vmatpush1.msra.mxu0 %v1351
      %1406 = vmatprep.subr.mxu0 0.0
      %1407 = vmatpush2.msra.mxu0 0.0
      %1408 = vmatprep.subr.mxu0 0.0
      %1409 = vmatpush2.msra.mxu0 0.0
      %1410 = vmatprep.subr.mxu0 0.0
      %1411 = vmatpush2.msra.mxu0 0.0
      %1412 = vmatprep.subr.mxu0 0.0
      %1413 = vmatpush2.msra.mxu0 0.0
      %1414 = vmatprep.subr.mxu0 0.0
      %1415 = vmatpush2.msra.mxu0 0.0
      %1416 = vmatprep.subr.mxu0 0.0
      %1417 = vmatpush2.msra.mxu0 0.0
      %1418 = vmatprep.subr.mxu0 0.0
      %1419 = vmatpush2.msra.mxu0 0.0
      %1420 = vmatprep.subr.mxu0 0.0
      %1421 = vmatpush2.msra.mxu0 0.0
      %1422 = vmatprep.subr.mxu0 0.0
      %1423 = vmatpush2.msra.mxu0 0.0
      %1424 = vmatprep.subr.mxu0 0.0
      %1425 = vmatpush2.msra.mxu0 0.0
      %1426 = vmatprep.subr.mxu0 0.0
      %1427 = vmatpush2.msra.mxu0 0.0
      %1428 = vmatprep.subr.mxu0 0.0
      %1429 = vmatpush2.msra.mxu0 0.0
      %1430 = vmatprep.subr.mxu0 0.0
      %1431 = vmatpush2.msra.mxu0 0.0
      %1432 = vmatprep.subr.mxu0 0.0
      %1433 = vmatpush2.msra.mxu0 0.0
      %1434 = vmatprep.subr.mxu0 0.0
      %1435 = vmatpush2.msra.mxu0 0.0
      %1436 = vmatprep.subr.mxu0 0.0
      %1437 = vmatpush2.msra.mxu0 0.0
      %1438 = vmatprep.mubr.f32.mxu0 0.0
      %1439 = vmatmul.mubr.f32.gmra.mxu0 %v1349
      %v1440 = vpop.f32.mrf.mxu0
      %v1441 = vadd.f32 %v1372, %v1440
      %v1442 = vpop.f32.mrf.mxu0
      %1443 = vmatprep.mubr.f32.mxu0 0.0
      %1444 = vmatmul.mubr.f32.gmra.mxu0 %v1350
      %v1445 = vpop.f32.mrf.mxu0
      %v1446 = vadd.f32 %v1372, %v1445
      %v1447 = vpop.f32.mrf.mxu0
      %1448 = vdwg.mxu0
      %v1449 = vadd.f32 %v1195, %v1441
      %v1450 = vadd.f32 %v1196, %v1446
      %v1451 = vld [vmem:[%s16] sm:$0xff]
      %v1452 = vld [vmem:[%s16 + $0x8] sm:$0xff]
      %v1453 = vld [vmem:[%s16 + $0x10] sm:$0xff]
      %v1454 = vld [vmem:[%s16 + $0x18] sm:$0xff]
      %v1455 = vld [vmem:[%s17] sm:$0x1]
      %v1457 = vlaneseq
      %v1458 = vshrl.u32 %v1457, 7
      %v1459 = vsub.s32 0, %v1458
      %v1460 = vrot.slane %v1455, %v1459
      %v1463 = vsel %vm679, %v1449, 0
      %v1466 = vsel %vm679, %v1450, 0
      %1468 = vmatprep.subr.mxu0 0.0
      %1469 = vmatpush1.msra.mxu0 0.0
      %1470 = vmatprep.subr.mxu0 0.0
      %1471 = vmatpush1.msra.mxu0 0.0
      %1472 = vmatprep.subr.mxu0 0.0
      %1473 = vmatpush1.msra.mxu0 0.0
      %1474 = vmatprep.subr.mxu0 0.0
      %1475 = vmatpush1.msra.mxu0 0.0
      %1476 = vmatprep.subr.mxu0 0.0
      %1477 = vmatpush1.msra.mxu0 0.0
      %1478 = vmatprep.subr.mxu0 0.0
      %1479 = vmatpush1.msra.mxu0 0.0
      %1480 = vmatprep.subr.mxu0 0.0
      %1481 = vmatpush1.msra.mxu0 0.0
      %1482 = vmatprep.subr.mxu0 0.0
      %1483 = vmatpush1.msra.mxu0 0.0
      %1484 = vmatprep.subr.mxu0 0.0
      %1485 = vmatpush1.msra.mxu0 0.0
      %1486 = vmatprep.subr.mxu0 0.0
      %1487 = vmatpush1.msra.mxu0 0.0
      %1488 = vmatprep.subr.mxu0 0.0
      %1489 = vmatpush1.msra.mxu0 0.0
      %1490 = vmatprep.subr.mxu0 0.0
      %1491 = vmatpush1.msra.mxu0 0.0
      %1492 = vmatprep.subr.mxu0 0.0
      %1493 = vmatpush1.msra.mxu0 %v1454
      %1494 = vmatprep.subr.mxu0 0.0
      %1495 = vmatpush1.msra.mxu0 %v1453
      %1496 = vmatprep.subr.mxu0 0.0
      %1497 = vmatpush1.msra.mxu0 %v1452
      %1498 = vmatprep.subr.mxu0 0.0
      %1499 = vmatpush1.msra.mxu0 %v1451
      %1500 = vmatprep.subr.mxu0 0.0
      %1501 = vmatpush2.msra.mxu0 0.0
      %1502 = vmatprep.subr.mxu0 0.0
      %1503 = vmatpush2.msra.mxu0 0.0
      %1504 = vmatprep.subr.mxu0 0.0
      %1505 = vmatpush2.msra.mxu0 0.0
      %1506 = vmatprep.subr.mxu0 0.0
      %1507 = vmatpush2.msra.mxu0 0.0
      %1508 = vmatprep.subr.mxu0 0.0
      %1509 = vmatpush2.msra.mxu0 0.0
      %1510 = vmatprep.subr.mxu0 0.0
      %1511 = vmatpush2.msra.mxu0 0.0
      %1512 = vmatprep.subr.mxu0 0.0
      %1513 = vmatpush2.msra.mxu0 0.0
      %1514 = vmatprep.subr.mxu0 0.0
      %1515 = vmatpush2.msra.mxu0 0.0
      %1516 = vmatprep.subr.mxu0 0.0
      %1517 = vmatpush2.msra.mxu0 0.0
      %1518 = vmatprep.subr.mxu0 0.0
      %1519 = vmatpush2.msra.mxu0 0.0
      %1520 = vmatprep.subr.mxu0 0.0
      %1521 = vmatpush2.msra.mxu0 0.0
      %1522 = vmatprep.subr.mxu0 0.0
      %1523 = vmatpush2.msra.mxu0 0.0
      %1524 = vmatprep.subr.mxu0 0.0
      %1525 = vmatpush2.msra.mxu0 0.0
      %1526 = vmatprep.subr.mxu0 0.0
      %1527 = vmatpush2.msra.mxu0 0.0
      %1528 = vmatprep.subr.mxu0 0.0
      %1529 = vmatpush2.msra.mxu0 0.0
      %1530 = vmatprep.subr.mxu0 0.0
      %1531 = vmatpush2.msra.mxu0 0.0
      %1532 = vmatprep.mubr.f32.mxu0 0.0
      %1533 = vmatmul.mubr.f32.gmra.mxu0 %v1463
      %v1534 = vpop.f32.mrf.mxu0
      %v1535 = vadd.f32 %v1460, %v1534
      %v1536 = vpop.f32.mrf.mxu0
      %1537 = vmatprep.mubr.f32.mxu0 0.0
      %1538 = vmatmul.mubr.f32.gmra.mxu0 %v1466
      %v1539 = vpop.f32.mrf.mxu0
      %v1540 = vadd.f32 %v1460, %v1539
      %v1541 = vpop.f32.mrf.mxu0
      %1542 = vdwg.mxu0
      %1543 = vst.msk [vmem:[%s575] sm:$0xff] %vm679, %v1535
      %1544 = vst.msk [vmem:[%s575 + $0x8] sm:$0xff] %vm679, %v1540
      %p1545 = scmp.lt.s32.totalorder %s29, 1
      %s1546 = scalar_select %p1545, %s29, 1
      %s1547 = smul.addr %s1546, 2
      %s1548 = smul.addr %s1547, 8
      %s1549 = scalar_lea.vmem %s18, %s1548
      // Predicated region
      $region93: #{_lambda_.2} parent=91 // pred_check
        %p1550 = pneg %p430
      $region94: #{_lambda_.2} parent=91 // pred_check_branch
        %1552 = sbr.rel (%p1550) target = $region96
      $region95: #{_lambda_.2} parent=91 // pred_region
        _
      $region96: #{_lambda_.2} parent=91 // pred_fallthru
        _
    $region92: #{_lambda_.2} parent=5 // pred_fallthru
      _
    %p1553 = scmp.le.s32.totalorder 2, %s24
    // Predicated region
    $region97: #{_lambda_.2} parent=5 // pred_check
      %p1554 = pneg %p1553
    $region98: #{_lambda_.2} parent=5 // pred_check_branch
      %1556 = sbr.rel (%p1554) target = $region100
    $region99: #{_lambda_.2} parent=5 // pred_region
      %s1557 = ssub.s32 %s24, 2
      // Predicated region
      $region101: #{_lambda_.2} parent=99 // pred_check
        %p1558 = pneg %p436
      $region102: #{_lambda_.2} parent=99 // pred_check_branch
        %1560 = sbr.rel (%p1558) target = $region104
      $region103: #{_lambda_.2} parent=99 // pred_region
        %p1561 = scmp.lt.s32.totalorder %s30, 1
        %s1562 = scalar_select %p1561, %s30, 1
        %s1563 = smul.addr %s1562, 2
        %s1564 = smul.addr %s1563, 8
        %s1565 = scalar_lea.vmem %s18, %s1564
      $region104: #{_lambda_.2} parent=99 // pred_fallthru
        _
    $region100: #{_lambda_.2} parent=5 // pred_fallthru
      _
  $region6: #{_lambda_.2} parent=0 // loop_footer
    %s28 = sadd.s32 1, %s24
  $region7: #{_lambda_.2} parent=0 // loop_footer_branch
    %23 = sbr.rel target = $region3
  $region8: #{_lambda_.2} parent=0 // loop_exit
    _

// kernel: _lambda_.3
$region0: #{_lambda_.3}
  #allocation0 [shape = 'u32[]', space=smem, size = 0x4, offset = 0x4, fixed_abs, tag = 'smem constant byte address 0x4 - core index']
  #allocation1 [shape = 'u32[144,128]{1,0:T(1,128)}', space=vmem, size = 0x12000, scoped, tag = 'internal scratch']
  %s0 = inlined_call_operand.smem [shape: u32[41], index: -1, kind: input, shape index: {}]
  %s1 = sld [smem:[%s0]]
  %s2 = scalar_lea.smem %s0, 1
  %s3 = sld [smem:[%s2]]
  %s4 = scalar_lea.smem %s0, 2
  %s5 = sld [smem:[%s4]]
  %s6 = scalar_lea.smem %s0, 3
  %s7 = sld [smem:[%s6]]
  %s8 = scalar_lea.smem %s0, 4
  %s9 = sld [smem:[%s8]]
  %s10 = scalar_lea.smem %s0, 5
  %s11 = sld [smem:[%s10]]
  %s12 = scalar_lea.smem %s0, 6
  %s13 = sld [smem:[%s12]]
  %s14 = scalar_lea.smem %s0, 7
  %s15 = sld [smem:[%s14]]
  %s16 = scalar_lea.smem %s0, 8
  %s17 = sld [smem:[%s16]]
  %s18 = scalar_lea.smem %s0, 9
  %s19 = sld [smem:[%s18]]
  %s20 = scalar_lea.smem %s0, 10
  %s21 = sld [smem:[%s20]]
  %s22 = scalar_lea.smem %s0, 11
  %s23 = sld [smem:[%s22]]
  %s24 = scalar_lea.smem %s0, 12
  %s25 = sld [smem:[%s24]]
  %s26 = scalar_lea.smem %s0, 13
  %s27 = sld [smem:[%s26]]
  %s28 = scalar_lea.smem %s0, 14
  %s29 = sld [smem:[%s28]]
  %s30 = scalar_lea.smem %s0, 15
  %s31 = sld [smem:[%s30]]
  %s32 = scalar_lea.smem %s0, 16
  %s33 = sld [smem:[%s32]]
  %s34 = scalar_lea.smem %s0, 17
  %s35 = sld [smem:[%s34]]
  %s36 = scalar_lea.smem %s0, 18
  %s37 = sld [smem:[%s36]]
  %s38 = scalar_lea.smem %s0, 19
  %s39 = sld [smem:[%s38]]
  %s40 = scalar_lea.smem %s0, 20
  %s41 = sld [smem:[%s40]]
  %s42 = scalar_lea.smem %s0, 21
  %s43 = sld [smem:[%s42]]
  %s44 = scalar_lea.smem %s0, 22
  %s45 = sld [smem:[%s44]]
  %s46 = scalar_lea.smem %s0, 23
  %s47 = sld [smem:[%s46]]
  %s48 = scalar_lea.smem %s0, 24
  %s49 = sld [smem:[%s48]]
  %s50 = scalar_lea.smem %s0, 25
  %s51 = sld [smem:[%s50]]
  %s52 = scalar_lea.smem %s0, 26
  %s53 = sld [smem:[%s52]]
  %s54 = scalar_lea.smem %s0, 27
  %s55 = sld [smem:[%s54]]
  %s56 = scalar_lea.smem %s0, 28
  %s57 = sld [smem:[%s56]]
  %s58 = scalar_lea.smem %s0, 29
  %s59 = sld [smem:[%s58]]
  %s60 = scalar_lea.smem %s0, 30
  %s61 = sld [smem:[%s60]]
  %s62 = scalar_lea.smem %s0, 31
  %s63 = sld [smem:[%s62]]
  %s64 = scalar_lea.smem %s0, 32
  %s65 = sld [smem:[%s64]]
  %s66 = scalar_lea.smem %s0, 33
  %s67 = sld [smem:[%s66]]
  %s68 = scalar_lea.smem %s0, 34
  %s69 = sld [smem:[%s68]]
  %s70 = scalar_lea.smem %s0, 35
  %s71 = sld [smem:[%s70]]
  %s72 = scalar_lea.smem %s0, 36
  %s73 = sld [smem:[%s72]]
  %s74 = scalar_lea.smem %s0, 37
  %s75 = sld [smem:[%s74]]
  %s76 = scalar_lea.smem %s0, 38
  %s77 = sld [smem:[%s76]]
  %s78 = scalar_lea.smem %s0, 39
  %s79 = sld [smem:[%s78]]
  %s80 = scalar_lea.smem %s0, 40
  %s81 = sld [smem:[%s80]]
  %82 = xla_tuple %s79, %s81
  %s83 = sld [smem:[#allocation0]]
  $region197: #{_lambda_.3} parent=0
    _
  %s85 = ssub.s32 1, %s83
  %s86 = scalar_select 0, %s85, %s83
  loop: start=0, step=1, limit=4
  $region2: #{_lambda_.3} parent=0 // loop_pre_header
    _
  $region3: #{_lambda_.3} parent=0 // loop_header
    %s88 = sphi 0, %s92
    %p89 = scmp.ge.s32.totalorder %s88, 4
    %s98 = sphi 0, %s100
    %s101 = sphi 0, %s98
    %s102 = sphi 0, %s101
    %s118 = sphi 0, %s102
    %s148 = sphi 0, %s150
    %s151 = sphi 0, %s148
    %s152 = sphi 0, %s151
    %s168 = sphi 0, %s152
    %s172 = sphi 0, %s172
    %s174 = sphi 0, %s172
    %s175 = sphi 0, %s174
    %s189 = sphi 0, %s175
    %s193 = sphi 0, %s193
    %s195 = sphi 0, %s193
    %s196 = sphi 0, %s195
    %s210 = sphi 0, %s196
    %s214 = sphi 0, %s214
    %s216 = sphi 0, %s214
    %s217 = sphi 0, %s216
    %s231 = sphi 0, %s217
    %s235 = sphi 0, %s235
    %s237 = sphi 0, %s235
    %s238 = sphi 0, %s237
    %s252 = sphi 0, %s238
    %s256 = sphi 0, %s256
    %s258 = sphi 0, %s256
    %s259 = sphi 0, %s258
    %s273 = sphi 0, %s259
    %s277 = sphi 0, %s277
    %s279 = sphi 0, %s277
    %s280 = sphi 0, %s279
    %s294 = sphi 0, %s280
    %s298 = sphi 0, %s298
    %s300 = sphi 0, %s298
    %s301 = sphi 0, %s300
    %s315 = sphi 0, %s301
    %s319 = sphi 0, %s319
    %s321 = sphi 0, %s319
    %s322 = sphi 0, %s321
    %s336 = sphi 0, %s322
    %s340 = sphi 0, %s340
    %s342 = sphi 0, %s340
    %s343 = sphi 0, %s342
    %s357 = sphi 0, %s343
    %s361 = sphi 0, %s361
    %s363 = sphi 0, %s361
    %s364 = sphi 0, %s363
    %s378 = sphi 0, %s364
    %s382 = sphi 0, %s382
    %s384 = sphi 0, %s382
    %s385 = sphi 0, %s384
    %s399 = sphi 0, %s385
    %s403 = sphi 0, %s403
    %s405 = sphi 0, %s403
    %s406 = sphi 0, %s405
    %s420 = sphi 0, %s406
    %s424 = sphi 0, %s424
    %s426 = sphi 0, %s424
    %s427 = sphi 0, %s426
    %s441 = sphi 0, %s427
    %s445 = sphi 0, %s445
    %s447 = sphi 0, %s445
    %s448 = sphi 0, %s447
    %s462 = sphi 0, %s448
    %s466 = sphi 0, %s466
    %s468 = sphi 0, %s466
    %s469 = sphi 0, %s468
    %s483 = sphi 0, %s469
    %s487 = sphi 0, %s487
    %s489 = sphi 0, %s487
    %s490 = sphi 0, %s489
    %s504 = sphi 0, %s490
    %s508 = sphi 0, %s508
    %s510 = sphi 0, %s508
    %s511 = sphi 0, %s510
    %s525 = sphi 0, %s511
    %s529 = sphi 0, %s529
    %s531 = sphi 0, %s529
    %s532 = sphi 0, %s531
    %s546 = sphi 0, %s532
    %s550 = sphi 0, %s550
    %s552 = sphi 0, %s550
    %s553 = sphi 0, %s552
    %s567 = sphi 0, %s553
    %s571 = sphi 0, %s571
    %s573 = sphi 0, %s571
    %s574 = sphi 0, %s573
    %s588 = sphi 0, %s574
    %s592 = sphi 0, %s592
    %s594 = sphi 0, %s592
    %s595 = sphi 0, %s594
    %s609 = sphi 0, %s595
    %s613 = sphi 0, %s613
    %s615 = sphi 0, %s613
    %s616 = sphi 0, %s615
    %s630 = sphi 0, %s616
    %s634 = sphi 0, %s634
    %s636 = sphi 0, %s634
    %s637 = sphi 0, %s636
    %s651 = sphi 0, %s637
    %s655 = sphi 0, %s655
    %s657 = sphi 0, %s655
    %s658 = sphi 0, %s657
    %s672 = sphi 0, %s658
    %s676 = sphi 0, %s676
    %s678 = sphi 0, %s676
    %s679 = sphi 0, %s678
    %s693 = sphi 0, %s679
    %s697 = sphi 0, %s697
    %s699 = sphi 0, %s697
    %s700 = sphi 0, %s699
    %s714 = sphi 0, %s700
    %s718 = sphi 0, %s718
    %s720 = sphi 0, %s718
    %s721 = sphi 0, %s720
    %s735 = sphi 0, %s721
    %s739 = sphi 0, %s739
    %s741 = sphi 0, %s739
    %s742 = sphi 0, %s741
    %s756 = sphi 0, %s742
    %s760 = sphi 0, %s760
    %s762 = sphi 0, %s760
    %s763 = sphi 0, %s762
    %s777 = sphi 0, %s763
    %s781 = sphi 0, %s781
    %s783 = sphi 0, %s781
    %s784 = sphi 0, %s783
    %s798 = sphi 0, %s784
    %s802 = sphi 0, %s802
    %s804 = sphi 0, %s802
    %s805 = sphi 0, %s804
    %s819 = sphi 0, %s805
    %s823 = sphi 0, %s823
    %s825 = sphi 0, %s823
    %s826 = sphi 0, %s825
    %s840 = sphi 0, %s826
    %s844 = sphi 0, %s844
    %s846 = sphi 0, %s844
    %s847 = sphi 0, %s846
    %s861 = sphi 0, %s847
    %s865 = sphi 0, %s865
    %s867 = sphi 0, %s865
    %s868 = sphi 0, %s867
    %s882 = sphi 0, %s868
    %s886 = sphi 0, %s886
    %s888 = sphi 0, %s886
    %s889 = sphi 0, %s888
    %s903 = sphi 0, %s889
    %s907 = sphi 0, %s907
    %s909 = sphi 0, %s907
    %s910 = sphi 0, %s909
    %s924 = sphi 0, %s910
    %s928 = sphi 0, %s928
    %s930 = sphi 0, %s928
    %s931 = sphi 0, %s930
    %s945 = sphi 0, %s931
    %s951 = sphi 0, %s953
    %s954 = sphi 0, %s951
    %s955 = sphi 0, %s954
    %s971 = sphi 0, %s955
    %s977 = sphi 0, %s979
    %s980 = sphi 0, %s977
    %s981 = sphi 0, %s980
    %s997 = sphi 0, %s981
  $region4: #{_lambda_.3} parent=0 // loop_header_branch
    %91 = sbr.rel (%p89) target = $region8
  $region5: #{_lambda_.3} parent=0 // loop_body
    %s93 = ssub.s32 %s88, 1
    %s94 = ssub.s32 %s88, 2
    %s95 = sadd.s32 %s88, 1
    %s96 = ssub.s32 %s88, %s95
    %p97 = scmp.eq.s32.totalorder %s96, 0
    %s99 = sadd.s32 %s98, 1
    %s100 = scalar_select %p97, %s98, %s99
    %p103 = pneg %p97
    %p104 = scmp.eq.s32.totalorder %s88, 1
    %p105 = por %p103, %p104
    %p106 = scmp.ne.s32.totalorder %s98, %s101
    %p107 = scmp.eq.s32.totalorder %s88, 0
    %p108 = por %p106, %p107
    %p109 = scmp.ne.s32.totalorder %s98, %s101
    %p110 = scmp.eq.s32.totalorder %s93, 1
    %p111 = por %p109, %p110
    %p112 = scmp.ne.s32.totalorder %s101, %s102
    %p113 = scmp.eq.s32.totalorder %s93, 0
    %p114 = por %p112, %p113
    %p115 = scmp.ne.s32.totalorder %s101, %s102
    %p116 = scmp.eq.s32.totalorder %s94, 1
    %p117 = por %p115, %p116
    %p119 = scmp.ne.s32.totalorder %s102, %s118
    %p120 = scmp.eq.s32.totalorder %s94, 0
    %p121 = por %p119, %p120
    %p122 = scmp.lt.s32.totalorder %s88, 0
    %s123 = ssub.s32 0, %s88
    %s124 = scalar_select %p122, %s123, %s88
    %s125 = sand.u32 %s124, 1
    %s126 = ssub.s32 0, %s125
    %s127 = scalar_select %p122, %s126, %s125
    %p128 = scmp.ne.s32.totalorder %s127, 0
    %p129 = scmp.lt.s32.totalorder %s127, 0
    %p130 = pnand %p129, %p128
    %p131 = pneg %p130
    %s132 = sadd.s32 %s127, 2
    %s133 = scalar_select %p131, %s132, %s127
    %p134 = scmp.lt.s32.totalorder %s95, 0
    %s135 = ssub.s32 0, %s95
    %s136 = scalar_select %p134, %s135, %s95
    %s137 = sand.u32 %s136, 1
    %s138 = ssub.s32 0, %s137
    %s139 = scalar_select %p134, %s138, %s137
    %p140 = scmp.ne.s32.totalorder %s139, 0
    %p141 = scmp.lt.s32.totalorder %s139, 0
    %p142 = pnand %p141, %p140
    %p143 = pneg %p142
    %s144 = sadd.s32 %s139, 2
    %s145 = scalar_select %p143, %s144, %s139
    %s146 = ssub.s32 %s133, %s145
    %p147 = scmp.eq.s32.totalorder %s146, 0
    %s149 = sadd.s32 %s148, 1
    %s150 = scalar_select %p147, %s148, %s149
    %p153 = pneg %p147
    %p154 = scmp.eq.s32.totalorder %s88, 1
    %p155 = por %p153, %p154
    %p156 = scmp.ne.s32.totalorder %s148, %s151
    %p157 = scmp.eq.s32.totalorder %s88, 0
    %p158 = por %p156, %p157
    %p159 = scmp.ne.s32.totalorder %s148, %s151
    %p160 = scmp.eq.s32.totalorder %s93, 1
    %p161 = por %p159, %p160
    %p162 = scmp.ne.s32.totalorder %s151, %s152
    %p163 = scmp.eq.s32.totalorder %s93, 0
    %p164 = por %p162, %p163
    %p165 = scmp.ne.s32.totalorder %s151, %s152
    %p166 = scmp.eq.s32.totalorder %s94, 1
    %p167 = por %p165, %p166
    %p169 = scmp.ne.s32.totalorder %s152, %s168
    %p170 = scmp.eq.s32.totalorder %s94, 0
    %p171 = por %p169, %p170
    %s173 = sadd.s32 %s172, 1
    %p176 = scmp.eq.s32.totalorder %s88, 1
    %p177 = scmp.ne.s32.totalorder %s172, %s174
    %p178 = scmp.eq.s32.totalorder %s88, 0
    %p179 = por %p177, %p178
    %p180 = scmp.ne.s32.totalorder %s172, %s174
    %p181 = scmp.eq.s32.totalorder %s93, 1
    %p182 = por %p180, %p181
    %p183 = scmp.ne.s32.totalorder %s174, %s175
    %p184 = scmp.eq.s32.totalorder %s93, 0
    %p185 = por %p183, %p184
    %p186 = scmp.ne.s32.totalorder %s174, %s175
    %p187 = scmp.eq.s32.totalorder %s94, 1
    %p188 = por %p186, %p187
    %p190 = scmp.ne.s32.totalorder %s175, %s189
    %p191 = scmp.eq.s32.totalorder %s94, 0
    %p192 = por %p190, %p191
    %s194 = sadd.s32 %s193, 1
    %p197 = scmp.eq.s32.totalorder %s88, 1
    %p198 = scmp.ne.s32.totalorder %s193, %s195
    %p199 = scmp.eq.s32.totalorder %s88, 0
    %p200 = por %p198, %p199
    %p201 = scmp.ne.s32.totalorder %s193, %s195
    %p202 = scmp.eq.s32.totalorder %s93, 1
    %p203 = por %p201, %p202
    %p204 = scmp.ne.s32.totalorder %s195, %s196
    %p205 = scmp.eq.s32.totalorder %s93, 0
    %p206 = por %p204, %p205
    %p207 = scmp.ne.s32.totalorder %s195, %s196
    %p208 = scmp.eq.s32.totalorder %s94, 1
    %p209 = por %p207, %p208
    %p211 = scmp.ne.s32.totalorder %s196, %s210
    %p212 = scmp.eq.s32.totalorder %s94, 0
    %p213 = por %p211, %p212
    %s215 = sadd.s32 %s214, 1
    %p218 = scmp.eq.s32.totalorder %s88, 1
    %p219 = scmp.ne.s32.totalorder %s214, %s216
    %p220 = scmp.eq.s32.totalorder %s88, 0
    %p221 = por %p219, %p220
    %p222 = scmp.ne.s32.totalorder %s214, %s216
    %p223 = scmp.eq.s32.totalorder %s93, 1
    %p224 = por %p222, %p223
    %p225 = scmp.ne.s32.totalorder %s216, %s217
    %p226 = scmp.eq.s32.totalorder %s93, 0
    %p227 = por %p225, %p226
    %p228 = scmp.ne.s32.totalorder %s216, %s217
    %p229 = scmp.eq.s32.totalorder %s94, 1
    %p230 = por %p228, %p229
    %p232 = scmp.ne.s32.totalorder %s217, %s231
    %p233 = scmp.eq.s32.totalorder %s94, 0
    %p234 = por %p232, %p233
    %s236 = sadd.s32 %s235, 1
    %p239 = scmp.eq.s32.totalorder %s88, 1
    %p240 = scmp.ne.s32.totalorder %s235, %s237
    %p241 = scmp.eq.s32.totalorder %s88, 0
    %p242 = por %p240, %p241
    %p243 = scmp.ne.s32.totalorder %s235, %s237
    %p244 = scmp.eq.s32.totalorder %s93, 1
    %p245 = por %p243, %p244
    %p246 = scmp.ne.s32.totalorder %s237, %s238
    %p247 = scmp.eq.s32.totalorder %s93, 0
    %p248 = por %p246, %p247
    %p249 = scmp.ne.s32.totalorder %s237, %s238
    %p250 = scmp.eq.s32.totalorder %s94, 1
    %p251 = por %p249, %p250
    %p253 = scmp.ne.s32.totalorder %s238, %s252
    %p254 = scmp.eq.s32.totalorder %s94, 0
    %p255 = por %p253, %p254
    %s257 = sadd.s32 %s256, 1
    %p260 = scmp.eq.s32.totalorder %s88, 1
    %p261 = scmp.ne.s32.totalorder %s256, %s258
    %p262 = scmp.eq.s32.totalorder %s88, 0
    %p263 = por %p261, %p262
    %p264 = scmp.ne.s32.totalorder %s256, %s258
    %p265 = scmp.eq.s32.totalorder %s93, 1
    %p266 = por %p264, %p265
    %p267 = scmp.ne.s32.totalorder %s258, %s259
    %p268 = scmp.eq.s32.totalorder %s93, 0
    %p269 = por %p267, %p268
    %p270 = scmp.ne.s32.totalorder %s258, %s259
    %p271 = scmp.eq.s32.totalorder %s94, 1
    %p272 = por %p270, %p271
    %p274 = scmp.ne.s32.totalorder %s259, %s273
    %p275 = scmp.eq.s32.totalorder %s94, 0
    %p276 = por %p274, %p275
    %s278 = sadd.s32 %s277, 1
    %p281 = scmp.eq.s32.totalorder %s88, 1
    %p282 = scmp.ne.s32.totalorder %s277, %s279
    %p283 = scmp.eq.s32.totalorder %s88, 0
    %p284 = por %p282, %p283
    %p285 = scmp.ne.s32.totalorder %s277, %s279
    %p286 = scmp.eq.s32.totalorder %s93, 1
    %p287 = por %p285, %p286
    %p288 = scmp.ne.s32.totalorder %s279, %s280
    %p289 = scmp.eq.s32.totalorder %s93, 0
    %p290 = por %p288, %p289
    %p291 = scmp.ne.s32.totalorder %s279, %s280
    %p292 = scmp.eq.s32.totalorder %s94, 1
    %p293 = por %p291, %p292
    %p295 = scmp.ne.s32.totalorder %s280, %s294
    %p296 = scmp.eq.s32.totalorder %s94, 0
    %p297 = por %p295, %p296
    %s299 = sadd.s32 %s298, 1
    %p302 = scmp.eq.s32.totalorder %s88, 1
    %p303 = scmp.ne.s32.totalorder %s298, %s300
    %p304 = scmp.eq.s32.totalorder %s88, 0
    %p305 = por %p303, %p304
    %p306 = scmp.ne.s32.totalorder %s298, %s300
    %p307 = scmp.eq.s32.totalorder %s93, 1
    %p308 = por %p306, %p307
    %p309 = scmp.ne.s32.totalorder %s300, %s301
    %p310 = scmp.eq.s32.totalorder %s93, 0
    %p311 = por %p309, %p310
    %p312 = scmp.ne.s32.totalorder %s300, %s301
    %p313 = scmp.eq.s32.totalorder %s94, 1
    %p314 = por %p312, %p313
    %p316 = scmp.ne.s32.totalorder %s301, %s315
    %p317 = scmp.eq.s32.totalorder %s94, 0
    %p318 = por %p316, %p317
    %s320 = sadd.s32 %s319, 1
    %p323 = scmp.eq.s32.totalorder %s88, 1
    %p324 = scmp.ne.s32.totalorder %s319, %s321
    %p325 = scmp.eq.s32.totalorder %s88, 0
    %p326 = por %p324, %p325
    %p327 = scmp.ne.s32.totalorder %s319, %s321
    %p328 = scmp.eq.s32.totalorder %s93, 1
    %p329 = por %p327, %p328
    %p330 = scmp.ne.s32.totalorder %s321, %s322
    %p331 = scmp.eq.s32.totalorder %s93, 0
    %p332 = por %p330, %p331
    %p333 = scmp.ne.s32.totalorder %s321, %s322
    %p334 = scmp.eq.s32.totalorder %s94, 1
    %p335 = por %p333, %p334
    %p337 = scmp.ne.s32.totalorder %s322, %s336
    %p338 = scmp.eq.s32.totalorder %s94, 0
    %p339 = por %p337, %p338
    %s341 = sadd.s32 %s340, 1
    %p344 = scmp.eq.s32.totalorder %s88, 1
    %p345 = scmp.ne.s32.totalorder %s340, %s342
    %p346 = scmp.eq.s32.totalorder %s88, 0
    %p347 = por %p345, %p346
    %p348 = scmp.ne.s32.totalorder %s340, %s342
    %p349 = scmp.eq.s32.totalorder %s93, 1
    %p350 = por %p348, %p349
    %p351 = scmp.ne.s32.totalorder %s342, %s343
    %p352 = scmp.eq.s32.totalorder %s93, 0
    %p353 = por %p351, %p352
    %p354 = scmp.ne.s32.totalorder %s342, %s343
    %p355 = scmp.eq.s32.totalorder %s94, 1
    %p356 = por %p354, %p355
    %p358 = scmp.ne.s32.totalorder %s343, %s357
    %p359 = scmp.eq.s32.totalorder %s94, 0
    %p360 = por %p358, %p359
    %s362 = sadd.s32 %s361, 1
    %p365 = scmp.eq.s32.totalorder %s88, 1
    %p366 = scmp.ne.s32.totalorder %s361, %s363
    %p367 = scmp.eq.s32.totalorder %s88, 0
    %p368 = por %p366, %p367
    %p369 = scmp.ne.s32.totalorder %s361, %s363
    %p370 = scmp.eq.s32.totalorder %s93, 1
    %p371 = por %p369, %p370
    %p372 = scmp.ne.s32.totalorder %s363, %s364
    %p373 = scmp.eq.s32.totalorder %s93, 0
    %p374 = por %p372, %p373
    %p375 = scmp.ne.s32.totalorder %s363, %s364
    %p376 = scmp.eq.s32.totalorder %s94, 1
    %p377 = por %p375, %p376
    %p379 = scmp.ne.s32.totalorder %s364, %s378
    %p380 = scmp.eq.s32.totalorder %s94, 0
    %p381 = por %p379, %p380
    %s383 = sadd.s32 %s382, 1
    %p386 = scmp.eq.s32.totalorder %s88, 1
    %p387 = scmp.ne.s32.totalorder %s382, %s384
    %p388 = scmp.eq.s32.totalorder %s88, 0
    %p389 = por %p387, %p388
    %p390 = scmp.ne.s32.totalorder %s382, %s384
    %p391 = scmp.eq.s32.totalorder %s93, 1
    %p392 = por %p390, %p391
    %p393 = scmp.ne.s32.totalorder %s384, %s385
    %p394 = scmp.eq.s32.totalorder %s93, 0
    %p395 = por %p393, %p394
    %p396 = scmp.ne.s32.totalorder %s384, %s385
    %p397 = scmp.eq.s32.totalorder %s94, 1
    %p398 = por %p396, %p397
    %p400 = scmp.ne.s32.totalorder %s385, %s399
    %p401 = scmp.eq.s32.totalorder %s94, 0
    %p402 = por %p400, %p401
    %s404 = sadd.s32 %s403, 1
    %p407 = scmp.eq.s32.totalorder %s88, 1
    %p408 = scmp.ne.s32.totalorder %s403, %s405
    %p409 = scmp.eq.s32.totalorder %s88, 0
    %p410 = por %p408, %p409
    %p411 = scmp.ne.s32.totalorder %s403, %s405
    %p412 = scmp.eq.s32.totalorder %s93, 1
    %p413 = por %p411, %p412
    %p414 = scmp.ne.s32.totalorder %s405, %s406
    %p415 = scmp.eq.s32.totalorder %s93, 0
    %p416 = por %p414, %p415
    %p417 = scmp.ne.s32.totalorder %s405, %s406
    %p418 = scmp.eq.s32.totalorder %s94, 1
    %p419 = por %p417, %p418
    %p421 = scmp.ne.s32.totalorder %s406, %s420
    %p422 = scmp.eq.s32.totalorder %s94, 0
    %p423 = por %p421, %p422
    %s425 = sadd.s32 %s424, 1
    %p428 = scmp.eq.s32.totalorder %s88, 1
    %p429 = scmp.ne.s32.totalorder %s424, %s426
    %p430 = scmp.eq.s32.totalorder %s88, 0
    %p431 = por %p429, %p430
    %p432 = scmp.ne.s32.totalorder %s424, %s426
    %p433 = scmp.eq.s32.totalorder %s93, 1
    %p434 = por %p432, %p433
    %p435 = scmp.ne.s32.totalorder %s426, %s427
    %p436 = scmp.eq.s32.totalorder %s93, 0
    %p437 = por %p435, %p436
    %p438 = scmp.ne.s32.totalorder %s426, %s427
    %p439 = scmp.eq.s32.totalorder %s94, 1
    %p440 = por %p438, %p439
    %p442 = scmp.ne.s32.totalorder %s427, %s441
    %p443 = scmp.eq.s32.totalorder %s94, 0
    %p444 = por %p442, %p443
    %s446 = sadd.s32 %s445, 1
    %p449 = scmp.eq.s32.totalorder %s88, 1
    %p450 = scmp.ne.s32.totalorder %s445, %s447
    %p451 = scmp.eq.s32.totalorder %s88, 0
    %p452 = por %p450, %p451
    %p453 = scmp.ne.s32.totalorder %s445, %s447
    %p454 = scmp.eq.s32.totalorder %s93, 1
    %p455 = por %p453, %p454
    %p456 = scmp.ne.s32.totalorder %s447, %s448
    %p457 = scmp.eq.s32.totalorder %s93, 0
    %p458 = por %p456, %p457
    %p459 = scmp.ne.s32.totalorder %s447, %s448
    %p460 = scmp.eq.s32.totalorder %s94, 1
    %p461 = por %p459, %p460
    %p463 = scmp.ne.s32.totalorder %s448, %s462
    %p464 = scmp.eq.s32.totalorder %s94, 0
    %p465 = por %p463, %p464
    %s467 = sadd.s32 %s466, 1
    %p470 = scmp.eq.s32.totalorder %s88, 1
    %p471 = scmp.ne.s32.totalorder %s466, %s468
    %p472 = scmp.eq.s32.totalorder %s88, 0
    %p473 = por %p471, %p472
    %p474 = scmp.ne.s32.totalorder %s466, %s468
    %p475 = scmp.eq.s32.totalorder %s93, 1
    %p476 = por %p474, %p475
    %p477 = scmp.ne.s32.totalorder %s468, %s469
    %p478 = scmp.eq.s32.totalorder %s93, 0
    %p479 = por %p477, %p478
    %p480 = scmp.ne.s32.totalorder %s468, %s469
    %p481 = scmp.eq.s32.totalorder %s94, 1
    %p482 = por %p480, %p481
    %p484 = scmp.ne.s32.totalorder %s469, %s483
    %p485 = scmp.eq.s32.totalorder %s94, 0
    %p486 = por %p484, %p485
    %s488 = sadd.s32 %s487, 1
    %p491 = scmp.eq.s32.totalorder %s88, 1
    %p492 = scmp.ne.s32.totalorder %s487, %s489
    %p493 = scmp.eq.s32.totalorder %s88, 0
    %p494 = por %p492, %p493
    %p495 = scmp.ne.s32.totalorder %s487, %s489
    %p496 = scmp.eq.s32.totalorder %s93, 1
    %p497 = por %p495, %p496
    %p498 = scmp.ne.s32.totalorder %s489, %s490
    %p499 = scmp.eq.s32.totalorder %s93, 0
    %p500 = por %p498, %p499
    %p501 = scmp.ne.s32.totalorder %s489, %s490
    %p502 = scmp.eq.s32.totalorder %s94, 1
    %p503 = por %p501, %p502
    %p505 = scmp.ne.s32.totalorder %s490, %s504
    %p506 = scmp.eq.s32.totalorder %s94, 0
    %p507 = por %p505, %p506
    %s509 = sadd.s32 %s508, 1
    %p512 = scmp.eq.s32.totalorder %s88, 1
    %p513 = scmp.ne.s32.totalorder %s508, %s510
    %p514 = scmp.eq.s32.totalorder %s88, 0
    %p515 = por %p513, %p514
    %p516 = scmp.ne.s32.totalorder %s508, %s510
    %p517 = scmp.eq.s32.totalorder %s93, 1
    %p518 = por %p516, %p517
    %p519 = scmp.ne.s32.totalorder %s510, %s511
    %p520 = scmp.eq.s32.totalorder %s93, 0
    %p521 = por %p519, %p520
    %p522 = scmp.ne.s32.totalorder %s510, %s511
    %p523 = scmp.eq.s32.totalorder %s94, 1
    %p524 = por %p522, %p523
    %p526 = scmp.ne.s32.totalorder %s511, %s525
    %p527 = scmp.eq.s32.totalorder %s94, 0
    %p528 = por %p526, %p527
    %s530 = sadd.s32 %s529, 1
    %p533 = scmp.eq.s32.totalorder %s88, 1
    %p534 = scmp.ne.s32.totalorder %s529, %s531
    %p535 = scmp.eq.s32.totalorder %s88, 0
    %p536 = por %p534, %p535
    %p537 = scmp.ne.s32.totalorder %s529, %s531
    %p538 = scmp.eq.s32.totalorder %s93, 1
    %p539 = por %p537, %p538
    %p540 = scmp.ne.s32.totalorder %s531, %s532
    %p541 = scmp.eq.s32.totalorder %s93, 0
    %p542 = por %p540, %p541
    %p543 = scmp.ne.s32.totalorder %s531, %s532
    %p544 = scmp.eq.s32.totalorder %s94, 1
    %p545 = por %p543, %p544
    %p547 = scmp.ne.s32.totalorder %s532, %s546
    %p548 = scmp.eq.s32.totalorder %s94, 0
    %p549 = por %p547, %p548
    %s551 = sadd.s32 %s550, 1
    %p554 = scmp.eq.s32.totalorder %s88, 1
    %p555 = scmp.ne.s32.totalorder %s550, %s552
    %p556 = scmp.eq.s32.totalorder %s88, 0
    %p557 = por %p555, %p556
    %p558 = scmp.ne.s32.totalorder %s550, %s552
    %p559 = scmp.eq.s32.totalorder %s93, 1
    %p560 = por %p558, %p559
    %p561 = scmp.ne.s32.totalorder %s552, %s553
    %p562 = scmp.eq.s32.totalorder %s93, 0
    %p563 = por %p561, %p562
    %p564 = scmp.ne.s32.totalorder %s552, %s553
    %p565 = scmp.eq.s32.totalorder %s94, 1
    %p566 = por %p564, %p565
    %p568 = scmp.ne.s32.totalorder %s553, %s567
    %p569 = scmp.eq.s32.totalorder %s94, 0
    %p570 = por %p568, %p569
    %s572 = sadd.s32 %s571, 1
    %p575 = scmp.eq.s32.totalorder %s88, 1
    %p576 = scmp.ne.s32.totalorder %s571, %s573
    %p577 = scmp.eq.s32.totalorder %s88, 0
    %p578 = por %p576, %p577
    %p579 = scmp.ne.s32.totalorder %s571, %s573
    %p580 = scmp.eq.s32.totalorder %s93, 1
    %p581 = por %p579, %p580
    %p582 = scmp.ne.s32.totalorder %s573, %s574
    %p583 = scmp.eq.s32.totalorder %s93, 0
    %p584 = por %p582, %p583
    %p585 = scmp.ne.s32.totalorder %s573, %s574
    %p586 = scmp.eq.s32.totalorder %s94, 1
    %p587 = por %p585, %p586
    %p589 = scmp.ne.s32.totalorder %s574, %s588
    %p590 = scmp.eq.s32.totalorder %s94, 0
    %p591 = por %p589, %p590
    %s593 = sadd.s32 %s592, 1
    %p596 = scmp.eq.s32.totalorder %s88, 1
    %p597 = scmp.ne.s32.totalorder %s592, %s594
    %p598 = scmp.eq.s32.totalorder %s88, 0
    %p599 = por %p597, %p598
    %p600 = scmp.ne.s32.totalorder %s592, %s594
    %p601 = scmp.eq.s32.totalorder %s93, 1
    %p602 = por %p600, %p601
    %p603 = scmp.ne.s32.totalorder %s594, %s595
    %p604 = scmp.eq.s32.totalorder %s93, 0
    %p605 = por %p603, %p604
    %p606 = scmp.ne.s32.totalorder %s594, %s595
    %p607 = scmp.eq.s32.totalorder %s94, 1
    %p608 = por %p606, %p607
    %p610 = scmp.ne.s32.totalorder %s595, %s609
    %p611 = scmp.eq.s32.totalorder %s94, 0
    %p612 = por %p610, %p611
    %s614 = sadd.s32 %s613, 1
    %p617 = scmp.eq.s32.totalorder %s88, 1
    %p618 = scmp.ne.s32.totalorder %s613, %s615
    %p619 = scmp.eq.s32.totalorder %s88, 0
    %p620 = por %p618, %p619
    %p621 = scmp.ne.s32.totalorder %s613, %s615
    %p622 = scmp.eq.s32.totalorder %s93, 1
    %p623 = por %p621, %p622
    %p624 = scmp.ne.s32.totalorder %s615, %s616
    %p625 = scmp.eq.s32.totalorder %s93, 0
    %p626 = por %p624, %p625
    %p627 = scmp.ne.s32.totalorder %s615, %s616
    %p628 = scmp.eq.s32.totalorder %s94, 1
    %p629 = por %p627, %p628
    %p631 = scmp.ne.s32.totalorder %s616, %s630
    %p632 = scmp.eq.s32.totalorder %s94, 0
    %p633 = por %p631, %p632
    %s635 = sadd.s32 %s634, 1
    %p638 = scmp.eq.s32.totalorder %s88, 1
    %p639 = scmp.ne.s32.totalorder %s634, %s636
    %p640 = scmp.eq.s32.totalorder %s88, 0
    %p641 = por %p639, %p640
    %p642 = scmp.ne.s32.totalorder %s634, %s636
    %p643 = scmp.eq.s32.totalorder %s93, 1
    %p644 = por %p642, %p643
    %p645 = scmp.ne.s32.totalorder %s636, %s637
    %p646 = scmp.eq.s32.totalorder %s93, 0
    %p647 = por %p645, %p646
    %p648 = scmp.ne.s32.totalorder %s636, %s637
    %p649 = scmp.eq.s32.totalorder %s94, 1
    %p650 = por %p648, %p649
    %p652 = scmp.ne.s32.totalorder %s637, %s651
    %p653 = scmp.eq.s32.totalorder %s94, 0
    %p654 = por %p652, %p653
    %s656 = sadd.s32 %s655, 1
    %p659 = scmp.eq.s32.totalorder %s88, 1
    %p660 = scmp.ne.s32.totalorder %s655, %s657
    %p661 = scmp.eq.s32.totalorder %s88, 0
    %p662 = por %p660, %p661
    %p663 = scmp.ne.s32.totalorder %s655, %s657
    %p664 = scmp.eq.s32.totalorder %s93, 1
    %p665 = por %p663, %p664
    %p666 = scmp.ne.s32.totalorder %s657, %s658
    %p667 = scmp.eq.s32.totalorder %s93, 0
    %p668 = por %p666, %p667
    %p669 = scmp.ne.s32.totalorder %s657, %s658
    %p670 = scmp.eq.s32.totalorder %s94, 1
    %p671 = por %p669, %p670
    %p673 = scmp.ne.s32.totalorder %s658, %s672
    %p674 = scmp.eq.s32.totalorder %s94, 0
    %p675 = por %p673, %p674
    %s677 = sadd.s32 %s676, 1
    %p680 = scmp.eq.s32.totalorder %s88, 1
    %p681 = scmp.ne.s32.totalorder %s676, %s678
    %p682 = scmp.eq.s32.totalorder %s88, 0
    %p683 = por %p681, %p682
    %p684 = scmp.ne.s32.totalorder %s676, %s678
    %p685 = scmp.eq.s32.totalorder %s93, 1
    %p686 = por %p684, %p685
    %p687 = scmp.ne.s32.totalorder %s678, %s679
    %p688 = scmp.eq.s32.totalorder %s93, 0
    %p689 = por %p687, %p688
    %p690 = scmp.ne.s32.totalorder %s678, %s679
    %p691 = scmp.eq.s32.totalorder %s94, 1
    %p692 = por %p690, %p691
    %p694 = scmp.ne.s32.totalorder %s679, %s693
    %p695 = scmp.eq.s32.totalorder %s94, 0
    %p696 = por %p694, %p695
    %s698 = sadd.s32 %s697, 1
    %p701 = scmp.eq.s32.totalorder %s88, 1
    %p702 = scmp.ne.s32.totalorder %s697, %s699
    %p703 = scmp.eq.s32.totalorder %s88, 0
    %p704 = por %p702, %p703
    %p705 = scmp.ne.s32.totalorder %s697, %s699
    %p706 = scmp.eq.s32.totalorder %s93, 1
    %p707 = por %p705, %p706
    %p708 = scmp.ne.s32.totalorder %s699, %s700
    %p709 = scmp.eq.s32.totalorder %s93, 0
    %p710 = por %p708, %p709
    %p711 = scmp.ne.s32.totalorder %s699, %s700
    %p712 = scmp.eq.s32.totalorder %s94, 1
    %p713 = por %p711, %p712
    %p715 = scmp.ne.s32.totalorder %s700, %s714
    %p716 = scmp.eq.s32.totalorder %s94, 0
    %p717 = por %p715, %p716
    %s719 = sadd.s32 %s718, 1
    %p722 = scmp.eq.s32.totalorder %s88, 1
    %p723 = scmp.ne.s32.totalorder %s718, %s720
    %p724 = scmp.eq.s32.totalorder %s88, 0
    %p725 = por %p723, %p724
    %p726 = scmp.ne.s32.totalorder %s718, %s720
    %p727 = scmp.eq.s32.totalorder %s93, 1
    %p728 = por %p726, %p727
    %p729 = scmp.ne.s32.totalorder %s720, %s721
    %p730 = scmp.eq.s32.totalorder %s93, 0
    %p731 = por %p729, %p730
    %p732 = scmp.ne.s32.totalorder %s720, %s721
    %p733 = scmp.eq.s32.totalorder %s94, 1
    %p734 = por %p732, %p733
    %p736 = scmp.ne.s32.totalorder %s721, %s735
    %p737 = scmp.eq.s32.totalorder %s94, 0
    %p738 = por %p736, %p737
    %s740 = sadd.s32 %s739, 1
    %p743 = scmp.eq.s32.totalorder %s88, 1
    %p744 = scmp.ne.s32.totalorder %s739, %s741
    %p745 = scmp.eq.s32.totalorder %s88, 0
    %p746 = por %p744, %p745
    %p747 = scmp.ne.s32.totalorder %s739, %s741
    %p748 = scmp.eq.s32.totalorder %s93, 1
    %p749 = por %p747, %p748
    %p750 = scmp.ne.s32.totalorder %s741, %s742
    %p751 = scmp.eq.s32.totalorder %s93, 0
    %p752 = por %p750, %p751
    %p753 = scmp.ne.s32.totalorder %s741, %s742
    %p754 = scmp.eq.s32.totalorder %s94, 1
    %p755 = por %p753, %p754
    %p757 = scmp.ne.s32.totalorder %s742, %s756
    %p758 = scmp.eq.s32.totalorder %s94, 0
    %p759 = por %p757, %p758
    %s761 = sadd.s32 %s760, 1
    %p764 = scmp.eq.s32.totalorder %s88, 1
    %p765 = scmp.ne.s32.totalorder %s760, %s762
    %p766 = scmp.eq.s32.totalorder %s88, 0
    %p767 = por %p765, %p766
    %p768 = scmp.ne.s32.totalorder %s760, %s762
    %p769 = scmp.eq.s32.totalorder %s93, 1
    %p770 = por %p768, %p769
    %p771 = scmp.ne.s32.totalorder %s762, %s763
    %p772 = scmp.eq.s32.totalorder %s93, 0
    %p773 = por %p771, %p772
    %p774 = scmp.ne.s32.totalorder %s762, %s763
    %p775 = scmp.eq.s32.totalorder %s94, 1
    %p776 = por %p774, %p775
    %p778 = scmp.ne.s32.totalorder %s763, %s777
    %p779 = scmp.eq.s32.totalorder %s94, 0
    %p780 = por %p778, %p779
    %s782 = sadd.s32 %s781, 1
    %p785 = scmp.eq.s32.totalorder %s88, 1
    %p786 = scmp.ne.s32.totalorder %s781, %s783
    %p787 = scmp.eq.s32.totalorder %s88, 0
    %p788 = por %p786, %p787
    %p789 = scmp.ne.s32.totalorder %s781, %s783
    %p790 = scmp.eq.s32.totalorder %s93, 1
    %p791 = por %p789, %p790
    %p792 = scmp.ne.s32.totalorder %s783, %s784
    %p793 = scmp.eq.s32.totalorder %s93, 0
    %p794 = por %p792, %p793
    %p795 = scmp.ne.s32.totalorder %s783, %s784
    %p796 = scmp.eq.s32.totalorder %s94, 1
    %p797 = por %p795, %p796
    %p799 = scmp.ne.s32.totalorder %s784, %s798
    %p800 = scmp.eq.s32.totalorder %s94, 0
    %p801 = por %p799, %p800
    %s803 = sadd.s32 %s802, 1
    %p806 = scmp.eq.s32.totalorder %s88, 1
    %p807 = scmp.ne.s32.totalorder %s802, %s804
    %p808 = scmp.eq.s32.totalorder %s88, 0
    %p809 = por %p807, %p808
    %p810 = scmp.ne.s32.totalorder %s802, %s804
    %p811 = scmp.eq.s32.totalorder %s93, 1
    %p812 = por %p810, %p811
    %p813 = scmp.ne.s32.totalorder %s804, %s805
    %p814 = scmp.eq.s32.totalorder %s93, 0
    %p815 = por %p813, %p814
    %p816 = scmp.ne.s32.totalorder %s804, %s805
    %p817 = scmp.eq.s32.totalorder %s94, 1
    %p818 = por %p816, %p817
    %p820 = scmp.ne.s32.totalorder %s805, %s819
    %p821 = scmp.eq.s32.totalorder %s94, 0
    %p822 = por %p820, %p821
    %s824 = sadd.s32 %s823, 1
    %p827 = scmp.eq.s32.totalorder %s88, 1
    %p828 = scmp.ne.s32.totalorder %s823, %s825
    %p829 = scmp.eq.s32.totalorder %s88, 0
    %p830 = por %p828, %p829
    %p831 = scmp.ne.s32.totalorder %s823, %s825
    %p832 = scmp.eq.s32.totalorder %s93, 1
    %p833 = por %p831, %p832
    %p834 = scmp.ne.s32.totalorder %s825, %s826
    %p835 = scmp.eq.s32.totalorder %s93, 0
    %p836 = por %p834, %p835
    %p837 = scmp.ne.s32.totalorder %s825, %s826
    %p838 = scmp.eq.s32.totalorder %s94, 1
    %p839 = por %p837, %p838
    %p841 = scmp.ne.s32.totalorder %s826, %s840
    %p842 = scmp.eq.s32.totalorder %s94, 0
    %p843 = por %p841, %p842
    %s845 = sadd.s32 %s844, 1
    %p848 = scmp.eq.s32.totalorder %s88, 1
    %p849 = scmp.ne.s32.totalorder %s844, %s846
    %p850 = scmp.eq.s32.totalorder %s88, 0
    %p851 = por %p849, %p850
    %p852 = scmp.ne.s32.totalorder %s844, %s846
    %p853 = scmp.eq.s32.totalorder %s93, 1
    %p854 = por %p852, %p853
    %p855 = scmp.ne.s32.totalorder %s846, %s847
    %p856 = scmp.eq.s32.totalorder %s93, 0
    %p857 = por %p855, %p856
    %p858 = scmp.ne.s32.totalorder %s846, %s847
    %p859 = scmp.eq.s32.totalorder %s94, 1
    %p860 = por %p858, %p859
    %p862 = scmp.ne.s32.totalorder %s847, %s861
    %p863 = scmp.eq.s32.totalorder %s94, 0
    %p864 = por %p862, %p863
    %s866 = sadd.s32 %s865, 1
    %p869 = scmp.eq.s32.totalorder %s88, 1
    %p870 = scmp.ne.s32.totalorder %s865, %s867
    %p871 = scmp.eq.s32.totalorder %s88, 0
    %p872 = por %p870, %p871
    %p873 = scmp.ne.s32.totalorder %s865, %s867
    %p874 = scmp.eq.s32.totalorder %s93, 1
    %p875 = por %p873, %p874
    %p876 = scmp.ne.s32.totalorder %s867, %s868
    %p877 = scmp.eq.s32.totalorder %s93, 0
    %p878 = por %p876, %p877
    %p879 = scmp.ne.s32.totalorder %s867, %s868
    %p880 = scmp.eq.s32.totalorder %s94, 1
    %p881 = por %p879, %p880
    %p883 = scmp.ne.s32.totalorder %s868, %s882
    %p884 = scmp.eq.s32.totalorder %s94, 0
    %p885 = por %p883, %p884
    %s887 = sadd.s32 %s886, 1
    %p890 = scmp.eq.s32.totalorder %s88, 1
    %p891 = scmp.ne.s32.totalorder %s886, %s888
    %p892 = scmp.eq.s32.totalorder %s88, 0
    %p893 = por %p891, %p892
    %p894 = scmp.ne.s32.totalorder %s886, %s888
    %p895 = scmp.eq.s32.totalorder %s93, 1
    %p896 = por %p894, %p895
    %p897 = scmp.ne.s32.totalorder %s888, %s889
    %p898 = scmp.eq.s32.totalorder %s93, 0
    %p899 = por %p897, %p898
    %p900 = scmp.ne.s32.totalorder %s888, %s889
    %p901 = scmp.eq.s32.totalorder %s94, 1
    %p902 = por %p900, %p901
    %p904 = scmp.ne.s32.totalorder %s889, %s903
    %p905 = scmp.eq.s32.totalorder %s94, 0
    %p906 = por %p904, %p905
    %s908 = sadd.s32 %s907, 1
    %p911 = scmp.eq.s32.totalorder %s88, 1
    %p912 = scmp.ne.s32.totalorder %s907, %s909
    %p913 = scmp.eq.s32.totalorder %s88, 0
    %p914 = por %p912, %p913
    %p915 = scmp.ne.s32.totalorder %s907, %s909
    %p916 = scmp.eq.s32.totalorder %s93, 1
    %p917 = por %p915, %p916
    %p918 = scmp.ne.s32.totalorder %s909, %s910
    %p919 = scmp.eq.s32.totalorder %s93, 0
    %p920 = por %p918, %p919
    %p921 = scmp.ne.s32.totalorder %s909, %s910
    %p922 = scmp.eq.s32.totalorder %s94, 1
    %p923 = por %p921, %p922
    %p925 = scmp.ne.s32.totalorder %s910, %s924
    %p926 = scmp.eq.s32.totalorder %s94, 0
    %p927 = por %p925, %p926
    %s929 = sadd.s32 %s928, 1
    %p932 = scmp.eq.s32.totalorder %s88, 1
    %p933 = scmp.ne.s32.totalorder %s928, %s930
    %p934 = scmp.eq.s32.totalorder %s88, 0
    %p935 = por %p933, %p934
    %p936 = scmp.ne.s32.totalorder %s928, %s930
    %p937 = scmp.eq.s32.totalorder %s93, 1
    %p938 = por %p936, %p937
    %p939 = scmp.ne.s32.totalorder %s930, %s931
    %p940 = scmp.eq.s32.totalorder %s93, 0
    %p941 = por %p939, %p940
    %p942 = scmp.ne.s32.totalorder %s930, %s931
    %p943 = scmp.eq.s32.totalorder %s94, 1
    %p944 = por %p942, %p943
    %p946 = scmp.ne.s32.totalorder %s931, %s945
    %p947 = scmp.eq.s32.totalorder %s94, 0
    %p948 = por %p946, %p947
    %s949 = ssub.s32 %s88, %s95
    %p950 = scmp.eq.s32.totalorder %s949, 0
    %s952 = sadd.s32 %s951, 1
    %s953 = scalar_select %p950, %s951, %s952
    %p956 = pneg %p950
    %p957 = scmp.eq.s32.totalorder %s88, 1
    %p958 = por %p956, %p957
    %p959 = scmp.ne.s32.totalorder %s951, %s954
    %p960 = scmp.eq.s32.totalorder %s88, 0
    %p961 = por %p959, %p960
    %p962 = scmp.ne.s32.totalorder %s951, %s954
    %p963 = scmp.eq.s32.totalorder %s93, 1
    %p964 = por %p962, %p963
    %p965 = scmp.ne.s32.totalorder %s954, %s955
    %p966 = scmp.eq.s32.totalorder %s93, 0
    %p967 = por %p965, %p966
    %p968 = scmp.ne.s32.totalorder %s954, %s955
    %p969 = scmp.eq.s32.totalorder %s94, 1
    %p970 = por %p968, %p969
    %p972 = scmp.ne.s32.totalorder %s955, %s971
    %p973 = scmp.eq.s32.totalorder %s94, 0
    %p974 = por %p972, %p973
    %s975 = ssub.s32 %s88, %s95
    %p976 = scmp.eq.s32.totalorder %s975, 0
    %s978 = sadd.s32 %s977, 1
    %s979 = scalar_select %p976, %s977, %s978
    %p982 = pneg %p976
    %p983 = scmp.eq.s32.totalorder %s88, 1
    %p984 = por %p982, %p983
    %p985 = scmp.ne.s32.totalorder %s977, %s980
    %p986 = scmp.eq.s32.totalorder %s88, 0
    %p987 = por %p985, %p986
    %p988 = scmp.ne.s32.totalorder %s977, %s980
    %p989 = scmp.eq.s32.totalorder %s93, 1
    %p990 = por %p988, %p989
    %p991 = scmp.ne.s32.totalorder %s980, %s981
    %p992 = scmp.eq.s32.totalorder %s93, 0
    %p993 = por %p991, %p992
    %p994 = scmp.ne.s32.totalorder %s980, %s981
    %p995 = scmp.eq.s32.totalorder %s94, 1
    %p996 = por %p994, %p995
    %p998 = scmp.ne.s32.totalorder %s981, %s997
    %p999 = scmp.eq.s32.totalorder %s94, 0
    %p1000 = por %p998, %p999
    %p1001 = scmp.le.s32.totalorder 1, %s88
    %p1002 = scmp.lt.s32.totalorder %s88, 3
    %p1003 = pnand %p1001, %p1002
    %p1004 = pneg %p1003
    // Predicated region
    $region9: #{_lambda_.3} parent=5 // pred_check
      _
    $region10: #{_lambda_.3} parent=5 // pred_check_branch
      %1006 = sbr.rel (%p1003) target = $region12
    $region11: #{_lambda_.3} parent=5 // pred_region
      %s1007 = ssub.s32 %s88, 1
      // Predicated region
      $region13: #{_lambda_.3} parent=11 // pred_check
        %p1008 = pneg %p185
      $region14: #{_lambda_.3} parent=11 // pred_check_branch
        %1010 = sbr.rel (%p1008) target = $region16
      $region15: #{_lambda_.3} parent=11 // pred_region
        _
      $region16: #{_lambda_.3} parent=11 // pred_fallthru
        _
      // Predicated region
      $region17: #{_lambda_.3} parent=11 // pred_check
        %p1011 = pneg %p206
      $region18: #{_lambda_.3} parent=11 // pred_check_branch
        %1013 = sbr.rel (%p1011) target = $region20
      $region19: #{_lambda_.3} parent=11 // pred_region
        _
      $region20: #{_lambda_.3} parent=11 // pred_fallthru
        _
      // Predicated region
      $region21: #{_lambda_.3} parent=11 // pred_check
        %p1014 = pneg %p227
      $region22: #{_lambda_.3} parent=11 // pred_check_branch
        %1016 = sbr.rel (%p1014) target = $region24
      $region23: #{_lambda_.3} parent=11 // pred_region
        _
      $region24: #{_lambda_.3} parent=11 // pred_fallthru
        _
      // Predicated region
      $region25: #{_lambda_.3} parent=11 // pred_check
        %p1017 = pneg %p248
      $region26: #{_lambda_.3} parent=11 // pred_check_branch
        %1019 = sbr.rel (%p1017) target = $region28
      $region27: #{_lambda_.3} parent=11 // pred_region
        _
      $region28: #{_lambda_.3} parent=11 // pred_fallthru
        _
      // Predicated region
      $region29: #{_lambda_.3} parent=11 // pred_check
        %p1020 = pneg %p269
      $region30: #{_lambda_.3} parent=11 // pred_check_branch
        %1022 = sbr.rel (%p1020) target = $region32
      $region31: #{_lambda_.3} parent=11 // pred_region
        _
      $region32: #{_lambda_.3} parent=11 // pred_fallthru
        _
      // Predicated region
      $region33: #{_lambda_.3} parent=11 // pred_check
        %p1023 = pneg %p290
      $region34: #{_lambda_.3} parent=11 // pred_check_branch
        %1025 = sbr.rel (%p1023) target = $region36
      $region35: #{_lambda_.3} parent=11 // pred_region
        _
      $region36: #{_lambda_.3} parent=11 // pred_fallthru
        _
      // Predicated region
      $region37: #{_lambda_.3} parent=11 // pred_check
        %p1026 = pneg %p311
      $region38: #{_lambda_.3} parent=11 // pred_check_branch
        %1028 = sbr.rel (%p1026) target = $region40
      $region39: #{_lambda_.3} parent=11 // pred_region
        _
      $region40: #{_lambda_.3} parent=11 // pred_fallthru
        _
      // Predicated region
      $region41: #{_lambda_.3} parent=11 // pred_check
        %p1029 = pneg %p332
      $region42: #{_lambda_.3} parent=11 // pred_check_branch
        %1031 = sbr.rel (%p1029) target = $region44
      $region43: #{_lambda_.3} parent=11 // pred_region
        _
      $region44: #{_lambda_.3} parent=11 // pred_fallthru
        _
      // Predicated region
      $region45: #{_lambda_.3} parent=11 // pred_check
        %p1032 = pneg %p353
      $region46: #{_lambda_.3} parent=11 // pred_check_branch
        %1034 = sbr.rel (%p1032) target = $region48
      $region47: #{_lambda_.3} parent=11 // pred_region
        _
      $region48: #{_lambda_.3} parent=11 // pred_fallthru
        _
      // Predicated region
      $region49: #{_lambda_.3} parent=11 // pred_check
        %p1035 = pneg %p374
      $region50: #{_lambda_.3} parent=11 // pred_check_branch
        %1037 = sbr.rel (%p1035) target = $region52
      $region51: #{_lambda_.3} parent=11 // pred_region
        _
      $region52: #{_lambda_.3} parent=11 // pred_fallthru
        _
      // Predicated region
      $region53: #{_lambda_.3} parent=11 // pred_check
        %p1038 = pneg %p395
      $region54: #{_lambda_.3} parent=11 // pred_check_branch
        %1040 = sbr.rel (%p1038) target = $region56
      $region55: #{_lambda_.3} parent=11 // pred_region
        _
      $region56: #{_lambda_.3} parent=11 // pred_fallthru
        _
      // Predicated region
      $region57: #{_lambda_.3} parent=11 // pred_check
        %p1041 = pneg %p416
      $region58: #{_lambda_.3} parent=11 // pred_check_branch
        %1043 = sbr.rel (%p1041) target = $region60
      $region59: #{_lambda_.3} parent=11 // pred_region
        _
      $region60: #{_lambda_.3} parent=11 // pred_fallthru
        _
      // Predicated region
      $region61: #{_lambda_.3} parent=11 // pred_check
        %p1044 = pneg %p437
      $region62: #{_lambda_.3} parent=11 // pred_check_branch
        %1046 = sbr.rel (%p1044) target = $region64
      $region63: #{_lambda_.3} parent=11 // pred_region
        _
      $region64: #{_lambda_.3} parent=11 // pred_fallthru
        _
      // Predicated region
      $region65: #{_lambda_.3} parent=11 // pred_check
        %p1047 = pneg %p458
      $region66: #{_lambda_.3} parent=11 // pred_check_branch
        %1049 = sbr.rel (%p1047) target = $region68
      $region67: #{_lambda_.3} parent=11 // pred_region
        _
      $region68: #{_lambda_.3} parent=11 // pred_fallthru
        _
      // Predicated region
      $region69: #{_lambda_.3} parent=11 // pred_check
        %p1050 = pneg %p479
      $region70: #{_lambda_.3} parent=11 // pred_check_branch
        %1052 = sbr.rel (%p1050) target = $region72
      $region71: #{_lambda_.3} parent=11 // pred_region
        _
      $region72: #{_lambda_.3} parent=11 // pred_fallthru
        _
      // Predicated region
      $region73: #{_lambda_.3} parent=11 // pred_check
        %p1053 = pneg %p500
      $region74: #{_lambda_.3} parent=11 // pred_check_branch
        %1055 = sbr.rel (%p1053) target = $region76
      $region75: #{_lambda_.3} parent=11 // pred_region
        _
      $region76: #{_lambda_.3} parent=11 // pred_fallthru
        _
      // Predicated region
      $region77: #{_lambda_.3} parent=11 // pred_check
        %p1056 = pneg %p521
      $region78: #{_lambda_.3} parent=11 // pred_check_branch
        %1058 = sbr.rel (%p1056) target = $region80
      $region79: #{_lambda_.3} parent=11 // pred_region
        _
      $region80: #{_lambda_.3} parent=11 // pred_fallthru
        _
      // Predicated region
      $region81: #{_lambda_.3} parent=11 // pred_check
        %p1059 = pneg %p542
      $region82: #{_lambda_.3} parent=11 // pred_check_branch
        %1061 = sbr.rel (%p1059) target = $region84
      $region83: #{_lambda_.3} parent=11 // pred_region
        _
      $region84: #{_lambda_.3} parent=11 // pred_fallthru
        _
      // Predicated region
      $region85: #{_lambda_.3} parent=11 // pred_check
        %p1062 = pneg %p563
      $region86: #{_lambda_.3} parent=11 // pred_check_branch
        %1064 = sbr.rel (%p1062) target = $region88
      $region87: #{_lambda_.3} parent=11 // pred_region
        _
      $region88: #{_lambda_.3} parent=11 // pred_fallthru
        _
      // Predicated region
      $region89: #{_lambda_.3} parent=11 // pred_check
        %p1065 = pneg %p584
      $region90: #{_lambda_.3} parent=11 // pred_check_branch
        %1067 = sbr.rel (%p1065) target = $region92
      $region91: #{_lambda_.3} parent=11 // pred_region
        _
      $region92: #{_lambda_.3} parent=11 // pred_fallthru
        _
      // Predicated region
      $region93: #{_lambda_.3} parent=11 // pred_check
        %p1068 = pneg %p605
      $region94: #{_lambda_.3} parent=11 // pred_check_branch
        %1070 = sbr.rel (%p1068) target = $region96
      $region95: #{_lambda_.3} parent=11 // pred_region
        _
      $region96: #{_lambda_.3} parent=11 // pred_fallthru
        _
      // Predicated region
      $region97: #{_lambda_.3} parent=11 // pred_check
        %p1071 = pneg %p626
      $region98: #{_lambda_.3} parent=11 // pred_check_branch
        %1073 = sbr.rel (%p1071) target = $region100
      $region99: #{_lambda_.3} parent=11 // pred_region
        _
      $region100: #{_lambda_.3} parent=11 // pred_fallthru
        _
      // Predicated region
      $region101: #{_lambda_.3} parent=11 // pred_check
        %p1074 = pneg %p647
      $region102: #{_lambda_.3} parent=11 // pred_check_branch
        %1076 = sbr.rel (%p1074) target = $region104
      $region103: #{_lambda_.3} parent=11 // pred_region
        _
      $region104: #{_lambda_.3} parent=11 // pred_fallthru
        _
      // Predicated region
      $region105: #{_lambda_.3} parent=11 // pred_check
        %p1077 = pneg %p668
      $region106: #{_lambda_.3} parent=11 // pred_check_branch
        %1079 = sbr.rel (%p1077) target = $region108
      $region107: #{_lambda_.3} parent=11 // pred_region
        _
      $region108: #{_lambda_.3} parent=11 // pred_fallthru
        _
      // Predicated region
      $region109: #{_lambda_.3} parent=11 // pred_check
        %p1080 = pneg %p689
      $region110: #{_lambda_.3} parent=11 // pred_check_branch
        %1082 = sbr.rel (%p1080) target = $region112
      $region111: #{_lambda_.3} parent=11 // pred_region
        _
      $region112: #{_lambda_.3} parent=11 // pred_fallthru
        _
      // Predicated region
      $region113: #{_lambda_.3} parent=11 // pred_check
        %p1083 = pneg %p710
      $region114: #{_lambda_.3} parent=11 // pred_check_branch
        %1085 = sbr.rel (%p1083) target = $region116
      $region115: #{_lambda_.3} parent=11 // pred_region
        _
      $region116: #{_lambda_.3} parent=11 // pred_fallthru
        _
      // Predicated region
      $region117: #{_lambda_.3} parent=11 // pred_check
        %p1086 = pneg %p731
      $region118: #{_lambda_.3} parent=11 // pred_check_branch
        %1088 = sbr.rel (%p1086) target = $region120
      $region119: #{_lambda_.3} parent=11 // pred_region
        _
      $region120: #{_lambda_.3} parent=11 // pred_fallthru
        _
      // Predicated region
      $region121: #{_lambda_.3} parent=11 // pred_check
        %p1089 = pneg %p752
      $region122: #{_lambda_.3} parent=11 // pred_check_branch
        %1091 = sbr.rel (%p1089) target = $region124
      $region123: #{_lambda_.3} parent=11 // pred_region
        _
      $region124: #{_lambda_.3} parent=11 // pred_fallthru
        _
      // Predicated region
      $region125: #{_lambda_.3} parent=11 // pred_check
        %p1092 = pneg %p773
      $region126: #{_lambda_.3} parent=11 // pred_check_branch
        %1094 = sbr.rel (%p1092) target = $region128
      $region127: #{_lambda_.3} parent=11 // pred_region
        _
      $region128: #{_lambda_.3} parent=11 // pred_fallthru
        _
      // Predicated region
      $region129: #{_lambda_.3} parent=11 // pred_check
        %p1095 = pneg %p794
      $region130: #{_lambda_.3} parent=11 // pred_check_branch
        %1097 = sbr.rel (%p1095) target = $region132
      $region131: #{_lambda_.3} parent=11 // pred_region
        _
      $region132: #{_lambda_.3} parent=11 // pred_fallthru
        _
      // Predicated region
      $region133: #{_lambda_.3} parent=11 // pred_check
        %p1098 = pneg %p815
      $region134: #{_lambda_.3} parent=11 // pred_check_branch
        %1100 = sbr.rel (%p1098) target = $region136
      $region135: #{_lambda_.3} parent=11 // pred_region
        _
      $region136: #{_lambda_.3} parent=11 // pred_fallthru
        _
      // Predicated region
      $region137: #{_lambda_.3} parent=11 // pred_check
        %p1101 = pneg %p836
      $region138: #{_lambda_.3} parent=11 // pred_check_branch
        %1103 = sbr.rel (%p1101) target = $region140
      $region139: #{_lambda_.3} parent=11 // pred_region
        _
      $region140: #{_lambda_.3} parent=11 // pred_fallthru
        _
      // Predicated region
      $region141: #{_lambda_.3} parent=11 // pred_check
        %p1104 = pneg %p857
      $region142: #{_lambda_.3} parent=11 // pred_check_branch
        %1106 = sbr.rel (%p1104) target = $region144
      $region143: #{_lambda_.3} parent=11 // pred_region
        _
      $region144: #{_lambda_.3} parent=11 // pred_fallthru
        _
      // Predicated region
      $region145: #{_lambda_.3} parent=11 // pred_check
        %p1107 = pneg %p878
      $region146: #{_lambda_.3} parent=11 // pred_check_branch
        %1109 = sbr.rel (%p1107) target = $region148
      $region147: #{_lambda_.3} parent=11 // pred_region
        _
      $region148: #{_lambda_.3} parent=11 // pred_fallthru
        _
      // Predicated region
      $region149: #{_lambda_.3} parent=11 // pred_check
        %p1110 = pneg %p899
      $region150: #{_lambda_.3} parent=11 // pred_check_branch
        %1112 = sbr.rel (%p1110) target = $region152
      $region151: #{_lambda_.3} parent=11 // pred_region
        _
      $region152: #{_lambda_.3} parent=11 // pred_fallthru
        _
      // Predicated region
      $region153: #{_lambda_.3} parent=11 // pred_check
        %p1113 = pneg %p920
      $region154: #{_lambda_.3} parent=11 // pred_check_branch
        %1115 = sbr.rel (%p1113) target = $region156
      $region155: #{_lambda_.3} parent=11 // pred_region
        _
      $region156: #{_lambda_.3} parent=11 // pred_fallthru
        _
      // Predicated region
      $region157: #{_lambda_.3} parent=11 // pred_check
        %p1116 = pneg %p941
      $region158: #{_lambda_.3} parent=11 // pred_check_branch
        %1118 = sbr.rel (%p1116) target = $region160
      $region159: #{_lambda_.3} parent=11 // pred_region
        _
      $region160: #{_lambda_.3} parent=11 // pred_fallthru
        _
    $region12: #{_lambda_.3} parent=5 // pred_fallthru
      _
    %p1119 = scmp.lt.s32.totalorder %s88, 2
    // Predicated region
    $region161: #{_lambda_.3} parent=5 // pred_check
      %p1120 = pneg %p1119
    $region162: #{_lambda_.3} parent=5 // pred_check_branch
      %1122 = sbr.rel (%p1120) target = $region164
    $region163: #{_lambda_.3} parent=5 // pred_region
      // Predicated region
      $region165: #{_lambda_.3} parent=163 // pred_check
        %p1123 = pneg %p108
      $region166: #{_lambda_.3} parent=163 // pred_check_branch
        %1125 = sbr.rel (%p1123) target = $region168
      $region167: #{_lambda_.3} parent=163 // pred_region
        %p1126 = scmp.lt.s32.totalorder %s88, 1
        %s1127 = scalar_select %p1126, %s88, 1
        %s1128 = smul.addr %s1127, 8
        %s1129 = scalar_lea.vmem %s1, %s1128
      $region168: #{_lambda_.3} parent=163 // pred_fallthru
        _
      // Predicated region
      $region169: #{_lambda_.3} parent=163 // pred_check
        %p1130 = pneg %p158
      $region170: #{_lambda_.3} parent=163 // pred_check_branch
        %1132 = sbr.rel (%p1130) target = $region172
      $region171: #{_lambda_.3} parent=163 // pred_region
        %p1133 = scmp.lt.s32.totalorder %s88, 0
        %s1134 = ssub.s32 0, %s88
        %s1135 = scalar_select %p1133, %s1134, %s88
        %s1136 = sand.u32 %s1135, 1
        %s1137 = ssub.s32 0, %s1136
        %s1138 = scalar_select %p1133, %s1137, %s1136
        %p1139 = scmp.ne.s32.totalorder %s1138, 0
        %p1140 = scmp.lt.s32.totalorder %s1138, 0
        %p1141 = pnand %p1140, %p1139
        %p1142 = pneg %p1141
        %s1143 = sadd.s32 %s1138, 2
        %s1144 = scalar_select %p1142, %s1143, %s1138
        %p1145 = scmp.lt.s32.totalorder %s1144, 1
        %s1146 = scalar_select %p1145, %s1144, 1
        %s1147 = smul.addr %s1146, 2
        %s1148 = smul.addr %s1147, 8
        %s1149 = scalar_lea.vmem %s3, %s1148
        %p1150 = scmp.lt.s32.totalorder %s88, 0
        %s1151 = ssub.s32 0, %s88
        %s1152 = scalar_select %p1150, %s1151, %s88
        %s1153 = sand.u32 %s1152, 1
        %s1154 = ssub.s32 0, %s1153
        %s1155 = scalar_select %p1150, %s1154, %s1153
        %p1156 = scmp.ne.s32.totalorder %s1155, 0
        %p1157 = scmp.lt.s32.totalorder %s1155, 0
        %p1158 = pnand %p1157, %p1156
        %p1159 = pneg %p1158
        %s1160 = sadd.s32 %s1155, 2
        %s1161 = scalar_select %p1159, %s1160, %s1155
      $region172: #{_lambda_.3} parent=163 // pred_fallthru
        _
    $region164: #{_lambda_.3} parent=5 // pred_fallthru
      _
    %p1162 = scmp.le.s32.totalorder 1, %s88
    %p1163 = scmp.lt.s32.totalorder %s88, 3
    %p1164 = pnand %p1162, %p1163
    %p1165 = pneg %p1164
    // Predicated region
    $region173: #{_lambda_.3} parent=5 // pred_check
      _
    $region174: #{_lambda_.3} parent=5 // pred_check_branch
      %1167 = sbr.rel (%p1164) target = $region176
    $region175: #{_lambda_.3} parent=5 // pred_region
      %s1168 = ssub.s32 %s88, 1
      %p1169 = scmp.lt.s32.totalorder %s93, 1
      %s1170 = scalar_select %p1169, %s93, 1
      %s1171 = smul.addr %s1170, 8
      %s1172 = scalar_lea.vmem %s1, %s1171
      %p1173 = pneg %p114
      %p1174 = pneg %p111
      %p1175 = scmp.lt.s32.totalorder %s93, 0
      %s1176 = ssub.s32 0, %s93
      %s1177 = scalar_select %p1175, %s1176, %s93
      %s1178 = sand.u32 %s1177, 1
      %s1179 = ssub.s32 0, %s1178
      %s1180 = scalar_select %p1175, %s1179, %s1178
      %p1181 = scmp.ne.s32.totalorder %s1180, 0
      %p1182 = scmp.lt.s32.totalorder %s1180, 0
      %p1183 = pnand %p1182, %p1181
      %p1184 = pneg %p1183
      %s1185 = sadd.s32 %s1180, 2
      %s1186 = scalar_select %p1184, %s1185, %s1180
      %p1187 = scmp.lt.s32.totalorder %s1186, 1
      %s1188 = scalar_select %p1187, %s1186, 1
      %s1189 = smul.addr %s1188, 2
      %s1190 = smul.addr %s1189, 8
      %s1191 = scalar_lea.vmem %s3, %s1190
      %p1192 = pneg %p164
      %p1193 = pneg %p161
      %p1194 = pneg %p185
      %p1195 = pneg %p182
      %p1196 = pneg %p206
      %p1197 = pneg %p203
      %p1198 = pneg %p227
      %p1199 = pneg %p224
      %p1200 = pneg %p248
      %p1201 = pneg %p245
      %p1202 = pneg %p269
      %p1203 = pneg %p266
      %p1204 = pneg %p290
      %p1205 = pneg %p287
      %p1206 = pneg %p311
      %p1207 = pneg %p308
      %p1208 = pneg %p332
      %p1209 = pneg %p329
      %p1210 = pneg %p353
      %p1211 = pneg %p350
      %p1212 = pneg %p374
      %p1213 = pneg %p371
      %p1214 = pneg %p395
      %p1215 = pneg %p392
      %p1216 = pneg %p416
      %p1217 = pneg %p413
      %p1218 = pneg %p437
      %p1219 = pneg %p434
      %p1220 = pneg %p458
      %p1221 = pneg %p455
      %p1222 = pneg %p479
      %p1223 = pneg %p476
      %p1224 = pneg %p500
      %p1225 = pneg %p497
      %p1226 = pneg %p521
      %p1227 = pneg %p518
      %p1228 = pneg %p542
      %p1229 = pneg %p539
      %p1230 = pneg %p563
      %p1231 = pneg %p560
      %p1232 = pneg %p584
      %p1233 = pneg %p581
      %p1234 = pneg %p605
      %p1235 = pneg %p602
      %p1236 = pneg %p626
      %p1237 = pneg %p623
      %p1238 = pneg %p647
      %p1239 = pneg %p644
      %p1240 = pneg %p668
      %p1241 = pneg %p665
      %p1242 = pneg %p689
      %p1243 = pneg %p686
      %p1244 = pneg %p710
      %p1245 = pneg %p707
      %p1246 = pneg %p731
      %p1247 = pneg %p728
      %p1248 = pneg %p752
      %p1249 = pneg %p749
      %p1250 = pneg %p773
      %p1251 = pneg %p770
      %p1252 = pneg %p794
      %p1253 = pneg %p791
      %p1254 = pneg %p815
      %p1255 = pneg %p812
      %p1256 = pneg %p836
      %p1257 = pneg %p833
      %p1258 = pneg %p857
      %p1259 = pneg %p854
      %p1260 = pneg %p878
      %p1261 = pneg %p875
      %p1262 = pneg %p899
      %p1263 = pneg %p896
      %p1264 = pneg %p920
      %p1265 = pneg %p917
      %p1266 = pneg %p941
      %p1267 = pneg %p938
      %p1268 = pneg %p967
      %p1269 = pneg %p964
      %p1270 = scmp.lt.s32.totalorder %s93, 1
      %s1271 = scalar_select %p1270, %s93, 1
      %s1272 = smul.addr %s1271, 2
      %s1273 = scalar_lea.vmem %s79, %s1272
      %p1274 = pneg %p993
      %p1275 = pneg %p990
      %p1276 = scmp.lt.s32.totalorder %s93, 1
      %s1277 = scalar_select %p1276, %s93, 1
      %s1278 = scalar_lea.vmem %s81, %s1277
      %p1279 = scmp.lt.s32.totalorder %s93, 1
      %s1280 = scalar_select %p1279, %s93, 1
      %s1281 = smul.addr %s1280, 8
      %s1282 = scalar_lea.vmem %s1, %s1281
      %p1283 = scmp.lt.s32.totalorder %s93, 0
      %s1284 = ssub.s32 0, %s93
      %s1285 = scalar_select %p1283, %s1284, %s93
      %s1286 = sand.u32 %s1285, 1
      %s1287 = ssub.s32 0, %s1286
      %s1288 = scalar_select %p1283, %s1287, %s1286
      %p1289 = scmp.ne.s32.totalorder %s1288, 0
      %p1290 = scmp.lt.s32.totalorder %s1288, 0
      %p1291 = pnand %p1290, %p1289
      %p1292 = pneg %p1291
      %s1293 = sadd.s32 %s1288, 2
      %s1294 = scalar_select %p1292, %s1293, %s1288
      %p1295 = scmp.lt.s32.totalorder %s1294, 1
      %s1296 = scalar_select %p1295, %s1294, 1
      %s1297 = smul.addr %s1296, 2
      %s1298 = smul.addr %s1297, 8
      %s1299 = scalar_lea.vmem %s3, %s1298
      %p1300 = scmp.lt.s32.totalorder %s93, 0
      %s1301 = ssub.s32 0, %s93
      %s1302 = scalar_select %p1300, %s1301, %s93
      %s1303 = sand.u32 %s1302, 1
      %s1304 = ssub.s32 0, %s1303
      %s1305 = scalar_select %p1300, %s1304, %s1303
      %p1306 = scmp.ne.s32.totalorder %s1305, 0
      %p1307 = scmp.lt.s32.totalorder %s1305, 0
      %p1308 = pnand %p1307, %p1306
      %p1309 = pneg %p1308
      %s1310 = sadd.s32 %s1305, 2
      %s1311 = scalar_select %p1309, %s1310, %s1305
      %p1312 = scmp.lt.s32.totalorder %s93, 1
      %s1313 = scalar_select %p1312, %s93, 1
      %s1314 = smul.addr %s1313, 2
      %s1315 = scalar_lea.vmem %s79, %s1314
      %p1316 = scmp.lt.s32.totalorder %s93, 1
      %s1317 = scalar_select %p1316, %s93, 1
      %s1318 = scalar_lea.vmem %s81, %s1317
      %v1319 = vld [vmem:[%s11] sm:$0xff]
      %v1320 = vld [vmem:[%s11 + $0x8] sm:$0xff]
      %v1321 = vld [vmem:[%s11 + $0x10] sm:$0xff]
      %v1322 = vld [vmem:[%s11 + $0x18] sm:$0xff]
      %v1323 = vld [vmem:[%s13] sm:$0x1]
      %v1324 = vld [vmem:[%s15] sm:$0xff]
      %v1325 = vld [vmem:[%s15 + $0x8] sm:$0xff]
      %v1326 = vld [vmem:[%s15 + $0x10] sm:$0xff]
      %v1327 = vld [vmem:[%s15 + $0x18] sm:$0xff]
      %v1328 = vld [vmem:[%s17] sm:$0x1]
      %v1329 = vld [vmem:[%s19] sm:$0xff]
      %v1330 = vld [vmem:[%s19 + $0x8] sm:$0xff]
      %v1331 = vld [vmem:[%s19 + $0x10] sm:$0xff]
      %v1332 = vld [vmem:[%s19 + $0x18] sm:$0xff]
      %v1333 = vld [vmem:[%s21] sm:$0x1]
      %v1334 = vld [vmem:[%s23] sm:$0xff]
      %v1335 = vld [vmem:[%s23 + $0x8] sm:$0xff]
      %v1336 = vld [vmem:[%s23 + $0x10] sm:$0xff]
      %v1337 = vld [vmem:[%s23 + $0x18] sm:$0xff]
      %v1338 = vld [vmem:[%s25] sm:$0x1]
      %v1339 = vld [vmem:[%s27] sm:$0x1]
      %v1340 = vld [vmem:[%s29] sm:$0x1]
      %v1341 = vld [vmem:[%s31] sm:$0xff]
      %v1342 = vld [vmem:[%s31 + $0x8] sm:$0xff]
      %v1343 = vld [vmem:[%s31 + $0x10] sm:$0xff]
      %v1344 = vld [vmem:[%s31 + $0x18] sm:$0xff]
      %v1345 = vld [vmem:[%s33] sm:$0x1]
      %v1346 = vld [vmem:[%s35] sm:$0xff]
      %v1347 = vld [vmem:[%s35 + $0x8] sm:$0xff]
      %v1348 = vld [vmem:[%s35 + $0x10] sm:$0xff]
      %v1349 = vld [vmem:[%s35 + $0x18] sm:$0xff]
      %v1350 = vld [vmem:[%s35 + $0x20] sm:$0xff]
      %v1351 = vld [vmem:[%s35 + $0x28] sm:$0xff]
      %v1352 = vld [vmem:[%s35 + $0x30] sm:$0xff]
      %v1353 = vld [vmem:[%s35 + $0x38] sm:$0xff]
      %v1354 = vld [vmem:[%s35 + $0x40] sm:$0xff]
      %v1355 = vld [vmem:[%s35 + $0x48] sm:$0xff]
      %v1356 = vld [vmem:[%s35 + $0x50] sm:$0xff]
      %v1357 = vld [vmem:[%s35 + $0x58] sm:$0xff]
      %v1358 = vld [vmem:[%s35 + $0x60] sm:$0xff]
      %v1359 = vld [vmem:[%s35 + $0x68] sm:$0xff]
      %v1360 = vld [vmem:[%s35 + $0x70] sm:$0xff]
      %v1361 = vld [vmem:[%s35 + $0x78] sm:$0xff]
      %v1362 = vld [vmem:[%s37] sm:$0x1]
      %v1363 = vld [vmem:[%s39] sm:$0x1]
      %v1364 = vld [vmem:[%s41] sm:$0x1]
      %v1365 = vld [vmem:[%s43] sm:$0xff]
      %v1366 = vld [vmem:[%s43 + $0x8] sm:$0xff]
      %v1367 = vld [vmem:[%s43 + $0x10] sm:$0xff]
      %v1368 = vld [vmem:[%s43 + $0x18] sm:$0xff]
      %v1369 = vld [vmem:[%s45] sm:$0x1]
      %v1370 = vld [vmem:[%s47] sm:$0xff]
      %v1371 = vld [vmem:[%s47 + $0x8] sm:$0xff]
      %v1372 = vld [vmem:[%s47 + $0x10] sm:$0xff]
      %v1373 = vld [vmem:[%s47 + $0x18] sm:$0xff]
      %v1374 = vld [vmem:[%s49] sm:$0x1]
      %v1375 = vld [vmem:[%s51] sm:$0xff]
      %v1376 = vld [vmem:[%s51 + $0x8] sm:$0xff]
      %v1377 = vld [vmem:[%s51 + $0x10] sm:$0xff]
      %v1378 = vld [vmem:[%s51 + $0x18] sm:$0xff]
      %v1379 = vld [vmem:[%s53] sm:$0x1]
      %v1380 = vld [vmem:[%s55] sm:$0xff]
      %v1381 = vld [vmem:[%s55 + $0x8] sm:$0xff]
      %v1382 = vld [vmem:[%s55 + $0x10] sm:$0xff]
      %v1383 = vld [vmem:[%s55 + $0x18] sm:$0xff]
      %v1384 = vld [vmem:[%s57] sm:$0x1]
      %v1385 = vld [vmem:[%s59] sm:$0xff]
      %v1386 = vld [vmem:[%s59 + $0x8] sm:$0xff]
      %v1387 = vld [vmem:[%s59 + $0x10] sm:$0xff]
      %v1388 = vld [vmem:[%s59 + $0x18] sm:$0xff]
      %v1389 = vld [vmem:[%s61] sm:$0x1]
      %v1390 = vld [vmem:[%s63] sm:$0xff]
      %v1391 = vld [vmem:[%s63 + $0x8] sm:$0xff]
      %v1392 = vld [vmem:[%s63 + $0x10] sm:$0xff]
      %v1393 = vld [vmem:[%s63 + $0x18] sm:$0xff]
      %v1394 = vld [vmem:[%s65] sm:$0x1]
      %v1395 = vld [vmem:[%s67] sm:$0xff]
      %v1396 = vld [vmem:[%s67 + $0x8] sm:$0xff]
      %v1397 = vld [vmem:[%s67 + $0x10] sm:$0xff]
      %v1398 = vld [vmem:[%s67 + $0x18] sm:$0xff]
      %v1399 = vld [vmem:[%s69] sm:$0x1]
      %v1400 = vld [vmem:[%s71] sm:$0xff]
      %v1401 = vld [vmem:[%s71 + $0x8] sm:$0xff]
      %v1402 = vld [vmem:[%s71 + $0x10] sm:$0xff]
      %v1403 = vld [vmem:[%s71 + $0x18] sm:$0xff]
      %v1404 = vld [vmem:[%s73] sm:$0x1]
      %v1405 = vld [vmem:[%s75] sm:$0xff]
      %v1406 = vld [vmem:[%s75 + $0x8] sm:$0xff]
      %v1407 = vld [vmem:[%s75 + $0x10] sm:$0xff]
      %v1408 = vld [vmem:[%s75 + $0x18] sm:$0xff]
      %v1409 = vld [vmem:[%s77] sm:$0x1]
      %v1410 = vld [vmem:[%s1282] sm:$0xff]
      %v1411 = vld [vmem:[%s1299] sm:$0xff]
      %v1412 = vld [vmem:[%s1299 + $0x8] sm:$0xff]
      %v1413 = vld [vmem:[%s5] sm:$0x1]
      %v1415 = vlaneseq
      %v1416 = vshrl.u32 %v1415, 7
      %v1417 = vsub.s32 0, %v1416
      %v1418 = vrot.slane %v1413, %v1417
      %v1420 = vadd.f32 %v1411, %v1418
      %v1421 = vadd.f32 %v1412, %v1418
      %v1422 = vld [vmem:[%s7] sm:$0xff]
      %v1423 = vld [vmem:[%s7 + $0x8] sm:$0xff]
      %v1424 = vadd.f32 %v1420, %v1422
      %v1425 = vadd.f32 %v1421, %v1423
      %v1427 = vlaneseq
      %v1428 = vshrl.u32 %v1427, 7
      %v1429 = vsub.s32 0, %v1428
      %v1430 = vrot.slane %v1323, %v1429
      %vm1432 = vcmask 261120
      %v1434 = vsel %vm1432, %v1410, 0
      %1436 = vmatprep.subr.mxu0 0.0
      %1437 = vmatpush1.msra.mxu0 0.0
      %1438 = vmatprep.subr.mxu0 0.0
      %1439 = vmatpush1.msra.mxu0 0.0
      %1440 = vmatprep.subr.mxu0 0.0
      %1441 = vmatpush1.msra.mxu0 0.0
      %1442 = vmatprep.subr.mxu0 0.0
      %1443 = vmatpush1.msra.mxu0 0.0
      %1444 = vmatprep.subr.mxu0 0.0
      %1445 = vmatpush1.msra.mxu0 0.0
      %1446 = vmatprep.subr.mxu0 0.0
      %1447 = vmatpush1.msra.mxu0 0.0
      %1448 = vmatprep.subr.mxu0 0.0
      %1449 = vmatpush1.msra.mxu0 0.0
      %1450 = vmatprep.subr.mxu0 0.0
      %1451 = vmatpush1.msra.mxu0 0.0
      %1452 = vmatprep.subr.mxu0 0.0
      %1453 = vmatpush1.msra.mxu0 0.0
      %1454 = vmatprep.subr.mxu0 0.0
      %1455 = vmatpush1.msra.mxu0 0.0
      %1456 = vmatprep.subr.mxu0 0.0
      %1457 = vmatpush1.msra.mxu0 0.0
      %1458 = vmatprep.subr.mxu0 0.0
      %1459 = vmatpush1.msra.mxu0 0.0
      %1460 = vmatprep.subr.mxu0 0.0
      %1461 = vmatpush1.msra.mxu0 %v1322
      %1462 = vmatprep.subr.mxu0 0.0
      %1463 = vmatpush1.msra.mxu0 %v1321
      %1464 = vmatprep.subr.mxu0 0.0
      %1465 = vmatpush1.msra.mxu0 %v1320
      %1466 = vmatprep.subr.mxu0 0.0
      %1467 = vmatpush1.msra.mxu0 %v1319
      %1468 = vmatprep.subr.mxu0 0.0
      %1469 = vmatpush2.msra.mxu0 0.0
      %1470 = vmatprep.subr.mxu0 0.0
      %1471 = vmatpush2.msra.mxu0 0.0
      %1472 = vmatprep.subr.mxu0 0.0
      %1473 = vmatpush2.msra.mxu0 0.0
      %1474 = vmatprep.subr.mxu0 0.0
      %1475 = vmatpush2.msra.mxu0 0.0
      %1476 = vmatprep.subr.mxu0 0.0
      %1477 = vmatpush2.msra.mxu0 0.0
      %1478 = vmatprep.subr.mxu0 0.0
      %1479 = vmatpush2.msra.mxu0 0.0
      %1480 = vmatprep.subr.mxu0 0.0
      %1481 = vmatpush2.msra.mxu0 0.0
      %1482 = vmatprep.subr.mxu0 0.0
      %1483 = vmatpush2.msra.mxu0 0.0
      %1484 = vmatprep.subr.mxu0 0.0
      %1485 = vmatpush2.msra.mxu0 0.0
      %1486 = vmatprep.subr.mxu0 0.0
      %1487 = vmatpush2.msra.mxu0 0.0
      %1488 = vmatprep.subr.mxu0 0.0
      %1489 = vmatpush2.msra.mxu0 0.0
      %1490 = vmatprep.subr.mxu0 0.0
      %1491 = vmatpush2.msra.mxu0 0.0
      %1492 = vmatprep.subr.mxu0 0.0
      %1493 = vmatpush2.msra.mxu0 0.0
      %1494 = vmatprep.subr.mxu0 0.0
      %1495 = vmatpush2.msra.mxu0 0.0
      %1496 = vmatprep.subr.mxu0 0.0
      %1497 = vmatpush2.msra.mxu0 0.0
      %1498 = vmatprep.subr.mxu0 0.0
      %1499 = vmatpush2.msra.mxu0 0.0
      %1500 = vmatprep.mubr.f32.mxu0 0.0
      %1501 = vmatmul.mubr.f32.gmra.mxu0 %v1434
      %v1502 = vpop.f32.mrf.mxu0
      %v1503 = vadd.f32 %v1430, %v1502
      %v1504 = vpop.f32.mrf.mxu0
      %1505 = vdwg.mxu0
      %v1507 = vlaneseq
      %v1508 = vshrl.u32 %v1507, 7
      %v1509 = vsub.s32 0, %v1508
      %v1510 = vrot.slane %v1328, %v1509
      %v1513 = vsel %vm1432, %v1424, 0
      %v1516 = vsel %vm1432, %v1425, 0
      %1518 = vmatprep.subr.mxu0 0.0
      %1519 = vmatpush1.msra.mxu0 0.0
      %1520 = vmatprep.subr.mxu0 0.0
      %1521 = vmatpush1.msra.mxu0 0.0
      %1522 = vmatprep.subr.mxu0 0.0
      %1523 = vmatpush1.msra.mxu0 0.0
      %1524 = vmatprep.subr.mxu0 0.0
      %1525 = vmatpush1.msra.mxu0 0.0
      %1526 = vmatprep.subr.mxu0 0.0
      %1527 = vmatpush1.msra.mxu0 0.0
      %1528 = vmatprep.subr.mxu0 0.0
      %1529 = vmatpush1.msra.mxu0 0.0
      %1530 = vmatprep.subr.mxu0 0.0
      %1531 = vmatpush1.msra.mxu0 0.0
      %1532 = vmatprep.subr.mxu0 0.0
      %1533 = vmatpush1.msra.mxu0 0.0
      %1534 = vmatprep.subr.mxu0 0.0
      %1535 = vmatpush1.msra.mxu0 0.0
      %1536 = vmatprep.subr.mxu0 0.0
      %1537 = vmatpush1.msra.mxu0 0.0
      %1538 = vmatprep.subr.mxu0 0.0
      %1539 = vmatpush1.msra.mxu0 0.0
      %1540 = vmatprep.subr.mxu0 0.0
      %1541 = vmatpush1.msra.mxu0 0.0
      %1542 = vmatprep.subr.mxu0 0.0
      %1543 = vmatpush1.msra.mxu0 %v1327
      %1544 = vmatprep.subr.mxu0 0.0
      %1545 = vmatpush1.msra.mxu0 %v1326
      %1546 = vmatprep.subr.mxu0 0.0
      %1547 = vmatpush1.msra.mxu0 %v1325
      %1548 = vmatprep.subr.mxu0 0.0
      %1549 = vmatpush1.msra.mxu0 %v1324
      %1550 = vmatprep.subr.mxu0 0.0
      %1551 = vmatpush2.msra.mxu0 0.0
      %1552 = vmatprep.subr.mxu0 0.0
      %1553 = vmatpush2.msra.mxu0 0.0
      %1554 = vmatprep.subr.mxu0 0.0
      %1555 = vmatpush2.msra.mxu0 0.0
      %1556 = vmatprep.subr.mxu0 0.0
      %1557 = vmatpush2.msra.mxu0 0.0
      %1558 = vmatprep.subr.mxu0 0.0
      %1559 = vmatpush2.msra.mxu0 0.0
      %1560 = vmatprep.subr.mxu0 0.0
      %1561 = vmatpush2.msra.mxu0 0.0
      %1562 = vmatprep.subr.mxu0 0.0
      %1563 = vmatpush2.msra.mxu0 0.0
      %1564 = vmatprep.subr.mxu0 0.0
      %1565 = vmatpush2.msra.mxu0 0.0
      %1566 = vmatprep.subr.mxu0 0.0
      %1567 = vmatpush2.msra.mxu0 0.0
      %1568 = vmatprep.subr.mxu0 0.0
      %1569 = vmatpush2.msra.mxu0 0.0
      %1570 = vmatprep.subr.mxu0 0.0
      %1571 = vmatpush2.msra.mxu0 0.0
      %1572 = vmatprep.subr.mxu0 0.0
      %1573 = vmatpush2.msra.mxu0 0.0
      %1574 = vmatprep.subr.mxu0 0.0
      %1575 = vmatpush2.msra.mxu0 0.0
      %1576 = vmatprep.subr.mxu0 0.0
      %1577 = vmatpush2.msra.mxu0 0.0
      %1578 = vmatprep.subr.mxu0 0.0
      %1579 = vmatpush2.msra.mxu0 0.0
      %1580 = vmatprep.subr.mxu0 0.0
      %1581 = vmatpush2.msra.mxu0 0.0
      %1582 = vmatprep.mubr.f32.mxu0 0.0
      %1583 = vmatmul.mubr.f32.gmra.mxu0 %v1513
      %v1584 = vpop.f32.mrf.mxu0
      %v1585 = vadd.f32 %v1510, %v1584
      %v1586 = vpop.f32.mrf.mxu0
      %1587 = vmatprep.mubr.f32.mxu0 0.0
      %1588 = vmatmul.mubr.f32.gmra.mxu0 %v1516
      %v1589 = vpop.f32.mrf.mxu0
      %v1590 = vadd.f32 %v1510, %v1589
      %v1591 = vpop.f32.mrf.mxu0
      %1592 = vdwg.mxu0
      %v1594 = vlaneseq
      %v1595 = vshrl.u32 %v1594, 7
      %v1596 = vsub.s32 0, %v1595
      %v1597 = vrot.slane %v1333, %v1596
      %v1600 = vsel %vm1432, %v1420, 0
      %v1603 = vsel %vm1432, %v1421, 0
      %1605 = vmatprep.subr.mxu0 0.0
      %1606 = vmatpush1.msra.mxu0 0.0
      %1607 = vmatprep.subr.mxu0 0.0
      %1608 = vmatpush1.msra.mxu0 0.0
      %1609 = vmatprep.subr.mxu0 0.0
      %1610 = vmatpush1.msra.mxu0 0.0
      %1611 = vmatprep.subr.mxu0 0.0
      %1612 = vmatpush1.msra.mxu0 0.0
      %1613 = vmatprep.subr.mxu0 0.0
      %1614 = vmatpush1.msra.mxu0 0.0
      %1615 = vmatprep.subr.mxu0 0.0
      %1616 = vmatpush1.msra.mxu0 0.0
      %1617 = vmatprep.subr.mxu0 0.0
      %1618 = vmatpush1.msra.mxu0 0.0
      %1619 = vmatprep.subr.mxu0 0.0
      %1620 = vmatpush1.msra.mxu0 0.0
      %1621 = vmatprep.subr.mxu0 0.0
      %1622 = vmatpush1.msra.mxu0 0.0
      %1623 = vmatprep.subr.mxu0 0.0
      %1624 = vmatpush1.msra.mxu0 0.0
      %1625 = vmatprep.subr.mxu0 0.0
      %1626 = vmatpush1.msra.mxu0 0.0
      %1627 = vmatprep.subr.mxu0 0.0
      %1628 = vmatpush1.msra.mxu0 0.0
      %1629 = vmatprep.subr.mxu0 0.0
      %1630 = vmatpush1.msra.mxu0 %v1332
      %1631 = vmatprep.subr.mxu0 0.0
      %1632 = vmatpush1.msra.mxu0 %v1331
      %1633 = vmatprep.subr.mxu0 0.0
      %1634 = vmatpush1.msra.mxu0 %v1330
      %1635 = vmatprep.subr.mxu0 0.0
      %1636 = vmatpush1.msra.mxu0 %v1329
      %1637 = vmatprep.subr.mxu0 0.0
      %1638 = vmatpush2.msra.mxu0 0.0
      %1639 = vmatprep.subr.mxu0 0.0
      %1640 = vmatpush2.msra.mxu0 0.0
      %1641 = vmatprep.subr.mxu0 0.0
      %1642 = vmatpush2.msra.mxu0 0.0
      %1643 = vmatprep.subr.mxu0 0.0
      %1644 = vmatpush2.msra.mxu0 0.0
      %1645 = vmatprep.subr.mxu0 0.0
      %1646 = vmatpush2.msra.mxu0 0.0
      %1647 = vmatprep.subr.mxu0 0.0
      %1648 = vmatpush2.msra.mxu0 0.0
      %1649 = vmatprep.subr.mxu0 0.0
      %1650 = vmatpush2.msra.mxu0 0.0
      %1651 = vmatprep.subr.mxu0 0.0
      %1652 = vmatpush2.msra.mxu0 0.0
      %1653 = vmatprep.subr.mxu0 0.0
      %1654 = vmatpush2.msra.mxu0 0.0
      %1655 = vmatprep.subr.mxu0 0.0
      %1656 = vmatpush2.msra.mxu0 0.0
      %1657 = vmatprep.subr.mxu0 0.0
      %1658 = vmatpush2.msra.mxu0 0.0
      %1659 = vmatprep.subr.mxu0 0.0
      %1660 = vmatpush2.msra.mxu0 0.0
      %1661 = vmatprep.subr.mxu0 0.0
      %1662 = vmatpush2.msra.mxu0 0.0
      %1663 = vmatprep.subr.mxu0 0.0
      %1664 = vmatpush2.msra.mxu0 0.0
      %1665 = vmatprep.subr.mxu0 0.0
      %1666 = vmatpush2.msra.mxu0 0.0
      %1667 = vmatprep.subr.mxu0 0.0
      %1668 = vmatpush2.msra.mxu0 0.0
      %1669 = vmatprep.mubr.f32.mxu0 0.0
      %1670 = vmatmul.mubr.f32.gmra.mxu0 %v1600
      %v1671 = vpop.f32.mrf.mxu0
      %v1672 = vadd.f32 %v1597, %v1671
      %v1673 = vpop.f32.mrf.mxu0
      %1674 = vmatprep.mubr.f32.mxu0 0.0
      %1675 = vmatmul.mubr.f32.gmra.mxu0 %v1603
      %v1676 = vpop.f32.mrf.mxu0
      %v1677 = vadd.f32 %v1597, %v1676
      %v1678 = vpop.f32.mrf.mxu0
      %1679 = vdwg.mxu0
      %v1681 = vsel %vm1432, %v1503, 0
      %v1684 = vsel %vm1432, %v1585, 0
      %v1687 = vsel %vm1432, %v1590, 0
      %1689 = vmatprep.subr.mxu0 0.0
      %1690 = vmatpush1.xpose.msra.mxu0 0.0
      %1691 = vmatprep.subr.mxu0 0.0
      %1692 = vmatpush1.xpose.msra.mxu0 0.0
      %1693 = vmatprep.subr.mxu0 0.0
      %1694 = vmatpush1.xpose.msra.mxu0 0.0
      %1695 = vmatprep.subr.mxu0 0.0
      %1696 = vmatpush1.xpose.msra.mxu0 0.0
      %1697 = vmatprep.subr.mxu0 0.0
      %1698 = vmatpush1.xpose.msra.mxu0 0.0
      %1699 = vmatprep.subr.mxu0 0.0
      %1700 = vmatpush1.xpose.msra.mxu0 0.0
      %1701 = vmatprep.subr.mxu0 0.0
      %1702 = vmatpush1.xpose.msra.mxu0 0.0
      %1703 = vmatprep.subr.mxu0 0.0
      %1704 = vmatpush1.xpose.msra.mxu0 0.0
      %1705 = vmatprep.subr.mxu0 0.0
      %1706 = vmatpush1.xpose.msra.mxu0 0.0
      %1707 = vmatprep.subr.mxu0 0.0
      %1708 = vmatpush1.xpose.msra.mxu0 0.0
      %1709 = vmatprep.subr.mxu0 0.0
      %1710 = vmatpush1.xpose.msra.mxu0 0.0
      %1711 = vmatprep.subr.mxu0 0.0
      %1712 = vmatpush1.xpose.msra.mxu0 0.0
      %1713 = vmatprep.subr.mxu0 0.0
      %1714 = vmatpush1.xpose.msra.mxu0 0.0
      %1715 = vmatprep.subr.mxu0 0.0
      %1716 = vmatpush1.xpose.msra.mxu0 0.0
      %1717 = vmatprep.subr.mxu0 0.0
      %1718 = vmatpush1.xpose.msra.mxu0 %v1687
      %1719 = vmatprep.subr.mxu0 0.0
      %1720 = vmatpush1.xpose.msra.mxu0 %v1684
      %1721 = vmatprep.subr.mxu0 0.0
      %1722 = vmatpush2.xpose.msra.mxu0 0.0
      %1723 = vmatprep.subr.mxu0 0.0
      %1724 = vmatpush2.xpose.msra.mxu0 0.0
      %1725 = vmatprep.subr.mxu0 0.0
      %1726 = vmatpush2.xpose.msra.mxu0 0.0
      %1727 = vmatprep.subr.mxu0 0.0
      %1728 = vmatpush2.xpose.msra.mxu0 0.0
      %1729 = vmatprep.subr.mxu0 0.0
      %1730 = vmatpush2.xpose.msra.mxu0 0.0
      %1731 = vmatprep.subr.mxu0 0.0
      %1732 = vmatpush2.xpose.msra.mxu0 0.0
      %1733 = vmatprep.subr.mxu0 0.0
      %1734 = vmatpush2.xpose.msra.mxu0 0.0
      %1735 = vmatprep.subr.mxu0 0.0
      %1736 = vmatpush2.xpose.msra.mxu0 0.0
      %1737 = vmatprep.subr.mxu0 0.0
      %1738 = vmatpush2.xpose.msra.mxu0 0.0
      %1739 = vmatprep.subr.mxu0 0.0
      %1740 = vmatpush2.xpose.msra.mxu0 0.0
      %1741 = vmatprep.subr.mxu0 0.0
      %1742 = vmatpush2.xpose.msra.mxu0 0.0
      %1743 = vmatprep.subr.mxu0 0.0
      %1744 = vmatpush2.xpose.msra.mxu0 0.0
      %1745 = vmatprep.subr.mxu0 0.0
      %1746 = vmatpush2.xpose.msra.mxu0 0.0
      %1747 = vmatprep.subr.mxu0 0.0
      %1748 = vmatpush2.xpose.msra.mxu0 0.0
      %1749 = vmatprep.subr.mxu0 0.0
      %1750 = vmatpush2.xpose.msra.mxu0 0.0
      %1751 = vmatprep.subr.mxu0 0.0
      %1752 = vmatpush2.xpose.msra.mxu0 0.0
      %1753 = vmatprep.mubr.f32.mxu0 0.0
      %1754 = vmatmul.mubr.f32.gmra.mxu0 %v1681
      %v1755 = vpop.f32.mrf.mxu0
      %v1756 = vadd.f32 0.0, %v1755
      %v1757 = vpop.f32.mrf.mxu0
      %1758 = vdwg.mxu0
      %v1759 = vmul.f32 %v1756, 0.17677669
      %vm1760 = vcmask 130048
      %v1761 = vsel %vm1760, %v1759, -inf
      %1762 = vmax.xlane.f32.xlu0 %v1761
      %v1763 = vpop.xlane.xlu0 %1762
      %v1764 = vsub.f32 %v1759, %v1763
      %v1765 = vmul.f32 %v1764, 1.442695
      %v1766 = vpow.pop %v1765
      %v1767 = vsel %vm1760, %v1766, 0.0
      %1768 = vadd.xlane.f32.xlu0 %v1767
      %v1769 = vpop.xlane.xlu0 %1768
      %v1770 = vrcp.pop %v1769
      %v1771 = vmul.f32 %v1766, %v1770
      %v1773 = vsel %vm1760, %v1771, 0
      %1775 = vmatprep.subr.mxu0 0.0
      %1776 = vmatpush1.msra.mxu0 0.0
      %1777 = vmatprep.subr.mxu0 0.0
      %1778 = vmatpush1.msra.mxu0 0.0
      %1779 = vmatprep.subr.mxu0 0.0
      %1780 = vmatpush1.msra.mxu0 0.0
      %1781 = vmatprep.subr.mxu0 0.0
      %1782 = vmatpush1.msra.mxu0 0.0
      %1783 = vmatprep.subr.mxu0 0.0
      %1784 = vmatpush1.msra.mxu0 0.0
      %1785 = vmatprep.subr.mxu0 0.0
      %1786 = vmatpush1.msra.mxu0 0.0
      %1787 = vmatprep.subr.mxu0 0.0
      %1788 = vmatpush1.msra.mxu0 0.0
      %1789 = vmatprep.subr.mxu0 0.0
      %1790 = vmatpush1.msra.mxu0 0.0
      %1791 = vmatprep.subr.mxu0 0.0
      %1792 = vmatpush1.msra.mxu0 0.0
      %1793 = vmatprep.subr.mxu0 0.0
      %1794 = vmatpush1.msra.mxu0 0.0
      %1795 = vmatprep.subr.mxu0 0.0
      %1796 = vmatpush1.msra.mxu0 0.0
      %1797 = vmatprep.subr.mxu0 0.0
      %1798 = vmatpush1.msra.mxu0 0.0
      %1799 = vmatprep.subr.mxu0 0.0
      %1800 = vmatpush1.msra.mxu0 0.0
      %1801 = vmatprep.subr.mxu0 0.0
      %1802 = vmatpush1.msra.mxu0 0.0
      %1803 = vmatprep.subr.mxu0 0.0
      %1804 = vmatpush1.msra.mxu0 %v1677
      %1805 = vmatprep.subr.mxu0 0.0
      %1806 = vmatpush1.msra.mxu0 %v1672
      %1807 = vmatprep.subr.mxu0 0.0
      %1808 = vmatpush2.msra.mxu0 0.0
      %1809 = vmatprep.subr.mxu0 0.0
      %1810 = vmatpush2.msra.mxu0 0.0
      %1811 = vmatprep.subr.mxu0 0.0
      %1812 = vmatpush2.msra.mxu0 0.0
      %1813 = vmatprep.subr.mxu0 0.0
      %1814 = vmatpush2.msra.mxu0 0.0
      %1815 = vmatprep.subr.mxu0 0.0
      %1816 = vmatpush2.msra.mxu0 0.0
      %1817 = vmatprep.subr.mxu0 0.0
      %1818 = vmatpush2.msra.mxu0 0.0
      %1819 = vmatprep.subr.mxu0 0.0
      %1820 = vmatpush2.msra.mxu0 0.0
      %1821 = vmatprep.subr.mxu0 0.0
      %1822 = vmatpush2.msra.mxu0 0.0
      %1823 = vmatprep.subr.mxu0 0.0
      %1824 = vmatpush2.msra.mxu0 0.0
      %1825 = vmatprep.subr.mxu0 0.0
      %1826 = vmatpush2.msra.mxu0 0.0
      %1827 = vmatprep.subr.mxu0 0.0
      %1828 = vmatpush2.msra.mxu0 0.0
      %1829 = vmatprep.subr.mxu0 0.0
      %1830 = vmatpush2.msra.mxu0 0.0
      %1831 = vmatprep.subr.mxu0 0.0
      %1832 = vmatpush2.msra.mxu0 0.0
      %1833 = vmatprep.subr.mxu0 0.0
      %1834 = vmatpush2.msra.mxu0 0.0
      %1835 = vmatprep.subr.mxu0 0.0
      %1836 = vmatpush2.msra.mxu0 0.0
      %1837 = vmatprep.subr.mxu0 0.0
      %1838 = vmatpush2.msra.mxu0 0.0
      %1839 = vmatprep.mubr.f32.mxu0 0.0
      %1840 = vmatmul.mubr.f32.gmra.mxu0 %v1773
      %v1841 = vpop.f32.mrf.mxu0
      %v1842 = vadd.f32 0.0, %v1841
      %v1843 = vpop.f32.mrf.mxu0
      %1844 = vdwg.mxu0
      %v1846 = vlaneseq
      %v1847 = vshrl.u32 %v1846, 7
      %v1848 = vsub.s32 0, %v1847
      %v1849 = vrot.slane %v1338, %v1848
      %v1852 = vsel %vm1432, %v1842, 0
      %1854 = vmatprep.subr.mxu0 0.0
      %1855 = vmatpush1.msra.mxu0 0.0
      %1856 = vmatprep.subr.mxu0 0.0
      %1857 = vmatpush1.msra.mxu0 0.0
      %1858 = vmatprep.subr.mxu0 0.0
      %1859 = vmatpush1.msra.mxu0 0.0
      %1860 = vmatprep.subr.mxu0 0.0
      %1861 = vmatpush1.msra.mxu0 0.0
      %1862 = vmatprep.subr.mxu0 0.0
      %1863 = vmatpush1.msra.mxu0 0.0
      %1864 = vmatprep.subr.mxu0 0.0
      %1865 = vmatpush1.msra.mxu0 0.0
      %1866 = vmatprep.subr.mxu0 0.0
      %1867 = vmatpush1.msra.mxu0 0.0
      %1868 = vmatprep.subr.mxu0 0.0
      %1869 = vmatpush1.msra.mxu0 0.0
      %1870 = vmatprep.subr.mxu0 0.0
      %1871 = vmatpush1.msra.mxu0 0.0
      %1872 = vmatprep.subr.mxu0 0.0
      %1873 = vmatpush1.msra.mxu0 0.0
      %1874 = vmatprep.subr.mxu0 0.0
      %1875 = vmatpush1.msra.mxu0 0.0
      %1876 = vmatprep.subr.mxu0 0.0
      %1877 = vmatpush1.msra.mxu0 0.0
      %1878 = vmatprep.subr.mxu0 0.0
      %1879 = vmatpush1.msra.mxu0 %v1337
      %1880 = vmatprep.subr.mxu0 0.0
      %1881 = vmatpush1.msra.mxu0 %v1336
      %1882 = vmatprep.subr.mxu0 0.0
      %1883 = vmatpush1.msra.mxu0 %v1335
      %1884 = vmatprep.subr.mxu0 0.0
      %1885 = vmatpush1.msra.mxu0 %v1334
      %1886 = vmatprep.subr.mxu0 0.0
      %1887 = vmatpush2.msra.mxu0 0.0
      %1888 = vmatprep.subr.mxu0 0.0
      %1889 = vmatpush2.msra.mxu0 0.0
      %1890 = vmatprep.subr.mxu0 0.0
      %1891 = vmatpush2.msra.mxu0 0.0
      %1892 = vmatprep.subr.mxu0 0.0
      %1893 = vmatpush2.msra.mxu0 0.0
      %1894 = vmatprep.subr.mxu0 0.0
      %1895 = vmatpush2.msra.mxu0 0.0
      %1896 = vmatprep.subr.mxu0 0.0
      %1897 = vmatpush2.msra.mxu0 0.0
      %1898 = vmatprep.subr.mxu0 0.0
      %1899 = vmatpush2.msra.mxu0 0.0
      %1900 = vmatprep.subr.mxu0 0.0
      %1901 = vmatpush2.msra.mxu0 0.0
      %1902 = vmatprep.subr.mxu0 0.0
      %1903 = vmatpush2.msra.mxu0 0.0
      %1904 = vmatprep.subr.mxu0 0.0
      %1905 = vmatpush2.msra.mxu0 0.0
      %1906 = vmatprep.subr.mxu0 0.0
      %1907 = vmatpush2.msra.mxu0 0.0
      %1908 = vmatprep.subr.mxu0 0.0
      %1909 = vmatpush2.msra.mxu0 0.0
      %1910 = vmatprep.subr.mxu0 0.0
      %1911 = vmatpush2.msra.mxu0 0.0
      %1912 = vmatprep.subr.mxu0 0.0
      %1913 = vmatpush2.msra.mxu0 0.0
      %1914 = vmatprep.subr.mxu0 0.0
      %1915 = vmatpush2.msra.mxu0 0.0
      %1916 = vmatprep.subr.mxu0 0.0
      %1917 = vmatpush2.msra.mxu0 0.0
      %1918 = vmatprep.mubr.f32.mxu0 0.0
      %1919 = vmatmul.mubr.f32.gmra.mxu0 %v1852
      %v1920 = vpop.f32.mrf.mxu0
      %v1921 = vadd.f32 %v1849, %v1920
      %v1922 = vpop.f32.mrf.mxu0
      %1923 = vdwg.mxu0
      %v1924 = vadd.f32 %v1410, %v1921
      %v1925 = vsel %vm1432, %v1924, 0.0
      %1926 = vadd.xlane.f32.xlu0 %v1925
      %v1927 = vpop.xlane.xlu0 %1926
      %v1928 = vrcp.pop 32.0
      %v1929 = vmul.f32 %v1927, %v1928
      %v1930 = vsub.f32 %v1924, %v1929
      %v1931 = vmul.f32 %v1930, %v1930
      %v1932 = vsel %vm1432, %v1931, 0.0
      %1933 = vadd.xlane.f32.xlu0 %v1932
      %v1934 = vpop.xlane.xlu0 %1933
      %v1935 = vmul.f32 %v1934, %v1928
      %v1936 = vadd.f32 %v1935, 1e-05
      %v1937 = vrsqrt.pop %v1936
      %v1938 = vmul.f32 %v1930, %v1937
      %v1940 = vlaneseq
      %v1941 = vshrl.u32 %v1940, 7
      %v1942 = vsub.s32 0, %v1941
      %v1943 = vrot.slane %v1339, %v1942
      %v1945 = vmul.f32 %v1938, %v1943
      %v1947 = vlaneseq
      %v1948 = vshrl.u32 %v1947, 7
      %v1949 = vsub.s32 0, %v1948
      %v1950 = vrot.slane %v1340, %v1949
      %v1952 = vadd.f32 %v1945, %v1950
      %v1954 = vlaneseq
      %v1955 = vshrl.u32 %v1954, 7
      %v1956 = vsub.s32 0, %v1955
      %v1957 = vrot.slane %v1345, %v1956
      %v1960 = vsel %vm1432, %v1952, 0
      %1962 = vmatprep.subr.mxu0 0.0
      %1963 = vmatpush1.msra.mxu0 0.0
      %1964 = vmatprep.subr.mxu0 0.0
      %1965 = vmatpush1.msra.mxu0 0.0
      %1966 = vmatprep.subr.mxu0 0.0
      %1967 = vmatpush1.msra.mxu0 0.0
      %1968 = vmatprep.subr.mxu0 0.0
      %1969 = vmatpush1.msra.mxu0 0.0
      %1970 = vmatprep.subr.mxu0 0.0
      %1971 = vmatpush1.msra.mxu0 0.0
      %1972 = vmatprep.subr.mxu0 0.0
      %1973 = vmatpush1.msra.mxu0 0.0
      %1974 = vmatprep.subr.mxu0 0.0
      %1975 = vmatpush1.msra.mxu0 0.0
      %1976 = vmatprep.subr.mxu0 0.0
      %1977 = vmatpush1.msra.mxu0 0.0
      %1978 = vmatprep.subr.mxu0 0.0
      %1979 = vmatpush1.msra.mxu0 0.0
      %1980 = vmatprep.subr.mxu0 0.0
      %1981 = vmatpush1.msra.mxu0 0.0
      %1982 = vmatprep.subr.mxu0 0.0
      %1983 = vmatpush1.msra.mxu0 0.0
      %1984 = vmatprep.subr.mxu0 0.0
      %1985 = vmatpush1.msra.mxu0 0.0
      %1986 = vmatprep.subr.mxu0 0.0
      %1987 = vmatpush1.msra.mxu0 %v1344
      %1988 = vmatprep.subr.mxu0 0.0
      %1989 = vmatpush1.msra.mxu0 %v1343
      %1990 = vmatprep.subr.mxu0 0.0
      %1991 = vmatpush1.msra.mxu0 %v1342
      %1992 = vmatprep.subr.mxu0 0.0
      %1993 = vmatpush1.msra.mxu0 %v1341
      %1994 = vmatprep.subr.mxu0 0.0
      %1995 = vmatpush2.msra.mxu0 0.0
      %1996 = vmatprep.subr.mxu0 0.0
      %1997 = vmatpush2.msra.mxu0 0.0
      %1998 = vmatprep.subr.mxu0 0.0
      %1999 = vmatpush2.msra.mxu0 0.0
      %2000 = vmatprep.subr.mxu0 0.0
      %2001 = vmatpush2.msra.mxu0 0.0
      %2002 = vmatprep.subr.mxu0 0.0
      %2003 = vmatpush2.msra.mxu0 0.0
      %2004 = vmatprep.subr.mxu0 0.0
      %2005 = vmatpush2.msra.mxu0 0.0
      %2006 = vmatprep.subr.mxu0 0.0
      %2007 = vmatpush2.msra.mxu0 0.0
      %2008 = vmatprep.subr.mxu0 0.0
      %2009 = vmatpush2.msra.mxu0 0.0
      %2010 = vmatprep.subr.mxu0 0.0
      %2011 = vmatpush2.msra.mxu0 0.0
      %2012 = vmatprep.subr.mxu0 0.0
      %2013 = vmatpush2.msra.mxu0 0.0
      %2014 = vmatprep.subr.mxu0 0.0
      %2015 = vmatpush2.msra.mxu0 0.0
      %2016 = vmatprep.subr.mxu0 0.0
      %2017 = vmatpush2.msra.mxu0 0.0
      %2018 = vmatprep.subr.mxu0 0.0
      %2019 = vmatpush2.msra.mxu0 0.0
      %2020 = vmatprep.subr.mxu0 0.0
      %2021 = vmatpush2.msra.mxu0 0.0
      %2022 = vmatprep.subr.mxu0 0.0
      %2023 = vmatpush2.msra.mxu0 0.0
      %2024 = vmatprep.subr.mxu0 0.0
      %2025 = vmatpush2.msra.mxu0 0.0
      %2026 = vmatprep.mubr.f32.mxu0 0.0
      %2027 = vmatmul.mubr.f32.gmra.mxu0 %v1960
      %v2028 = vpop.f32.mrf.mxu0
      %v2029 = vadd.f32 %v1957, %v2028
      %v2030 = vpop.f32.mrf.mxu0
      %2031 = vdwg.mxu0
      %v2032 = vmax.f32 %v2029, 0.0
      %v2034 = vlaneseq
      %v2035 = vshrl.u32 %v2034, 7
      %v2036 = vsub.s32 0, %v2035
      %v2037 = vrot.slane %v1362, %v2036
      %2039 = vmatprep.subr.mxu0 0.0
      %2040 = vmatpush1.msra.mxu0 %v1361
      %2041 = vmatprep.subr.mxu0 0.0
      %2042 = vmatpush1.msra.mxu0 %v1360
      %2043 = vmatprep.subr.mxu0 0.0
      %2044 = vmatpush1.msra.mxu0 %v1359
      %2045 = vmatprep.subr.mxu0 0.0
      %2046 = vmatpush1.msra.mxu0 %v1358
      %2047 = vmatprep.subr.mxu0 0.0
      %2048 = vmatpush1.msra.mxu0 %v1357
      %2049 = vmatprep.subr.mxu0 0.0
      %2050 = vmatpush1.msra.mxu0 %v1356
      %2051 = vmatprep.subr.mxu0 0.0
      %2052 = vmatpush1.msra.mxu0 %v1355
      %2053 = vmatprep.subr.mxu0 0.0
      %2054 = vmatpush1.msra.mxu0 %v1354
      %2055 = vmatprep.subr.mxu0 0.0
      %2056 = vmatpush1.msra.mxu0 %v1353
      %2057 = vmatprep.subr.mxu0 0.0
      %2058 = vmatpush1.msra.mxu0 %v1352
      %2059 = vmatprep.subr.mxu0 0.0
      %2060 = vmatpush1.msra.mxu0 %v1351
      %2061 = vmatprep.subr.mxu0 0.0
      %2062 = vmatpush1.msra.mxu0 %v1350
      %2063 = vmatprep.subr.mxu0 0.0
      %2064 = vmatpush1.msra.mxu0 %v1349
      %2065 = vmatprep.subr.mxu0 0.0
      %2066 = vmatpush1.msra.mxu0 %v1348
      %2067 = vmatprep.subr.mxu0 0.0
      %2068 = vmatpush1.msra.mxu0 %v1347
      %2069 = vmatprep.subr.mxu0 0.0
      %2070 = vmatpush1.msra.mxu0 %v1346
      %2071 = vmatprep.subr.mxu0 0.0
      %2072 = vmatpush2.msra.mxu0 0.0
      %2073 = vmatprep.subr.mxu0 0.0
      %2074 = vmatpush2.msra.mxu0 0.0
      %2075 = vmatprep.subr.mxu0 0.0
      %2076 = vmatpush2.msra.mxu0 0.0
      %2077 = vmatprep.subr.mxu0 0.0
      %2078 = vmatpush2.msra.mxu0 0.0
      %2079 = vmatprep.subr.mxu0 0.0
      %2080 = vmatpush2.msra.mxu0 0.0
      %2081 = vmatprep.subr.mxu0 0.0
      %2082 = vmatpush2.msra.mxu0 0.0
      %2083 = vmatprep.subr.mxu0 0.0
      %2084 = vmatpush2.msra.mxu0 0.0
      %2085 = vmatprep.subr.mxu0 0.0
      %2086 = vmatpush2.msra.mxu0 0.0
      %2087 = vmatprep.subr.mxu0 0.0
      %2088 = vmatpush2.msra.mxu0 0.0
      %2089 = vmatprep.subr.mxu0 0.0
      %2090 = vmatpush2.msra.mxu0 0.0
      %2091 = vmatprep.subr.mxu0 0.0
      %2092 = vmatpush2.msra.mxu0 0.0
      %2093 = vmatprep.subr.mxu0 0.0
      %2094 = vmatpush2.msra.mxu0 0.0
      %2095 = vmatprep.subr.mxu0 0.0
      %2096 = vmatpush2.msra.mxu0 0.0
      %2097 = vmatprep.subr.mxu0 0.0
      %2098 = vmatpush2.msra.mxu0 0.0
      %2099 = vmatprep.subr.mxu0 0.0
      %2100 = vmatpush2.msra.mxu0 0.0
      %2101 = vmatprep.subr.mxu0 0.0
      %2102 = vmatpush2.msra.mxu0 0.0
      %2103 = vmatprep.mubr.f32.mxu0 0.0
      %2104 = vmatmul.mubr.f32.gmra.mxu0 %v2032
      %v2105 = vpop.f32.mrf.mxu0
      %v2106 = vadd.f32 %v2037, %v2105
      %v2107 = vpop.f32.mrf.mxu0
      %2108 = vdwg.mxu0
      %v2109 = vadd.f32 %v1952, %v2106
      %v2110 = vsel %vm1432, %v2109, 0.0
      %2111 = vadd.xlane.f32.xlu0 %v2110
      %v2112 = vpop.xlane.xlu0 %2111
      %v2113 = vmul.f32 %v2112, %v1928
      %v2114 = vsub.f32 %v2109, %v2113
      %v2115 = vmul.f32 %v2114, %v2114
      %v2116 = vsel %vm1432, %v2115, 0.0
      %2117 = vadd.xlane.f32.xlu0 %v2116
      %v2118 = vpop.xlane.xlu0 %2117
      %v2119 = vmul.f32 %v2118, %v1928
      %v2120 = vadd.f32 %v2119, 1e-05
      %v2121 = vrsqrt.pop %v2120
      %v2122 = vmul.f32 %v2114, %v2121
      %v2124 = vlaneseq
      %v2125 = vshrl.u32 %v2124, 7
      %v2126 = vsub.s32 0, %v2125
      %v2127 = vrot.slane %v1363, %v2126
      %v2129 = vmul.f32 %v2122, %v2127
      %v2131 = vlaneseq
      %v2132 = vshrl.u32 %v2131, 7
      %v2133 = vsub.s32 0, %v2132
      %v2134 = vrot.slane %v1364, %v2133
      %v2136 = vadd.f32 %v2129, %v2134
      %v2138 = vlaneseq
      %v2139 = vshrl.u32 %v2138, 7
      %v2140 = vsub.s32 0, %v2139
      %v2141 = vrot.slane %v1369, %v2140
      %2143 = vmatprep.subr.mxu0 0.0
      %2144 = vmatpush1.msra.mxu0 0.0
      %2145 = vmatprep.subr.mxu0 0.0
      %2146 = vmatpush1.msra.mxu0 0.0
      %2147 = vmatprep.subr.mxu0 0.0
      %2148 = vmatpush1.msra.mxu0 0.0
      %2149 = vmatprep.subr.mxu0 0.0
      %2150 = vmatpush1.msra.mxu0 0.0
      %2151 = vmatprep.subr.mxu0 0.0
      %2152 = vmatpush1.msra.mxu0 0.0
      %2153 = vmatprep.subr.mxu0 0.0
      %2154 = vmatpush1.msra.mxu0 0.0
      %2155 = vmatprep.subr.mxu0 0.0
      %2156 = vmatpush1.msra.mxu0 0.0
      %2157 = vmatprep.subr.mxu0 0.0
      %2158 = vmatpush1.msra.mxu0 0.0
      %2159 = vmatprep.subr.mxu0 0.0
      %2160 = vmatpush1.msra.mxu0 0.0
      %2161 = vmatprep.subr.mxu0 0.0
      %2162 = vmatpush1.msra.mxu0 0.0
      %2163 = vmatprep.subr.mxu0 0.0
      %2164 = vmatpush1.msra.mxu0 0.0
      %2165 = vmatprep.subr.mxu0 0.0
      %2166 = vmatpush1.msra.mxu0 0.0
      %2167 = vmatprep.subr.mxu0 0.0
      %2168 = vmatpush1.msra.mxu0 %v1368
      %2169 = vmatprep.subr.mxu0 0.0
      %2170 = vmatpush1.msra.mxu0 %v1367
      %2171 = vmatprep.subr.mxu0 0.0
      %2172 = vmatpush1.msra.mxu0 %v1366
      %2173 = vmatprep.subr.mxu0 0.0
      %2174 = vmatpush1.msra.mxu0 %v1365
      %2175 = vmatprep.subr.mxu0 0.0
      %2176 = vmatpush2.msra.mxu0 0.0
      %2177 = vmatprep.subr.mxu0 0.0
      %2178 = vmatpush2.msra.mxu0 0.0
      %2179 = vmatprep.subr.mxu0 0.0
      %2180 = vmatpush2.msra.mxu0 0.0
      %2181 = vmatprep.subr.mxu0 0.0
      %2182 = vmatpush2.msra.mxu0 0.0
      %2183 = vmatprep.subr.mxu0 0.0
      %2184 = vmatpush2.msra.mxu0 0.0
      %2185 = vmatprep.subr.mxu0 0.0
      %2186 = vmatpush2.msra.mxu0 0.0
      %2187 = vmatprep.subr.mxu0 0.0
      %2188 = vmatpush2.msra.mxu0 0.0
      %2189 = vmatprep.subr.mxu0 0.0
      %2190 = vmatpush2.msra.mxu0 0.0
      %2191 = vmatprep.subr.mxu0 0.0
      %2192 = vmatpush2.msra.mxu0 0.0
      %2193 = vmatprep.subr.mxu0 0.0
      %2194 = vmatpush2.msra.mxu0 0.0
      %2195 = vmatprep.subr.mxu0 0.0
      %2196 = vmatpush2.msra.mxu0 0.0
      %2197 = vmatprep.subr.mxu0 0.0
      %2198 = vmatpush2.msra.mxu0 0.0
      %2199 = vmatprep.subr.mxu0 0.0
      %2200 = vmatpush2.msra.mxu0 0.0
      %2201 = vmatprep.subr.mxu0 0.0
      %2202 = vmatpush2.msra.mxu0 0.0
      %2203 = vmatprep.subr.mxu0 0.0
      %2204 = vmatpush2.msra.mxu0 0.0
      %2205 = vmatprep.subr.mxu0 0.0
      %2206 = vmatpush2.msra.mxu0 0.0
      %2207 = vmatprep.mubr.f32.mxu0 0.0
      %2208 = vmatmul.mubr.f32.gmra.mxu0 %v1513
      %v2209 = vpop.f32.mrf.mxu0
      %v2210 = vadd.f32 %v2141, %v2209
      %v2211 = vpop.f32.mrf.mxu0
      %2212 = vmatprep.mubr.f32.mxu0 0.0
      %2213 = vmatmul.mubr.f32.gmra.mxu0 %v1516
      %v2214 = vpop.f32.mrf.mxu0
      %v2215 = vadd.f32 %v2141, %v2214
      %v2216 = vpop.f32.mrf.mxu0
      %2217 = vdwg.mxu0
      %v2219 = vlaneseq
      %v2220 = vshrl.u32 %v2219, 7
      %v2221 = vsub.s32 0, %v2220
      %v2222 = vrot.slane %v1374, %v2221
      %v2225 = vsel %vm1432, %v2136, 0
      %2227 = vmatprep.subr.mxu0 0.0
      %2228 = vmatpush1.msra.mxu0 0.0
      %2229 = vmatprep.subr.mxu0 0.0
      %2230 = vmatpush1.msra.mxu0 0.0
      %2231 = vmatprep.subr.mxu0 0.0
      %2232 = vmatpush1.msra.mxu0 0.0
      %2233 = vmatprep.subr.mxu0 0.0
      %2234 = vmatpush1.msra.mxu0 0.0
      %2235 = vmatprep.subr.mxu0 0.0
      %2236 = vmatpush1.msra.mxu0 0.0
      %2237 = vmatprep.subr.mxu0 0.0
      %2238 = vmatpush1.msra.mxu0 0.0
      %2239 = vmatprep.subr.mxu0 0.0
      %2240 = vmatpush1.msra.mxu0 0.0
      %2241 = vmatprep.subr.mxu0 0.0
      %2242 = vmatpush1.msra.mxu0 0.0
      %2243 = vmatprep.subr.mxu0 0.0
      %2244 = vmatpush1.msra.mxu0 0.0
      %2245 = vmatprep.subr.mxu0 0.0
      %2246 = vmatpush1.msra.mxu0 0.0
      %2247 = vmatprep.subr.mxu0 0.0
      %2248 = vmatpush1.msra.mxu0 0.0
      %2249 = vmatprep.subr.mxu0 0.0
      %2250 = vmatpush1.msra.mxu0 0.0
      %2251 = vmatprep.subr.mxu0 0.0
      %2252 = vmatpush1.msra.mxu0 %v1373
      %2253 = vmatprep.subr.mxu0 0.0
      %2254 = vmatpush1.msra.mxu0 %v1372
      %2255 = vmatprep.subr.mxu0 0.0
      %2256 = vmatpush1.msra.mxu0 %v1371
      %2257 = vmatprep.subr.mxu0 0.0
      %2258 = vmatpush1.msra.mxu0 %v1370
      %2259 = vmatprep.subr.mxu0 0.0
      %2260 = vmatpush2.msra.mxu0 0.0
      %2261 = vmatprep.subr.mxu0 0.0
      %2262 = vmatpush2.msra.mxu0 0.0
      %2263 = vmatprep.subr.mxu0 0.0
      %2264 = vmatpush2.msra.mxu0 0.0
      %2265 = vmatprep.subr.mxu0 0.0
      %2266 = vmatpush2.msra.mxu0 0.0
      %2267 = vmatprep.subr.mxu0 0.0
      %2268 = vmatpush2.msra.mxu0 0.0
      %2269 = vmatprep.subr.mxu0 0.0
      %2270 = vmatpush2.msra.mxu0 0.0
      %2271 = vmatprep.subr.mxu0 0.0
      %2272 = vmatpush2.msra.mxu0 0.0
      %2273 = vmatprep.subr.mxu0 0.0
      %2274 = vmatpush2.msra.mxu0 0.0
      %2275 = vmatprep.subr.mxu0 0.0
      %2276 = vmatpush2.msra.mxu0 0.0
      %2277 = vmatprep.subr.mxu0 0.0
      %2278 = vmatpush2.msra.mxu0 0.0
      %2279 = vmatprep.subr.mxu0 0.0
      %2280 = vmatpush2.msra.mxu0 0.0
      %2281 = vmatprep.subr.mxu0 0.0
      %2282 = vmatpush2.msra.mxu0 0.0
      %2283 = vmatprep.subr.mxu0 0.0
      %2284 = vmatpush2.msra.mxu0 0.0
      %2285 = vmatprep.subr.mxu0 0.0
      %2286 = vmatpush2.msra.mxu0 0.0
      %2287 = vmatprep.subr.mxu0 0.0
      %2288 = vmatpush2.msra.mxu0 0.0
      %2289 = vmatprep.subr.mxu0 0.0
      %2290 = vmatpush2.msra.mxu0 0.0
      %2291 = vmatprep.mubr.f32.mxu0 0.0
      %2292 = vmatmul.mubr.f32.gmra.mxu0 %v2225
      %v2293 = vpop.f32.mrf.mxu0
      %v2294 = vadd.f32 %v2222, %v2293
      %v2295 = vpop.f32.mrf.mxu0
      %2296 = vdwg.mxu0
      %v2298 = vlaneseq
      %v2299 = vshrl.u32 %v2298, 7
      %v2300 = vsub.s32 0, %v2299
      %v2301 = vrot.slane %v1379, %v2300
      %2303 = vmatprep.subr.mxu0 0.0
      %2304 = vmatpush1.msra.mxu0 0.0
      %2305 = vmatprep.subr.mxu0 0.0
      %2306 = vmatpush1.msra.mxu0 0.0
      %2307 = vmatprep.subr.mxu0 0.0
      %2308 = vmatpush1.msra.mxu0 0.0
      %2309 = vmatprep.subr.mxu0 0.0
      %2310 = vmatpush1.msra.mxu0 0.0
      %2311 = vmatprep.subr.mxu0 0.0
      %2312 = vmatpush1.msra.mxu0 0.0
      %2313 = vmatprep.subr.mxu0 0.0
      %2314 = vmatpush1.msra.mxu0 0.0
      %2315 = vmatprep.subr.mxu0 0.0
      %2316 = vmatpush1.msra.mxu0 0.0
      %2317 = vmatprep.subr.mxu0 0.0
      %2318 = vmatpush1.msra.mxu0 0.0
      %2319 = vmatprep.subr.mxu0 0.0
      %2320 = vmatpush1.msra.mxu0 0.0
      %2321 = vmatprep.subr.mxu0 0.0
      %2322 = vmatpush1.msra.mxu0 0.0
      %2323 = vmatprep.subr.mxu0 0.0
      %2324 = vmatpush1.msra.mxu0 0.0
      %2325 = vmatprep.subr.mxu0 0.0
      %2326 = vmatpush1.msra.mxu0 0.0
      %2327 = vmatprep.subr.mxu0 0.0
      %2328 = vmatpush1.msra.mxu0 %v1378
      %2329 = vmatprep.subr.mxu0 0.0
      %2330 = vmatpush1.msra.mxu0 %v1377
      %2331 = vmatprep.subr.mxu0 0.0
      %2332 = vmatpush1.msra.mxu0 %v1376
      %2333 = vmatprep.subr.mxu0 0.0
      %2334 = vmatpush1.msra.mxu0 %v1375
      %2335 = vmatprep.subr.mxu0 0.0
      %2336 = vmatpush2.msra.mxu0 0.0
      %2337 = vmatprep.subr.mxu0 0.0
      %2338 = vmatpush2.msra.mxu0 0.0
      %2339 = vmatprep.subr.mxu0 0.0
      %2340 = vmatpush2.msra.mxu0 0.0
      %2341 = vmatprep.subr.mxu0 0.0
      %2342 = vmatpush2.msra.mxu0 0.0
      %2343 = vmatprep.subr.mxu0 0.0
      %2344 = vmatpush2.msra.mxu0 0.0
      %2345 = vmatprep.subr.mxu0 0.0
      %2346 = vmatpush2.msra.mxu0 0.0
      %2347 = vmatprep.subr.mxu0 0.0
      %2348 = vmatpush2.msra.mxu0 0.0
      %2349 = vmatprep.subr.mxu0 0.0
      %2350 = vmatpush2.msra.mxu0 0.0
      %2351 = vmatprep.subr.mxu0 0.0
      %2352 = vmatpush2.msra.mxu0 0.0
      %2353 = vmatprep.subr.mxu0 0.0
      %2354 = vmatpush2.msra.mxu0 0.0
      %2355 = vmatprep.subr.mxu0 0.0
      %2356 = vmatpush2.msra.mxu0 0.0
      %2357 = vmatprep.subr.mxu0 0.0
      %2358 = vmatpush2.msra.mxu0 0.0
      %2359 = vmatprep.subr.mxu0 0.0
      %2360 = vmatpush2.msra.mxu0 0.0
      %2361 = vmatprep.subr.mxu0 0.0
      %2362 = vmatpush2.msra.mxu0 0.0
      %2363 = vmatprep.subr.mxu0 0.0
      %2364 = vmatpush2.msra.mxu0 0.0
      %2365 = vmatprep.subr.mxu0 0.0
      %2366 = vmatpush2.msra.mxu0 0.0
      %2367 = vmatprep.mubr.f32.mxu0 0.0
      %2368 = vmatmul.mubr.f32.gmra.mxu0 %v2225
      %v2369 = vpop.f32.mrf.mxu0
      %v2370 = vadd.f32 %v2301, %v2369
      %v2371 = vpop.f32.mrf.mxu0
      %2372 = vdwg.mxu0
      %v2374 = vsel %vm1432, %v2210, 0
      %v2377 = vsel %vm1432, %v2215, 0
      %v2380 = vsel %vm1432, %v2294, 0
      %2382 = vmatprep.subr.mxu0 0.0
      %2383 = vmatpush1.xpose.msra.mxu0 0.0
      %2384 = vmatprep.subr.mxu0 0.0
      %2385 = vmatpush1.xpose.msra.mxu0 0.0
      %2386 = vmatprep.subr.mxu0 0.0
      %2387 = vmatpush1.xpose.msra.mxu0 0.0
      %2388 = vmatprep.subr.mxu0 0.0
      %2389 = vmatpush1.xpose.msra.mxu0 0.0
      %2390 = vmatprep.subr.mxu0 0.0
      %2391 = vmatpush1.xpose.msra.mxu0 0.0
      %2392 = vmatprep.subr.mxu0 0.0
      %2393 = vmatpush1.xpose.msra.mxu0 0.0
      %2394 = vmatprep.subr.mxu0 0.0
      %2395 = vmatpush1.xpose.msra.mxu0 0.0
      %2396 = vmatprep.subr.mxu0 0.0
      %2397 = vmatpush1.xpose.msra.mxu0 0.0
      %2398 = vmatprep.subr.mxu0 0.0
      %2399 = vmatpush1.xpose.msra.mxu0 0.0
      %2400 = vmatprep.subr.mxu0 0.0
      %2401 = vmatpush1.xpose.msra.mxu0 0.0
      %2402 = vmatprep.subr.mxu0 0.0
      %2403 = vmatpush1.xpose.msra.mxu0 0.0
      %2404 = vmatprep.subr.mxu0 0.0
      %2405 = vmatpush1.xpose.msra.mxu0 0.0
      %2406 = vmatprep.subr.mxu0 0.0
      %2407 = vmatpush1.xpose.msra.mxu0 0.0
      %2408 = vmatprep.subr.mxu0 0.0
      %2409 = vmatpush1.xpose.msra.mxu0 0.0
      %2410 = vmatprep.subr.mxu0 0.0
      %2411 = vmatpush1.xpose.msra.mxu0 0.0
      %2412 = vmatprep.subr.mxu0 0.0
      %2413 = vmatpush1.xpose.msra.mxu0 %v2380
      %2414 = vmatprep.subr.mxu0 0.0
      %2415 = vmatpush2.xpose.msra.mxu0 0.0
      %2416 = vmatprep.subr.mxu0 0.0
      %2417 = vmatpush2.xpose.msra.mxu0 0.0
      %2418 = vmatprep.subr.mxu0 0.0
      %2419 = vmatpush2.xpose.msra.mxu0 0.0
      %2420 = vmatprep.subr.mxu0 0.0
      %2421 = vmatpush2.xpose.msra.mxu0 0.0
      %2422 = vmatprep.subr.mxu0 0.0
      %2423 = vmatpush2.xpose.msra.mxu0 0.0
      %2424 = vmatprep.subr.mxu0 0.0
      %2425 = vmatpush2.xpose.msra.mxu0 0.0
      %2426 = vmatprep.subr.mxu0 0.0
      %2427 = vmatpush2.xpose.msra.mxu0 0.0
      %2428 = vmatprep.subr.mxu0 0.0
      %2429 = vmatpush2.xpose.msra.mxu0 0.0
      %2430 = vmatprep.subr.mxu0 0.0
      %2431 = vmatpush2.xpose.msra.mxu0 0.0
      %2432 = vmatprep.subr.mxu0 0.0
      %2433 = vmatpush2.xpose.msra.mxu0 0.0
      %2434 = vmatprep.subr.mxu0 0.0
      %2435 = vmatpush2.xpose.msra.mxu0 0.0
      %2436 = vmatprep.subr.mxu0 0.0
      %2437 = vmatpush2.xpose.msra.mxu0 0.0
      %2438 = vmatprep.subr.mxu0 0.0
      %2439 = vmatpush2.xpose.msra.mxu0 0.0
      %2440 = vmatprep.subr.mxu0 0.0
      %2441 = vmatpush2.xpose.msra.mxu0 0.0
      %2442 = vmatprep.subr.mxu0 0.0
      %2443 = vmatpush2.xpose.msra.mxu0 0.0
      %2444 = vmatprep.subr.mxu0 0.0
      %2445 = vmatpush2.xpose.msra.mxu0 0.0
      %2446 = vmatprep.mubr.f32.mxu0 0.0
      %2447 = vmatmul.mubr.f32.gmra.mxu0 %v2374
      %v2448 = vpop.f32.mrf.mxu0
      %v2449 = vadd.f32 0.0, %v2448
      %v2450 = vpop.f32.mrf.mxu0
      %2451 = vmatprep.mubr.f32.mxu0 0.0
      %2452 = vmatmul.mubr.f32.gmra.mxu0 %v2377
      %v2453 = vpop.f32.mrf.mxu0
      %v2454 = vadd.f32 0.0, %v2453
      %v2455 = vpop.f32.mrf.mxu0
      %2456 = vdwg.mxu0
      %v2457 = vmul.f32 %v2449, 0.17677669
      %v2458 = vmul.f32 %v2454, 0.17677669
      %vm2459 = vcmask 64512
      %v2460 = vsel %vm2459, %v2457, -inf
      %2461 = vmax.xlane.f32.xlu0 %v2460
      %v2462 = vpop.xlane.xlu0 %2461
      %v2463 = vsel %vm2459, %v2458, -inf
      %2464 = vmax.xlane.f32.xlu0 %v2463
      %v2465 = vpop.xlane.xlu0 %2464
      %v2466 = vsub.f32 %v2457, %v2462
      %v2467 = vsub.f32 %v2458, %v2465
      %v2468 = vmul.f32 %v2466, 1.442695
      %v2469 = vpow.pop %v2468
      %v2470 = vmul.f32 %v2467, 1.442695
      %v2471 = vpow.pop %v2470
      %v2472 = vsel %vm2459, %v2469, 0.0
      %2473 = vadd.xlane.f32.xlu0 %v2472
      %v2474 = vpop.xlane.xlu0 %2473
      %v2475 = vsel %vm2459, %v2471, 0.0
      %2476 = vadd.xlane.f32.xlu0 %v2475
      %v2477 = vpop.xlane.xlu0 %2476
      %v2478 = vrcp.pop %v2474
      %v2479 = vmul.f32 %v2469, %v2478
      %v2480 = vrcp.pop %v2477
      %v2481 = vmul.f32 %v2471, %v2480
      %v2483 = vsel %vm2459, %v2479, 0
      %v2486 = vsel %vm2459, %v2481, 0
      %2488 = vmatprep.subr.mxu0 0.0
      %2489 = vmatpush1.msra.mxu0 0.0
      %2490 = vmatprep.subr.mxu0 0.0
      %2491 = vmatpush1.msra.mxu0 0.0
      %2492 = vmatprep.subr.mxu0 0.0
      %2493 = vmatpush1.msra.mxu0 0.0
      %2494 = vmatprep.subr.mxu0 0.0
      %2495 = vmatpush1.msra.mxu0 0.0
      %2496 = vmatprep.subr.mxu0 0.0
      %2497 = vmatpush1.msra.mxu0 0.0
      %2498 = vmatprep.subr.mxu0 0.0
      %2499 = vmatpush1.msra.mxu0 0.0
      %2500 = vmatprep.subr.mxu0 0.0
      %2501 = vmatpush1.msra.mxu0 0.0
      %2502 = vmatprep.subr.mxu0 0.0
      %2503 = vmatpush1.msra.mxu0 0.0
      %2504 = vmatprep.subr.mxu0 0.0
      %2505 = vmatpush1.msra.mxu0 0.0
      %2506 = vmatprep.subr.mxu0 0.0
      %2507 = vmatpush1.msra.mxu0 0.0
      %2508 = vmatprep.subr.mxu0 0.0
      %2509 = vmatpush1.msra.mxu0 0.0
      %2510 = vmatprep.subr.mxu0 0.0
      %2511 = vmatpush1.msra.mxu0 0.0
      %2512 = vmatprep.subr.mxu0 0.0
      %2513 = vmatpush1.msra.mxu0 0.0
      %2514 = vmatprep.subr.mxu0 0.0
      %2515 = vmatpush1.msra.mxu0 0.0
      %2516 = vmatprep.subr.mxu0 0.0
      %2517 = vmatpush1.msra.mxu0 0.0
      %2518 = vmatprep.subr.mxu0 0.0
      %2519 = vmatpush1.msra.mxu0 %v2370
      %2520 = vmatprep.subr.mxu0 0.0
      %2521 = vmatpush2.msra.mxu0 0.0
      %2522 = vmatprep.subr.mxu0 0.0
      %2523 = vmatpush2.msra.mxu0 0.0
      %2524 = vmatprep.subr.mxu0 0.0
      %2525 = vmatpush2.msra.mxu0 0.0
      %2526 = vmatprep.subr.mxu0 0.0
      %2527 = vmatpush2.msra.mxu0 0.0
      %2528 = vmatprep.subr.mxu0 0.0
      %2529 = vmatpush2.msra.mxu0 0.0
      %2530 = vmatprep.subr.mxu0 0.0
      %2531 = vmatpush2.msra.mxu0 0.0
      %2532 = vmatprep.subr.mxu0 0.0
      %2533 = vmatpush2.msra.mxu0 0.0
      %2534 = vmatprep.subr.mxu0 0.0
      %2535 = vmatpush2.msra.mxu0 0.0
      %2536 = vmatprep.subr.mxu0 0.0
      %2537 = vmatpush2.msra.mxu0 0.0
      %2538 = vmatprep.subr.mxu0 0.0
      %2539 = vmatpush2.msra.mxu0 0.0
      %2540 = vmatprep.subr.mxu0 0.0
      %2541 = vmatpush2.msra.mxu0 0.0
      %2542 = vmatprep.subr.mxu0 0.0
      %2543 = vmatpush2.msra.mxu0 0.0
      %2544 = vmatprep.subr.mxu0 0.0
      %2545 = vmatpush2.msra.mxu0 0.0
      %2546 = vmatprep.subr.mxu0 0.0
      %2547 = vmatpush2.msra.mxu0 0.0
      %2548 = vmatprep.subr.mxu0 0.0
      %2549 = vmatpush2.msra.mxu0 0.0
      %2550 = vmatprep.subr.mxu0 0.0
      %2551 = vmatpush2.msra.mxu0 0.0
      %2552 = vmatprep.mubr.f32.mxu0 0.0
      %2553 = vmatmul.mubr.f32.gmra.mxu0 %v2483
      %v2554 = vpop.f32.mrf.mxu0
      %v2555 = vadd.f32 0.0, %v2554
      %v2556 = vpop.f32.mrf.mxu0
      %2557 = vmatprep.mubr.f32.mxu0 0.0
      %2558 = vmatmul.mubr.f32.gmra.mxu0 %v2486
      %v2559 = vpop.f32.mrf.mxu0
      %v2560 = vadd.f32 0.0, %v2559
      %v2561 = vpop.f32.mrf.mxu0
      %2562 = vdwg.mxu0
      %v2564 = vlaneseq
      %v2565 = vshrl.u32 %v2564, 7
      %v2566 = vsub.s32 0, %v2565
      %v2567 = vrot.slane %v1384, %v2566
      %v2570 = vsel %vm1432, %v2555, 0
      %v2573 = vsel %vm1432, %v2560, 0
      %2575 = vmatprep.subr.mxu0 0.0
      %2576 = vmatpush1.msra.mxu0 0.0
      %2577 = vmatprep.subr.mxu0 0.0
      %2578 = vmatpush1.msra.mxu0 0.0
      %2579 = vmatprep.subr.mxu0 0.0
      %2580 = vmatpush1.msra.mxu0 0.0
      %2581 = vmatprep.subr.mxu0 0.0
      %2582 = vmatpush1.msra.mxu0 0.0
      %2583 = vmatprep.subr.mxu0 0.0
      %2584 = vmatpush1.msra.mxu0 0.0
      %2585 = vmatprep.subr.mxu0 0.0
      %2586 = vmatpush1.msra.mxu0 0.0
      %2587 = vmatprep.subr.mxu0 0.0
      %2588 = vmatpush1.msra.mxu0 0.0
      %2589 = vmatprep.subr.mxu0 0.0
      %2590 = vmatpush1.msra.mxu0 0.0
      %2591 = vmatprep.subr.mxu0 0.0
      %2592 = vmatpush1.msra.mxu0 0.0
      %2593 = vmatprep.subr.mxu0 0.0
      %2594 = vmatpush1.msra.mxu0 0.0
      %2595 = vmatprep.subr.mxu0 0.0
      %2596 = vmatpush1.msra.mxu0 0.0
      %2597 = vmatprep.subr.mxu0 0.0
      %2598 = vmatpush1.msra.mxu0 0.0
      %2599 = vmatprep.subr.mxu0 0.0
      %2600 = vmatpush1.msra.mxu0 %v1383
      %2601 = vmatprep.subr.mxu0 0.0
      %2602 = vmatpush1.msra.mxu0 %v1382
      %2603 = vmatprep.subr.mxu0 0.0
      %2604 = vmatpush1.msra.mxu0 %v1381
      %2605 = vmatprep.subr.mxu0 0.0
      %2606 = vmatpush1.msra.mxu0 %v1380
      %2607 = vmatprep.subr.mxu0 0.0
      %2608 = vmatpush2.msra.mxu0 0.0
      %2609 = vmatprep.subr.mxu0 0.0
      %2610 = vmatpush2.msra.mxu0 0.0
      %2611 = vmatprep.subr.mxu0 0.0
      %2612 = vmatpush2.msra.mxu0 0.0
      %2613 = vmatprep.subr.mxu0 0.0
      %2614 = vmatpush2.msra.mxu0 0.0
      %2615 = vmatprep.subr.mxu0 0.0
      %2616 = vmatpush2.msra.mxu0 0.0
      %2617 = vmatprep.subr.mxu0 0.0
      %2618 = vmatpush2.msra.mxu0 0.0
      %2619 = vmatprep.subr.mxu0 0.0
      %2620 = vmatpush2.msra.mxu0 0.0
      %2621 = vmatprep.subr.mxu0 0.0
      %2622 = vmatpush2.msra.mxu0 0.0
      %2623 = vmatprep.subr.mxu0 0.0
      %2624 = vmatpush2.msra.mxu0 0.0
      %2625 = vmatprep.subr.mxu0 0.0
      %2626 = vmatpush2.msra.mxu0 0.0
      %2627 = vmatprep.subr.mxu0 0.0
      %2628 = vmatpush2.msra.mxu0 0.0
      %2629 = vmatprep.subr.mxu0 0.0
      %2630 = vmatpush2.msra.mxu0 0.0
      %2631 = vmatprep.subr.mxu0 0.0
      %2632 = vmatpush2.msra.mxu0 0.0
      %2633 = vmatprep.subr.mxu0 0.0
      %2634 = vmatpush2.msra.mxu0 0.0
      %2635 = vmatprep.subr.mxu0 0.0
      %2636 = vmatpush2.msra.mxu0 0.0
      %2637 = vmatprep.subr.mxu0 0.0
      %2638 = vmatpush2.msra.mxu0 0.0
      %2639 = vmatprep.mubr.f32.mxu0 0.0
      %2640 = vmatmul.mubr.f32.gmra.mxu0 %v2570
      %v2641 = vpop.f32.mrf.mxu0
      %v2642 = vadd.f32 %v2567, %v2641
      %v2643 = vpop.f32.mrf.mxu0
      %2644 = vmatprep.mubr.f32.mxu0 0.0
      %2645 = vmatmul.mubr.f32.gmra.mxu0 %v2573
      %v2646 = vpop.f32.mrf.mxu0
      %v2647 = vadd.f32 %v2567, %v2646
      %v2648 = vpop.f32.mrf.mxu0
      %2649 = vdwg.mxu0
      %v2650 = vadd.f32 %v1420, %v2642
      %v2651 = vadd.f32 %v1421, %v2647
      %v2652 = vrot.slane %v2136, 1
      %v2653 = vsel %vm1432, %v2652, 0
      %2655 = vmatprep.subr.mxu0 0.0
      %2656 = vmatpush1.msra.mxu0 0.0
      %2657 = vmatprep.subr.mxu0 0.0
      %2658 = vmatpush1.msra.mxu0 0.0
      %2659 = vmatprep.subr.mxu0 0.0
      %2660 = vmatpush1.msra.mxu0 0.0
      %2661 = vmatprep.subr.mxu0 0.0
      %2662 = vmatpush1.msra.mxu0 0.0
      %2663 = vmatprep.subr.mxu0 0.0
      %2664 = vmatpush1.msra.mxu0 0.0
      %2665 = vmatprep.subr.mxu0 0.0
      %2666 = vmatpush1.msra.mxu0 0.0
      %2667 = vmatprep.subr.mxu0 0.0
      %2668 = vmatpush1.msra.mxu0 0.0
      %2669 = vmatprep.subr.mxu0 0.0
      %2670 = vmatpush1.msra.mxu0 0.0
      %2671 = vmatprep.subr.mxu0 0.0
      %2672 = vmatpush1.msra.mxu0 0.0
      %2673 = vmatprep.subr.mxu0 0.0
      %2674 = vmatpush1.msra.mxu0 0.0
      %2675 = vmatprep.subr.mxu0 0.0
      %2676 = vmatpush1.msra.mxu0 0.0
      %2677 = vmatprep.subr.mxu0 0.0
      %2678 = vmatpush1.msra.mxu0 0.0
      %2679 = vmatprep.subr.mxu0 0.0
      %2680 = vmatpush1.msra.mxu0 %v1393
      %2681 = vmatprep.subr.mxu0 0.0
      %2682 = vmatpush1.msra.mxu0 %v1392
      %2683 = vmatprep.subr.mxu0 0.0
      %2684 = vmatpush1.msra.mxu0 %v1391
      %2685 = vmatprep.subr.mxu0 0.0
      %2686 = vmatpush1.msra.mxu0 %v1390
      %2687 = vmatprep.subr.mxu0 0.0
      %2688 = vmatpush2.msra.mxu0 0.0
      %2689 = vmatprep.subr.mxu0 0.0
      %2690 = vmatpush2.msra.mxu0 0.0
      %2691 = vmatprep.subr.mxu0 0.0
      %2692 = vmatpush2.msra.mxu0 0.0
      %2693 = vmatprep.subr.mxu0 0.0
      %2694 = vmatpush2.msra.mxu0 0.0
      %2695 = vmatprep.subr.mxu0 0.0
      %2696 = vmatpush2.msra.mxu0 0.0
      %2697 = vmatprep.subr.mxu0 0.0
      %2698 = vmatpush2.msra.mxu0 0.0
      %2699 = vmatprep.subr.mxu0 0.0
      %2700 = vmatpush2.msra.mxu0 0.0
      %2701 = vmatprep.subr.mxu0 0.0
      %2702 = vmatpush2.msra.mxu0 0.0
      %2703 = vmatprep.subr.mxu0 0.0
      %2704 = vmatpush2.msra.mxu0 0.0
      %2705 = vmatprep.subr.mxu0 0.0
      %2706 = vmatpush2.msra.mxu0 0.0
      %2707 = vmatprep.subr.mxu0 0.0
      %2708 = vmatpush2.msra.mxu0 0.0
      %2709 = vmatprep.subr.mxu0 0.0
      %2710 = vmatpush2.msra.mxu0 0.0
      %2711 = vmatprep.subr.mxu0 0.0
      %2712 = vmatpush2.msra.mxu0 0.0
      %2713 = vmatprep.subr.mxu0 0.0
      %2714 = vmatpush2.msra.mxu0 0.0
      %2715 = vmatprep.subr.mxu0 0.0
      %2716 = vmatpush2.msra.mxu0 0.0
      %2717 = vmatprep.subr.mxu0 0.0
      %2718 = vmatpush2.msra.mxu0 0.0
      %2719 = vmatprep.mubr.f32.mxu0 0.0
      %2720 = vmatmul.mubr.f32.gmra.mxu0 %v2653
      %v2721 = vpop.f32.mrf.mxu0
      %v2722 = vadd.f32 %v1394, %v2721
      %v2723 = vpop.f32.mrf.mxu0
      %2724 = vdwg.mxu0
      %v2725 = vmax.f32 %v2722, 0.0
      %v2727 = vsel %vm1432, %v2725, 0
      %2729 = vmatprep.subr.mxu0 0.0
      %2730 = vmatpush1.msra.mxu0 0.0
      %2731 = vmatprep.subr.mxu0 0.0
      %2732 = vmatpush1.msra.mxu0 0.0
      %2733 = vmatprep.subr.mxu0 0.0
      %2734 = vmatpush1.msra.mxu0 0.0
      %2735 = vmatprep.subr.mxu0 0.0
      %2736 = vmatpush1.msra.mxu0 0.0
      %2737 = vmatprep.subr.mxu0 0.0
      %2738 = vmatpush1.msra.mxu0 0.0
      %2739 = vmatprep.subr.mxu0 0.0
      %2740 = vmatpush1.msra.mxu0 0.0
      %2741 = vmatprep.subr.mxu0 0.0
      %2742 = vmatpush1.msra.mxu0 0.0
      %2743 = vmatprep.subr.mxu0 0.0
      %2744 = vmatpush1.msra.mxu0 0.0
      %2745 = vmatprep.subr.mxu0 0.0
      %2746 = vmatpush1.msra.mxu0 0.0
      %2747 = vmatprep.subr.mxu0 0.0
      %2748 = vmatpush1.msra.mxu0 0.0
      %2749 = vmatprep.subr.mxu0 0.0
      %2750 = vmatpush1.msra.mxu0 0.0
      %2751 = vmatprep.subr.mxu0 0.0
      %2752 = vmatpush1.msra.mxu0 0.0
      %2753 = vmatprep.subr.mxu0 0.0
      %2754 = vmatpush1.msra.mxu0 %v1398
      %2755 = vmatprep.subr.mxu0 0.0
      %2756 = vmatpush1.msra.mxu0 %v1397
      %2757 = vmatprep.subr.mxu0 0.0
      %2758 = vmatpush1.msra.mxu0 %v1396
      %2759 = vmatprep.subr.mxu0 0.0
      %2760 = vmatpush1.msra.mxu0 %v1395
      %2761 = vmatprep.subr.mxu0 0.0
      %2762 = vmatpush2.msra.mxu0 0.0
      %2763 = vmatprep.subr.mxu0 0.0
      %2764 = vmatpush2.msra.mxu0 0.0
      %2765 = vmatprep.subr.mxu0 0.0
      %2766 = vmatpush2.msra.mxu0 0.0
      %2767 = vmatprep.subr.mxu0 0.0
      %2768 = vmatpush2.msra.mxu0 0.0
      %2769 = vmatprep.subr.mxu0 0.0
      %2770 = vmatpush2.msra.mxu0 0.0
      %2771 = vmatprep.subr.mxu0 0.0
      %2772 = vmatpush2.msra.mxu0 0.0
      %2773 = vmatprep.subr.mxu0 0.0
      %2774 = vmatpush2.msra.mxu0 0.0
      %2775 = vmatprep.subr.mxu0 0.0
      %2776 = vmatpush2.msra.mxu0 0.0
      %2777 = vmatprep.subr.mxu0 0.0
      %2778 = vmatpush2.msra.mxu0 0.0
      %2779 = vmatprep.subr.mxu0 0.0
      %2780 = vmatpush2.msra.mxu0 0.0
      %2781 = vmatprep.subr.mxu0 0.0
      %2782 = vmatpush2.msra.mxu0 0.0
      %2783 = vmatprep.subr.mxu0 0.0
      %2784 = vmatpush2.msra.mxu0 0.0
      %2785 = vmatprep.subr.mxu0 0.0
      %2786 = vmatpush2.msra.mxu0 0.0
      %2787 = vmatprep.subr.mxu0 0.0
      %2788 = vmatpush2.msra.mxu0 0.0
      %2789 = vmatprep.subr.mxu0 0.0
      %2790 = vmatpush2.msra.mxu0 0.0
      %2791 = vmatprep.subr.mxu0 0.0
      %2792 = vmatpush2.msra.mxu0 0.0
      %2793 = vmatprep.mubr.f32.mxu0 0.0
      %2794 = vmatmul.mubr.f32.gmra.mxu0 %v2727
      %v2795 = vpop.f32.mrf.mxu0
      %v2796 = vadd.f32 %v1399, %v2795
      %v2797 = vpop.f32.mrf.mxu0
      %2798 = vdwg.mxu0
      %v2799 = vld [vmem:[%s9] sm:$0xff]
      %v2800 = vld [vmem:[%s9 + $0x8] sm:$0xff]
      %v2801 = vld [vmem:[%s9 + $0x10] sm:$0xff]
      %v2802 = vld [vmem:[%s9 + $0x18] sm:$0xff]
      %v2803 = vld [vmem:[%s9 + $0x20] sm:$0xff]
      %v2804 = vld [vmem:[%s9 + $0x28] sm:$0xff]
      %v2805 = vld [vmem:[%s9 + $0x30] sm:$0xff]
      %v2806 = vld [vmem:[%s9 + $0x38] sm:$0xff]
      %v2807 = vld [vmem:[%s9 + $0x40] sm:$0xff]
      %v2808 = vld [vmem:[%s9 + $0x48] sm:$0xff]
      %v2809 = vld [vmem:[%s9 + $0x50] sm:$0xff]
      %v2810 = vld [vmem:[%s9 + $0x58] sm:$0xff]
      %v2811 = vld [vmem:[%s9 + $0x60] sm:$0xff]
      %v2812 = vld [vmem:[%s9 + $0x68] sm:$0xff]
      %v2813 = vld [vmem:[%s9 + $0x70] sm:$0xff]
      %v2814 = vld [vmem:[%s9 + $0x78] sm:$0xff]
      %v2815 = vld [vmem:[%s9 + $0x80] sm:$0xff]
      %v2816 = vld [vmem:[%s9 + $0x88] sm:$0xff]
      %v2817 = vld [vmem:[%s9 + $0x90] sm:$0xff]
      %v2818 = vld [vmem:[%s9 + $0x98] sm:$0xff]
      %v2819 = vld [vmem:[%s9 + $0xa0] sm:$0xff]
      %v2820 = vld [vmem:[%s9 + $0xa8] sm:$0xff]
      %v2821 = vld [vmem:[%s9 + $0xb0] sm:$0xff]
      %v2822 = vld [vmem:[%s9 + $0xb8] sm:$0xff]
      %v2823 = vld [vmem:[%s9 + $0xc0] sm:$0xff]
      %v2824 = vld [vmem:[%s9 + $0xc8] sm:$0xff]
      %v2825 = vld [vmem:[%s9 + $0xd0] sm:$0xff]
      %v2826 = vld [vmem:[%s9 + $0xd8] sm:$0xff]
      %v2827 = vld [vmem:[%s9 + $0xe0] sm:$0xff]
      %v2828 = vld [vmem:[%s9 + $0xe8] sm:$0xff]
      %v2829 = vld [vmem:[%s9 + $0xf0] sm:$0xff]
      %v2830 = vld [vmem:[%s9 + $0xf8] sm:$0xff]
      %v2832 = vsel %vm1760, %v2799, 0
      %v2835 = vsel %vm1760, %v2800, 0
      %v2838 = vsel %vm1760, %v2801, 0
      %v2841 = vsel %vm1760, %v2802, 0
      %v2844 = vsel %vm1760, %v2803, 0
      %v2847 = vsel %vm1760, %v2804, 0
      %v2850 = vsel %vm1760, %v2805, 0
      %v2853 = vsel %vm1760, %v2806, 0
      %v2856 = vsel %vm1760, %v2807, 0
      %v2859 = vsel %vm1760, %v2808, 0
      %v2862 = vsel %vm1760, %v2809, 0
      %v2865 = vsel %vm1760, %v2810, 0
      %v2868 = vsel %vm1760, %v2811, 0
      %v2871 = vsel %vm1760, %v2812, 0
      %v2874 = vsel %vm1760, %v2813, 0
      %v2877 = vsel %vm1760, %v2814, 0
      %v2880 = vsel %vm1760, %v2815, 0
      %v2883 = vsel %vm1760, %v2816, 0
      %v2886 = vsel %vm1760, %v2817, 0
      %v2889 = vsel %vm1760, %v2818, 0
      %v2892 = vsel %vm1760, %v2819, 0
      %v2895 = vsel %vm1760, %v2820, 0
      %v2898 = vsel %vm1760, %v2821, 0
      %v2901 = vsel %vm1760, %v2822, 0
      %v2904 = vsel %vm1760, %v2823, 0
      %v2907 = vsel %vm1760, %v2824, 0
      %v2910 = vsel %vm1760, %v2825, 0
      %v2913 = vsel %vm1760, %v2826, 0
      %v2916 = vsel %vm1760, %v2827, 0
      %v2919 = vsel %vm1760, %v2828, 0
      %v2922 = vsel %vm1760, %v2829, 0
      %v2925 = vsel %vm1760, %v2830, 0
      %2927 = vmatprep.subr.mxu0 0.0
      %2928 = vmatpush1.msra.mxu0 0.0
      %2929 = vmatprep.subr.mxu0 0.0
      %2930 = vmatpush1.msra.mxu0 0.0
      %2931 = vmatprep.subr.mxu0 0.0
      %2932 = vmatpush1.msra.mxu0 0.0
      %2933 = vmatprep.subr.mxu0 0.0
      %2934 = vmatpush1.msra.mxu0 0.0
      %2935 = vmatprep.subr.mxu0 0.0
      %2936 = vmatpush1.msra.mxu0 0.0
      %2937 = vmatprep.subr.mxu0 0.0
      %2938 = vmatpush1.msra.mxu0 0.0
      %2939 = vmatprep.subr.mxu0 0.0
      %2940 = vmatpush1.msra.mxu0 0.0
      %2941 = vmatprep.subr.mxu0 0.0
      %2942 = vmatpush1.msra.mxu0 0.0
      %2943 = vmatprep.subr.mxu0 0.0
      %2944 = vmatpush1.msra.mxu0 0.0
      %2945 = vmatprep.subr.mxu0 0.0
      %2946 = vmatpush1.msra.mxu0 0.0
      %2947 = vmatprep.subr.mxu0 0.0
      %2948 = vmatpush1.msra.mxu0 0.0
      %2949 = vmatprep.subr.mxu0 0.0
      %2950 = vmatpush1.msra.mxu0 0.0
      %2951 = vmatprep.subr.mxu0 0.0
      %2952 = vmatpush1.msra.mxu0 0.0
      %2953 = vmatprep.subr.mxu0 0.0
      %2954 = vmatpush1.msra.mxu0 0.0
      %2955 = vmatprep.subr.mxu0 0.0
      %2956 = vmatpush1.msra.mxu0 %v2651
      %2957 = vmatprep.subr.mxu0 0.0
      %2958 = vmatpush1.msra.mxu0 %v2650
      %2959 = vmatprep.subr.mxu0 0.0
      %2960 = vmatpush2.msra.mxu0 0.0
      %2961 = vmatprep.subr.mxu0 0.0
      %2962 = vmatpush2.msra.mxu0 0.0
      %2963 = vmatprep.subr.mxu0 0.0
      %2964 = vmatpush2.msra.mxu0 0.0
      %2965 = vmatprep.subr.mxu0 0.0
      %2966 = vmatpush2.msra.mxu0 0.0
      %2967 = vmatprep.subr.mxu0 0.0
      %2968 = vmatpush2.msra.mxu0 0.0
      %2969 = vmatprep.subr.mxu0 0.0
      %2970 = vmatpush2.msra.mxu0 0.0
      %2971 = vmatprep.subr.mxu0 0.0
      %2972 = vmatpush2.msra.mxu0 0.0
      %2973 = vmatprep.subr.mxu0 0.0
      %2974 = vmatpush2.msra.mxu0 0.0
      %2975 = vmatprep.subr.mxu0 0.0
      %2976 = vmatpush2.msra.mxu0 0.0
      %2977 = vmatprep.subr.mxu0 0.0
      %2978 = vmatpush2.msra.mxu0 0.0
      %2979 = vmatprep.subr.mxu0 0.0
      %2980 = vmatpush2.msra.mxu0 0.0
      %2981 = vmatprep.subr.mxu0 0.0
      %2982 = vmatpush2.msra.mxu0 0.0
      %2983 = vmatprep.subr.mxu0 0.0
      %2984 = vmatpush2.msra.mxu0 0.0
      %2985 = vmatprep.subr.mxu0 0.0
      %2986 = vmatpush2.msra.mxu0 0.0
      %2987 = vmatprep.subr.mxu0 0.0
      %2988 = vmatpush2.msra.mxu0 0.0
      %2989 = vmatprep.subr.mxu0 0.0
      %2990 = vmatpush2.msra.mxu0 0.0
      %2991 = vmatprep.mubr.f32.mxu0 0.0
      %2992 = vmatmul.mubr.f32.gmra.mxu0 %v2832
      %v2993 = vpop.f32.mrf.mxu0
      %v2994 = vadd.f32 0.0, %v2993
      %v2995 = vpop.f32.mrf.mxu0
      %2996 = vmatprep.mubr.f32.mxu0 0.0
      %2997 = vmatmul.mubr.f32.gmra.mxu0 %v2835
      %v2998 = vpop.f32.mrf.mxu0
      %v2999 = vadd.f32 0.0, %v2998
      %v3000 = vpop.f32.mrf.mxu0
      %3001 = vmatprep.mubr.f32.mxu0 0.0
      %3002 = vmatmul.mubr.f32.gmra.mxu0 %v2838
      %v3003 = vpop.f32.mrf.mxu0
      %v3004 = vadd.f32 0.0, %v3003
      %v3005 = vpop.f32.mrf.mxu0
      %3006 = vmatprep.mubr.f32.mxu0 0.0
      %3007 = vmatmul.mubr.f32.gmra.mxu0 %v2841
      %v3008 = vpop.f32.mrf.mxu0
      %v3009 = vadd.f32 0.0, %v3008
      %v3010 = vpop.f32.mrf.mxu0
      %3011 = vmatprep.mubr.f32.mxu0 0.0
      %3012 = vmatmul.mubr.f32.gmra.mxu0 %v2844
      %v3013 = vpop.f32.mrf.mxu0
      %v3014 = vadd.f32 0.0, %v3013
      %v3015 = vpop.f32.mrf.mxu0
      %3016 = vmatprep.mubr.f32.mxu0 0.0
      %3017 = vmatmul.mubr.f32.gmra.mxu0 %v2847
      %v3018 = vpop.f32.mrf.mxu0
      %v3019 = vadd.f32 0.0, %v3018
      %v3020 = vpop.f32.mrf.mxu0
      %3021 = vmatprep.mubr.f32.mxu0 0.0
      %3022 = vmatmul.mubr.f32.gmra.mxu0 %v2850
      %v3023 = vpop.f32.mrf.mxu0
      %v3024 = vadd.f32 0.0, %v3023
      %v3025 = vpop.f32.mrf.mxu0
      %3026 = vmatprep.mubr.f32.mxu0 0.0
      %3027 = vmatmul.mubr.f32.gmra.mxu0 %v2853
      %v3028 = vpop.f32.mrf.mxu0
      %v3029 = vadd.f32 0.0, %v3028
      %v3030 = vpop.f32.mrf.mxu0
      %3031 = vmatprep.mubr.f32.mxu0 0.0
      %3032 = vmatmul.mubr.f32.gmra.mxu0 %v2856
      %v3033 = vpop.f32.mrf.mxu0
      %v3034 = vadd.f32 0.0, %v3033
      %v3035 = vpop.f32.mrf.mxu0
      %3036 = vmatprep.mubr.f32.mxu0 0.0
      %3037 = vmatmul.mubr.f32.gmra.mxu0 %v2859
      %v3038 = vpop.f32.mrf.mxu0
      %v3039 = vadd.f32 0.0, %v3038
      %v3040 = vpop.f32.mrf.mxu0
      %3041 = vmatprep.mubr.f32.mxu0 0.0
      %3042 = vmatmul.mubr.f32.gmra.mxu0 %v2862
      %v3043 = vpop.f32.mrf.mxu0
      %v3044 = vadd.f32 0.0, %v3043
      %v3045 = vpop.f32.mrf.mxu0
      %3046 = vmatprep.mubr.f32.mxu0 0.0
      %3047 = vmatmul.mubr.f32.gmra.mxu0 %v2865
      %v3048 = vpop.f32.mrf.mxu0
      %v3049 = vadd.f32 0.0, %v3048
      %v3050 = vpop.f32.mrf.mxu0
      %3051 = vmatprep.mubr.f32.mxu0 0.0
      %3052 = vmatmul.mubr.f32.gmra.mxu0 %v2868
      %v3053 = vpop.f32.mrf.mxu0
      %v3054 = vadd.f32 0.0, %v3053
      %v3055 = vpop.f32.mrf.mxu0
      %3056 = vmatprep.mubr.f32.mxu0 0.0
      %3057 = vmatmul.mubr.f32.gmra.mxu0 %v2871
      %v3058 = vpop.f32.mrf.mxu0
      %v3059 = vadd.f32 0.0, %v3058
      %v3060 = vpop.f32.mrf.mxu0
      %3061 = vmatprep.mubr.f32.mxu0 0.0
      %3062 = vmatmul.mubr.f32.gmra.mxu0 %v2874
      %v3063 = vpop.f32.mrf.mxu0
      %v3064 = vadd.f32 0.0, %v3063
      %v3065 = vpop.f32.mrf.mxu0
      %3066 = vmatprep.mubr.f32.mxu0 0.0
      %3067 = vmatmul.mubr.f32.gmra.mxu0 %v2877
      %v3068 = vpop.f32.mrf.mxu0
      %v3069 = vadd.f32 0.0, %v3068
      %v3070 = vpop.f32.mrf.mxu0
      %3071 = vmatprep.mubr.f32.mxu0 0.0
      %3072 = vmatmul.mubr.f32.gmra.mxu0 %v2880
      %v3073 = vpop.f32.mrf.mxu0
      %v3074 = vadd.f32 0.0, %v3073
      %v3075 = vpop.f32.mrf.mxu0
      %3076 = vmatprep.mubr.f32.mxu0 0.0
      %3077 = vmatmul.mubr.f32.gmra.mxu0 %v2883
      %v3078 = vpop.f32.mrf.mxu0
      %v3079 = vadd.f32 0.0, %v3078
      %v3080 = vpop.f32.mrf.mxu0
      %3081 = vmatprep.mubr.f32.mxu0 0.0
      %3082 = vmatmul.mubr.f32.gmra.mxu0 %v2886
      %v3083 = vpop.f32.mrf.mxu0
      %v3084 = vadd.f32 0.0, %v3083
      %v3085 = vpop.f32.mrf.mxu0
      %3086 = vmatprep.mubr.f32.mxu0 0.0
      %3087 = vmatmul.mubr.f32.gmra.mxu0 %v2889
      %v3088 = vpop.f32.mrf.mxu0
      %v3089 = vadd.f32 0.0, %v3088
      %v3090 = vpop.f32.mrf.mxu0
      %3091 = vmatprep.mubr.f32.mxu0 0.0
      %3092 = vmatmul.mubr.f32.gmra.mxu0 %v2892
      %v3093 = vpop.f32.mrf.mxu0
      %v3094 = vadd.f32 0.0, %v3093
      %v3095 = vpop.f32.mrf.mxu0
      %3096 = vmatprep.mubr.f32.mxu0 0.0
      %3097 = vmatmul.mubr.f32.gmra.mxu0 %v2895
      %v3098 = vpop.f32.mrf.mxu0
      %v3099 = vadd.f32 0.0, %v3098
      %v3100 = vpop.f32.mrf.mxu0
      %3101 = vmatprep.mubr.f32.mxu0 0.0
      %3102 = vmatmul.mubr.f32.gmra.mxu0 %v2898
      %v3103 = vpop.f32.mrf.mxu0
      %v3104 = vadd.f32 0.0, %v3103
      %v3105 = vpop.f32.mrf.mxu0
      %3106 = vmatprep.mubr.f32.mxu0 0.0
      %3107 = vmatmul.mubr.f32.gmra.mxu0 %v2901
      %v3108 = vpop.f32.mrf.mxu0
      %v3109 = vadd.f32 0.0, %v3108
      %v3110 = vpop.f32.mrf.mxu0
      %3111 = vmatprep.mubr.f32.mxu0 0.0
      %3112 = vmatmul.mubr.f32.gmra.mxu0 %v2904
      %v3113 = vpop.f32.mrf.mxu0
      %v3114 = vadd.f32 0.0, %v3113
      %v3115 = vpop.f32.mrf.mxu0
      %3116 = vmatprep.mubr.f32.mxu0 0.0
      %3117 = vmatmul.mubr.f32.gmra.mxu0 %v2907
      %v3118 = vpop.f32.mrf.mxu0
      %v3119 = vadd.f32 0.0, %v3118
      %v3120 = vpop.f32.mrf.mxu0
      %3121 = vmatprep.mubr.f32.mxu0 0.0
      %3122 = vmatmul.mubr.f32.gmra.mxu0 %v2910
      %v3123 = vpop.f32.mrf.mxu0
      %v3124 = vadd.f32 0.0, %v3123
      %v3125 = vpop.f32.mrf.mxu0
      %3126 = vmatprep.mubr.f32.mxu0 0.0
      %3127 = vmatmul.mubr.f32.gmra.mxu0 %v2913
      %v3128 = vpop.f32.mrf.mxu0
      %v3129 = vadd.f32 0.0, %v3128
      %v3130 = vpop.f32.mrf.mxu0
      %3131 = vmatprep.mubr.f32.mxu0 0.0
      %3132 = vmatmul.mubr.f32.gmra.mxu0 %v2916
      %v3133 = vpop.f32.mrf.mxu0
      %v3134 = vadd.f32 0.0, %v3133
      %v3135 = vpop.f32.mrf.mxu0
      %3136 = vmatprep.mubr.f32.mxu0 0.0
      %3137 = vmatmul.mubr.f32.gmra.mxu0 %v2919
      %v3138 = vpop.f32.mrf.mxu0
      %v3139 = vadd.f32 0.0, %v3138
      %v3140 = vpop.f32.mrf.mxu0
      %3141 = vmatprep.mubr.f32.mxu0 0.0
      %3142 = vmatmul.mubr.f32.gmra.mxu0 %v2922
      %v3143 = vpop.f32.mrf.mxu0
      %v3144 = vadd.f32 0.0, %v3143
      %v3145 = vpop.f32.mrf.mxu0
      %3146 = vmatprep.mubr.f32.mxu0 0.0
      %3147 = vmatmul.mubr.f32.gmra.mxu0 %v2925
      %v3148 = vpop.f32.mrf.mxu0
      %v3149 = vadd.f32 0.0, %v3148
      %v3150 = vpop.f32.mrf.mxu0
      %3151 = vdwg.mxu0
      %v3153 = vlaneseq
      %v3154 = vshrl.u32 %v3153, 7
      %v3155 = vsub.s32 0, %v3154
      %v3156 = vrot.slane %v1389, %v3155
      %v3159 = vsel %vm1432, %v2994, 0
      %v3162 = vsel %vm1432, %v2999, 0
      %v3165 = vsel %vm1432, %v3004, 0
      %v3168 = vsel %vm1432, %v3009, 0
      %v3171 = vsel %vm1432, %v3014, 0
      %v3174 = vsel %vm1432, %v3019, 0
      %v3177 = vsel %vm1432, %v3024, 0
      %v3180 = vsel %vm1432, %v3029, 0
      %v3183 = vsel %vm1432, %v3034, 0
      %v3186 = vsel %vm1432, %v3039, 0
      %v3189 = vsel %vm1432, %v3044, 0
      %v3192 = vsel %vm1432, %v3049, 0
      %v3195 = vsel %vm1432, %v3054, 0
      %v3198 = vsel %vm1432, %v3059, 0
      %v3201 = vsel %vm1432, %v3064, 0
      %v3204 = vsel %vm1432, %v3069, 0
      %v3207 = vsel %vm1432, %v3074, 0
      %v3210 = vsel %vm1432, %v3079, 0
      %v3213 = vsel %vm1432, %v3084, 0
      %v3216 = vsel %vm1432, %v3089, 0
      %v3219 = vsel %vm1432, %v3094, 0
      %v3222 = vsel %vm1432, %v3099, 0
      %v3225 = vsel %vm1432, %v3104, 0
      %v3228 = vsel %vm1432, %v3109, 0
      %v3231 = vsel %vm1432, %v3114, 0
      %v3234 = vsel %vm1432, %v3119, 0
      %v3237 = vsel %vm1432, %v3124, 0
      %v3240 = vsel %vm1432, %v3129, 0
      %v3243 = vsel %vm1432, %v3134, 0
      %v3246 = vsel %vm1432, %v3139, 0
      %v3249 = vsel %vm1432, %v3144, 0
      %v3252 = vsel %vm1432, %v3149, 0
      %3254 = vmatprep.subr.mxu0 0.0
      %3255 = vmatpush1.msra.mxu0 0.0
      %3256 = vmatprep.subr.mxu0 0.0
      %3257 = vmatpush1.msra.mxu0 0.0
      %3258 = vmatprep.subr.mxu0 0.0
      %3259 = vmatpush1.msra.mxu0 0.0
      %3260 = vmatprep.subr.mxu0 0.0
      %3261 = vmatpush1.msra.mxu0 0.0
      %3262 = vmatprep.subr.mxu0 0.0
      %3263 = vmatpush1.msra.mxu0 0.0
      %3264 = vmatprep.subr.mxu0 0.0
      %3265 = vmatpush1.msra.mxu0 0.0
      %3266 = vmatprep.subr.mxu0 0.0
      %3267 = vmatpush1.msra.mxu0 0.0
      %3268 = vmatprep.subr.mxu0 0.0
      %3269 = vmatpush1.msra.mxu0 0.0
      %3270 = vmatprep.subr.mxu0 0.0
      %3271 = vmatpush1.msra.mxu0 0.0
      %3272 = vmatprep.subr.mxu0 0.0
      %3273 = vmatpush1.msra.mxu0 0.0
      %3274 = vmatprep.subr.mxu0 0.0
      %3275 = vmatpush1.msra.mxu0 0.0
      %3276 = vmatprep.subr.mxu0 0.0
      %3277 = vmatpush1.msra.mxu0 0.0
      %3278 = vmatprep.subr.mxu0 0.0
      %3279 = vmatpush1.msra.mxu0 %v1388
      %3280 = vmatprep.subr.mxu0 0.0
      %3281 = vmatpush1.msra.mxu0 %v1387
      %3282 = vmatprep.subr.mxu0 0.0
      %3283 = vmatpush1.msra.mxu0 %v1386
      %3284 = vmatprep.subr.mxu0 0.0
      %3285 = vmatpush1.msra.mxu0 %v1385
      %3286 = vmatprep.subr.mxu0 0.0
      %3287 = vmatpush2.msra.mxu0 0.0
      %3288 = vmatprep.subr.mxu0 0.0
      %3289 = vmatpush2.msra.mxu0 0.0
      %3290 = vmatprep.subr.mxu0 0.0
      %3291 = vmatpush2.msra.mxu0 0.0
      %3292 = vmatprep.subr.mxu0 0.0
      %3293 = vmatpush2.msra.mxu0 0.0
      %3294 = vmatprep.subr.mxu0 0.0
      %3295 = vmatpush2.msra.mxu0 0.0
      %3296 = vmatprep.subr.mxu0 0.0
      %3297 = vmatpush2.msra.mxu0 0.0
      %3298 = vmatprep.subr.mxu0 0.0
      %3299 = vmatpush2.msra.mxu0 0.0
      %3300 = vmatprep.subr.mxu0 0.0
      %3301 = vmatpush2.msra.mxu0 0.0
      %3302 = vmatprep.subr.mxu0 0.0
      %3303 = vmatpush2.msra.mxu0 0.0
      %3304 = vmatprep.subr.mxu0 0.0
      %3305 = vmatpush2.msra.mxu0 0.0
      %3306 = vmatprep.subr.mxu0 0.0
      %3307 = vmatpush2.msra.mxu0 0.0
      %3308 = vmatprep.subr.mxu0 0.0
      %3309 = vmatpush2.msra.mxu0 0.0
      %3310 = vmatprep.subr.mxu0 0.0
      %3311 = vmatpush2.msra.mxu0 0.0
      %3312 = vmatprep.subr.mxu0 0.0
      %3313 = vmatpush2.msra.mxu0 0.0
      %3314 = vmatprep.subr.mxu0 0.0
      %3315 = vmatpush2.msra.mxu0 0.0
      %3316 = vmatprep.subr.mxu0 0.0
      %3317 = vmatpush2.msra.mxu0 0.0
      %3318 = vmatprep.mubr.f32.mxu0 0.0
      %3319 = vmatmul.mubr.f32.gmra.mxu0 %v3159
      %v3320 = vpop.f32.mrf.mxu0
      %v3321 = vadd.f32 %v3156, %v3320
      %v3322 = vpop.f32.mrf.mxu0
      %3323 = vmatprep.mubr.f32.mxu0 0.0
      %3324 = vmatmul.mubr.f32.gmra.mxu0 %v3162
      %v3325 = vpop.f32.mrf.mxu0
      %v3326 = vadd.f32 %v3156, %v3325
      %v3327 = vpop.f32.mrf.mxu0
      %3328 = vmatprep.mubr.f32.mxu0 0.0
      %3329 = vmatmul.mubr.f32.gmra.mxu0 %v3165
      %v3330 = vpop.f32.mrf.mxu0
      %v3331 = vadd.f32 %v3156, %v3330
      %v3332 = vpop.f32.mrf.mxu0
      %3333 = vmatprep.mubr.f32.mxu0 0.0
      %3334 = vmatmul.mubr.f32.gmra.mxu0 %v3168
      %v3335 = vpop.f32.mrf.mxu0
      %v3336 = vadd.f32 %v3156, %v3335
      %v3337 = vpop.f32.mrf.mxu0
      %3338 = vmatprep.mubr.f32.mxu0 0.0
      %3339 = vmatmul.mubr.f32.gmra.mxu0 %v3171
      %v3340 = vpop.f32.mrf.mxu0
      %v3341 = vadd.f32 %v3156, %v3340
      %v3342 = vpop.f32.mrf.mxu0
      %3343 = vmatprep.mubr.f32.mxu0 0.0
      %3344 = vmatmul.mubr.f32.gmra.mxu0 %v3174
      %v3345 = vpop.f32.mrf.mxu0
      %v3346 = vadd.f32 %v3156, %v3345
      %v3347 = vpop.f32.mrf.mxu0
      %3348 = vmatprep.mubr.f32.mxu0 0.0
      %3349 = vmatmul.mubr.f32.gmra.mxu0 %v3177
      %v3350 = vpop.f32.mrf.mxu0
      %v3351 = vadd.f32 %v3156, %v3350
      %v3352 = vpop.f32.mrf.mxu0
      %3353 = vmatprep.mubr.f32.mxu0 0.0
      %3354 = vmatmul.mubr.f32.gmra.mxu0 %v3180
      %v3355 = vpop.f32.mrf.mxu0
      %v3356 = vadd.f32 %v3156, %v3355
      %v3357 = vpop.f32.mrf.mxu0
      %3358 = vmatprep.mubr.f32.mxu0 0.0
      %3359 = vmatmul.mubr.f32.gmra.mxu0 %v3183
      %v3360 = vpop.f32.mrf.mxu0
      %v3361 = vadd.f32 %v3156, %v3360
      %v3362 = vpop.f32.mrf.mxu0
      %3363 = vmatprep.mubr.f32.mxu0 0.0
      %3364 = vmatmul.mubr.f32.gmra.mxu0 %v3186
      %v3365 = vpop.f32.mrf.mxu0
      %v3366 = vadd.f32 %v3156, %v3365
      %v3367 = vpop.f32.mrf.mxu0
      %3368 = vmatprep.mubr.f32.mxu0 0.0
      %3369 = vmatmul.mubr.f32.gmra.mxu0 %v3189
      %v3370 = vpop.f32.mrf.mxu0
      %v3371 = vadd.f32 %v3156, %v3370
      %v3372 = vpop.f32.mrf.mxu0
      %3373 = vmatprep.mubr.f32.mxu0 0.0
      %3374 = vmatmul.mubr.f32.gmra.mxu0 %v3192
      %v3375 = vpop.f32.mrf.mxu0
      %v3376 = vadd.f32 %v3156, %v3375
      %v3377 = vpop.f32.mrf.mxu0
      %3378 = vmatprep.mubr.f32.mxu0 0.0
      %3379 = vmatmul.mubr.f32.gmra.mxu0 %v3195
      %v3380 = vpop.f32.mrf.mxu0
      %v3381 = vadd.f32 %v3156, %v3380
      %v3382 = vpop.f32.mrf.mxu0
      %3383 = vmatprep.mubr.f32.mxu0 0.0
      %3384 = vmatmul.mubr.f32.gmra.mxu0 %v3198
      %v3385 = vpop.f32.mrf.mxu0
      %v3386 = vadd.f32 %v3156, %v3385
      %v3387 = vpop.f32.mrf.mxu0
      %3388 = vmatprep.mubr.f32.mxu0 0.0
      %3389 = vmatmul.mubr.f32.gmra.mxu0 %v3201
      %v3390 = vpop.f32.mrf.mxu0
      %v3391 = vadd.f32 %v3156, %v3390
      %v3392 = vpop.f32.mrf.mxu0
      %3393 = vmatprep.mubr.f32.mxu0 0.0
      %3394 = vmatmul.mubr.f32.gmra.mxu0 %v3204
      %v3395 = vpop.f32.mrf.mxu0
      %v3396 = vadd.f32 %v3156, %v3395
      %v3397 = vpop.f32.mrf.mxu0
      %3398 = vmatprep.mubr.f32.mxu0 0.0
      %3399 = vmatmul.mubr.f32.gmra.mxu0 %v3207
      %v3400 = vpop.f32.mrf.mxu0
      %v3401 = vadd.f32 %v3156, %v3400
      %v3402 = vpop.f32.mrf.mxu0
      %3403 = vmatprep.mubr.f32.mxu0 0.0
      %3404 = vmatmul.mubr.f32.gmra.mxu0 %v3210
      %v3405 = vpop.f32.mrf.mxu0
      %v3406 = vadd.f32 %v3156, %v3405
      %v3407 = vpop.f32.mrf.mxu0
      %3408 = vmatprep.mubr.f32.mxu0 0.0
      %3409 = vmatmul.mubr.f32.gmra.mxu0 %v3213
      %v3410 = vpop.f32.mrf.mxu0
      %v3411 = vadd.f32 %v3156, %v3410
      %v3412 = vpop.f32.mrf.mxu0
      %3413 = vmatprep.mubr.f32.mxu0 0.0
      %3414 = vmatmul.mubr.f32.gmra.mxu0 %v3216
      %v3415 = vpop.f32.mrf.mxu0
      %v3416 = vadd.f32 %v3156, %v3415
      %v3417 = vpop.f32.mrf.mxu0
      %3418 = vmatprep.mubr.f32.mxu0 0.0
      %3419 = vmatmul.mubr.f32.gmra.mxu0 %v3219
      %v3420 = vpop.f32.mrf.mxu0
      %v3421 = vadd.f32 %v3156, %v3420
      %v3422 = vpop.f32.mrf.mxu0
      %3423 = vmatprep.mubr.f32.mxu0 0.0
      %3424 = vmatmul.mubr.f32.gmra.mxu0 %v3222
      %v3425 = vpop.f32.mrf.mxu0
      %v3426 = vadd.f32 %v3156, %v3425
      %v3427 = vpop.f32.mrf.mxu0
      %3428 = vmatprep.mubr.f32.mxu0 0.0
      %3429 = vmatmul.mubr.f32.gmra.mxu0 %v3225
      %v3430 = vpop.f32.mrf.mxu0
      %v3431 = vadd.f32 %v3156, %v3430
      %v3432 = vpop.f32.mrf.mxu0
      %3433 = vmatprep.mubr.f32.mxu0 0.0
      %3434 = vmatmul.mubr.f32.gmra.mxu0 %v3228
      %v3435 = vpop.f32.mrf.mxu0
      %v3436 = vadd.f32 %v3156, %v3435
      %v3437 = vpop.f32.mrf.mxu0
      %3438 = vmatprep.mubr.f32.mxu0 0.0
      %3439 = vmatmul.mubr.f32.gmra.mxu0 %v3231
      %v3440 = vpop.f32.mrf.mxu0
      %v3441 = vadd.f32 %v3156, %v3440
      %v3442 = vpop.f32.mrf.mxu0
      %3443 = vmatprep.mubr.f32.mxu0 0.0
      %3444 = vmatmul.mubr.f32.gmra.mxu0 %v3234
      %v3445 = vpop.f32.mrf.mxu0
      %v3446 = vadd.f32 %v3156, %v3445
      %v3447 = vpop.f32.mrf.mxu0
      %3448 = vmatprep.mubr.f32.mxu0 0.0
      %3449 = vmatmul.mubr.f32.gmra.mxu0 %v3237
      %v3450 = vpop.f32.mrf.mxu0
      %v3451 = vadd.f32 %v3156, %v3450
      %v3452 = vpop.f32.mrf.mxu0
      %3453 = vmatprep.mubr.f32.mxu0 0.0
      %3454 = vmatmul.mubr.f32.gmra.mxu0 %v3240
      %v3455 = vpop.f32.mrf.mxu0
      %v3456 = vadd.f32 %v3156, %v3455
      %v3457 = vpop.f32.mrf.mxu0
      %3458 = vmatprep.mubr.f32.mxu0 0.0
      %3459 = vmatmul.mubr.f32.gmra.mxu0 %v3243
      %v3460 = vpop.f32.mrf.mxu0
      %v3461 = vadd.f32 %v3156, %v3460
      %v3462 = vpop.f32.mrf.mxu0
      %3463 = vmatprep.mubr.f32.mxu0 0.0
      %3464 = vmatmul.mubr.f32.gmra.mxu0 %v3246
      %v3465 = vpop.f32.mrf.mxu0
      %v3466 = vadd.f32 %v3156, %v3465
      %v3467 = vpop.f32.mrf.mxu0
      %3468 = vmatprep.mubr.f32.mxu0 0.0
      %3469 = vmatmul.mubr.f32.gmra.mxu0 %v3249
      %v3470 = vpop.f32.mrf.mxu0
      %v3471 = vadd.f32 %v3156, %v3470
      %v3472 = vpop.f32.mrf.mxu0
      %3473 = vmatprep.mubr.f32.mxu0 0.0
      %3474 = vmatmul.mubr.f32.gmra.mxu0 %v3252
      %v3475 = vpop.f32.mrf.mxu0
      %v3476 = vadd.f32 %v3156, %v3475
      %v3477 = vpop.f32.mrf.mxu0
      %3478 = vdwg.mxu0
      %v3479 = vmul.f32 %v3321, %v3321
      %v3480 = vmul.f32 %v3326, %v3326
      %v3481 = vmul.f32 %v3331, %v3331
      %v3482 = vmul.f32 %v3336, %v3336
      %v3483 = vmul.f32 %v3341, %v3341
      %v3484 = vmul.f32 %v3346, %v3346
      %v3485 = vmul.f32 %v3351, %v3351
      %v3486 = vmul.f32 %v3356, %v3356
      %v3487 = vmul.f32 %v3361, %v3361
      %v3488 = vmul.f32 %v3366, %v3366
      %v3489 = vmul.f32 %v3371, %v3371
      %v3490 = vmul.f32 %v3376, %v3376
      %v3491 = vmul.f32 %v3381, %v3381
      %v3492 = vmul.f32 %v3386, %v3386
      %v3493 = vmul.f32 %v3391, %v3391
      %v3494 = vmul.f32 %v3396, %v3396
      %v3495 = vmul.f32 %v3401, %v3401
      %v3496 = vmul.f32 %v3406, %v3406
      %v3497 = vmul.f32 %v3411, %v3411
      %v3498 = vmul.f32 %v3416, %v3416
      %v3499 = vmul.f32 %v3421, %v3421
      %v3500 = vmul.f32 %v3426, %v3426
      %v3501 = vmul.f32 %v3431, %v3431
      %v3502 = vmul.f32 %v3436, %v3436
      %v3503 = vmul.f32 %v3441, %v3441
      %v3504 = vmul.f32 %v3446, %v3446
      %v3505 = vmul.f32 %v3451, %v3451
      %v3506 = vmul.f32 %v3456, %v3456
      %v3507 = vmul.f32 %v3461, %v3461
      %v3508 = vmul.f32 %v3466, %v3466
      %v3509 = vmul.f32 %v3471, %v3471
      %v3510 = vmul.f32 %v3476, %v3476
      %v3511 = vmul.f32 %v3321, %v3479
      %v3512 = vmul.f32 %v3326, %v3480
      %v3513 = vmul.f32 %v3331, %v3481
      %v3514 = vmul.f32 %v3336, %v3482
      %v3515 = vmul.f32 %v3341, %v3483
      %v3516 = vmul.f32 %v3346, %v3484
      %v3517 = vmul.f32 %v3351, %v3485
      %v3518 = vmul.f32 %v3356, %v3486
      %v3519 = vmul.f32 %v3361, %v3487
      %v3520 = vmul.f32 %v3366, %v3488
      %v3521 = vmul.f32 %v3371, %v3489
      %v3522 = vmul.f32 %v3376, %v3490
      %v3523 = vmul.f32 %v3381, %v3491
      %v3524 = vmul.f32 %v3386, %v3492
      %v3525 = vmul.f32 %v3391, %v3493
      %v3526 = vmul.f32 %v3396, %v3494
      %v3527 = vmul.f32 %v3401, %v3495
      %v3528 = vmul.f32 %v3406, %v3496
      %v3529 = vmul.f32 %v3411, %v3497
      %v3530 = vmul.f32 %v3416, %v3498
      %v3531 = vmul.f32 %v3421, %v3499
      %v3532 = vmul.f32 %v3426, %v3500
      %v3533 = vmul.f32 %v3431, %v3501
      %v3534 = vmul.f32 %v3436, %v3502
      %v3535 = vmul.f32 %v3441, %v3503
      %v3536 = vmul.f32 %v3446, %v3504
      %v3537 = vmul.f32 %v3451, %v3505
      %v3538 = vmul.f32 %v3456, %v3506
      %v3539 = vmul.f32 %v3461, %v3507
      %v3540 = vmul.f32 %v3466, %v3508
      %v3541 = vmul.f32 %v3471, %v3509
      %v3542 = vmul.f32 %v3476, %v3510
      %v3543 = vmul.f32 %v3511, 0.044715
      %v3544 = vmul.f32 %v3512, 0.044715
      %v3545 = vmul.f32 %v3513, 0.044715
      %v3546 = vmul.f32 %v3514, 0.044715
      %v3547 = vmul.f32 %v3515, 0.044715
      %v3548 = vmul.f32 %v3516, 0.044715
      %v3549 = vmul.f32 %v3517, 0.044715
      %v3550 = vmul.f32 %v3518, 0.044715
      %v3551 = vmul.f32 %v3519, 0.044715
      %v3552 = vmul.f32 %v3520, 0.044715
      %v3553 = vmul.f32 %v3521, 0.044715
      %v3554 = vmul.f32 %v3522, 0.044715
      %v3555 = vmul.f32 %v3523, 0.044715
      %v3556 = vmul.f32 %v3524, 0.044715
      %v3557 = vmul.f32 %v3525, 0.044715
      %v3558 = vmul.f32 %v3526, 0.044715
      %v3559 = vmul.f32 %v3527, 0.044715
      %v3560 = vmul.f32 %v3528, 0.044715
      %v3561 = vmul.f32 %v3529, 0.044715
      %v3562 = vmul.f32 %v3530, 0.044715
      %v3563 = vmul.f32 %v3531, 0.044715
      %v3564 = vmul.f32 %v3532, 0.044715
      %v3565 = vmul.f32 %v3533, 0.044715
      %v3566 = vmul.f32 %v3534, 0.044715
      %v3567 = vmul.f32 %v3535, 0.044715
      %v3568 = vmul.f32 %v3536, 0.044715
      %v3569 = vmul.f32 %v3537, 0.044715
      %v3570 = vmul.f32 %v3538, 0.044715
      %v3571 = vmul.f32 %v3539, 0.044715
      %v3572 = vmul.f32 %v3540, 0.044715
      %v3573 = vmul.f32 %v3541, 0.044715
      %v3574 = vmul.f32 %v3542, 0.044715
      %v3575 = vadd.f32 %v3321, %v3543
      %v3576 = vadd.f32 %v3326, %v3544
      %v3577 = vadd.f32 %v3331, %v3545
      %v3578 = vadd.f32 %v3336, %v3546
      %v3579 = vadd.f32 %v3341, %v3547
      %v3580 = vadd.f32 %v3346, %v3548
      %v3581 = vadd.f32 %v3351, %v3549
      %v3582 = vadd.f32 %v3356, %v3550
      %v3583 = vadd.f32 %v3361, %v3551
      %v3584 = vadd.f32 %v3366, %v3552
      %v3585 = vadd.f32 %v3371, %v3553
      %v3586 = vadd.f32 %v3376, %v3554
      %v3587 = vadd.f32 %v3381, %v3555
      %v3588 = vadd.f32 %v3386, %v3556
      %v3589 = vadd.f32 %v3391, %v3557
      %v3590 = vadd.f32 %v3396, %v3558
      %v3591 = vadd.f32 %v3401, %v3559
      %v3592 = vadd.f32 %v3406, %v3560
      %v3593 = vadd.f32 %v3411, %v3561
      %v3594 = vadd.f32 %v3416, %v3562
      %v3595 = vadd.f32 %v3421, %v3563
      %v3596 = vadd.f32 %v3426, %v3564
      %v3597 = vadd.f32 %v3431, %v3565
      %v3598 = vadd.f32 %v3436, %v3566
      %v3599 = vadd.f32 %v3441, %v3567
      %v3600 = vadd.f32 %v3446, %v3568
      %v3601 = vadd.f32 %v3451, %v3569
      %v3602 = vadd.f32 %v3456, %v3570
      %v3603 = vadd.f32 %v3461, %v3571
      %v3604 = vadd.f32 %v3466, %v3572
      %v3605 = vadd.f32 %v3471, %v3573
      %v3606 = vadd.f32 %v3476, %v3574
      %v3607 = vmul.f32 %v3575, 0.7978846
      %v3608 = vmul.f32 %v3576, 0.7978846
      %v3609 = vmul.f32 %v3577, 0.7978846
      %v3610 = vmul.f32 %v3578, 0.7978846
      %v3611 = vmul.f32 %v3579, 0.7978846
      %v3612 = vmul.f32 %v3580, 0.7978846
      %v3613 = vmul.f32 %v3581, 0.7978846
      %v3614 = vmul.f32 %v3582, 0.7978846
      %v3615 = vmul.f32 %v3583, 0.7978846
      %v3616 = vmul.f32 %v3584, 0.7978846
      %v3617 = vmul.f32 %v3585, 0.7978846
      %v3618 = vmul.f32 %v3586, 0.7978846
      %v3619 = vmul.f32 %v3587, 0.7978846
      %v3620 = vmul.f32 %v3588, 0.7978846
      %v3621 = vmul.f32 %v3589, 0.7978846
      %v3622 = vmul.f32 %v3590, 0.7978846
      %v3623 = vmul.f32 %v3591, 0.7978846
      %v3624 = vmul.f32 %v3592, 0.7978846
      %v3625 = vmul.f32 %v3593, 0.7978846
      %v3626 = vmul.f32 %v3594, 0.7978846
      %v3627 = vmul.f32 %v3595, 0.7978846
      %v3628 = vmul.f32 %v3596, 0.7978846
      %v3629 = vmul.f32 %v3597, 0.7978846
      %v3630 = vmul.f32 %v3598, 0.7978846
      %v3631 = vmul.f32 %v3599, 0.7978846
      %v3632 = vmul.f32 %v3600, 0.7978846
      %v3633 = vmul.f32 %v3601, 0.7978846
      %v3634 = vmul.f32 %v3602, 0.7978846
      %v3635 = vmul.f32 %v3603, 0.7978846
      %v3636 = vmul.f32 %v3604, 0.7978846
      %v3637 = vmul.f32 %v3605, 0.7978846
      %v3638 = vmul.f32 %v3606, 0.7978846
      %v3639 = vtanh.pop %v3607
      %v3640 = vtanh.pop %v3608
      %v3641 = vtanh.pop %v3609
      %v3642 = vtanh.pop %v3610
      %v3643 = vtanh.pop %v3611
      %v3644 = vtanh.pop %v3612
      %v3645 = vtanh.pop %v3613
      %v3646 = vtanh.pop %v3614
      %v3647 = vtanh.pop %v3615
      %v3648 = vtanh.pop %v3616
      %v3649 = vtanh.pop %v3617
      %v3650 = vtanh.pop %v3618
      %v3651 = vtanh.pop %v3619
      %v3652 = vtanh.pop %v3620
      %v3653 = vtanh.pop %v3621
      %v3654 = vtanh.pop %v3622
      %v3655 = vtanh.pop %v3623
      %v3656 = vtanh.pop %v3624
      %v3657 = vtanh.pop %v3625
      %v3658 = vtanh.pop %v3626
      %v3659 = vtanh.pop %v3627
      %v3660 = vtanh.pop %v3628
      %v3661 = vtanh.pop %v3629
      %v3662 = vtanh.pop %v3630
      %v3663 = vtanh.pop %v3631
      %v3664 = vtanh.pop %v3632
      %v3665 = vtanh.pop %v3633
      %v3666 = vtanh.pop %v3634
      %v3667 = vtanh.pop %v3635
      %v3668 = vtanh.pop %v3636
      %v3669 = vtanh.pop %v3637
      %v3670 = vtanh.pop %v3638
      %v3671 = vadd.f32 %v3639, 1.0
      %v3672 = vadd.f32 %v3640, 1.0
      %v3673 = vadd.f32 %v3641, 1.0
      %v3674 = vadd.f32 %v3642, 1.0
      %v3675 = vadd.f32 %v3643, 1.0
      %v3676 = vadd.f32 %v3644, 1.0
      %v3677 = vadd.f32 %v3645, 1.0
      %v3678 = vadd.f32 %v3646, 1.0
      %v3679 = vadd.f32 %v3647, 1.0
      %v3680 = vadd.f32 %v3648, 1.0
      %v3681 = vadd.f32 %v3649, 1.0
      %v3682 = vadd.f32 %v3650, 1.0
      %v3683 = vadd.f32 %v3651, 1.0
      %v3684 = vadd.f32 %v3652, 1.0
      %v3685 = vadd.f32 %v3653, 1.0
      %v3686 = vadd.f32 %v3654, 1.0
      %v3687 = vadd.f32 %v3655, 1.0
      %v3688 = vadd.f32 %v3656, 1.0
      %v3689 = vadd.f32 %v3657, 1.0
      %v3690 = vadd.f32 %v3658, 1.0
      %v3691 = vadd.f32 %v3659, 1.0
      %v3692 = vadd.f32 %v3660, 1.0
      %v3693 = vadd.f32 %v3661, 1.0
      %v3694 = vadd.f32 %v3662, 1.0
      %v3695 = vadd.f32 %v3663, 1.0
      %v3696 = vadd.f32 %v3664, 1.0
      %v3697 = vadd.f32 %v3665, 1.0
      %v3698 = vadd.f32 %v3666, 1.0
      %v3699 = vadd.f32 %v3667, 1.0
      %v3700 = vadd.f32 %v3668, 1.0
      %v3701 = vadd.f32 %v3669, 1.0
      %v3702 = vadd.f32 %v3670, 1.0
      %v3703 = vmul.f32 %v3671, 0.5
      %v3704 = vmul.f32 %v3672, 0.5
      %v3705 = vmul.f32 %v3673, 0.5
      %v3706 = vmul.f32 %v3674, 0.5
      %v3707 = vmul.f32 %v3675, 0.5
      %v3708 = vmul.f32 %v3676, 0.5
      %v3709 = vmul.f32 %v3677, 0.5
      %v3710 = vmul.f32 %v3678, 0.5
      %v3711 = vmul.f32 %v3679, 0.5
      %v3712 = vmul.f32 %v3680, 0.5
      %v3713 = vmul.f32 %v3681, 0.5
      %v3714 = vmul.f32 %v3682, 0.5
      %v3715 = vmul.f32 %v3683, 0.5
      %v3716 = vmul.f32 %v3684, 0.5
      %v3717 = vmul.f32 %v3685, 0.5
      %v3718 = vmul.f32 %v3686, 0.5
      %v3719 = vmul.f32 %v3687, 0.5
      %v3720 = vmul.f32 %v3688, 0.5
      %v3721 = vmul.f32 %v3689, 0.5
      %v3722 = vmul.f32 %v3690, 0.5
      %v3723 = vmul.f32 %v3691, 0.5
      %v3724 = vmul.f32 %v3692, 0.5
      %v3725 = vmul.f32 %v3693, 0.5
      %v3726 = vmul.f32 %v3694, 0.5
      %v3727 = vmul.f32 %v3695, 0.5
      %v3728 = vmul.f32 %v3696, 0.5
      %v3729 = vmul.f32 %v3697, 0.5
      %v3730 = vmul.f32 %v3698, 0.5
      %v3731 = vmul.f32 %v3699, 0.5
      %v3732 = vmul.f32 %v3700, 0.5
      %v3733 = vmul.f32 %v3701, 0.5
      %v3734 = vmul.f32 %v3702, 0.5
      %v3735 = vmul.f32 %v3321, %v3703
      %v3736 = vmul.f32 %v3326, %v3704
      %v3737 = vmul.f32 %v3331, %v3705
      %v3738 = vmul.f32 %v3336, %v3706
      %v3739 = vmul.f32 %v3341, %v3707
      %v3740 = vmul.f32 %v3346, %v3708
      %v3741 = vmul.f32 %v3351, %v3709
      %v3742 = vmul.f32 %v3356, %v3710
      %v3743 = vmul.f32 %v3361, %v3711
      %v3744 = vmul.f32 %v3366, %v3712
      %v3745 = vmul.f32 %v3371, %v3713
      %v3746 = vmul.f32 %v3376, %v3714
      %v3747 = vmul.f32 %v3381, %v3715
      %v3748 = vmul.f32 %v3386, %v3716
      %v3749 = vmul.f32 %v3391, %v3717
      %v3750 = vmul.f32 %v3396, %v3718
      %v3751 = vmul.f32 %v3401, %v3719
      %v3752 = vmul.f32 %v3406, %v3720
      %v3753 = vmul.f32 %v3411, %v3721
      %v3754 = vmul.f32 %v3416, %v3722
      %v3755 = vmul.f32 %v3421, %v3723
      %v3756 = vmul.f32 %v3426, %v3724
      %v3757 = vmul.f32 %v3431, %v3725
      %v3758 = vmul.f32 %v3436, %v3726
      %v3759 = vmul.f32 %v3441, %v3727
      %v3760 = vmul.f32 %v3446, %v3728
      %v3761 = vmul.f32 %v3451, %v3729
      %v3762 = vmul.f32 %v3456, %v3730
      %v3763 = vmul.f32 %v3461, %v3731
      %v3764 = vmul.f32 %v3466, %v3732
      %v3765 = vmul.f32 %v3471, %v3733
      %v3766 = vmul.f32 %v3476, %v3734
      %v3768 = vsel %vm2459, %v2796, 0
      %v3771 = vsel %vm2459, %v3735, 0
      %v3774 = vsel %vm2459, %v3736, 0
      %v3777 = vsel %vm2459, %v3737, 0
      %v3780 = vsel %vm2459, %v3738, 0
      %v3783 = vsel %vm2459, %v3739, 0
      %v3786 = vsel %vm2459, %v3740, 0
      %v3789 = vsel %vm2459, %v3741, 0
      %v3792 = vsel %vm2459, %v3742, 0
      %v3795 = vsel %vm2459, %v3743, 0
      %v3798 = vsel %vm2459, %v3744, 0
      %v3801 = vsel %vm2459, %v3745, 0
      %v3804 = vsel %vm2459, %v3746, 0
      %v3807 = vsel %vm2459, %v3747, 0
      %v3810 = vsel %vm2459, %v3748, 0
      %v3813 = vsel %vm2459, %v3749, 0
      %v3816 = vsel %vm2459, %v3750, 0
      %v3819 = vsel %vm2459, %v3751, 0
      %v3822 = vsel %vm2459, %v3752, 0
      %v3825 = vsel %vm2459, %v3753, 0
      %v3828 = vsel %vm2459, %v3754, 0
      %v3831 = vsel %vm2459, %v3755, 0
      %v3834 = vsel %vm2459, %v3756, 0
      %v3837 = vsel %vm2459, %v3757, 0
      %v3840 = vsel %vm2459, %v3758, 0
      %v3843 = vsel %vm2459, %v3759, 0
      %v3846 = vsel %vm2459, %v3760, 0
      %v3849 = vsel %vm2459, %v3761, 0
      %v3852 = vsel %vm2459, %v3762, 0
      %v3855 = vsel %vm2459, %v3763, 0
      %v3858 = vsel %vm2459, %v3764, 0
      %v3861 = vsel %vm2459, %v3765, 0
      %v3864 = vsel %vm2459, %v3766, 0
      %3866 = vmatprep.subr.mxu0 0.0
      %3867 = vmatpush1.xpose.msra.mxu0 %v3816
      %3868 = vmatprep.subr.mxu0 0.0
      %3869 = vmatpush1.xpose.msra.mxu0 %v3813
      %3870 = vmatprep.subr.mxu0 0.0
      %3871 = vmatpush1.xpose.msra.mxu0 %v3810
      %3872 = vmatprep.subr.mxu0 0.0
      %3873 = vmatpush1.xpose.msra.mxu0 %v3807
      %3874 = vmatprep.subr.mxu0 0.0
      %3875 = vmatpush1.xpose.msra.mxu0 %v3804
      %3876 = vmatprep.subr.mxu0 0.0
      %3877 = vmatpush1.xpose.msra.mxu0 %v3801
      %3878 = vmatprep.subr.mxu0 0.0
      %3879 = vmatpush1.xpose.msra.mxu0 %v3798
      %3880 = vmatprep.subr.mxu0 0.0
      %3881 = vmatpush1.xpose.msra.mxu0 %v3795
      %3882 = vmatprep.subr.mxu0 0.0
      %3883 = vmatpush1.xpose.msra.mxu0 %v3792
      %3884 = vmatprep.subr.mxu0 0.0
      %3885 = vmatpush1.xpose.msra.mxu0 %v3789
      %3886 = vmatprep.subr.mxu0 0.0
      %3887 = vmatpush1.xpose.msra.mxu0 %v3786
      %3888 = vmatprep.subr.mxu0 0.0
      %3889 = vmatpush1.xpose.msra.mxu0 %v3783
      %3890 = vmatprep.subr.mxu0 0.0
      %3891 = vmatpush1.xpose.msra.mxu0 %v3780
      %3892 = vmatprep.subr.mxu0 0.0
      %3893 = vmatpush1.xpose.msra.mxu0 %v3777
      %3894 = vmatprep.subr.mxu0 0.0
      %3895 = vmatpush1.xpose.msra.mxu0 %v3774
      %3896 = vmatprep.subr.mxu0 0.0
      %3897 = vmatpush1.xpose.msra.mxu0 %v3771
      %3898 = vmatprep.subr.mxu0 0.0
      %3899 = vmatpush2.xpose.msra.mxu0 %v3864
      %3900 = vmatprep.subr.mxu0 0.0
      %3901 = vmatpush2.xpose.msra.mxu0 %v3861
      %3902 = vmatprep.subr.mxu0 0.0
      %3903 = vmatpush2.xpose.msra.mxu0 %v3858
      %3904 = vmatprep.subr.mxu0 0.0
      %3905 = vmatpush2.xpose.msra.mxu0 %v3855
      %3906 = vmatprep.subr.mxu0 0.0
      %3907 = vmatpush2.xpose.msra.mxu0 %v3852
      %3908 = vmatprep.subr.mxu0 0.0
      %3909 = vmatpush2.xpose.msra.mxu0 %v3849
      %3910 = vmatprep.subr.mxu0 0.0
      %3911 = vmatpush2.xpose.msra.mxu0 %v3846
      %3912 = vmatprep.subr.mxu0 0.0
      %3913 = vmatpush2.xpose.msra.mxu0 %v3843
      %3914 = vmatprep.subr.mxu0 0.0
      %3915 = vmatpush2.xpose.msra.mxu0 %v3840
      %3916 = vmatprep.subr.mxu0 0.0
      %3917 = vmatpush2.xpose.msra.mxu0 %v3837
      %3918 = vmatprep.subr.mxu0 0.0
      %3919 = vmatpush2.xpose.msra.mxu0 %v3834
      %3920 = vmatprep.subr.mxu0 0.0
      %3921 = vmatpush2.xpose.msra.mxu0 %v3831
      %3922 = vmatprep.subr.mxu0 0.0
      %3923 = vmatpush2.xpose.msra.mxu0 %v3828
      %3924 = vmatprep.subr.mxu0 0.0
      %3925 = vmatpush2.xpose.msra.mxu0 %v3825
      %3926 = vmatprep.subr.mxu0 0.0
      %3927 = vmatpush2.xpose.msra.mxu0 %v3822
      %3928 = vmatprep.subr.mxu0 0.0
      %3929 = vmatpush2.xpose.msra.mxu0 %v3819
      %3930 = vmatprep.mubr.f32.mxu0 0.0
      %3931 = vmatmul.mubr.f32.gmra.mxu0 %v3768
      %v3932 = vpop.f32.mrf.mxu0
      %v3933 = vadd.f32 0.0, %v3932
      %v3934 = vpop.f32.mrf.mxu0
      %v3935 = vadd.f32 0.0, %v3934
      %3936 = vdwg.mxu0
      %v3939 = vcombine.low %v3933, %v3935
      %v3941 = vunpack.c.l.s4 1966171168
      %v3942 = vunpack.c.0.s8 %v3941
      %v3943 = vlaneseq
      %v3944 = vshrl.u32 %v3943, 7
      %v3945 = vsub.s32 %v3942, %v3944
      %v3946 = vrot.slane %v3939, %v3945
      %v3948 = vunpack.c.l.s4 1966171168
      %v3949 = vunpack.c.0.s8 %v3948
      %v3950 = vlaneseq
      %v3951 = vshrl.u32 %v3950, 7
      %v3952 = vsub.s32 %v3949, %v3951
      %v3953 = vrot.slane %v3946, %v3952
      %v3955 = vlaneseq
      %vm3956 = vcmp.ge.s32.totalorder %v3955, 0
      %vm3957 = vcmp.lt.s32.totalorder %v3955, 256
      %vm3958 = vmand %vm3956, %vm3957
      %3959 = vst.msk [vmem:[%s1315] sm:$0x3] %vm3958, %v3953
      %3960 = vmatprep.subr.mxu0 0.0
      %3961 = vmatpush1.msra.mxu0 0.0
      %3962 = vmatprep.subr.mxu0 0.0
      %3963 = vmatpush1.msra.mxu0 0.0
      %3964 = vmatprep.subr.mxu0 0.0
      %3965 = vmatpush1.msra.mxu0 0.0
      %3966 = vmatprep.subr.mxu0 0.0
      %3967 = vmatpush1.msra.mxu0 0.0
      %3968 = vmatprep.subr.mxu0 0.0
      %3969 = vmatpush1.msra.mxu0 0.0
      %3970 = vmatprep.subr.mxu0 0.0
      %3971 = vmatpush1.msra.mxu0 0.0
      %3972 = vmatprep.subr.mxu0 0.0
      %3973 = vmatpush1.msra.mxu0 0.0
      %3974 = vmatprep.subr.mxu0 0.0
      %3975 = vmatpush1.msra.mxu0 0.0
      %3976 = vmatprep.subr.mxu0 0.0
      %3977 = vmatpush1.msra.mxu0 0.0
      %3978 = vmatprep.subr.mxu0 0.0
      %3979 = vmatpush1.msra.mxu0 0.0
      %3980 = vmatprep.subr.mxu0 0.0
      %3981 = vmatpush1.msra.mxu0 0.0
      %3982 = vmatprep.subr.mxu0 0.0
      %3983 = vmatpush1.msra.mxu0 0.0
      %3984 = vmatprep.subr.mxu0 0.0
      %3985 = vmatpush1.msra.mxu0 %v1403
      %3986 = vmatprep.subr.mxu0 0.0
      %3987 = vmatpush1.msra.mxu0 %v1402
      %3988 = vmatprep.subr.mxu0 0.0
      %3989 = vmatpush1.msra.mxu0 %v1401
      %3990 = vmatprep.subr.mxu0 0.0
      %3991 = vmatpush1.msra.mxu0 %v1400
      %3992 = vmatprep.subr.mxu0 0.0
      %3993 = vmatpush2.msra.mxu0 0.0
      %3994 = vmatprep.subr.mxu0 0.0
      %3995 = vmatpush2.msra.mxu0 0.0
      %3996 = vmatprep.subr.mxu0 0.0
      %3997 = vmatpush2.msra.mxu0 0.0
      %3998 = vmatprep.subr.mxu0 0.0
      %3999 = vmatpush2.msra.mxu0 0.0
      %4000 = vmatprep.subr.mxu0 0.0
      %4001 = vmatpush2.msra.mxu0 0.0
      %4002 = vmatprep.subr.mxu0 0.0
      %4003 = vmatpush2.msra.mxu0 0.0
      %4004 = vmatprep.subr.mxu0 0.0
      %4005 = vmatpush2.msra.mxu0 0.0
      %4006 = vmatprep.subr.mxu0 0.0
      %4007 = vmatpush2.msra.mxu0 0.0
      %4008 = vmatprep.subr.mxu0 0.0
      %4009 = vmatpush2.msra.mxu0 0.0
      %4010 = vmatprep.subr.mxu0 0.0
      %4011 = vmatpush2.msra.mxu0 0.0
      %4012 = vmatprep.subr.mxu0 0.0
      %4013 = vmatpush2.msra.mxu0 0.0
      %4014 = vmatprep.subr.mxu0 0.0
      %4015 = vmatpush2.msra.mxu0 0.0
      %4016 = vmatprep.subr.mxu0 0.0
      %4017 = vmatpush2.msra.mxu0 0.0
      %4018 = vmatprep.subr.mxu0 0.0
      %4019 = vmatpush2.msra.mxu0 0.0
      %4020 = vmatprep.subr.mxu0 0.0
      %4021 = vmatpush2.msra.mxu0 0.0
      %4022 = vmatprep.subr.mxu0 0.0
      %4023 = vmatpush2.msra.mxu0 0.0
      %4024 = vmatprep.mubr.f32.mxu0 0.0
      %4025 = vmatmul.mubr.f32.gmra.mxu0 %v2225
      %v4026 = vpop.f32.mrf.mxu0
      %v4027 = vadd.f32 %v1404, %v4026
      %v4028 = vpop.f32.mrf.mxu0
      %4029 = vdwg.mxu0
      %v4030 = vmax.f32 %v4027, 0.0
      %v4032 = vsel %vm1432, %v4030, 0
      %4034 = vmatprep.subr.mxu0 0.0
      %4035 = vmatpush1.msra.mxu0 0.0
      %4036 = vmatprep.subr.mxu0 0.0
      %4037 = vmatpush1.msra.mxu0 0.0
      %4038 = vmatprep.subr.mxu0 0.0
      %4039 = vmatpush1.msra.mxu0 0.0
      %4040 = vmatprep.subr.mxu0 0.0
      %4041 = vmatpush1.msra.mxu0 0.0
      %4042 = vmatprep.subr.mxu0 0.0
      %4043 = vmatpush1.msra.mxu0 0.0
      %4044 = vmatprep.subr.mxu0 0.0
      %4045 = vmatpush1.msra.mxu0 0.0
      %4046 = vmatprep.subr.mxu0 0.0
      %4047 = vmatpush1.msra.mxu0 0.0
      %4048 = vmatprep.subr.mxu0 0.0
      %4049 = vmatpush1.msra.mxu0 0.0
      %4050 = vmatprep.subr.mxu0 0.0
      %4051 = vmatpush1.msra.mxu0 0.0
      %4052 = vmatprep.subr.mxu0 0.0
      %4053 = vmatpush1.msra.mxu0 0.0
      %4054 = vmatprep.subr.mxu0 0.0
      %4055 = vmatpush1.msra.mxu0 0.0
      %4056 = vmatprep.subr.mxu0 0.0
      %4057 = vmatpush1.msra.mxu0 0.0
      %4058 = vmatprep.subr.mxu0 0.0
      %4059 = vmatpush1.msra.mxu0 %v1408
      %4060 = vmatprep.subr.mxu0 0.0
      %4061 = vmatpush1.msra.mxu0 %v1407
      %4062 = vmatprep.subr.mxu0 0.0
      %4063 = vmatpush1.msra.mxu0 %v1406
      %4064 = vmatprep.subr.mxu0 0.0
      %4065 = vmatpush1.msra.mxu0 %v1405
      %4066 = vmatprep.subr.mxu0 0.0
      %4067 = vmatpush2.msra.mxu0 0.0
      %4068 = vmatprep.subr.mxu0 0.0
      %4069 = vmatpush2.msra.mxu0 0.0
      %4070 = vmatprep.subr.mxu0 0.0
      %4071 = vmatpush2.msra.mxu0 0.0
      %4072 = vmatprep.subr.mxu0 0.0
      %4073 = vmatpush2.msra.mxu0 0.0
      %4074 = vmatprep.subr.mxu0 0.0
      %4075 = vmatpush2.msra.mxu0 0.0
      %4076 = vmatprep.subr.mxu0 0.0
      %4077 = vmatpush2.msra.mxu0 0.0
      %4078 = vmatprep.subr.mxu0 0.0
      %4079 = vmatpush2.msra.mxu0 0.0
      %4080 = vmatprep.subr.mxu0 0.0
      %4081 = vmatpush2.msra.mxu0 0.0
      %4082 = vmatprep.subr.mxu0 0.0
      %4083 = vmatpush2.msra.mxu0 0.0
      %4084 = vmatprep.subr.mxu0 0.0
      %4085 = vmatpush2.msra.mxu0 0.0
      %4086 = vmatprep.subr.mxu0 0.0
      %4087 = vmatpush2.msra.mxu0 0.0
      %4088 = vmatprep.subr.mxu0 0.0
      %4089 = vmatpush2.msra.mxu0 0.0
      %4090 = vmatprep.subr.mxu0 0.0
      %4091 = vmatpush2.msra.mxu0 0.0
      %4092 = vmatprep.subr.mxu0 0.0
      %4093 = vmatpush2.msra.mxu0 0.0
      %4094 = vmatprep.subr.mxu0 0.0
      %4095 = vmatpush2.msra.mxu0 0.0
      %4096 = vmatprep.subr.mxu0 0.0
      %4097 = vmatpush2.msra.mxu0 0.0
      %4098 = vmatprep.mubr.f32.mxu0 0.0
      %4099 = vmatmul.mubr.f32.gmra.mxu0 %v4032
      %v4100 = vpop.f32.mrf.mxu0
      %v4101 = vadd.f32 %v1409, %v4100
      %v4102 = vpop.f32.mrf.mxu0
      %4103 = vdwg.mxu0
      %vm4104 = vcmask 24576
      %4105 = vst.msk [vmem:[%s1318] sm:$0x1] %vm4104, %v4101
      %p4106 = scmp.lt.s32.totalorder %s93, 1
      %s4107 = scalar_select %p4106, %s93, 1
      %s4108 = smul.addr %s4107, 2
      %s4109 = scalar_lea.vmem %s79, %s4108
      %p4110 = scmp.lt.s32.totalorder %s93, 1
      %s4111 = scalar_select %p4110, %s93, 1
      %s4112 = scalar_lea.vmem %s81, %s4111
      // Predicated region
      $region177: #{_lambda_.3} parent=175 // pred_check
        %p4113 = pneg %p964
      $region178: #{_lambda_.3} parent=175 // pred_check_branch
        %4115 = sbr.rel (%p4113) target = $region180
      $region179: #{_lambda_.3} parent=175 // pred_region
        _
      $region180: #{_lambda_.3} parent=175 // pred_fallthru
        _
      // Predicated region
      $region181: #{_lambda_.3} parent=175 // pred_check
        %p4116 = pneg %p990
      $region182: #{_lambda_.3} parent=175 // pred_check_branch
        %4118 = sbr.rel (%p4116) target = $region184
      $region183: #{_lambda_.3} parent=175 // pred_region
        _
      $region184: #{_lambda_.3} parent=175 // pred_fallthru
        _
    $region176: #{_lambda_.3} parent=5 // pred_fallthru
      _
    %p4119 = scmp.le.s32.totalorder 2, %s88
    // Predicated region
    $region185: #{_lambda_.3} parent=5 // pred_check
      %p4120 = pneg %p4119
    $region186: #{_lambda_.3} parent=5 // pred_check_branch
      %4122 = sbr.rel (%p4120) target = $region188
    $region187: #{_lambda_.3} parent=5 // pred_region
      %s4123 = ssub.s32 %s88, 2
      // Predicated region
      $region189: #{_lambda_.3} parent=187 // pred_check
        %p4124 = pneg %p970
      $region190: #{_lambda_.3} parent=187 // pred_check_branch
        %4126 = sbr.rel (%p4124) target = $region192
      $region191: #{_lambda_.3} parent=187 // pred_region
        %p4127 = scmp.lt.s32.totalorder %s94, 1
        %s4128 = scalar_select %p4127, %s94, 1
        %s4129 = smul.addr %s4128, 2
        %s4130 = scalar_lea.vmem %s79, %s4129
      $region192: #{_lambda_.3} parent=187 // pred_fallthru
        _
      // Predicated region
      $region193: #{_lambda_.3} parent=187 // pred_check
        %p4131 = pneg %p996
      $region194: #{_lambda_.3} parent=187 // pred_check_branch
        %4133 = sbr.rel (%p4131) target = $region196
      $region195: #{_lambda_.3} parent=187 // pred_region
        %p4134 = scmp.lt.s32.totalorder %s94, 1
        %s4135 = scalar_select %p4134, %s94, 1
        %s4136 = scalar_lea.vmem %s81, %s4135
      $region196: #{_lambda_.3} parent=187 // pred_fallthru
        _
    $region188: #{_lambda_.3} parent=5 // pred_fallthru
      _
  $region6: #{_lambda_.3} parent=0 // loop_footer
    %s92 = sadd.s32 1, %s88
  $region7: #{_lambda_.3} parent=0 // loop_footer_branch
    %87 = sbr.rel target = $region3
  $region8: #{_lambda_.3} parent=0 // loop_exit
    _

</llo_original>
